<compile_context>
chip_gen: v5e
topology: v5e:2x2
jax: 0.10.0
libtpu: 0.0.40
codegen_flags: <defaults>
</compile_context>

<pallas_src>
import jax
import jax.numpy as jnp
import numpy as np
from jax.experimental import pallas as pl
from jax.experimental.pallas import tpu as pltpu

LANES = 128  # lane-dense padded output-channel width for the conv matmuls


# ----------------------------- Pallas kernels ------------------------------ #

def _conv_matmul_kernel(x_ref, w_ref, b_ref, o_ref):
    """One (TM, K) x (K, 128) tile: bf16 matmul, f32 accumulate, bias + ReLU."""
    acc = jnp.dot(x_ref[...], w_ref[...], preferred_element_type=jnp.float32)
    acc = jnp.maximum(acc + b_ref[...], 0.0)          # bias/ReLU in f32 on VPU
    o_ref[...] = acc.astype(o_ref.dtype)


def _pool_kernel(x_ref, o_ref):
    """2x2 / stride-2 max pool.  Input view: (R, 2, Wp, 2*C) where dim 1 is the
    H-parity (leading dim -> cheap integer index) and the W-parity is folded
    into the lane dim (so the W-pair max is two 128-aligned lane slices)."""
    hmax = jnp.maximum(x_ref[:, 0], x_ref[:, 1])       # (R, Wp, 2*C)
    c = o_ref.shape[-1]
    o_ref[...] = jnp.maximum(hmax[..., :c], hmax[..., c:])


def _fc_fused_kernel(x_ref, w1_ref, b1_ref, w2_ref, b2_ref, w3_ref, b3_ref,
                     o_ref):
    """fc1+ReLU -> fc2+ReLU -> fc3, fused; intermediates never leave VMEM/vregs."""
    h = jnp.dot(x_ref[...], w1_ref[...], preferred_element_type=jnp.float32)
    h = jnp.maximum(h + b1_ref[...], 0.0).astype(jnp.bfloat16)
    h = jnp.dot(h, w2_ref[...], preferred_element_type=jnp.float32)
    h = jnp.maximum(h + b2_ref[...], 0.0).astype(jnp.bfloat16)
    h = jnp.dot(h, w3_ref[...], preferred_element_type=jnp.float32)
    o_ref[...] = (h + b3_ref[...]).astype(o_ref.dtype)


# ------------------------------ Wrappers ------------------------------------ #

def _pick_tm(m, target=1024):
    """Largest divisor of m that is <= target and a multiple of 16 (bf16 sublane
    packing).  Falls back to a single block for small / awkward m."""
    if m <= target:
        return m
    t = (target // 16) * 16
    while t >= 16:
        if m % t == 0:
            return t
        t -= 16
    return m


def _largest_divisor(m, target):
    if m <= target:
        return m
    for t in range(target, 0, -1):
        if m % t == 0:
            return t
    return m


def conv_matmul_bias_relu(patches, w_pad, b_pad):
    """(M, K) bf16 patches @ (K, 128) bf16 weight + bias, ReLU -> (M, 128) bf16."""
    m, k = patches.shape
    tm = _pick_tm(m)
    return pl.pallas_call(
        _conv_matmul_kernel,
        out_shape=jax.ShapeDtypeStruct((m, LANES), jnp.bfloat16),
        grid=(m // tm,),
        in_specs=[
            pl.BlockSpec((tm, k), lambda i: (i, 0)),
            pl.BlockSpec((k, LANES), lambda i: (0, 0)),
            pl.BlockSpec((1, LANES), lambda i: (0, 0)),
        ],
        out_specs=pl.BlockSpec((tm, LANES), lambda i: (i, 0)),
        compiler_params=pltpu.CompilerParams(
            dimension_semantics=("parallel",)),
    )(patches.astype(jnp.bfloat16), w_pad, b_pad)


def max_pool_2x2(y_flat, n, h, w, c=LANES):
    """y_flat: (n*h*w, c) rows in (n, h, w) order -> (n, h//2, w//2, c)."""
    hp, wp = h // 2, w // 2
    r = n * hp
    xr = y_flat.reshape(r, 2, wp, 2 * c)       # contiguous -> free reshape
    tr = _largest_divisor(r, 256)
    out = pl.pallas_call(
        _pool_kernel,
        out_shape=jax.ShapeDtypeStruct((r, wp, c), y_flat.dtype),
        grid=(r // tr,),
        in_specs=[pl.BlockSpec((tr, 2, wp, 2 * c), lambda i: (i, 0, 0, 0))],
        out_specs=pl.BlockSpec((tr, wp, c), lambda i: (i, 0, 0)),
        compiler_params=pltpu.CompilerParams(
            dimension_semantics=("parallel",)),
    )(xr)
    return out.reshape(n, hp, wp, c)


def fc_fused(x, prep):
    m, k1 = x.shape
    h1 = prep["fc1_w"].shape[1]
    h2 = prep["fc2_w"].shape[1]
    no = prep["fc3_w"].shape[1]
    return pl.pallas_call(
        _fc_fused_kernel,
        out_shape=jax.ShapeDtypeStruct((m, no), jnp.float32),
        grid=(1,),
        in_specs=[
            pl.BlockSpec((m, k1), lambda i: (0, 0)),
            pl.BlockSpec((k1, h1), lambda i: (0, 0)),
            pl.BlockSpec((1, h1), lambda i: (0, 0)),
            pl.BlockSpec((h1, h2), lambda i: (0, 0)),
            pl.BlockSpec((1, h2), lambda i: (0, 0)),
            pl.BlockSpec((h2, no), lambda i: (0, 0)),
            pl.BlockSpec((1, no), lambda i: (0, 0)),
        ],
        out_specs=pl.BlockSpec((m, no), lambda i: (0, 0)),
    )(x.astype(jnp.bfloat16), prep["fc1_w"], prep["fc1_b"],
      prep["fc2_w"], prep["fc2_b"], prep["fc3_w"], prep["fc3_b"])


# ------------------------------ JAX glue ------------------------------------ #

def _im2col(x, kh, kw):
    """x: (N, H, W, C) -> (N*Ho*Wo, kh*kw*C) in tap-major (dy, dx, c) column
    order, matching the pre-reordered conv weights — no transpose needed."""
    n, h, w, c = x.shape
    ho, wo = h - kh + 1, w - kw + 1
    taps = [x[:, dy:dy + ho, dx:dx + wo, :]
            for dy in range(kh) for dx in range(kw)]
    p = jnp.stack(taps, axis=3)                      # (N, Ho, Wo, kh*kw, C)
    return p.reshape(n * ho * wo, kh * kw * c), (n, ho, wo)


def prepare_params(p):
    """One-time weight reordering / zero-padding / bf16 casting."""
    def conv_prep(w, b, in_pad=None):
        o, i, kh, kw = w.shape
        ip = i if in_pad is None else in_pad
        wt = jnp.transpose(w, (2, 3, 1, 0))                     # (kh,kw,i,o)
        wt = jnp.pad(wt, ((0, 0), (0, 0), (0, ip - i), (0, LANES - o)))
        wt = wt.reshape(kh * kw * ip, LANES).astype(jnp.bfloat16)
        bp = jnp.pad(b, (0, LANES - o)).astype(jnp.float32).reshape(1, LANES)
        return wt, bp

    # conv1 consumes the real 3-channel im2col; conv2 consumes the lane-dense
    # 128-channel pool1 output directly, so its input channels are zero-padded.
    c1w, c1b = conv_prep(p["conv1_w"], p["conv1_b"])
    c2w, c2b = conv_prep(p["conv2_w"], p["conv2_b"], in_pad=LANES)

    # fc1: PyTorch flattens NCHW (c, h, w); our features are the pool2 output
    # flattened as (h, w, c_pad128).  Permute + zero-pad the fc1 rows ONCE so
    # the forward pass needs only a free contiguous reshape before fc1.
    o1, k = p["fc1_w"].shape                     # (120, 400)
    c2_out = p["conv2_w"].shape[0]               # 16
    s = int(round(np.sqrt(k // c2_out)))         # 5
    w1 = p["fc1_w"].reshape(o1, c2_out, s, s).transpose(0, 2, 3, 1)
    w1 = jnp.pad(w1, ((0, 0), (0, 0), (0, 0), (0, LANES - c2_out)))
    w1 = w1.reshape(o1, s * s * LANES).T.astype(jnp.bfloat16)   # (3200, 120)

    return {
        "conv1_w": c1w, "conv1_b": c1b,
        "conv2_w": c2w, "conv2_b": c2b,
        "fc1_w": w1,
        "fc1_b": p["fc1_b"].reshape(1, -1).astype(jnp.float32),
        "fc2_w": p["fc2_w"].T.astype(jnp.bfloat16),
        "fc2_b": p["fc2_b"].reshape(1, -1).astype(jnp.float32),
        "fc3_w": p["fc3_w"].T.astype(jnp.bfloat16),
        "fc3_b": p["fc3_b"].reshape(1, -1).astype(jnp.float32),
    }


def convnet_forward(x_nchw, prep):
    x = jnp.transpose(x_nchw, (0, 2, 3, 1)).astype(jnp.bfloat16)   # NHWC bf16
    # conv1 + ReLU (lane-dense 128-channel output), pool
    p1, (n, h1, w1) = _im2col(x, 5, 5)                      # (N*28*28, 75)
    y1 = conv_matmul_bias_relu(p1, prep["conv1_w"], prep["conv1_b"])
    z1 = max_pool_2x2(y1, n, h1, w1)                        # (N,14,14,128)
    # conv2 + ReLU over the full lane-dense 128 channels (extra lanes are zero
    # and the padded weight rows are zero), pool
    p2, (n, h2, w2) = _im2col(z1, 5, 5)                     # (N*10*10, 3200)
    y2 = conv_matmul_bias_relu(p2, prep["conv2_w"], prep["conv2_b"])
    z2 = max_pool_2x2(y2, n, h2, w2)                        # (N,5,5,128)
    # Free contiguous flatten; fc1 rows were pre-permuted/padded to 3200.
    feat = z2.reshape(n, -1)                                # (N, 3200)
    return fc_fused(feat, prep)                             # (N, 10) f32


# Pure-JAX reference (no Pallas) for a sanity check.
def reference_forward(x_nchw, p):
    def conv(x, w, b):
        y = jax.lax.conv_general_dilated(
            x, w, (1, 1), "VALID", dimension_numbers=("NCHW", "OIHW", "NCHW"))
        return jax.nn.relu(y + b[None, :, None, None])

    def pool(x):
        return jax.lax.reduce_window(x, -jnp.inf, jax.lax.max,
                                     (1, 1, 2, 2), (1, 1, 2, 2), "VALID")

    x = pool(conv(x_nchw, p["conv1_w"], p["conv1_b"]))
    x = pool(conv(x, p["conv2_w"], p["conv2_b"]))
    x = x.reshape(x.shape[0], -1)
    x = jax.nn.relu(x @ p["fc1_w"].T + p["fc1_b"])
    x = jax.nn.relu(x @ p["fc2_w"].T + p["fc2_b"])
    return x @ p["fc3_w"].T + p["fc3_b"]


def init_params(key):
    def uni(k, shape, fan_in):
        bound = 1.0 / np.sqrt(fan_in)
        return jax.random.uniform(k, shape, jnp.float32, -bound, bound)

    ks = jax.random.split(key, 10)
    return {
        "conv1_w": uni(ks[0], (6, 3, 5, 5), 3 * 5 * 5),
        "conv1_b": uni(ks[1], (6,), 3 * 5 * 5),
        "conv2_w": uni(ks[2], (16, 6, 5, 5), 6 * 5 * 5),
        "conv2_b": uni(ks[3], (16,), 6 * 5 * 5),
        "fc1_w": uni(ks[4], (120, 16 * 5 * 5), 16 * 5 * 5),
        "fc1_b": uni(ks[5], (120,), 16 * 5 * 5),
        "fc2_w": uni(ks[6], (84, 120), 120),
        "fc2_b": uni(ks[7], (84,), 120),
        "fc3_w": uni(ks[8], (10, 84), 84),
        "fc3_b": uni(ks[9], (10,), 84),
    }


if __name__ == "__main__":
    key = jax.random.PRNGKey(0)
    k_x, k_p = jax.random.split(key)
    params = init_params(k_p)
    prep = prepare_params(params)          # one-time reorder / pad / bf16 cast
    # NCHW input, 32x32 spatial so that 16*5*5 = 400 features reach fc1.
    x = jax.random.normal(k_x, (2, 3, 32, 32), dtype=jnp.float32)

    out = jax.jit(convnet_forward)(x, prep)
    out = jax.block_until_ready(out)

    assert out.shape == (2, 10) and bool(jnp.all(jnp.isfinite(out)))
    ref = reference_forward(x, params)
    np.testing.assert_allclose(np.asarray(out), np.asarray(ref),
                               rtol=5e-2, atol=5e-2)
    print("KERNEL_OK")
</pallas_src>

<mosaic_0001>
module attributes {stable_mosaic.version = 11 : i64} {
  func.func @_conv_matmul_kernel(%arg0: i32, %arg1: memref<784x75xbf16, #tpu.memory_space<vmem>>, %arg2: memref<75x128xbf16, #tpu.memory_space<vmem>>, %arg3: memref<1x128xf32, #tpu.memory_space<vmem>>, %arg4: memref<784x128xbf16, #tpu.memory_space<vmem>>) attributes {dimension_semantics = [#tpu.dimension_semantics<parallel>], iteration_bounds = array<i64: 2>, scalar_prefetch = 0 : i64, scratch_operands = 0 : i64, tpu.core_type = #tpu.core_type<tc>, window_params = [{transform_indices = @transform_0, window_bounds = array<i64: 784, 75>}, {pipeline_mode = #tpu.pipeline_mode<synchronous>, transform_indices = @transform_1, window_bounds = array<i64: 75, 128>}, {pipeline_mode = #tpu.pipeline_mode<synchronous>, transform_indices = @transform_2, window_bounds = array<i64: 1, 128>}, {transform_indices = @transform_3, window_bounds = array<i64: 784, 128>}]} {
    %c0 = arith.constant 0 : index
    %c0_0 = arith.constant 0 : index
    %0 = vector.load %arg1[%c0, %c0_0] : memref<784x75xbf16, #tpu.memory_space<vmem>>, vector<784x75xbf16>
    %c0_1 = arith.constant 0 : index
    %c0_2 = arith.constant 0 : index
    %1 = vector.load %arg2[%c0_1, %c0_2] : memref<75x128xbf16, #tpu.memory_space<vmem>>, vector<75x128xbf16>
    %cst = arith.constant dense<0.000000e+00> : vector<784x128xf32>
    %2 = tpu.matmul %0, %1, %cst {dimension_numbers = #tpu.dot_dimension_numbers<[1], [0], [0], [1], [0, 0, 1, 1], [], []>} : vector<784x75xbf16>, vector<75x128xbf16>, vector<784x128xf32> -> vector<784x128xf32>
    %c0_3 = arith.constant 0 : index
    %c0_4 = arith.constant 0 : index
    %3 = vector.load %arg3[%c0_3, %c0_4] : memref<1x128xf32, #tpu.memory_space<vmem>>, vector<1x128xf32>
    %4 = vector.broadcast %3 : vector<1x128xf32> to vector<784x128xf32>
    %5 = arith.addf %2, %4 : vector<784x128xf32>
    %cst_5 = arith.constant 0.000000e+00 : f32
    %6 = vector.broadcast %cst_5 : f32 to vector<784x128xf32>
    %7 = arith.maximumf %5, %6 : vector<784x128xf32>
    %8 = arith.truncf %7 : vector<784x128xf32> to vector<784x128xbf16>
    %c0_6 = arith.constant 0 : index
    %c0_7 = arith.constant 0 : index
    %9 = vector.load %arg4[%c0_6, %c0_7] : memref<784x128xbf16, #tpu.memory_space<vmem>>, vector<784x128xbf16>
    tpu.vector_store %arg4[%c0_6, %c0_7], %8 {strides = array<i32>} : memref<784x128xbf16, #tpu.memory_space<vmem>>, vector<784x128xbf16>,
    return
  }
  func.func @transform_0(%arg0: i32) -> (i32, i32) {
    %c0_i32 = arith.constant 0 : i32
    %c0_i32_0 = arith.constant 0 : i32
    return %arg0, %c0_i32 : i32, i32
  }
  func.func @transform_1(%arg0: i32) -> (i32, i32) {
    %c0_i32 = arith.constant 0 : i32
    %c0_i32_0 = arith.constant 0 : i32
    %c0_i32_1 = arith.constant 0 : i32
    return %c0_i32, %c0_i32_0 : i32, i32
  }
  func.func @transform_2(%arg0: i32) -> (i32, i32) {
    %c0_i32 = arith.constant 0 : i32
    %c0_i32_0 = arith.constant 0 : i32
    %c0_i32_1 = arith.constant 0 : i32
    return %c0_i32, %c0_i32_0 : i32, i32
  }
  func.func @transform_3(%arg0: i32) -> (i32, i32) {
    %c0_i32 = arith.constant 0 : i32
    %c0_i32_0 = arith.constant 0 : i32
    return %arg0, %c0_i32 : i32, i32
  }
}

module attributes {stable_mosaic.version = 11 : i64} {
  func.func @_pool_kernel(%arg0: i32, %arg1: memref<28x2x14x256xbf16, #tpu.memory_space<vmem>>, %arg2: memref<28x14x128xbf16, #tpu.memory_space<vmem>>) attributes {dimension_semantics = [#tpu.dimension_semantics<parallel>], iteration_bounds = array<i64: 1>, scalar_prefetch = 0 : i64, scratch_operands = 0 : i64, tpu.core_type = #tpu.core_type<tc>, window_params = [{transform_indices = @transform_0, window_bounds = array<i64: 28, 2, 14, 256>}, {transform_indices = @transform_1, window_bounds = array<i64: 28, 14, 128>}]} {
    %c0 = arith.constant 0 : index
    %c0_0 = arith.constant 0 : index
    %c0_1 = arith.constant 0 : index
    %c0_2 = arith.constant 0 : index
    %0 = vector.load %arg1[%c0, %c0_0, %c0_1, %c0_2] : memref<28x2x14x256xbf16, #tpu.memory_space<vmem>>, vector<28x1x14x256xbf16>
    %1 = vector.shape_cast %0 : vector<28x1x14x256xbf16> to vector<28x14x256xbf16>
    %c0_3 = arith.constant 0 : index
    %c1 = arith.constant 1 : index
    %c0_4 = arith.constant 0 : index
    %c0_5 = arith.constant 0 : index
    %2 = vector.load %arg1[%c0_3, %c1, %c0_4, %c0_5] : memref<28x2x14x256xbf16, #tpu.memory_space<vmem>>, vector<28x1x14x256xbf16>
    %3 = vector.shape_cast %2 : vector<28x1x14x256xbf16> to vector<28x14x256xbf16>
    %4 = arith.maximumf %1, %3 : vector<28x14x256xbf16>
    %5 = vector.extract_strided_slice %4 {offsets = [0, 0, 0], sizes = [28, 14, 128], strides = [1, 1, 1]} : vector<28x14x256xbf16> to vector<28x14x128xbf16>
    %6 = vector.extract_strided_slice %4 {offsets = [0, 0, 128], sizes = [28, 14, 128], strides = [1, 1, 1]} : vector<28x14x256xbf16> to vector<28x14x128xbf16>
    %7 = arith.maximumf %5, %6 : vector<28x14x128xbf16>
    %c0_6 = arith.constant 0 : index
    %c0_7 = arith.constant 0 : index
    %c0_8 = arith.constant 0 : index
    %8 = vector.load %arg2[%c0_6, %c0_7, %c0_8] : memref<28x14x128xbf16, #tpu.memory_space<vmem>>, vector<28x14x128xbf16>
    tpu.vector_store %arg2[%c0_6, %c0_7, %c0_8], %7 {strides = array<i32>} : memref<28x14x128xbf16, #tpu.memory_space<vmem>>, vector<28x14x128xbf16>,
    return
  }
  func.func @transform_0(%arg0: i32) -> (i32, i32, i32, i32) {
    %c0_i32 = arith.constant 0 : i32
    %c0_i32_0 = arith.constant 0 : i32
    %c0_i32_1 = arith.constant 0 : i32
    %c0_i32_2 = arith.constant 0 : i32
    return %arg0, %c0_i32, %c0_i32_0, %c0_i32_1 : i32, i32, i32, i32
  }
  func.func @transform_1(%arg0: i32) -> (i32, i32, i32) {
    %c0_i32 = arith.constant 0 : i32
    %c0_i32_0 = arith.constant 0 : i32
    %c0_i32_1 = arith.constant 0 : i32
    return %arg0, %c0_i32, %c0_i32_0 : i32, i32, i32
  }
}

module attributes {stable_mosaic.version = 11 : i64} {
  func.func @_conv_matmul_kernel(%arg0: i32, %arg1: memref<200x3200xbf16, #tpu.memory_space<vmem>>, %arg2: memref<3200x128xbf16, #tpu.memory_space<vmem>>, %arg3: memref<1x128xf32, #tpu.memory_space<vmem>>, %arg4: memref<200x128xbf16, #tpu.memory_space<vmem>>) attributes {dimension_semantics = [#tpu.dimension_semantics<parallel>], iteration_bounds = array<i64: 1>, scalar_prefetch = 0 : i64, scratch_operands = 0 : i64, tpu.core_type = #tpu.core_type<tc>, window_params = [{transform_indices = @transform_0, window_bounds = array<i64: 200, 3200>}, {pipeline_mode = #tpu.pipeline_mode<synchronous>, transform_indices = @transform_1, window_bounds = array<i64: 3200, 128>}, {pipeline_mode = #tpu.pipeline_mode<synchronous>, transform_indices = @transform_2, window_bounds = array<i64: 1, 128>}, {transform_indices = @transform_3, window_bounds = array<i64: 200, 128>}]} {
    %c0 = arith.constant 0 : index
    %c0_0 = arith.constant 0 : index
    %0 = vector.load %arg1[%c0, %c0_0] : memref<200x3200xbf16, #tpu.memory_space<vmem>>, vector<200x3200xbf16>
    %c0_1 = arith.constant 0 : index
    %c0_2 = arith.constant 0 : index
    %1 = vector.load %arg2[%c0_1, %c0_2] : memref<3200x128xbf16, #tpu.memory_space<vmem>>, vector<3200x128xbf16>
    %cst = arith.constant dense<0.000000e+00> : vector<200x128xf32>
    %2 = tpu.matmul %0, %1, %cst {dimension_numbers = #tpu.dot_dimension_numbers<[1], [0], [0], [1], [0, 0, 1, 1], [], []>} : vector<200x3200xbf16>, vector<3200x128xbf16>, vector<200x128xf32> -> vector<200x128xf32>
    %c0_3 = arith.constant 0 : index
    %c0_4 = arith.constant 0 : index
    %3 = vector.load %arg3[%c0_3, %c0_4] : memref<1x128xf32, #tpu.memory_space<vmem>>, vector<1x128xf32>
    %4 = vector.broadcast %3 : vector<1x128xf32> to vector<200x128xf32>
    %5 = arith.addf %2, %4 : vector<200x128xf32>
    %cst_5 = arith.constant 0.000000e+00 : f32
    %6 = vector.broadcast %cst_5 : f32 to vector<200x128xf32>
    %7 = arith.maximumf %5, %6 : vector<200x128xf32>
    %8 = arith.truncf %7 : vector<200x128xf32> to vector<200x128xbf16>
    %c0_6 = arith.constant 0 : index
    %c0_7 = arith.constant 0 : index
    %9 = vector.load %arg4[%c0_6, %c0_7] : memref<200x128xbf16, #tpu.memory_space<vmem>>, vector<200x128xbf16>
    tpu.vector_store %arg4[%c0_6, %c0_7], %8 {strides = array<i32>} : memref<200x128xbf16, #tpu.memory_space<vmem>>, vector<200x128xbf16>,
    return
  }
  func.func @transform_0(%arg0: i32) -> (i32, i32) {
    %c0_i32 = arith.constant 0 : i32
    %c0_i32_0 = arith.constant 0 : i32
    return %arg0, %c0_i32 : i32, i32
  }
  func.func @transform_1(%arg0: i32) -> (i32, i32) {
    %c0_i32 = arith.constant 0 : i32
    %c0_i32_0 = arith.constant 0 : i32
    %c0_i32_1 = arith.constant 0 : i32
    return %c0_i32, %c0_i32_0 : i32, i32
  }
  func.func @transform_2(%arg0: i32) -> (i32, i32) {
    %c0_i32 = arith.constant 0 : i32
    %c0_i32_0 = arith.constant 0 : i32
    %c0_i32_1 = arith.constant 0 : i32
    return %c0_i32, %c0_i32_0 : i32, i32
  }
  func.func @transform_3(%arg0: i32) -> (i32, i32) {
    %c0_i32 = arith.constant 0 : i32
    %c0_i32_0 = arith.constant 0 : i32
    return %arg0, %c0_i32 : i32, i32
  }
}

module attributes {stable_mosaic.version = 11 : i64} {
  func.func @_pool_kernel(%arg0: i32, %arg1: memref<10x2x5x256xbf16, #tpu.memory_space<vmem>>, %arg2: memref<10x5x128xbf16, #tpu.memory_space<vmem>>) attributes {dimension_semantics = [#tpu.dimension_semantics<parallel>], iteration_bounds = array<i64: 1>, scalar_prefetch = 0 : i64, scratch_operands = 0 : i64, tpu.core_type = #tpu.core_type<tc>, window_params = [{transform_indices = @transform_0, window_bounds = array<i64: 10, 2, 5, 256>}, {transform_indices = @transform_1, window_bounds = array<i64: 10, 5, 128>}]} {
    %c0 = arith.constant 0 : index
    %c0_0 = arith.constant 0 : index
    %c0_1 = arith.constant 0 : index
    %c0_2 = arith.constant 0 : index
    %0 = vector.load %arg1[%c0, %c0_0, %c0_1, %c0_2] : memref<10x2x5x256xbf16, #tpu.memory_space<vmem>>, vector<10x1x5x256xbf16>
    %1 = vector.shape_cast %0 : vector<10x1x5x256xbf16> to vector<10x5x256xbf16>
    %c0_3 = arith.constant 0 : index
    %c1 = arith.constant 1 : index
    %c0_4 = arith.constant 0 : index
    %c0_5 = arith.constant 0 : index
    %2 = vector.load %arg1[%c0_3, %c1, %c0_4, %c0_5] : memref<10x2x5x256xbf16, #tpu.memory_space<vmem>>, vector<10x1x5x256xbf16>
    %3 = vector.shape_cast %2 : vector<10x1x5x256xbf16> to vector<10x5x256xbf16>
    %4 = arith.maximumf %1, %3 : vector<10x5x256xbf16>
    %5 = vector.extract_strided_slice %4 {offsets = [0, 0, 0], sizes = [10, 5, 128], strides = [1, 1, 1]} : vector<10x5x256xbf16> to vector<10x5x128xbf16>
    %6 = vector.extract_strided_slice %4 {offsets = [0, 0, 128], sizes = [10, 5, 128], strides = [1, 1, 1]} : vector<10x5x256xbf16> to vector<10x5x128xbf16>
    %7 = arith.maximumf %5, %6 : vector<10x5x128xbf16>
    %c0_6 = arith.constant 0 : index
    %c0_7 = arith.constant 0 : index
    %c0_8 = arith.constant 0 : index
    %8 = vector.load %arg2[%c0_6, %c0_7, %c0_8] : memref<10x5x128xbf16, #tpu.memory_space<vmem>>, vector<10x5x128xbf16>
    tpu.vector_store %arg2[%c0_6, %c0_7, %c0_8], %7 {strides = array<i32>} : memref<10x5x128xbf16, #tpu.memory_space<vmem>>, vector<10x5x128xbf16>,
    return
  }
  func.func @transform_0(%arg0: i32) -> (i32, i32, i32, i32) {
    %c0_i32 = arith.constant 0 : i32
    %c0_i32_0 = arith.constant 0 : i32
    %c0_i32_1 = arith.constant 0 : i32
    %c0_i32_2 = arith.constant 0 : i32
    return %arg0, %c0_i32, %c0_i32_0, %c0_i32_1 : i32, i32, i32, i32
  }
  func.func @transform_1(%arg0: i32) -> (i32, i32, i32) {
    %c0_i32 = arith.constant 0 : i32
    %c0_i32_0 = arith.constant 0 : i32
    %c0_i32_1 = arith.constant 0 : i32
    return %arg0, %c0_i32, %c0_i32_0 : i32, i32, i32
  }
}

module attributes {stable_mosaic.version = 11 : i64} {
  func.func @_fc_fused_kernel(%arg0: i32, %arg1: memref<2x3200xbf16, #tpu.memory_space<vmem>>, %arg2: memref<3200x120xbf16, #tpu.memory_space<vmem>>, %arg3: memref<1x120xf32, #tpu.memory_space<vmem>>, %arg4: memref<120x84xbf16, #tpu.memory_space<vmem>>, %arg5: memref<1x84xf32, #tpu.memory_space<vmem>>, %arg6: memref<84x10xbf16, #tpu.memory_space<vmem>>, %arg7: memref<1x10xf32, #tpu.memory_space<vmem>>, %arg8: memref<2x10xf32, #tpu.memory_space<vmem>>) attributes {dimension_semantics = [#tpu.dimension_semantics<arbitrary>], iteration_bounds = array<i64: 1>, scalar_prefetch = 0 : i64, scratch_operands = 0 : i64, tpu.core_type = #tpu.core_type<tc>, window_params = [{pipeline_mode = #tpu.pipeline_mode<synchronous>, transform_indices = @transform_0, window_bounds = array<i64: 2, 3200>}, {pipeline_mode = #tpu.pipeline_mode<synchronous>, transform_indices = @transform_1, window_bounds = array<i64: 3200, 120>}, {pipeline_mode = #tpu.pipeline_mode<synchronous>, transform_indices = @transform_2, window_bounds = array<i64: 1, 120>}, {pipeline_mode = #tpu.pipeline_mode<synchronous>, transform_indices = @transform_3, window_bounds = array<i64: 120, 84>}, {pipeline_mode = #tpu.pipeline_mode<synchronous>, transform_indices = @transform_4, window_bounds = array<i64: 1, 84>}, {pipeline_mode = #tpu.pipeline_mode<synchronous>, transform_indices = @transform_5, window_bounds = array<i64: 84, 10>}, {pipeline_mode = #tpu.pipeline_mode<synchronous>, transform_indices = @transform_6, window_bounds = array<i64: 1, 10>}, {pipeline_mode = #tpu.pipeline_mode<synchronous>, transform_indices = @transform_7, window_bounds = array<i64: 2, 10>}]} {
    %c0 = arith.constant 0 : index
    %c0_0 = arith.constant 0 : index
    %0 = vector.load %arg1[%c0, %c0_0] : memref<2x3200xbf16, #tpu.memory_space<vmem>>, vector<2x3200xbf16>
    %c0_1 = arith.constant 0 : index
    %c0_2 = arith.constant 0 : index
    %1 = vector.load %arg2[%c0_1, %c0_2] : memref<3200x120xbf16, #tpu.memory_space<vmem>>, vector<3200x120xbf16>
    %cst = arith.constant dense<0.000000e+00> : vector<2x120xf32>
    %2 = tpu.matmul %0, %1, %cst {dimension_numbers = #tpu.dot_dimension_numbers<[1], [0], [0], [1], [0, 0, 1, 1], [], []>} : vector<2x3200xbf16>, vector<3200x120xbf16>, vector<2x120xf32> -> vector<2x120xf32>
    %c0_3 = arith.constant 0 : index
    %c0_4 = arith.constant 0 : index
    %3 = vector.load %arg3[%c0_3, %c0_4] : memref<1x120xf32, #tpu.memory_space<vmem>>, vector<1x120xf32>
    %4 = vector.broadcast %3 : vector<1x120xf32> to vector<2x120xf32>
    %5 = arith.addf %2, %4 : vector<2x120xf32>
    %cst_5 = arith.constant 0.000000e+00 : f32
    %6 = vector.broadcast %cst_5 : f32 to vector<2x120xf32>
    %7 = arith.maximumf %5, %6 : vector<2x120xf32>
    %8 = arith.truncf %7 : vector<2x120xf32> to vector<2x120xbf16>
    %c0_6 = arith.constant 0 : index
    %c0_7 = arith.constant 0 : index
    %9 = vector.load %arg4[%c0_6, %c0_7] : memref<120x84xbf16, #tpu.memory_space<vmem>>, vector<120x84xbf16>
    %cst_8 = arith.constant dense<0.000000e+00> : vector<2x84xf32>
    %10 = tpu.matmul %8, %9, %cst_8 {dimension_numbers = #tpu.dot_dimension_numbers<[1], [0], [0], [1], [0, 0, 1, 1], [], []>} : vector<2x120xbf16>, vector<120x84xbf16>, vector<2x84xf32> -> vector<2x84xf32>
    %c0_9 = arith.constant 0 : index
    %c0_10 = arith.constant 0 : index
    %11 = vector.load %arg5[%c0_9, %c0_10] : memref<1x84xf32, #tpu.memory_space<vmem>>, vector<1x84xf32>
    %12 = vector.broadcast %11 : vector<1x84xf32> to vector<2x84xf32>
    %13 = arith.addf %10, %12 : vector<2x84xf32>
    %cst_11 = arith.constant 0.000000e+00 : f32
    %14 = vector.broadcast %cst_11 : f32 to vector<2x84xf32>
    %15 = arith.maximumf %13, %14 : vector<2x84xf32>
    %16 = arith.truncf %15 : vector<2x84xf32> to vector<2x84xbf16>
    %c0_12 = arith.constant 0 : index
    %c0_13 = arith.constant 0 : index
    %17 = vector.load %arg6[%c0_12, %c0_13] : memref<84x10xbf16, #tpu.memory_space<vmem>>, vector<84x10xbf16>
    %cst_14 = arith.constant dense<0.000000e+00> : vector<2x10xf32>
    %18 = tpu.matmul %16, %17, %cst_14 {dimension_numbers = #tpu.dot_dimension_numbers<[1], [0], [0], [1], [0, 0, 1, 1], [], []>} : vector<2x84xbf16>, vector<84x10xbf16>, vector<2x10xf32> -> vector<2x10xf32>
    %c0_15 = arith.constant 0 : index
    %c0_16 = arith.constant 0 : index
    %19 = vector.load %arg7[%c0_15, %c0_16] : memref<1x10xf32, #tpu.memory_space<vmem>>, vector<1x10xf32>
    %20 = vector.broadcast %19 : vector<1x10xf32> to vector<2x10xf32>
    %21 = arith.addf %18, %20 : vector<2x10xf32>
    %c0_17 = arith.constant 0 : index
    %c0_18 = arith.constant 0 : index
    %22 = vector.load %arg8[%c0_17, %c0_18] : memref<2x10xf32, #tpu.memory_space<vmem>>, vector<2x10xf32>
    tpu.vector_store %arg8[%c0_17, %c0_18], %21 {strides = array<i32>} : memref<2x10xf32, #tpu.memory_space<vmem>>, vector<2x10xf32>,
    return
  }
  func.func @transform_0(%arg0: i32) -> (i32, i32) {
    %c0_i32 = arith.constant 0 : i32
    %c0_i32_0 = arith.constant 0 : i32
    %c0_i32_1 = arith.constant 0 : i32
    return %c0_i32, %c0_i32_0 : i32, i32
  }
  func.func @transform_1(%arg0: i32) -> (i32, i32) {
    %c0_i32 = arith.constant 0 : i32
    %c0_i32_0 = arith.constant 0 : i32
    %c0_i32_1 = arith.constant 0 : i32
    return %c0_i32, %c0_i32_0 : i32, i32
  }
  func.func @transform_2(%arg0: i32) -> (i32, i32) {
    %c0_i32 = arith.constant 0 : i32
    %c0_i32_0 = arith.constant 0 : i32
    %c0_i32_1 = arith.constant 0 : i32
    return %c0_i32, %c0_i32_0 : i32, i32
  }
  func.func @transform_3(%arg0: i32) -> (i32, i32) {
    %c0_i32 = arith.constant 0 : i32
    %c0_i32_0 = arith.constant 0 : i32
    %c0_i32_1 = arith.constant 0 : i32
    return %c0_i32, %c0_i32_0 : i32, i32
  }
  func.func @transform_4(%arg0: i32) -> (i32, i32) {
    %c0_i32 = arith.constant 0 : i32
    %c0_i32_0 = arith.constant 0 : i32
    %c0_i32_1 = arith.constant 0 : i32
    return %c0_i32, %c0_i32_0 : i32, i32
  }
  func.func @transform_5(%arg0: i32) -> (i32, i32) {
    %c0_i32 = arith.constant 0 : i32
    %c0_i32_0 = arith.constant 0 : i32
    %c0_i32_1 = arith.constant 0 : i32
    return %c0_i32, %c0_i32_0 : i32, i32
  }
  func.func @transform_6(%arg0: i32) -> (i32, i32) {
    %c0_i32 = arith.constant 0 : i32
    %c0_i32_0 = arith.constant 0 : i32
    %c0_i32_1 = arith.constant 0 : i32
    return %c0_i32, %c0_i32_0 : i32, i32
  }
  func.func @transform_7(%arg0: i32) -> (i32, i32) {
    %c0_i32 = arith.constant 0 : i32
    %c0_i32_0 = arith.constant 0 : i32
    %c0_i32_1 = arith.constant 0 : i32
    return %c0_i32, %c0_i32_0 : i32, i32
  }
}

</mosaic_0001>

<llo_original>
// kernel: convnet_forward.5
$region0: #{convnet_forward.5}
  #allocation0 [shape = 'u32[]', space=smem, size = 0x4, offset = 0x4, fixed_abs, tag = 'smem constant byte address 0x4 - core index']
  #allocation1 [shape = 'u32[72,128]{1,0:T(1,128)}', space=vmem, size = 0x9000, scoped, tag = 'internal scratch']
  %s0 = inlined_call_operand.vmem [shape: bf16[1568,75], index: 0, kind: input, shape index: {}]
  %s1 = inlined_call_operand.vmem [shape: bf16[75,128], index: 1, kind: input, shape index: {}]
  %s2 = inlined_call_operand.vmem [shape: f32[1,128], index: 2, kind: input, shape index: {}]
  %s3 = inlined_call_operand.vmem [shape: bf16[1568,128], index: 3, kind: output, shape index: {}]
  %s4 = sld [smem:[#allocation0]]
  $region45: #{convnet_forward.5} parent=0
    _
  %s6 = ssub.s32 1, %s4
  %s7 = scalar_select 0, %s6, %s4
  loop: start=0, step=1, limit=4
  $region2: #{convnet_forward.5} parent=0 // loop_pre_header
    _
  $region3: #{convnet_forward.5} parent=0 // loop_header
    %s9 = sphi 0, %s13
    %p10 = scmp.ge.s32.totalorder %s9, 4
    %s19 = sphi 0, %s21
    %s22 = sphi 0, %s19
    %s23 = sphi 0, %s22
    %s39 = sphi 0, %s23
    %s43 = sphi 0, %s43
    %s45 = sphi 0, %s43
    %s46 = sphi 0, %s45
    %s60 = sphi 0, %s46
    %s64 = sphi 0, %s64
    %s66 = sphi 0, %s64
    %s67 = sphi 0, %s66
    %s81 = sphi 0, %s67
    %s87 = sphi 0, %s89
    %s90 = sphi 0, %s87
    %s91 = sphi 0, %s90
    %s107 = sphi 0, %s91
  $region4: #{convnet_forward.5} parent=0 // loop_header_branch
    %12 = sbr.rel (%p10) target = $region8
  $region5: #{convnet_forward.5} parent=0 // loop_body
    %s14 = ssub.s32 %s9, 1
    %s15 = ssub.s32 %s9, 2
    %s16 = sadd.s32 %s9, 1
    %s17 = ssub.s32 %s9, %s16
    %p18 = scmp.eq.s32.totalorder %s17, 0
    %s20 = sadd.s32 %s19, 1
    %s21 = scalar_select %p18, %s19, %s20
    %p24 = pneg %p18
    %p25 = scmp.eq.s32.totalorder %s9, 1
    %p26 = por %p24, %p25
    %p27 = scmp.ne.s32.totalorder %s19, %s22
    %p28 = scmp.eq.s32.totalorder %s9, 0
    %p29 = por %p27, %p28
    %p30 = scmp.ne.s32.totalorder %s19, %s22
    %p31 = scmp.eq.s32.totalorder %s14, 1
    %p32 = por %p30, %p31
    %p33 = scmp.ne.s32.totalorder %s22, %s23
    %p34 = scmp.eq.s32.totalorder %s14, 0
    %p35 = por %p33, %p34
    %p36 = scmp.ne.s32.totalorder %s22, %s23
    %p37 = scmp.eq.s32.totalorder %s15, 1
    %p38 = por %p36, %p37
    %p40 = scmp.ne.s32.totalorder %s23, %s39
    %p41 = scmp.eq.s32.totalorder %s15, 0
    %p42 = por %p40, %p41
    %s44 = sadd.s32 %s43, 1
    %p47 = scmp.eq.s32.totalorder %s9, 1
    %p48 = scmp.ne.s32.totalorder %s43, %s45
    %p49 = scmp.eq.s32.totalorder %s9, 0
    %p50 = por %p48, %p49
    %p51 = scmp.ne.s32.totalorder %s43, %s45
    %p52 = scmp.eq.s32.totalorder %s14, 1
    %p53 = por %p51, %p52
    %p54 = scmp.ne.s32.totalorder %s45, %s46
    %p55 = scmp.eq.s32.totalorder %s14, 0
    %p56 = por %p54, %p55
    %p57 = scmp.ne.s32.totalorder %s45, %s46
    %p58 = scmp.eq.s32.totalorder %s15, 1
    %p59 = por %p57, %p58
    %p61 = scmp.ne.s32.totalorder %s46, %s60
    %p62 = scmp.eq.s32.totalorder %s15, 0
    %p63 = por %p61, %p62
    %s65 = sadd.s32 %s64, 1
    %p68 = scmp.eq.s32.totalorder %s9, 1
    %p69 = scmp.ne.s32.totalorder %s64, %s66
    %p70 = scmp.eq.s32.totalorder %s9, 0
    %p71 = por %p69, %p70
    %p72 = scmp.ne.s32.totalorder %s64, %s66
    %p73 = scmp.eq.s32.totalorder %s14, 1
    %p74 = por %p72, %p73
    %p75 = scmp.ne.s32.totalorder %s66, %s67
    %p76 = scmp.eq.s32.totalorder %s14, 0
    %p77 = por %p75, %p76
    %p78 = scmp.ne.s32.totalorder %s66, %s67
    %p79 = scmp.eq.s32.totalorder %s15, 1
    %p80 = por %p78, %p79
    %p82 = scmp.ne.s32.totalorder %s67, %s81
    %p83 = scmp.eq.s32.totalorder %s15, 0
    %p84 = por %p82, %p83
    %s85 = ssub.s32 %s9, %s16
    %p86 = scmp.eq.s32.totalorder %s85, 0
    %s88 = sadd.s32 %s87, 1
    %s89 = scalar_select %p86, %s87, %s88
    %p92 = pneg %p86
    %p93 = scmp.eq.s32.totalorder %s9, 1
    %p94 = por %p92, %p93
    %p95 = scmp.ne.s32.totalorder %s87, %s90
    %p96 = scmp.eq.s32.totalorder %s9, 0
    %p97 = por %p95, %p96
    %p98 = scmp.ne.s32.totalorder %s87, %s90
    %p99 = scmp.eq.s32.totalorder %s14, 1
    %p100 = por %p98, %p99
    %p101 = scmp.ne.s32.totalorder %s90, %s91
    %p102 = scmp.eq.s32.totalorder %s14, 0
    %p103 = por %p101, %p102
    %p104 = scmp.ne.s32.totalorder %s90, %s91
    %p105 = scmp.eq.s32.totalorder %s15, 1
    %p106 = por %p104, %p105
    %p108 = scmp.ne.s32.totalorder %s91, %s107
    %p109 = scmp.eq.s32.totalorder %s15, 0
    %p110 = por %p108, %p109
    %p111 = scmp.le.s32.totalorder 1, %s9
    %p112 = scmp.lt.s32.totalorder %s9, 3
    %p113 = pnand %p111, %p112
    %p114 = pneg %p113
    // Predicated region
    $region9: #{convnet_forward.5} parent=5 // pred_check
      _
    $region10: #{convnet_forward.5} parent=5 // pred_check_branch
      %116 = sbr.rel (%p113) target = $region12
    $region11: #{convnet_forward.5} parent=5 // pred_region
      %s117 = ssub.s32 %s9, 1
      // Predicated region
      $region13: #{convnet_forward.5} parent=11 // pred_check
        %p118 = pneg %p56
      $region14: #{convnet_forward.5} parent=11 // pred_check_branch
        %120 = sbr.rel (%p118) target = $region16
      $region15: #{convnet_forward.5} parent=11 // pred_region
        _
      $region16: #{convnet_forward.5} parent=11 // pred_fallthru
        _
      // Predicated region
      $region17: #{convnet_forward.5} parent=11 // pred_check
        %p121 = pneg %p77
      $region18: #{convnet_forward.5} parent=11 // pred_check_branch
        %123 = sbr.rel (%p121) target = $region20
      $region19: #{convnet_forward.5} parent=11 // pred_region
        _
      $region20: #{convnet_forward.5} parent=11 // pred_fallthru
        _
    $region12: #{convnet_forward.5} parent=5 // pred_fallthru
      _
    %p124 = scmp.lt.s32.totalorder %s9, 2
    // Predicated region
    $region21: #{convnet_forward.5} parent=5 // pred_check
      %p125 = pneg %p124
    $region22: #{convnet_forward.5} parent=5 // pred_check_branch
      %127 = sbr.rel (%p125) target = $region24
    $region23: #{convnet_forward.5} parent=5 // pred_region
      // Predicated region
      $region25: #{convnet_forward.5} parent=23 // pred_check
        %p128 = pneg %p29
      $region26: #{convnet_forward.5} parent=23 // pred_check_branch
        %130 = sbr.rel (%p128) target = $region28
      $region27: #{convnet_forward.5} parent=23 // pred_region
        %s131 = smul.u32 98, %s9
        %p132 = scmp.lt.s32.totalorder %s131, 195
        %s133 = scalar_select %p132, %s131, 195
        %s134 = smul.addr %s133, 4
        %s135 = scalar_lea.vmem %s0, %s134
        %s136 = smul.u32 98, %s9
      $region28: #{convnet_forward.5} parent=23 // pred_fallthru
        _
    $region24: #{convnet_forward.5} parent=5 // pred_fallthru
      _
    %p137 = scmp.le.s32.totalorder 1, %s9
    %p138 = scmp.lt.s32.totalorder %s9, 3
    %p139 = pnand %p137, %p138
    %p140 = pneg %p139
    // Predicated region
    $region29: #{convnet_forward.5} parent=5 // pred_check
      _
    $region30: #{convnet_forward.5} parent=5 // pred_check_branch
      %142 = sbr.rel (%p139) target = $region32
    $region31: #{convnet_forward.5} parent=5 // pred_region
      %s143 = ssub.s32 %s9, 1
      %s144 = smul.u32 98, %s14
      %p145 = scmp.lt.s32.totalorder %s144, 195
      %s146 = scalar_select %p145, %s144, 195
      %s147 = smul.addr %s146, 4
      %s148 = scalar_lea.vmem %s0, %s147
      %p149 = pneg %p35
      %p150 = pneg %p32
      %p151 = pneg %p56
      %p152 = pneg %p53
      %p153 = pneg %p77
      %p154 = pneg %p74
      %p155 = pneg %p103
      %p156 = pneg %p100
      %s157 = smul.u32 98, %s14
      %p158 = scmp.lt.s32.totalorder %s157, 195
      %s159 = scalar_select %p158, %s157, 195
      %s160 = smul.addr %s159, 4
      %s161 = scalar_lea.vmem %s3, %s160
      %s162 = smul.u32 98, %s14
      %p163 = scmp.lt.s32.totalorder %s162, 195
      %s164 = scalar_select %p163, %s162, 195
      %s165 = smul.addr %s164, 4
      %s166 = scalar_lea.vmem %s0, %s165
      %s167 = smul.u32 98, %s14
      %s168 = smul.u32 98, %s14
      %p169 = scmp.lt.s32.totalorder %s168, 195
      %s170 = scalar_select %p169, %s168, 195
      %s171 = smul.addr %s170, 4
      %s172 = scalar_lea.vmem %s3, %s171
      %s173 = smul.u32 98, %s14
      %v175 = vld [vmem:[%s166] sm:$0xf]
      %v176 = vld [vmem:[%s166 + $0x4] sm:$0xf]
      %v177 = vld [vmem:[%s166 + $0x8] sm:$0xf]
      %v178 = vld [vmem:[%s166 + $0xc] sm:$0xf]
      %v179 = vld [vmem:[%s166 + $0x10] sm:$0xf]
      %v180 = vld [vmem:[%s166 + $0x14] sm:$0xf]
      %v181 = vld [vmem:[%s166 + $0x18] sm:$0xf]
      %v182 = vld [vmem:[%s166 + $0x1c] sm:$0xf]
      %v183 = vld [vmem:[%s166 + $0x20] sm:$0xf]
      %v184 = vld [vmem:[%s166 + $0x24] sm:$0xf]
      %v185 = vld [vmem:[%s166 + $0x28] sm:$0xf]
      %v186 = vld [vmem:[%s166 + $0x2c] sm:$0xf]
      %v187 = vld [vmem:[%s166 + $0x30] sm:$0xf]
      %v188 = vld [vmem:[%s166 + $0x34] sm:$0xf]
      %v189 = vld [vmem:[%s166 + $0x38] sm:$0xf]
      %v190 = vld [vmem:[%s166 + $0x3c] sm:$0xf]
      %v191 = vld [vmem:[%s166 + $0x40] sm:$0xf]
      %v192 = vld [vmem:[%s166 + $0x44] sm:$0xf]
      %v193 = vld [vmem:[%s166 + $0x48] sm:$0xf]
      %v194 = vld [vmem:[%s166 + $0x4c] sm:$0xf]
      %v195 = vld [vmem:[%s166 + $0x50] sm:$0xf]
      %v196 = vld [vmem:[%s166 + $0x54] sm:$0xf]
      %v197 = vld [vmem:[%s166 + $0x58] sm:$0xf]
      %v198 = vld [vmem:[%s166 + $0x5c] sm:$0xf]
      %v199 = vld [vmem:[%s166 + $0x60] sm:$0xf]
      %v200 = vld [vmem:[%s166 + $0x64] sm:$0xf]
      %v201 = vld [vmem:[%s166 + $0x68] sm:$0xf]
      %v202 = vld [vmem:[%s166 + $0x6c] sm:$0xf]
      %v203 = vld [vmem:[%s166 + $0x70] sm:$0xf]
      %v204 = vld [vmem:[%s166 + $0x74] sm:$0xf]
      %v205 = vld [vmem:[%s166 + $0x78] sm:$0xf]
      %v206 = vld [vmem:[%s166 + $0x7c] sm:$0xf]
      %v207 = vld [vmem:[%s166 + $0x80] sm:$0xf]
      %v208 = vld [vmem:[%s166 + $0x84] sm:$0xf]
      %v209 = vld [vmem:[%s166 + $0x88] sm:$0xf]
      %v210 = vld [vmem:[%s166 + $0x8c] sm:$0xf]
      %v211 = vld [vmem:[%s166 + $0x90] sm:$0xf]
      %v212 = vld [vmem:[%s166 + $0x94] sm:$0xf]
      %v213 = vld [vmem:[%s166 + $0x98] sm:$0xf]
      %v214 = vld [vmem:[%s166 + $0x9c] sm:$0xf]
      %v215 = vld [vmem:[%s166 + $0xa0] sm:$0xf]
      %v216 = vld [vmem:[%s166 + $0xa4] sm:$0xf]
      %v217 = vld [vmem:[%s166 + $0xa8] sm:$0xf]
      %v218 = vld [vmem:[%s166 + $0xac] sm:$0xf]
      %v219 = vld [vmem:[%s166 + $0xb0] sm:$0xf]
      %v220 = vld [vmem:[%s166 + $0xb4] sm:$0xf]
      %v221 = vld [vmem:[%s166 + $0xb8] sm:$0xf]
      %v222 = vld [vmem:[%s166 + $0xbc] sm:$0xf]
      %v223 = vld [vmem:[%s166 + $0xc0] sm:$0xf]
      %v224 = vld [vmem:[%s166 + $0xc4] sm:$0xf]
      %v225 = vld [vmem:[%s166 + $0xc8] sm:$0xf]
      %v226 = vld [vmem:[%s166 + $0xcc] sm:$0xf]
      %v227 = vld [vmem:[%s166 + $0xd0] sm:$0xf]
      %v228 = vld [vmem:[%s166 + $0xd4] sm:$0xf]
      %v229 = vld [vmem:[%s166 + $0xd8] sm:$0xf]
      %v230 = vld [vmem:[%s166 + $0xdc] sm:$0xf]
      %v231 = vld [vmem:[%s166 + $0xe0] sm:$0xf]
      %v232 = vld [vmem:[%s166 + $0xe4] sm:$0xf]
      %v233 = vld [vmem:[%s166 + $0xe8] sm:$0xf]
      %v234 = vld [vmem:[%s166 + $0xec] sm:$0xf]
      %v235 = vld [vmem:[%s166 + $0xf0] sm:$0xf]
      %v236 = vld [vmem:[%s166 + $0xf4] sm:$0xf]
      %v237 = vld [vmem:[%s166 + $0xf8] sm:$0xf]
      %v238 = vld [vmem:[%s166 + $0xfc] sm:$0xf]
      %v239 = vld [vmem:[%s166 + $0x100] sm:$0xf]
      %v240 = vld [vmem:[%s166 + $0x104] sm:$0xf]
      %v241 = vld [vmem:[%s166 + $0x108] sm:$0xf]
      %v242 = vld [vmem:[%s166 + $0x10c] sm:$0xf]
      %v243 = vld [vmem:[%s166 + $0x110] sm:$0xf]
      %v244 = vld [vmem:[%s166 + $0x114] sm:$0xf]
      %v245 = vld [vmem:[%s166 + $0x118] sm:$0xf]
      %v246 = vld [vmem:[%s166 + $0x11c] sm:$0xf]
      %v247 = vld [vmem:[%s166 + $0x120] sm:$0xf]
      %v248 = vld [vmem:[%s166 + $0x124] sm:$0xf]
      %v249 = vld [vmem:[%s166 + $0x128] sm:$0xf]
      %v250 = vld [vmem:[%s166 + $0x12c] sm:$0xf]
      %v251 = vld [vmem:[%s166 + $0x130] sm:$0xf]
      %v252 = vld [vmem:[%s166 + $0x134] sm:$0xf]
      %v253 = vld [vmem:[%s166 + $0x138] sm:$0xf]
      %v254 = vld [vmem:[%s166 + $0x13c] sm:$0xf]
      %v255 = vld [vmem:[%s166 + $0x140] sm:$0xf]
      %v256 = vld [vmem:[%s166 + $0x144] sm:$0xf]
      %v257 = vld [vmem:[%s166 + $0x148] sm:$0xf]
      %v258 = vld [vmem:[%s166 + $0x14c] sm:$0xf]
      %v259 = vld [vmem:[%s166 + $0x150] sm:$0xf]
      %v260 = vld [vmem:[%s166 + $0x154] sm:$0xf]
      %v261 = vld [vmem:[%s166 + $0x158] sm:$0xf]
      %v262 = vld [vmem:[%s166 + $0x15c] sm:$0xf]
      %v263 = vld [vmem:[%s166 + $0x160] sm:$0xf]
      %v264 = vld [vmem:[%s166 + $0x164] sm:$0xf]
      %v265 = vld [vmem:[%s166 + $0x168] sm:$0xf]
      %v266 = vld [vmem:[%s166 + $0x16c] sm:$0xf]
      %v267 = vld [vmem:[%s166 + $0x170] sm:$0xf]
      %v268 = vld [vmem:[%s166 + $0x174] sm:$0xf]
      %v269 = vld [vmem:[%s166 + $0x178] sm:$0xf]
      %v270 = vld [vmem:[%s166 + $0x17c] sm:$0xf]
      %v271 = vld [vmem:[%s166 + $0x180] sm:$0xf]
      %v272 = vld [vmem:[%s166 + $0x184] sm:$0xf]
      %v273 = vld [vmem:[%s1] sm:$0xf]
      %v274 = vld [vmem:[%s1 + $0x4] sm:$0xf]
      %v275 = vld [vmem:[%s1 + $0x8] sm:$0xf]
      %v276 = vld [vmem:[%s1 + $0xc] sm:$0xf]
      %v277 = vld [vmem:[%s1 + $0x10] sm:$0xf]
      %v278 = vld [vmem:[%s1 + $0x14] sm:$0xf]
      %v279 = vld [vmem:[%s1 + $0x18] sm:$0xf]
      %v280 = vld [vmem:[%s1 + $0x1c] sm:$0xf]
      %v281 = vld [vmem:[%s1 + $0x20] sm:$0xf]
      %v282 = vld [vmem:[%s1 + $0x24] sm:$0x3]
      %v283 = vld [vmem:[%s2] sm:$0x1]
      %v285 = vperm.slane %v283, 0
      %v385 = vunpack.c.l.b16 %v175
      %v386 = vunpack.c.l.b16 %v176
      %v387 = vunpack.c.l.b16 %v177
      %v388 = vunpack.c.l.b16 %v178
      %v389 = vunpack.c.l.b16 %v179
      %v390 = vunpack.c.l.b16 %v180
      %v391 = vunpack.c.l.b16 %v181
      %v392 = vunpack.c.l.b16 %v182
      %v393 = vunpack.c.l.b16 %v183
      %v394 = vunpack.c.l.b16 %v184
      %v395 = vunpack.c.l.b16 %v185
      %v396 = vunpack.c.l.b16 %v186
      %v397 = vunpack.c.l.b16 %v187
      %v398 = vunpack.c.l.b16 %v188
      %v399 = vunpack.c.l.b16 %v189
      %v400 = vunpack.c.l.b16 %v190
      %v401 = vunpack.c.l.b16 %v191
      %v402 = vunpack.c.l.b16 %v192
      %v403 = vunpack.c.l.b16 %v193
      %v404 = vunpack.c.l.b16 %v194
      %v405 = vunpack.c.l.b16 %v195
      %v406 = vunpack.c.l.b16 %v196
      %v407 = vunpack.c.l.b16 %v197
      %v408 = vunpack.c.l.b16 %v198
      %v409 = vunpack.c.l.b16 %v199
      %v410 = vunpack.c.l.b16 %v200
      %v411 = vunpack.c.l.b16 %v201
      %v412 = vunpack.c.l.b16 %v202
      %v413 = vunpack.c.l.b16 %v203
      %v414 = vunpack.c.l.b16 %v204
      %v415 = vunpack.c.l.b16 %v205
      %v416 = vunpack.c.l.b16 %v206
      %v417 = vunpack.c.l.b16 %v207
      %v418 = vunpack.c.l.b16 %v208
      %v419 = vunpack.c.l.b16 %v209
      %v420 = vunpack.c.l.b16 %v210
      %v421 = vunpack.c.l.b16 %v211
      %v422 = vunpack.c.l.b16 %v212
      %v423 = vunpack.c.l.b16 %v213
      %v424 = vunpack.c.l.b16 %v214
      %v425 = vunpack.c.l.b16 %v215
      %v426 = vunpack.c.l.b16 %v216
      %v427 = vunpack.c.l.b16 %v217
      %v428 = vunpack.c.l.b16 %v218
      %v429 = vunpack.c.l.b16 %v219
      %v430 = vunpack.c.l.b16 %v220
      %v431 = vunpack.c.l.b16 %v221
      %v432 = vunpack.c.l.b16 %v222
      %v433 = vunpack.c.l.b16 %v223
      %v434 = vunpack.c.l.b16 %v224
      %v435 = vunpack.c.l.b16 %v225
      %v436 = vunpack.c.l.b16 %v226
      %v437 = vunpack.c.l.b16 %v227
      %v438 = vunpack.c.l.b16 %v228
      %v439 = vunpack.c.l.b16 %v229
      %v440 = vunpack.c.l.b16 %v230
      %v441 = vunpack.c.l.b16 %v231
      %v442 = vunpack.c.l.b16 %v232
      %v443 = vunpack.c.l.b16 %v233
      %v444 = vunpack.c.l.b16 %v234
      %v445 = vunpack.c.l.b16 %v235
      %v446 = vunpack.c.l.b16 %v236
      %v447 = vunpack.c.l.b16 %v237
      %v448 = vunpack.c.l.b16 %v238
      %v449 = vunpack.c.l.b16 %v239
      %v450 = vunpack.c.l.b16 %v240
      %v451 = vunpack.c.l.b16 %v241
      %v452 = vunpack.c.l.b16 %v242
      %v453 = vunpack.c.l.b16 %v243
      %v454 = vunpack.c.l.b16 %v244
      %v455 = vunpack.c.l.b16 %v245
      %v456 = vunpack.c.l.b16 %v246
      %v457 = vunpack.c.l.b16 %v247
      %v458 = vunpack.c.l.b16 %v248
      %v459 = vunpack.c.l.b16 %v249
      %v460 = vunpack.c.l.b16 %v250
      %v461 = vunpack.c.l.b16 %v251
      %v462 = vunpack.c.l.b16 %v252
      %v463 = vunpack.c.l.b16 %v253
      %v464 = vunpack.c.l.b16 %v254
      %v465 = vunpack.c.l.b16 %v255
      %v466 = vunpack.c.l.b16 %v256
      %v467 = vunpack.c.l.b16 %v257
      %v468 = vunpack.c.l.b16 %v258
      %v469 = vunpack.c.l.b16 %v259
      %v470 = vunpack.c.l.b16 %v260
      %v471 = vunpack.c.l.b16 %v261
      %v472 = vunpack.c.l.b16 %v262
      %v473 = vunpack.c.l.b16 %v263
      %v474 = vunpack.c.l.b16 %v264
      %v475 = vunpack.c.l.b16 %v265
      %v476 = vunpack.c.l.b16 %v266
      %v477 = vunpack.c.l.b16 %v267
      %v478 = vunpack.c.l.b16 %v268
      %v479 = vunpack.c.l.b16 %v269
      %v480 = vunpack.c.l.b16 %v270
      %v481 = vunpack.c.l.b16 %v271
      %v482 = vunpack.c.l.b16 %v272
      %v483 = vpack.c.b16 %v386, %v385
      %v484 = vpack.c.b16 %v388, %v387
      %v485 = vpack.c.b16 %v390, %v389
      %v486 = vpack.c.b16 %v392, %v391
      %v487 = vpack.c.b16 %v394, %v393
      %v488 = vpack.c.b16 %v396, %v395
      %v489 = vpack.c.b16 %v398, %v397
      %v490 = vpack.c.b16 %v400, %v399
      %v491 = vpack.c.b16 %v402, %v401
      %v492 = vpack.c.b16 %v404, %v403
      %v493 = vpack.c.b16 %v406, %v405
      %v494 = vpack.c.b16 %v408, %v407
      %v495 = vpack.c.b16 %v410, %v409
      %v496 = vpack.c.b16 %v412, %v411
      %v497 = vpack.c.b16 %v414, %v413
      %v498 = vpack.c.b16 %v416, %v415
      %v499 = vpack.c.b16 %v418, %v417
      %v500 = vpack.c.b16 %v420, %v419
      %v501 = vpack.c.b16 %v422, %v421
      %v502 = vpack.c.b16 %v424, %v423
      %v503 = vpack.c.b16 %v426, %v425
      %v504 = vpack.c.b16 %v428, %v427
      %v505 = vpack.c.b16 %v430, %v429
      %v506 = vpack.c.b16 %v432, %v431
      %v507 = vpack.c.b16 %v434, %v433
      %v508 = vpack.c.b16 %v436, %v435
      %v509 = vpack.c.b16 %v438, %v437
      %v510 = vpack.c.b16 %v440, %v439
      %v511 = vpack.c.b16 %v442, %v441
      %v512 = vpack.c.b16 %v444, %v443
      %v513 = vpack.c.b16 %v446, %v445
      %v514 = vpack.c.b16 %v448, %v447
      %v515 = vpack.c.b16 %v450, %v449
      %v516 = vpack.c.b16 %v452, %v451
      %v517 = vpack.c.b16 %v454, %v453
      %v518 = vpack.c.b16 %v456, %v455
      %v519 = vpack.c.b16 %v458, %v457
      %v520 = vpack.c.b16 %v460, %v459
      %v521 = vpack.c.b16 %v462, %v461
      %v522 = vpack.c.b16 %v464, %v463
      %v523 = vpack.c.b16 %v466, %v465
      %v524 = vpack.c.b16 %v468, %v467
      %v525 = vpack.c.b16 %v470, %v469
      %v526 = vpack.c.b16 %v472, %v471
      %v527 = vpack.c.b16 %v474, %v473
      %v528 = vpack.c.b16 %v476, %v475
      %v529 = vpack.c.b16 %v478, %v477
      %v530 = vpack.c.b16 %v480, %v479
      %v531 = vpack.c.b16 %v482, %v481
      %v542 = vunpack.c.l.b16 %v273
      %v543 = vunpack.c.l.b16 %v274
      %v544 = vunpack.c.l.b16 %v275
      %v545 = vunpack.c.l.b16 %v276
      %v546 = vunpack.c.l.b16 %v277
      %v547 = vunpack.c.l.b16 %v278
      %v548 = vunpack.c.l.b16 %v279
      %v549 = vunpack.c.l.b16 %v280
      %v550 = vunpack.c.l.b16 %v281
      %v551 = vunpack.c.l.b16 %v282
      %v552 = vpack.c.b16 %v543, %v542
      %v553 = vpack.c.b16 %v545, %v544
      %v554 = vpack.c.b16 %v547, %v546
      %v555 = vpack.c.b16 %v549, %v548
      %v556 = vpack.c.b16 %v551, %v550
      %vm561 = vcmask 613376
      %v563 = vsel %vm561, %v483, 0
      %v566 = vsel %vm561, %v484, 0
      %v569 = vsel %vm561, %v485, 0
      %v572 = vsel %vm561, %v486, 0
      %v575 = vsel %vm561, %v487, 0
      %v578 = vsel %vm561, %v488, 0
      %v581 = vsel %vm561, %v489, 0
      %v584 = vsel %vm561, %v490, 0
      %v587 = vsel %vm561, %v491, 0
      %v590 = vsel %vm561, %v492, 0
      %v593 = vsel %vm561, %v493, 0
      %v596 = vsel %vm561, %v494, 0
      %v599 = vsel %vm561, %v495, 0
      %v602 = vsel %vm561, %v496, 0
      %v605 = vsel %vm561, %v497, 0
      %v608 = vsel %vm561, %v498, 0
      %v611 = vsel %vm561, %v499, 0
      %v614 = vsel %vm561, %v500, 0
      %v617 = vsel %vm561, %v501, 0
      %v620 = vsel %vm561, %v502, 0
      %v623 = vsel %vm561, %v503, 0
      %v626 = vsel %vm561, %v504, 0
      %v629 = vsel %vm561, %v505, 0
      %v632 = vsel %vm561, %v506, 0
      %v635 = vsel %vm561, %v507, 0
      %v638 = vsel %vm561, %v508, 0
      %v641 = vsel %vm561, %v509, 0
      %v644 = vsel %vm561, %v510, 0
      %v647 = vsel %vm561, %v511, 0
      %v650 = vsel %vm561, %v512, 0
      %v653 = vsel %vm561, %v513, 0
      %v656 = vsel %vm561, %v514, 0
      %v659 = vsel %vm561, %v515, 0
      %v662 = vsel %vm561, %v516, 0
      %v665 = vsel %vm561, %v517, 0
      %v668 = vsel %vm561, %v518, 0
      %v671 = vsel %vm561, %v519, 0
      %v674 = vsel %vm561, %v520, 0
      %v677 = vsel %vm561, %v521, 0
      %v680 = vsel %vm561, %v522, 0
      %v683 = vsel %vm561, %v523, 0
      %v686 = vsel %vm561, %v524, 0
      %v689 = vsel %vm561, %v525, 0
      %v692 = vsel %vm561, %v526, 0
      %v695 = vsel %vm561, %v527, 0
      %v698 = vsel %vm561, %v528, 0
      %v701 = vsel %vm561, %v529, 0
      %v704 = vsel %vm561, %v530, 0
      %v707 = vsel %vm561, %v531, 0
      %vm709 = vcmask 1044480
      %vm710 = vcmask 1045504
      %v711 = vsel %vm709, 4294967295, 65535
      %v712 = vsel %vm710, %v711, 0
      %v714 = vand.u32 %v556, %v712
      %716 = vmatpush.bf16.msra.mxu0 0
      %717 = vmatpush.bf16.msra.mxu0 0
      %718 = vmatpush.bf16.msra.mxu0 0
      %719 = vmatpush.bf16.msra.mxu0 %v714
      %720 = vmatpush.bf16.msra.mxu0 %v555
      %721 = vmatpush.bf16.msra.mxu0 %v554
      %722 = vmatpush.bf16.msra.mxu0 %v553
      %723 = vmatpush.bf16.msra.mxu0 %v552
      %724 = vmatmul.bf16.gmra.mxu0 %v563
      %v725 = vpop.f32.mrf.mxu0
      %v726 = vadd.f32 %v285, %v725
      %v727 = vpop.f32.mrf.mxu0
      %v728 = vadd.f32 %v285, %v727
      %729 = vmatmul.bf16.gmra.mxu0 %v566
      %v730 = vpop.f32.mrf.mxu0
      %v731 = vadd.f32 %v285, %v730
      %v732 = vpop.f32.mrf.mxu0
      %v733 = vadd.f32 %v285, %v732
      %734 = vmatmul.bf16.gmra.mxu0 %v569
      %v735 = vpop.f32.mrf.mxu0
      %v736 = vadd.f32 %v285, %v735
      %v737 = vpop.f32.mrf.mxu0
      %v738 = vadd.f32 %v285, %v737
      %739 = vmatmul.bf16.gmra.mxu0 %v572
      %v740 = vpop.f32.mrf.mxu0
      %v741 = vadd.f32 %v285, %v740
      %v742 = vpop.f32.mrf.mxu0
      %v743 = vadd.f32 %v285, %v742
      %744 = vmatmul.bf16.gmra.mxu0 %v575
      %v745 = vpop.f32.mrf.mxu0
      %v746 = vadd.f32 %v285, %v745
      %v747 = vpop.f32.mrf.mxu0
      %v748 = vadd.f32 %v285, %v747
      %749 = vmatmul.bf16.gmra.mxu0 %v578
      %v750 = vpop.f32.mrf.mxu0
      %v751 = vadd.f32 %v285, %v750
      %v752 = vpop.f32.mrf.mxu0
      %v753 = vadd.f32 %v285, %v752
      %754 = vmatmul.bf16.gmra.mxu0 %v581
      %v755 = vpop.f32.mrf.mxu0
      %v756 = vadd.f32 %v285, %v755
      %v757 = vpop.f32.mrf.mxu0
      %v758 = vadd.f32 %v285, %v757
      %759 = vmatmul.bf16.gmra.mxu0 %v584
      %v760 = vpop.f32.mrf.mxu0
      %v761 = vadd.f32 %v285, %v760
      %v762 = vpop.f32.mrf.mxu0
      %v763 = vadd.f32 %v285, %v762
      %764 = vmatmul.bf16.gmra.mxu0 %v587
      %v765 = vpop.f32.mrf.mxu0
      %v766 = vadd.f32 %v285, %v765
      %v767 = vpop.f32.mrf.mxu0
      %v768 = vadd.f32 %v285, %v767
      %769 = vmatmul.bf16.gmra.mxu0 %v590
      %v770 = vpop.f32.mrf.mxu0
      %v771 = vadd.f32 %v285, %v770
      %v772 = vpop.f32.mrf.mxu0
      %v773 = vadd.f32 %v285, %v772
      %774 = vmatmul.bf16.gmra.mxu0 %v593
      %v775 = vpop.f32.mrf.mxu0
      %v776 = vadd.f32 %v285, %v775
      %v777 = vpop.f32.mrf.mxu0
      %v778 = vadd.f32 %v285, %v777
      %779 = vmatmul.bf16.gmra.mxu0 %v596
      %v780 = vpop.f32.mrf.mxu0
      %v781 = vadd.f32 %v285, %v780
      %v782 = vpop.f32.mrf.mxu0
      %v783 = vadd.f32 %v285, %v782
      %784 = vmatmul.bf16.gmra.mxu0 %v599
      %v785 = vpop.f32.mrf.mxu0
      %v786 = vadd.f32 %v285, %v785
      %v787 = vpop.f32.mrf.mxu0
      %v788 = vadd.f32 %v285, %v787
      %789 = vmatmul.bf16.gmra.mxu0 %v602
      %v790 = vpop.f32.mrf.mxu0
      %v791 = vadd.f32 %v285, %v790
      %v792 = vpop.f32.mrf.mxu0
      %v793 = vadd.f32 %v285, %v792
      %794 = vmatmul.bf16.gmra.mxu0 %v605
      %v795 = vpop.f32.mrf.mxu0
      %v796 = vadd.f32 %v285, %v795
      %v797 = vpop.f32.mrf.mxu0
      %v798 = vadd.f32 %v285, %v797
      %799 = vmatmul.bf16.gmra.mxu0 %v608
      %v800 = vpop.f32.mrf.mxu0
      %v801 = vadd.f32 %v285, %v800
      %v802 = vpop.f32.mrf.mxu0
      %v803 = vadd.f32 %v285, %v802
      %804 = vmatmul.bf16.gmra.mxu0 %v611
      %v805 = vpop.f32.mrf.mxu0
      %v806 = vadd.f32 %v285, %v805
      %v807 = vpop.f32.mrf.mxu0
      %v808 = vadd.f32 %v285, %v807
      %809 = vmatmul.bf16.gmra.mxu0 %v614
      %v810 = vpop.f32.mrf.mxu0
      %v811 = vadd.f32 %v285, %v810
      %v812 = vpop.f32.mrf.mxu0
      %v813 = vadd.f32 %v285, %v812
      %814 = vmatmul.bf16.gmra.mxu0 %v617
      %v815 = vpop.f32.mrf.mxu0
      %v816 = vadd.f32 %v285, %v815
      %v817 = vpop.f32.mrf.mxu0
      %v818 = vadd.f32 %v285, %v817
      %819 = vmatmul.bf16.gmra.mxu0 %v620
      %v820 = vpop.f32.mrf.mxu0
      %v821 = vadd.f32 %v285, %v820
      %v822 = vpop.f32.mrf.mxu0
      %v823 = vadd.f32 %v285, %v822
      %824 = vmatmul.bf16.gmra.mxu0 %v623
      %v825 = vpop.f32.mrf.mxu0
      %v826 = vadd.f32 %v285, %v825
      %v827 = vpop.f32.mrf.mxu0
      %v828 = vadd.f32 %v285, %v827
      %829 = vmatmul.bf16.gmra.mxu0 %v626
      %v830 = vpop.f32.mrf.mxu0
      %v831 = vadd.f32 %v285, %v830
      %v832 = vpop.f32.mrf.mxu0
      %v833 = vadd.f32 %v285, %v832
      %834 = vmatmul.bf16.gmra.mxu0 %v629
      %v835 = vpop.f32.mrf.mxu0
      %v836 = vadd.f32 %v285, %v835
      %v837 = vpop.f32.mrf.mxu0
      %v838 = vadd.f32 %v285, %v837
      %839 = vmatmul.bf16.gmra.mxu0 %v632
      %v840 = vpop.f32.mrf.mxu0
      %v841 = vadd.f32 %v285, %v840
      %v842 = vpop.f32.mrf.mxu0
      %v843 = vadd.f32 %v285, %v842
      %844 = vmatmul.bf16.gmra.mxu0 %v635
      %v845 = vpop.f32.mrf.mxu0
      %v846 = vadd.f32 %v285, %v845
      %v847 = vpop.f32.mrf.mxu0
      %v848 = vadd.f32 %v285, %v847
      %849 = vmatmul.bf16.gmra.mxu0 %v638
      %v850 = vpop.f32.mrf.mxu0
      %v851 = vadd.f32 %v285, %v850
      %v852 = vpop.f32.mrf.mxu0
      %v853 = vadd.f32 %v285, %v852
      %854 = vmatmul.bf16.gmra.mxu0 %v641
      %v855 = vpop.f32.mrf.mxu0
      %v856 = vadd.f32 %v285, %v855
      %v857 = vpop.f32.mrf.mxu0
      %v858 = vadd.f32 %v285, %v857
      %859 = vmatmul.bf16.gmra.mxu0 %v644
      %v860 = vpop.f32.mrf.mxu0
      %v861 = vadd.f32 %v285, %v860
      %v862 = vpop.f32.mrf.mxu0
      %v863 = vadd.f32 %v285, %v862
      %864 = vmatmul.bf16.gmra.mxu0 %v647
      %v865 = vpop.f32.mrf.mxu0
      %v866 = vadd.f32 %v285, %v865
      %v867 = vpop.f32.mrf.mxu0
      %v868 = vadd.f32 %v285, %v867
      %869 = vmatmul.bf16.gmra.mxu0 %v650
      %v870 = vpop.f32.mrf.mxu0
      %v871 = vadd.f32 %v285, %v870
      %v872 = vpop.f32.mrf.mxu0
      %v873 = vadd.f32 %v285, %v872
      %874 = vmatmul.bf16.gmra.mxu0 %v653
      %v875 = vpop.f32.mrf.mxu0
      %v876 = vadd.f32 %v285, %v875
      %v877 = vpop.f32.mrf.mxu0
      %v878 = vadd.f32 %v285, %v877
      %879 = vmatmul.bf16.gmra.mxu0 %v656
      %v880 = vpop.f32.mrf.mxu0
      %v881 = vadd.f32 %v285, %v880
      %v882 = vpop.f32.mrf.mxu0
      %v883 = vadd.f32 %v285, %v882
      %884 = vmatmul.bf16.gmra.mxu0 %v659
      %v885 = vpop.f32.mrf.mxu0
      %v886 = vadd.f32 %v285, %v885
      %v887 = vpop.f32.mrf.mxu0
      %v888 = vadd.f32 %v285, %v887
      %889 = vmatmul.bf16.gmra.mxu0 %v662
      %v890 = vpop.f32.mrf.mxu0
      %v891 = vadd.f32 %v285, %v890
      %v892 = vpop.f32.mrf.mxu0
      %v893 = vadd.f32 %v285, %v892
      %894 = vmatmul.bf16.gmra.mxu0 %v665
      %v895 = vpop.f32.mrf.mxu0
      %v896 = vadd.f32 %v285, %v895
      %v897 = vpop.f32.mrf.mxu0
      %v898 = vadd.f32 %v285, %v897
      %899 = vmatmul.bf16.gmra.mxu0 %v668
      %v900 = vpop.f32.mrf.mxu0
      %v901 = vadd.f32 %v285, %v900
      %v902 = vpop.f32.mrf.mxu0
      %v903 = vadd.f32 %v285, %v902
      %904 = vmatmul.bf16.gmra.mxu0 %v671
      %v905 = vpop.f32.mrf.mxu0
      %v906 = vadd.f32 %v285, %v905
      %v907 = vpop.f32.mrf.mxu0
      %v908 = vadd.f32 %v285, %v907
      %909 = vmatmul.bf16.gmra.mxu0 %v674
      %v910 = vpop.f32.mrf.mxu0
      %v911 = vadd.f32 %v285, %v910
      %v912 = vpop.f32.mrf.mxu0
      %v913 = vadd.f32 %v285, %v912
      %914 = vmatmul.bf16.gmra.mxu0 %v677
      %v915 = vpop.f32.mrf.mxu0
      %v916 = vadd.f32 %v285, %v915
      %v917 = vpop.f32.mrf.mxu0
      %v918 = vadd.f32 %v285, %v917
      %919 = vmatmul.bf16.gmra.mxu0 %v680
      %v920 = vpop.f32.mrf.mxu0
      %v921 = vadd.f32 %v285, %v920
      %v922 = vpop.f32.mrf.mxu0
      %v923 = vadd.f32 %v285, %v922
      %924 = vmatmul.bf16.gmra.mxu0 %v683
      %v925 = vpop.f32.mrf.mxu0
      %v926 = vadd.f32 %v285, %v925
      %v927 = vpop.f32.mrf.mxu0
      %v928 = vadd.f32 %v285, %v927
      %929 = vmatmul.bf16.gmra.mxu0 %v686
      %v930 = vpop.f32.mrf.mxu0
      %v931 = vadd.f32 %v285, %v930
      %v932 = vpop.f32.mrf.mxu0
      %v933 = vadd.f32 %v285, %v932
      %934 = vmatmul.bf16.gmra.mxu0 %v689
      %v935 = vpop.f32.mrf.mxu0
      %v936 = vadd.f32 %v285, %v935
      %v937 = vpop.f32.mrf.mxu0
      %v938 = vadd.f32 %v285, %v937
      %939 = vmatmul.bf16.gmra.mxu0 %v692
      %v940 = vpop.f32.mrf.mxu0
      %v941 = vadd.f32 %v285, %v940
      %v942 = vpop.f32.mrf.mxu0
      %v943 = vadd.f32 %v285, %v942
      %944 = vmatmul.bf16.gmra.mxu0 %v695
      %v945 = vpop.f32.mrf.mxu0
      %v946 = vadd.f32 %v285, %v945
      %v947 = vpop.f32.mrf.mxu0
      %v948 = vadd.f32 %v285, %v947
      %949 = vmatmul.bf16.gmra.mxu0 %v698
      %v950 = vpop.f32.mrf.mxu0
      %v951 = vadd.f32 %v285, %v950
      %v952 = vpop.f32.mrf.mxu0
      %v953 = vadd.f32 %v285, %v952
      %954 = vmatmul.bf16.gmra.mxu0 %v701
      %v955 = vpop.f32.mrf.mxu0
      %v956 = vadd.f32 %v285, %v955
      %v957 = vpop.f32.mrf.mxu0
      %v958 = vadd.f32 %v285, %v957
      %959 = vmatmul.bf16.gmra.mxu0 %v704
      %v960 = vpop.f32.mrf.mxu0
      %v961 = vadd.f32 %v285, %v960
      %v962 = vpop.f32.mrf.mxu0
      %v963 = vadd.f32 %v285, %v962
      %964 = vmatmul.bf16.gmra.mxu0 %v707
      %v965 = vpop.f32.mrf.mxu0
      %v966 = vadd.f32 %v285, %v965
      %v967 = vpop.f32.mrf.mxu0
      %v968 = vadd.f32 %v285, %v967
      %969 = vdwg.mxu0
      %v970 = vmax.f32 %v726, 0.0
      %v971 = vmax.f32 %v728, 0.0
      %v972 = vmax.f32 %v731, 0.0
      %v973 = vmax.f32 %v733, 0.0
      %v974 = vmax.f32 %v736, 0.0
      %v975 = vmax.f32 %v738, 0.0
      %v976 = vmax.f32 %v741, 0.0
      %v977 = vmax.f32 %v743, 0.0
      %v978 = vmax.f32 %v746, 0.0
      %v979 = vmax.f32 %v748, 0.0
      %v980 = vmax.f32 %v751, 0.0
      %v981 = vmax.f32 %v753, 0.0
      %v982 = vmax.f32 %v756, 0.0
      %v983 = vmax.f32 %v758, 0.0
      %v984 = vmax.f32 %v761, 0.0
      %v985 = vmax.f32 %v763, 0.0
      %v986 = vmax.f32 %v766, 0.0
      %v987 = vmax.f32 %v768, 0.0
      %v988 = vmax.f32 %v771, 0.0
      %v989 = vmax.f32 %v773, 0.0
      %v990 = vmax.f32 %v776, 0.0
      %v991 = vmax.f32 %v778, 0.0
      %v992 = vmax.f32 %v781, 0.0
      %v993 = vmax.f32 %v783, 0.0
      %v994 = vmax.f32 %v786, 0.0
      %v995 = vmax.f32 %v788, 0.0
      %v996 = vmax.f32 %v791, 0.0
      %v997 = vmax.f32 %v793, 0.0
      %v998 = vmax.f32 %v796, 0.0
      %v999 = vmax.f32 %v798, 0.0
      %v1000 = vmax.f32 %v801, 0.0
      %v1001 = vmax.f32 %v803, 0.0
      %v1002 = vmax.f32 %v806, 0.0
      %v1003 = vmax.f32 %v808, 0.0
      %v1004 = vmax.f32 %v811, 0.0
      %v1005 = vmax.f32 %v813, 0.0
      %v1006 = vmax.f32 %v816, 0.0
      %v1007 = vmax.f32 %v818, 0.0
      %v1008 = vmax.f32 %v821, 0.0
      %v1009 = vmax.f32 %v823, 0.0
      %v1010 = vmax.f32 %v826, 0.0
      %v1011 = vmax.f32 %v828, 0.0
      %v1012 = vmax.f32 %v831, 0.0
      %v1013 = vmax.f32 %v833, 0.0
      %v1014 = vmax.f32 %v836, 0.0
      %v1015 = vmax.f32 %v838, 0.0
      %v1016 = vmax.f32 %v841, 0.0
      %v1017 = vmax.f32 %v843, 0.0
      %v1018 = vmax.f32 %v846, 0.0
      %v1019 = vmax.f32 %v848, 0.0
      %v1020 = vmax.f32 %v851, 0.0
      %v1021 = vmax.f32 %v853, 0.0
      %v1022 = vmax.f32 %v856, 0.0
      %v1023 = vmax.f32 %v858, 0.0
      %v1024 = vmax.f32 %v861, 0.0
      %v1025 = vmax.f32 %v863, 0.0
      %v1026 = vmax.f32 %v866, 0.0
      %v1027 = vmax.f32 %v868, 0.0
      %v1028 = vmax.f32 %v871, 0.0
      %v1029 = vmax.f32 %v873, 0.0
      %v1030 = vmax.f32 %v876, 0.0
      %v1031 = vmax.f32 %v878, 0.0
      %v1032 = vmax.f32 %v881, 0.0
      %v1033 = vmax.f32 %v883, 0.0
      %v1034 = vmax.f32 %v886, 0.0
      %v1035 = vmax.f32 %v888, 0.0
      %v1036 = vmax.f32 %v891, 0.0
      %v1037 = vmax.f32 %v893, 0.0
      %v1038 = vmax.f32 %v896, 0.0
      %v1039 = vmax.f32 %v898, 0.0
      %v1040 = vmax.f32 %v901, 0.0
      %v1041 = vmax.f32 %v903, 0.0
      %v1042 = vmax.f32 %v906, 0.0
      %v1043 = vmax.f32 %v908, 0.0
      %v1044 = vmax.f32 %v911, 0.0
      %v1045 = vmax.f32 %v913, 0.0
      %v1046 = vmax.f32 %v916, 0.0
      %v1047 = vmax.f32 %v918, 0.0
      %v1048 = vmax.f32 %v921, 0.0
      %v1049 = vmax.f32 %v923, 0.0
      %v1050 = vmax.f32 %v926, 0.0
      %v1051 = vmax.f32 %v928, 0.0
      %v1052 = vmax.f32 %v931, 0.0
      %v1053 = vmax.f32 %v933, 0.0
      %v1054 = vmax.f32 %v936, 0.0
      %v1055 = vmax.f32 %v938, 0.0
      %v1056 = vmax.f32 %v941, 0.0
      %v1057 = vmax.f32 %v943, 0.0
      %v1058 = vmax.f32 %v946, 0.0
      %v1059 = vmax.f32 %v948, 0.0
      %v1060 = vmax.f32 %v951, 0.0
      %v1061 = vmax.f32 %v953, 0.0
      %v1062 = vmax.f32 %v956, 0.0
      %v1063 = vmax.f32 %v958, 0.0
      %v1064 = vmax.f32 %v961, 0.0
      %v1065 = vmax.f32 %v963, 0.0
      %v1066 = vmax.f32 %v966, 0.0
      %v1067 = vmax.f32 %v968, 0.0
      %v1068 = vpack.c.bf16 %v970, %v970
      %v1069 = vpack.c.bf16 %v971, %v971
      %v1070 = vpack.c.bf16 %v972, %v972
      %v1071 = vpack.c.bf16 %v973, %v973
      %v1072 = vpack.c.bf16 %v974, %v974
      %v1073 = vpack.c.bf16 %v975, %v975
      %v1074 = vpack.c.bf16 %v976, %v976
      %v1075 = vpack.c.bf16 %v977, %v977
      %v1076 = vpack.c.bf16 %v978, %v978
      %v1077 = vpack.c.bf16 %v979, %v979
      %v1078 = vpack.c.bf16 %v980, %v980
      %v1079 = vpack.c.bf16 %v981, %v981
      %v1080 = vpack.c.bf16 %v982, %v982
      %v1081 = vpack.c.bf16 %v983, %v983
      %v1082 = vpack.c.bf16 %v984, %v984
      %v1083 = vpack.c.bf16 %v985, %v985
      %v1084 = vpack.c.bf16 %v986, %v986
      %v1085 = vpack.c.bf16 %v987, %v987
      %v1086 = vpack.c.bf16 %v988, %v988
      %v1087 = vpack.c.bf16 %v989, %v989
      %v1088 = vpack.c.bf16 %v990, %v990
      %v1089 = vpack.c.bf16 %v991, %v991
      %v1090 = vpack.c.bf16 %v992, %v992
      %v1091 = vpack.c.bf16 %v993, %v993
      %v1092 = vpack.c.bf16 %v994, %v994
      %v1093 = vpack.c.bf16 %v995, %v995
      %v1094 = vpack.c.bf16 %v996, %v996
      %v1095 = vpack.c.bf16 %v997, %v997
      %v1096 = vpack.c.bf16 %v998, %v998
      %v1097 = vpack.c.bf16 %v999, %v999
      %v1098 = vpack.c.bf16 %v1000, %v1000
      %v1099 = vpack.c.bf16 %v1001, %v1001
      %v1100 = vpack.c.bf16 %v1002, %v1002
      %v1101 = vpack.c.bf16 %v1003, %v1003
      %v1102 = vpack.c.bf16 %v1004, %v1004
      %v1103 = vpack.c.bf16 %v1005, %v1005
      %v1104 = vpack.c.bf16 %v1006, %v1006
      %v1105 = vpack.c.bf16 %v1007, %v1007
      %v1106 = vpack.c.bf16 %v1008, %v1008
      %v1107 = vpack.c.bf16 %v1009, %v1009
      %v1108 = vpack.c.bf16 %v1010, %v1010
      %v1109 = vpack.c.bf16 %v1011, %v1011
      %v1110 = vpack.c.bf16 %v1012, %v1012
      %v1111 = vpack.c.bf16 %v1013, %v1013
      %v1112 = vpack.c.bf16 %v1014, %v1014
      %v1113 = vpack.c.bf16 %v1015, %v1015
      %v1114 = vpack.c.bf16 %v1016, %v1016
      %v1115 = vpack.c.bf16 %v1017, %v1017
      %v1116 = vpack.c.bf16 %v1018, %v1018
      %v1117 = vpack.c.bf16 %v1019, %v1019
      %v1118 = vpack.c.bf16 %v1020, %v1020
      %v1119 = vpack.c.bf16 %v1021, %v1021
      %v1120 = vpack.c.bf16 %v1022, %v1022
      %v1121 = vpack.c.bf16 %v1023, %v1023
      %v1122 = vpack.c.bf16 %v1024, %v1024
      %v1123 = vpack.c.bf16 %v1025, %v1025
      %v1124 = vpack.c.bf16 %v1026, %v1026
      %v1125 = vpack.c.bf16 %v1027, %v1027
      %v1126 = vpack.c.bf16 %v1028, %v1028
      %v1127 = vpack.c.bf16 %v1029, %v1029
      %v1128 = vpack.c.bf16 %v1030, %v1030
      %v1129 = vpack.c.bf16 %v1031, %v1031
      %v1130 = vpack.c.bf16 %v1032, %v1032
      %v1131 = vpack.c.bf16 %v1033, %v1033
      %v1132 = vpack.c.bf16 %v1034, %v1034
      %v1133 = vpack.c.bf16 %v1035, %v1035
      %v1134 = vpack.c.bf16 %v1036, %v1036
      %v1135 = vpack.c.bf16 %v1037, %v1037
      %v1136 = vpack.c.bf16 %v1038, %v1038
      %v1137 = vpack.c.bf16 %v1039, %v1039
      %v1138 = vpack.c.bf16 %v1040, %v1040
      %v1139 = vpack.c.bf16 %v1041, %v1041
      %v1140 = vpack.c.bf16 %v1042, %v1042
      %v1141 = vpack.c.bf16 %v1043, %v1043
      %v1142 = vpack.c.bf16 %v1044, %v1044
      %v1143 = vpack.c.bf16 %v1045, %v1045
      %v1144 = vpack.c.bf16 %v1046, %v1046
      %v1145 = vpack.c.bf16 %v1047, %v1047
      %v1146 = vpack.c.bf16 %v1048, %v1048
      %v1147 = vpack.c.bf16 %v1049, %v1049
      %v1148 = vpack.c.bf16 %v1050, %v1050
      %v1149 = vpack.c.bf16 %v1051, %v1051
      %v1150 = vpack.c.bf16 %v1052, %v1052
      %v1151 = vpack.c.bf16 %v1053, %v1053
      %v1152 = vpack.c.bf16 %v1054, %v1054
      %v1153 = vpack.c.bf16 %v1055, %v1055
      %v1154 = vpack.c.bf16 %v1056, %v1056
      %v1155 = vpack.c.bf16 %v1057, %v1057
      %v1156 = vpack.c.bf16 %v1058, %v1058
      %v1157 = vpack.c.bf16 %v1059, %v1059
      %v1158 = vpack.c.bf16 %v1060, %v1060
      %v1159 = vpack.c.bf16 %v1061, %v1061
      %v1160 = vpack.c.bf16 %v1062, %v1062
      %v1161 = vpack.c.bf16 %v1063, %v1063
      %v1162 = vpack.c.bf16 %v1064, %v1064
      %v1163 = vpack.c.bf16 %v1065, %v1065
      %v1164 = vpack.c.bf16 %v1066, %v1066
      %v1165 = vpack.c.bf16 %v1067, %v1067
      %1166 = vst [vmem:[%s172] sm:$0xf] %v1068
      %1167 = vst [vmem:[%s172 + $0x4] sm:$0xf] %v1069
      %1168 = vst [vmem:[%s172 + $0x8] sm:$0xf] %v1070
      %1169 = vst [vmem:[%s172 + $0xc] sm:$0xf] %v1071
      %1170 = vst [vmem:[%s172 + $0x10] sm:$0xf] %v1072
      %1171 = vst [vmem:[%s172 + $0x14] sm:$0xf] %v1073
      %1172 = vst [vmem:[%s172 + $0x18] sm:$0xf] %v1074
      %1173 = vst [vmem:[%s172 + $0x1c] sm:$0xf] %v1075
      %1174 = vst [vmem:[%s172 + $0x20] sm:$0xf] %v1076
      %1175 = vst [vmem:[%s172 + $0x24] sm:$0xf] %v1077
      %1176 = vst [vmem:[%s172 + $0x28] sm:$0xf] %v1078
      %1177 = vst [vmem:[%s172 + $0x2c] sm:$0xf] %v1079
      %1178 = vst [vmem:[%s172 + $0x30] sm:$0xf] %v1080
      %1179 = vst [vmem:[%s172 + $0x34] sm:$0xf] %v1081
      %1180 = vst [vmem:[%s172 + $0x38] sm:$0xf] %v1082
      %1181 = vst [vmem:[%s172 + $0x3c] sm:$0xf] %v1083
      %1182 = vst [vmem:[%s172 + $0x40] sm:$0xf] %v1084
      %1183 = vst [vmem:[%s172 + $0x44] sm:$0xf] %v1085
      %1184 = vst [vmem:[%s172 + $0x48] sm:$0xf] %v1086
      %1185 = vst [vmem:[%s172 + $0x4c] sm:$0xf] %v1087
      %1186 = vst [vmem:[%s172 + $0x50] sm:$0xf] %v1088
      %1187 = vst [vmem:[%s172 + $0x54] sm:$0xf] %v1089
      %1188 = vst [vmem:[%s172 + $0x58] sm:$0xf] %v1090
      %1189 = vst [vmem:[%s172 + $0x5c] sm:$0xf] %v1091
      %1190 = vst [vmem:[%s172 + $0x60] sm:$0xf] %v1092
      %1191 = vst [vmem:[%s172 + $0x64] sm:$0xf] %v1093
      %1192 = vst [vmem:[%s172 + $0x68] sm:$0xf] %v1094
      %1193 = vst [vmem:[%s172 + $0x6c] sm:$0xf] %v1095
      %1194 = vst [vmem:[%s172 + $0x70] sm:$0xf] %v1096
      %1195 = vst [vmem:[%s172 + $0x74] sm:$0xf] %v1097
      %1196 = vst [vmem:[%s172 + $0x78] sm:$0xf] %v1098
      %1197 = vst [vmem:[%s172 + $0x7c] sm:$0xf] %v1099
      %1198 = vst [vmem:[%s172 + $0x80] sm:$0xf] %v1100
      %1199 = vst [vmem:[%s172 + $0x84] sm:$0xf] %v1101
      %1200 = vst [vmem:[%s172 + $0x88] sm:$0xf] %v1102
      %1201 = vst [vmem:[%s172 + $0x8c] sm:$0xf] %v1103
      %1202 = vst [vmem:[%s172 + $0x90] sm:$0xf] %v1104
      %1203 = vst [vmem:[%s172 + $0x94] sm:$0xf] %v1105
      %1204 = vst [vmem:[%s172 + $0x98] sm:$0xf] %v1106
      %1205 = vst [vmem:[%s172 + $0x9c] sm:$0xf] %v1107
      %1206 = vst [vmem:[%s172 + $0xa0] sm:$0xf] %v1108
      %1207 = vst [vmem:[%s172 + $0xa4] sm:$0xf] %v1109
      %1208 = vst [vmem:[%s172 + $0xa8] sm:$0xf] %v1110
      %1209 = vst [vmem:[%s172 + $0xac] sm:$0xf] %v1111
      %1210 = vst [vmem:[%s172 + $0xb0] sm:$0xf] %v1112
      %1211 = vst [vmem:[%s172 + $0xb4] sm:$0xf] %v1113
      %1212 = vst [vmem:[%s172 + $0xb8] sm:$0xf] %v1114
      %1213 = vst [vmem:[%s172 + $0xbc] sm:$0xf] %v1115
      %1214 = vst [vmem:[%s172 + $0xc0] sm:$0xf] %v1116
      %1215 = vst [vmem:[%s172 + $0xc4] sm:$0xf] %v1117
      %1216 = vst [vmem:[%s172 + $0xc8] sm:$0xf] %v1118
      %1217 = vst [vmem:[%s172 + $0xcc] sm:$0xf] %v1119
      %1218 = vst [vmem:[%s172 + $0xd0] sm:$0xf] %v1120
      %1219 = vst [vmem:[%s172 + $0xd4] sm:$0xf] %v1121
      %1220 = vst [vmem:[%s172 + $0xd8] sm:$0xf] %v1122
      %1221 = vst [vmem:[%s172 + $0xdc] sm:$0xf] %v1123
      %1222 = vst [vmem:[%s172 + $0xe0] sm:$0xf] %v1124
      %1223 = vst [vmem:[%s172 + $0xe4] sm:$0xf] %v1125
      %1224 = vst [vmem:[%s172 + $0xe8] sm:$0xf] %v1126
      %1225 = vst [vmem:[%s172 + $0xec] sm:$0xf] %v1127
      %1226 = vst [vmem:[%s172 + $0xf0] sm:$0xf] %v1128
      %1227 = vst [vmem:[%s172 + $0xf4] sm:$0xf] %v1129
      %1228 = vst [vmem:[%s172 + $0xf8] sm:$0xf] %v1130
      %1229 = vst [vmem:[%s172 + $0xfc] sm:$0xf] %v1131
      %1230 = vst [vmem:[%s172 + $0x100] sm:$0xf] %v1132
      %1231 = vst [vmem:[%s172 + $0x104] sm:$0xf] %v1133
      %1232 = vst [vmem:[%s172 + $0x108] sm:$0xf] %v1134
      %1233 = vst [vmem:[%s172 + $0x10c] sm:$0xf] %v1135
      %1234 = vst [vmem:[%s172 + $0x110] sm:$0xf] %v1136
      %1235 = vst [vmem:[%s172 + $0x114] sm:$0xf] %v1137
      %1236 = vst [vmem:[%s172 + $0x118] sm:$0xf] %v1138
      %1237 = vst [vmem:[%s172 + $0x11c] sm:$0xf] %v1139
      %1238 = vst [vmem:[%s172 + $0x120] sm:$0xf] %v1140
      %1239 = vst [vmem:[%s172 + $0x124] sm:$0xf] %v1141
      %1240 = vst [vmem:[%s172 + $0x128] sm:$0xf] %v1142
      %1241 = vst [vmem:[%s172 + $0x12c] sm:$0xf] %v1143
      %1242 = vst [vmem:[%s172 + $0x130] sm:$0xf] %v1144
      %1243 = vst [vmem:[%s172 + $0x134] sm:$0xf] %v1145
      %1244 = vst [vmem:[%s172 + $0x138] sm:$0xf] %v1146
      %1245 = vst [vmem:[%s172 + $0x13c] sm:$0xf] %v1147
      %1246 = vst [vmem:[%s172 + $0x140] sm:$0xf] %v1148
      %1247 = vst [vmem:[%s172 + $0x144] sm:$0xf] %v1149
      %1248 = vst [vmem:[%s172 + $0x148] sm:$0xf] %v1150
      %1249 = vst [vmem:[%s172 + $0x14c] sm:$0xf] %v1151
      %1250 = vst [vmem:[%s172 + $0x150] sm:$0xf] %v1152
      %1251 = vst [vmem:[%s172 + $0x154] sm:$0xf] %v1153
      %1252 = vst [vmem:[%s172 + $0x158] sm:$0xf] %v1154
      %1253 = vst [vmem:[%s172 + $0x15c] sm:$0xf] %v1155
      %1254 = vst [vmem:[%s172 + $0x160] sm:$0xf] %v1156
      %1255 = vst [vmem:[%s172 + $0x164] sm:$0xf] %v1157
      %1256 = vst [vmem:[%s172 + $0x168] sm:$0xf] %v1158
      %1257 = vst [vmem:[%s172 + $0x16c] sm:$0xf] %v1159
      %1258 = vst [vmem:[%s172 + $0x170] sm:$0xf] %v1160
      %1259 = vst [vmem:[%s172 + $0x174] sm:$0xf] %v1161
      %1260 = vst [vmem:[%s172 + $0x178] sm:$0xf] %v1162
      %1261 = vst [vmem:[%s172 + $0x17c] sm:$0xf] %v1163
      %1262 = vst [vmem:[%s172 + $0x180] sm:$0xf] %v1164
      %1263 = vst [vmem:[%s172 + $0x184] sm:$0xf] %v1165
      %s1264 = smul.u32 98, %s14
      %p1265 = scmp.lt.s32.totalorder %s1264, 195
      %s1266 = scalar_select %p1265, %s1264, 195
      %s1267 = smul.addr %s1266, 4
      %s1268 = scalar_lea.vmem %s3, %s1267
      // Predicated region
      $region33: #{convnet_forward.5} parent=31 // pred_check
        %p1269 = pneg %p100
      $region34: #{convnet_forward.5} parent=31 // pred_check_branch
        %1271 = sbr.rel (%p1269) target = $region36
      $region35: #{convnet_forward.5} parent=31 // pred_region
        %s1272 = smul.u32 98, %s14
      $region36: #{convnet_forward.5} parent=31 // pred_fallthru
        _
    $region32: #{convnet_forward.5} parent=5 // pred_fallthru
      _
    %p1273 = scmp.le.s32.totalorder 2, %s9
    // Predicated region
    $region37: #{convnet_forward.5} parent=5 // pred_check
      %p1274 = pneg %p1273
    $region38: #{convnet_forward.5} parent=5 // pred_check_branch
      %1276 = sbr.rel (%p1274) target = $region40
    $region39: #{convnet_forward.5} parent=5 // pred_region
      %s1277 = ssub.s32 %s9, 2
      // Predicated region
      $region41: #{convnet_forward.5} parent=39 // pred_check
        %p1278 = pneg %p106
      $region42: #{convnet_forward.5} parent=39 // pred_check_branch
        %1280 = sbr.rel (%p1278) target = $region44
      $region43: #{convnet_forward.5} parent=39 // pred_region
        %s1281 = smul.u32 98, %s15
        %p1282 = scmp.lt.s32.totalorder %s1281, 195
        %s1283 = scalar_select %p1282, %s1281, 195
        %s1284 = smul.addr %s1283, 4
        %s1285 = scalar_lea.vmem %s3, %s1284
      $region44: #{convnet_forward.5} parent=39 // pred_fallthru
        _
    $region40: #{convnet_forward.5} parent=5 // pred_fallthru
      _
  $region6: #{convnet_forward.5} parent=0 // loop_footer
    %s13 = sadd.s32 1, %s9
  $region7: #{convnet_forward.5} parent=0 // loop_footer_branch
    %8 = sbr.rel target = $region3
  $region8: #{convnet_forward.5} parent=0 // loop_exit
    _

// kernel: convnet_forward.6
$region0: #{convnet_forward.6}
  #allocation0 [shape = 'u32[]', space=smem, size = 0x4, offset = 0x4, fixed_abs, tag = 'smem constant byte address 0x4 - core index']
  #allocation1 [shape = 'u32[72,128]{1,0:T(1,128)}', space=vmem, size = 0x9000, scoped, tag = 'internal scratch']
  %s0 = inlined_call_operand.vmem [shape: bf16[28,2,14,256], index: 0, kind: input, shape index: {}]
  %s1 = inlined_call_operand.vmem [shape: bf16[28,14,128], index: 1, kind: output, shape index: {}]
  %s2 = sld [smem:[#allocation0]]
  $region14: #{convnet_forward.6} parent=0
    _
  %s4 = ssub.s32 1, %s2
  %s5 = scalar_select 0, %s4, %s2
  // Predicated region
  $region2: #{convnet_forward.6} parent=0 // pred_check
    _
  $region3: #{convnet_forward.6} parent=0 // pred_check_branch
    %7 = sbr.rel (0) target = $region5
  $region4: #{convnet_forward.6} parent=0 // pred_region
    _
  $region5: #{convnet_forward.6} parent=0 // pred_fallthru
    _
  %v8 = vld [vmem:[%s0] sm:$0xff]
  %v9 = vld [vmem:[%s0 + $0x8] sm:$0x77]
  %v10 = vld [vmem:[%s0 + $0x20] sm:$0xff]
  %v11 = vld [vmem:[%s0 + $0x28] sm:$0x77]
  %v12 = vld [vmem:[%s0 + $0x40] sm:$0xff]
  %v13 = vld [vmem:[%s0 + $0x48] sm:$0x77]
  %v14 = vld [vmem:[%s0 + $0x60] sm:$0xff]
  %v15 = vld [vmem:[%s0 + $0x68] sm:$0x77]
  %v16 = vld [vmem:[%s0 + $0x80] sm:$0xff]
  %v17 = vld [vmem:[%s0 + $0x88] sm:$0x77]
  %v18 = vld [vmem:[%s0 + $0xa0] sm:$0xff]
  %v19 = vld [vmem:[%s0 + $0xa8] sm:$0x77]
  %v20 = vld [vmem:[%s0 + $0xc0] sm:$0xff]
  %v21 = vld [vmem:[%s0 + $0xc8] sm:$0x77]
  %v22 = vld [vmem:[%s0 + $0xe0] sm:$0xff]
  %v23 = vld [vmem:[%s0 + $0xe8] sm:$0x77]
  %v24 = vld [vmem:[%s0 + $0x100] sm:$0xff]
  %v25 = vld [vmem:[%s0 + $0x108] sm:$0x77]
  %v26 = vld [vmem:[%s0 + $0x120] sm:$0xff]
  %v27 = vld [vmem:[%s0 + $0x128] sm:$0x77]
  %v28 = vld [vmem:[%s0 + $0x140] sm:$0xff]
  %v29 = vld [vmem:[%s0 + $0x148] sm:$0x77]
  %v30 = vld [vmem:[%s0 + $0x160] sm:$0xff]
  %v31 = vld [vmem:[%s0 + $0x168] sm:$0x77]
  %v32 = vld [vmem:[%s0 + $0x180] sm:$0xff]
  %v33 = vld [vmem:[%s0 + $0x188] sm:$0x77]
  %v34 = vld [vmem:[%s0 + $0x1a0] sm:$0xff]
  %v35 = vld [vmem:[%s0 + $0x1a8] sm:$0x77]
  %v36 = vld [vmem:[%s0 + $0x1c0] sm:$0xff]
  %v37 = vld [vmem:[%s0 + $0x1c8] sm:$0x77]
  %v38 = vld [vmem:[%s0 + $0x1e0] sm:$0xff]
  %v39 = vld [vmem:[%s0 + $0x1e8] sm:$0x77]
  %v40 = vld [vmem:[%s0 + $0x200] sm:$0xff]
  %v41 = vld [vmem:[%s0 + $0x208] sm:$0x77]
  %v42 = vld [vmem:[%s0 + $0x220] sm:$0xff]
  %v43 = vld [vmem:[%s0 + $0x228] sm:$0x77]
  %v44 = vld [vmem:[%s0 + $0x240] sm:$0xff]
  %v45 = vld [vmem:[%s0 + $0x248] sm:$0x77]
  %v46 = vld [vmem:[%s0 + $0x260] sm:$0xff]
  %v47 = vld [vmem:[%s0 + $0x268] sm:$0x77]
  %v48 = vld [vmem:[%s0 + $0x280] sm:$0xff]
  %v49 = vld [vmem:[%s0 + $0x288] sm:$0x77]
  %v50 = vld [vmem:[%s0 + $0x2a0] sm:$0xff]
  %v51 = vld [vmem:[%s0 + $0x2a8] sm:$0x77]
  %v52 = vld [vmem:[%s0 + $0x2c0] sm:$0xff]
  %v53 = vld [vmem:[%s0 + $0x2c8] sm:$0x77]
  %v54 = vld [vmem:[%s0 + $0x2e0] sm:$0xff]
  %v55 = vld [vmem:[%s0 + $0x2e8] sm:$0x77]
  %v56 = vld [vmem:[%s0 + $0x300] sm:$0xff]
  %v57 = vld [vmem:[%s0 + $0x308] sm:$0x77]
  %v58 = vld [vmem:[%s0 + $0x320] sm:$0xff]
  %v59 = vld [vmem:[%s0 + $0x328] sm:$0x77]
  %v60 = vld [vmem:[%s0 + $0x340] sm:$0xff]
  %v61 = vld [vmem:[%s0 + $0x348] sm:$0x77]
  %v62 = vld [vmem:[%s0 + $0x360] sm:$0xff]
  %v63 = vld [vmem:[%s0 + $0x368] sm:$0x77]
  %s64 = scalar_lea.vmem %s0, 16
  %v65 = vld [vmem:[%s64] sm:$0xff]
  %v66 = vld [vmem:[%s64 + $0x8] sm:$0x77]
  %v67 = vld [vmem:[%s64 + $0x20] sm:$0xff]
  %v68 = vld [vmem:[%s64 + $0x28] sm:$0x77]
  %v69 = vld [vmem:[%s64 + $0x40] sm:$0xff]
  %v70 = vld [vmem:[%s64 + $0x48] sm:$0x77]
  %v71 = vld [vmem:[%s64 + $0x60] sm:$0xff]
  %v72 = vld [vmem:[%s64 + $0x68] sm:$0x77]
  %v73 = vld [vmem:[%s64 + $0x80] sm:$0xff]
  %v74 = vld [vmem:[%s64 + $0x88] sm:$0x77]
  %v75 = vld [vmem:[%s64 + $0xa0] sm:$0xff]
  %v76 = vld [vmem:[%s64 + $0xa8] sm:$0x77]
  %v77 = vld [vmem:[%s64 + $0xc0] sm:$0xff]
  %v78 = vld [vmem:[%s64 + $0xc8] sm:$0x77]
  %v79 = vld [vmem:[%s64 + $0xe0] sm:$0xff]
  %v80 = vld [vmem:[%s64 + $0xe8] sm:$0x77]
  %v81 = vld [vmem:[%s64 + $0x100] sm:$0xff]
  %v82 = vld [vmem:[%s64 + $0x108] sm:$0x77]
  %v83 = vld [vmem:[%s64 + $0x120] sm:$0xff]
  %v84 = vld [vmem:[%s64 + $0x128] sm:$0x77]
  %v85 = vld [vmem:[%s64 + $0x140] sm:$0xff]
  %v86 = vld [vmem:[%s64 + $0x148] sm:$0x77]
  %v87 = vld [vmem:[%s64 + $0x160] sm:$0xff]
  %v88 = vld [vmem:[%s64 + $0x168] sm:$0x77]
  %v89 = vld [vmem:[%s64 + $0x180] sm:$0xff]
  %v90 = vld [vmem:[%s64 + $0x188] sm:$0x77]
  %v91 = vld [vmem:[%s64 + $0x1a0] sm:$0xff]
  %v92 = vld [vmem:[%s64 + $0x1a8] sm:$0x77]
  %v93 = vld [vmem:[%s64 + $0x1c0] sm:$0xff]
  %v94 = vld [vmem:[%s64 + $0x1c8] sm:$0x77]
  %v95 = vld [vmem:[%s64 + $0x1e0] sm:$0xff]
  %v96 = vld [vmem:[%s64 + $0x1e8] sm:$0x77]
  %v97 = vld [vmem:[%s64 + $0x200] sm:$0xff]
  %v98 = vld [vmem:[%s64 + $0x208] sm:$0x77]
  %v99 = vld [vmem:[%s64 + $0x220] sm:$0xff]
  %v100 = vld [vmem:[%s64 + $0x228] sm:$0x77]
  %v101 = vld [vmem:[%s64 + $0x240] sm:$0xff]
  %v102 = vld [vmem:[%s64 + $0x248] sm:$0x77]
  %v103 = vld [vmem:[%s64 + $0x260] sm:$0xff]
  %v104 = vld [vmem:[%s64 + $0x268] sm:$0x77]
  %v105 = vld [vmem:[%s64 + $0x280] sm:$0xff]
  %v106 = vld [vmem:[%s64 + $0x288] sm:$0x77]
  %v107 = vld [vmem:[%s64 + $0x2a0] sm:$0xff]
  %v108 = vld [vmem:[%s64 + $0x2a8] sm:$0x77]
  %v109 = vld [vmem:[%s64 + $0x2c0] sm:$0xff]
  %v110 = vld [vmem:[%s64 + $0x2c8] sm:$0x77]
  %v111 = vld [vmem:[%s64 + $0x2e0] sm:$0xff]
  %v112 = vld [vmem:[%s64 + $0x2e8] sm:$0x77]
  %v113 = vld [vmem:[%s64 + $0x300] sm:$0xff]
  %v114 = vld [vmem:[%s64 + $0x308] sm:$0x77]
  %v115 = vld [vmem:[%s64 + $0x320] sm:$0xff]
  %v116 = vld [vmem:[%s64 + $0x328] sm:$0x77]
  %v117 = vld [vmem:[%s64 + $0x340] sm:$0xff]
  %v118 = vld [vmem:[%s64 + $0x348] sm:$0x77]
  %v119 = vld [vmem:[%s64 + $0x360] sm:$0xff]
  %v120 = vld [vmem:[%s64 + $0x368] sm:$0x77]
  %v121 = vunpack.c.l.bf16 %v8
  %v122 = vunpack.c.h.bf16 %v8
  %v123 = vunpack.c.l.bf16 %v9
  %v124 = vunpack.c.h.bf16 %v9
  %v125 = vunpack.c.l.bf16 %v10
  %v126 = vunpack.c.h.bf16 %v10
  %v127 = vunpack.c.l.bf16 %v11
  %v128 = vunpack.c.h.bf16 %v11
  %v129 = vunpack.c.l.bf16 %v12
  %v130 = vunpack.c.h.bf16 %v12
  %v131 = vunpack.c.l.bf16 %v13
  %v132 = vunpack.c.h.bf16 %v13
  %v133 = vunpack.c.l.bf16 %v14
  %v134 = vunpack.c.h.bf16 %v14
  %v135 = vunpack.c.l.bf16 %v15
  %v136 = vunpack.c.h.bf16 %v15
  %v137 = vunpack.c.l.bf16 %v16
  %v138 = vunpack.c.h.bf16 %v16
  %v139 = vunpack.c.l.bf16 %v17
  %v140 = vunpack.c.h.bf16 %v17
  %v141 = vunpack.c.l.bf16 %v18
  %v142 = vunpack.c.h.bf16 %v18
  %v143 = vunpack.c.l.bf16 %v19
  %v144 = vunpack.c.h.bf16 %v19
  %v145 = vunpack.c.l.bf16 %v20
  %v146 = vunpack.c.h.bf16 %v20
  %v147 = vunpack.c.l.bf16 %v21
  %v148 = vunpack.c.h.bf16 %v21
  %v149 = vunpack.c.l.bf16 %v22
  %v150 = vunpack.c.h.bf16 %v22
  %v151 = vunpack.c.l.bf16 %v23
  %v152 = vunpack.c.h.bf16 %v23
  %v153 = vunpack.c.l.bf16 %v24
  %v154 = vunpack.c.h.bf16 %v24
  %v155 = vunpack.c.l.bf16 %v25
  %v156 = vunpack.c.h.bf16 %v25
  %v157 = vunpack.c.l.bf16 %v26
  %v158 = vunpack.c.h.bf16 %v26
  %v159 = vunpack.c.l.bf16 %v27
  %v160 = vunpack.c.h.bf16 %v27
  %v161 = vunpack.c.l.bf16 %v28
  %v162 = vunpack.c.h.bf16 %v28
  %v163 = vunpack.c.l.bf16 %v29
  %v164 = vunpack.c.h.bf16 %v29
  %v165 = vunpack.c.l.bf16 %v30
  %v166 = vunpack.c.h.bf16 %v30
  %v167 = vunpack.c.l.bf16 %v31
  %v168 = vunpack.c.h.bf16 %v31
  %v169 = vunpack.c.l.bf16 %v32
  %v170 = vunpack.c.h.bf16 %v32
  %v171 = vunpack.c.l.bf16 %v33
  %v172 = vunpack.c.h.bf16 %v33
  %v173 = vunpack.c.l.bf16 %v34
  %v174 = vunpack.c.h.bf16 %v34
  %v175 = vunpack.c.l.bf16 %v35
  %v176 = vunpack.c.h.bf16 %v35
  %v177 = vunpack.c.l.bf16 %v36
  %v178 = vunpack.c.h.bf16 %v36
  %v179 = vunpack.c.l.bf16 %v37
  %v180 = vunpack.c.h.bf16 %v37
  %v181 = vunpack.c.l.bf16 %v38
  %v182 = vunpack.c.h.bf16 %v38
  %v183 = vunpack.c.l.bf16 %v39
  %v184 = vunpack.c.h.bf16 %v39
  %v185 = vunpack.c.l.bf16 %v40
  %v186 = vunpack.c.h.bf16 %v40
  %v187 = vunpack.c.l.bf16 %v41
  %v188 = vunpack.c.h.bf16 %v41
  %v189 = vunpack.c.l.bf16 %v42
  %v190 = vunpack.c.h.bf16 %v42
  %v191 = vunpack.c.l.bf16 %v43
  %v192 = vunpack.c.h.bf16 %v43
  %v193 = vunpack.c.l.bf16 %v44
  %v194 = vunpack.c.h.bf16 %v44
  %v195 = vunpack.c.l.bf16 %v45
  %v196 = vunpack.c.h.bf16 %v45
  %v197 = vunpack.c.l.bf16 %v46
  %v198 = vunpack.c.h.bf16 %v46
  %v199 = vunpack.c.l.bf16 %v47
  %v200 = vunpack.c.h.bf16 %v47
  %v201 = vunpack.c.l.bf16 %v48
  %v202 = vunpack.c.h.bf16 %v48
  %v203 = vunpack.c.l.bf16 %v49
  %v204 = vunpack.c.h.bf16 %v49
  %v205 = vunpack.c.l.bf16 %v50
  %v206 = vunpack.c.h.bf16 %v50
  %v207 = vunpack.c.l.bf16 %v51
  %v208 = vunpack.c.h.bf16 %v51
  %v209 = vunpack.c.l.bf16 %v52
  %v210 = vunpack.c.h.bf16 %v52
  %v211 = vunpack.c.l.bf16 %v53
  %v212 = vunpack.c.h.bf16 %v53
  %v213 = vunpack.c.l.bf16 %v54
  %v214 = vunpack.c.h.bf16 %v54
  %v215 = vunpack.c.l.bf16 %v55
  %v216 = vunpack.c.h.bf16 %v55
  %v217 = vunpack.c.l.bf16 %v56
  %v218 = vunpack.c.h.bf16 %v56
  %v219 = vunpack.c.l.bf16 %v57
  %v220 = vunpack.c.h.bf16 %v57
  %v221 = vunpack.c.l.bf16 %v58
  %v222 = vunpack.c.h.bf16 %v58
  %v223 = vunpack.c.l.bf16 %v59
  %v224 = vunpack.c.h.bf16 %v59
  %v225 = vunpack.c.l.bf16 %v60
  %v226 = vunpack.c.h.bf16 %v60
  %v227 = vunpack.c.l.bf16 %v61
  %v228 = vunpack.c.h.bf16 %v61
  %v229 = vunpack.c.l.bf16 %v62
  %v230 = vunpack.c.h.bf16 %v62
  %v231 = vunpack.c.l.bf16 %v63
  %v232 = vunpack.c.h.bf16 %v63
  %v233 = vunpack.c.l.bf16 %v65
  %v234 = vunpack.c.h.bf16 %v65
  %v235 = vunpack.c.l.bf16 %v66
  %v236 = vunpack.c.h.bf16 %v66
  %v237 = vunpack.c.l.bf16 %v67
  %v238 = vunpack.c.h.bf16 %v67
  %v239 = vunpack.c.l.bf16 %v68
  %v240 = vunpack.c.h.bf16 %v68
  %v241 = vunpack.c.l.bf16 %v69
  %v242 = vunpack.c.h.bf16 %v69
  %v243 = vunpack.c.l.bf16 %v70
  %v244 = vunpack.c.h.bf16 %v70
  %v245 = vunpack.c.l.bf16 %v71
  %v246 = vunpack.c.h.bf16 %v71
  %v247 = vunpack.c.l.bf16 %v72
  %v248 = vunpack.c.h.bf16 %v72
  %v249 = vunpack.c.l.bf16 %v73
  %v250 = vunpack.c.h.bf16 %v73
  %v251 = vunpack.c.l.bf16 %v74
  %v252 = vunpack.c.h.bf16 %v74
  %v253 = vunpack.c.l.bf16 %v75
  %v254 = vunpack.c.h.bf16 %v75
  %v255 = vunpack.c.l.bf16 %v76
  %v256 = vunpack.c.h.bf16 %v76
  %v257 = vunpack.c.l.bf16 %v77
  %v258 = vunpack.c.h.bf16 %v77
  %v259 = vunpack.c.l.bf16 %v78
  %v260 = vunpack.c.h.bf16 %v78
  %v261 = vunpack.c.l.bf16 %v79
  %v262 = vunpack.c.h.bf16 %v79
  %v263 = vunpack.c.l.bf16 %v80
  %v264 = vunpack.c.h.bf16 %v80
  %v265 = vunpack.c.l.bf16 %v81
  %v266 = vunpack.c.h.bf16 %v81
  %v267 = vunpack.c.l.bf16 %v82
  %v268 = vunpack.c.h.bf16 %v82
  %v269 = vunpack.c.l.bf16 %v83
  %v270 = vunpack.c.h.bf16 %v83
  %v271 = vunpack.c.l.bf16 %v84
  %v272 = vunpack.c.h.bf16 %v84
  %v273 = vunpack.c.l.bf16 %v85
  %v274 = vunpack.c.h.bf16 %v85
  %v275 = vunpack.c.l.bf16 %v86
  %v276 = vunpack.c.h.bf16 %v86
  %v277 = vunpack.c.l.bf16 %v87
  %v278 = vunpack.c.h.bf16 %v87
  %v279 = vunpack.c.l.bf16 %v88
  %v280 = vunpack.c.h.bf16 %v88
  %v281 = vunpack.c.l.bf16 %v89
  %v282 = vunpack.c.h.bf16 %v89
  %v283 = vunpack.c.l.bf16 %v90
  %v284 = vunpack.c.h.bf16 %v90
  %v285 = vunpack.c.l.bf16 %v91
  %v286 = vunpack.c.h.bf16 %v91
  %v287 = vunpack.c.l.bf16 %v92
  %v288 = vunpack.c.h.bf16 %v92
  %v289 = vunpack.c.l.bf16 %v93
  %v290 = vunpack.c.h.bf16 %v93
  %v291 = vunpack.c.l.bf16 %v94
  %v292 = vunpack.c.h.bf16 %v94
  %v293 = vunpack.c.l.bf16 %v95
  %v294 = vunpack.c.h.bf16 %v95
  %v295 = vunpack.c.l.bf16 %v96
  %v296 = vunpack.c.h.bf16 %v96
  %v297 = vunpack.c.l.bf16 %v97
  %v298 = vunpack.c.h.bf16 %v97
  %v299 = vunpack.c.l.bf16 %v98
  %v300 = vunpack.c.h.bf16 %v98
  %v301 = vunpack.c.l.bf16 %v99
  %v302 = vunpack.c.h.bf16 %v99
  %v303 = vunpack.c.l.bf16 %v100
  %v304 = vunpack.c.h.bf16 %v100
  %v305 = vunpack.c.l.bf16 %v101
  %v306 = vunpack.c.h.bf16 %v101
  %v307 = vunpack.c.l.bf16 %v102
  %v308 = vunpack.c.h.bf16 %v102
  %v309 = vunpack.c.l.bf16 %v103
  %v310 = vunpack.c.h.bf16 %v103
  %v311 = vunpack.c.l.bf16 %v104
  %v312 = vunpack.c.h.bf16 %v104
  %v313 = vunpack.c.l.bf16 %v105
  %v314 = vunpack.c.h.bf16 %v105
  %v315 = vunpack.c.l.bf16 %v106
  %v316 = vunpack.c.h.bf16 %v106
  %v317 = vunpack.c.l.bf16 %v107
  %v318 = vunpack.c.h.bf16 %v107
  %v319 = vunpack.c.l.bf16 %v108
  %v320 = vunpack.c.h.bf16 %v108
  %v321 = vunpack.c.l.bf16 %v109
  %v322 = vunpack.c.h.bf16 %v109
  %v323 = vunpack.c.l.bf16 %v110
  %v324 = vunpack.c.h.bf16 %v110
  %v325 = vunpack.c.l.bf16 %v111
  %v326 = vunpack.c.h.bf16 %v111
  %v327 = vunpack.c.l.bf16 %v112
  %v328 = vunpack.c.h.bf16 %v112
  %v329 = vunpack.c.l.bf16 %v113
  %v330 = vunpack.c.h.bf16 %v113
  %v331 = vunpack.c.l.bf16 %v114
  %v332 = vunpack.c.h.bf16 %v114
  %v333 = vunpack.c.l.bf16 %v115
  %v334 = vunpack.c.h.bf16 %v115
  %v335 = vunpack.c.l.bf16 %v116
  %v336 = vunpack.c.h.bf16 %v116
  %v337 = vunpack.c.l.bf16 %v117
  %v338 = vunpack.c.h.bf16 %v117
  %v339 = vunpack.c.l.bf16 %v118
  %v340 = vunpack.c.h.bf16 %v118
  %v341 = vunpack.c.l.bf16 %v119
  %v342 = vunpack.c.h.bf16 %v119
  %v343 = vunpack.c.l.bf16 %v120
  %v344 = vunpack.c.h.bf16 %v120
  %v345 = vmax.f32 %v121, %v233
  %v346 = vmax.f32 %v122, %v234
  %v347 = vmax.f32 %v123, %v235
  %v348 = vmax.f32 %v124, %v236
  %v349 = vmax.f32 %v125, %v237
  %v350 = vmax.f32 %v126, %v238
  %v351 = vmax.f32 %v127, %v239
  %v352 = vmax.f32 %v128, %v240
  %v353 = vmax.f32 %v129, %v241
  %v354 = vmax.f32 %v130, %v242
  %v355 = vmax.f32 %v131, %v243
  %v356 = vmax.f32 %v132, %v244
  %v357 = vmax.f32 %v133, %v245
  %v358 = vmax.f32 %v134, %v246
  %v359 = vmax.f32 %v135, %v247
  %v360 = vmax.f32 %v136, %v248
  %v361 = vmax.f32 %v137, %v249
  %v362 = vmax.f32 %v138, %v250
  %v363 = vmax.f32 %v139, %v251
  %v364 = vmax.f32 %v140, %v252
  %v365 = vmax.f32 %v141, %v253
  %v366 = vmax.f32 %v142, %v254
  %v367 = vmax.f32 %v143, %v255
  %v368 = vmax.f32 %v144, %v256
  %v369 = vmax.f32 %v145, %v257
  %v370 = vmax.f32 %v146, %v258
  %v371 = vmax.f32 %v147, %v259
  %v372 = vmax.f32 %v148, %v260
  %v373 = vmax.f32 %v149, %v261
  %v374 = vmax.f32 %v150, %v262
  %v375 = vmax.f32 %v151, %v263
  %v376 = vmax.f32 %v152, %v264
  %v377 = vmax.f32 %v153, %v265
  %v378 = vmax.f32 %v154, %v266
  %v379 = vmax.f32 %v155, %v267
  %v380 = vmax.f32 %v156, %v268
  %v381 = vmax.f32 %v157, %v269
  %v382 = vmax.f32 %v158, %v270
  %v383 = vmax.f32 %v159, %v271
  %v384 = vmax.f32 %v160, %v272
  %v385 = vmax.f32 %v161, %v273
  %v386 = vmax.f32 %v162, %v274
  %v387 = vmax.f32 %v163, %v275
  %v388 = vmax.f32 %v164, %v276
  %v389 = vmax.f32 %v165, %v277
  %v390 = vmax.f32 %v166, %v278
  %v391 = vmax.f32 %v167, %v279
  %v392 = vmax.f32 %v168, %v280
  %v393 = vmax.f32 %v169, %v281
  %v394 = vmax.f32 %v170, %v282
  %v395 = vmax.f32 %v171, %v283
  %v396 = vmax.f32 %v172, %v284
  %v397 = vmax.f32 %v173, %v285
  %v398 = vmax.f32 %v174, %v286
  %v399 = vmax.f32 %v175, %v287
  %v400 = vmax.f32 %v176, %v288
  %v401 = vmax.f32 %v177, %v289
  %v402 = vmax.f32 %v178, %v290
  %v403 = vmax.f32 %v179, %v291
  %v404 = vmax.f32 %v180, %v292
  %v405 = vmax.f32 %v181, %v293
  %v406 = vmax.f32 %v182, %v294
  %v407 = vmax.f32 %v183, %v295
  %v408 = vmax.f32 %v184, %v296
  %v409 = vmax.f32 %v185, %v297
  %v410 = vmax.f32 %v186, %v298
  %v411 = vmax.f32 %v187, %v299
  %v412 = vmax.f32 %v188, %v300
  %v413 = vmax.f32 %v189, %v301
  %v414 = vmax.f32 %v190, %v302
  %v415 = vmax.f32 %v191, %v303
  %v416 = vmax.f32 %v192, %v304
  %v417 = vmax.f32 %v193, %v305
  %v418 = vmax.f32 %v194, %v306
  %v419 = vmax.f32 %v195, %v307
  %v420 = vmax.f32 %v196, %v308
  %v421 = vmax.f32 %v197, %v309
  %v422 = vmax.f32 %v198, %v310
  %v423 = vmax.f32 %v199, %v311
  %v424 = vmax.f32 %v200, %v312
  %v425 = vmax.f32 %v201, %v313
  %v426 = vmax.f32 %v202, %v314
  %v427 = vmax.f32 %v203, %v315
  %v428 = vmax.f32 %v204, %v316
  %v429 = vmax.f32 %v205, %v317
  %v430 = vmax.f32 %v206, %v318
  %v431 = vmax.f32 %v207, %v319
  %v432 = vmax.f32 %v208, %v320
  %v433 = vmax.f32 %v209, %v321
  %v434 = vmax.f32 %v210, %v322
  %v435 = vmax.f32 %v211, %v323
  %v436 = vmax.f32 %v212, %v324
  %v437 = vmax.f32 %v213, %v325
  %v438 = vmax.f32 %v214, %v326
  %v439 = vmax.f32 %v215, %v327
  %v440 = vmax.f32 %v216, %v328
  %v441 = vmax.f32 %v217, %v329
  %v442 = vmax.f32 %v218, %v330
  %v443 = vmax.f32 %v219, %v331
  %v444 = vmax.f32 %v220, %v332
  %v445 = vmax.f32 %v221, %v333
  %v446 = vmax.f32 %v222, %v334
  %v447 = vmax.f32 %v223, %v335
  %v448 = vmax.f32 %v224, %v336
  %v449 = vmax.f32 %v225, %v337
  %v450 = vmax.f32 %v226, %v338
  %v451 = vmax.f32 %v227, %v339
  %v452 = vmax.f32 %v228, %v340
  %v453 = vmax.f32 %v229, %v341
  %v454 = vmax.f32 %v230, %v342
  %v455 = vmax.f32 %v231, %v343
  %v456 = vmax.f32 %v232, %v344
  %v457 = vpack.c.bf16 %v346, %v345
  %v458 = vpack.c.bf16 %v348, %v347
  %v459 = vpack.c.bf16 %v350, %v349
  %v460 = vpack.c.bf16 %v352, %v351
  %v461 = vpack.c.bf16 %v354, %v353
  %v462 = vpack.c.bf16 %v356, %v355
  %v463 = vpack.c.bf16 %v358, %v357
  %v464 = vpack.c.bf16 %v360, %v359
  %v465 = vpack.c.bf16 %v362, %v361
  %v466 = vpack.c.bf16 %v364, %v363
  %v467 = vpack.c.bf16 %v366, %v365
  %v468 = vpack.c.bf16 %v368, %v367
  %v469 = vpack.c.bf16 %v370, %v369
  %v470 = vpack.c.bf16 %v372, %v371
  %v471 = vpack.c.bf16 %v374, %v373
  %v472 = vpack.c.bf16 %v376, %v375
  %v473 = vpack.c.bf16 %v378, %v377
  %v474 = vpack.c.bf16 %v380, %v379
  %v475 = vpack.c.bf16 %v382, %v381
  %v476 = vpack.c.bf16 %v384, %v383
  %v477 = vpack.c.bf16 %v386, %v385
  %v478 = vpack.c.bf16 %v388, %v387
  %v479 = vpack.c.bf16 %v390, %v389
  %v480 = vpack.c.bf16 %v392, %v391
  %v481 = vpack.c.bf16 %v394, %v393
  %v482 = vpack.c.bf16 %v396, %v395
  %v483 = vpack.c.bf16 %v398, %v397
  %v484 = vpack.c.bf16 %v400, %v399
  %v485 = vpack.c.bf16 %v402, %v401
  %v486 = vpack.c.bf16 %v404, %v403
  %v487 = vpack.c.bf16 %v406, %v405
  %v488 = vpack.c.bf16 %v408, %v407
  %v489 = vpack.c.bf16 %v410, %v409
  %v490 = vpack.c.bf16 %v412, %v411
  %v491 = vpack.c.bf16 %v414, %v413
  %v492 = vpack.c.bf16 %v416, %v415
  %v493 = vpack.c.bf16 %v418, %v417
  %v494 = vpack.c.bf16 %v420, %v419
  %v495 = vpack.c.bf16 %v422, %v421
  %v496 = vpack.c.bf16 %v424, %v423
  %v497 = vpack.c.bf16 %v426, %v425
  %v498 = vpack.c.bf16 %v428, %v427
  %v499 = vpack.c.bf16 %v430, %v429
  %v500 = vpack.c.bf16 %v432, %v431
  %v501 = vpack.c.bf16 %v434, %v433
  %v502 = vpack.c.bf16 %v436, %v435
  %v503 = vpack.c.bf16 %v438, %v437
  %v504 = vpack.c.bf16 %v440, %v439
  %v505 = vpack.c.bf16 %v442, %v441
  %v506 = vpack.c.bf16 %v444, %v443
  %v507 = vpack.c.bf16 %v446, %v445
  %v508 = vpack.c.bf16 %v448, %v447
  %v509 = vpack.c.bf16 %v450, %v449
  %v510 = vpack.c.bf16 %v452, %v451
  %v511 = vpack.c.bf16 %v454, %v453
  %v512 = vpack.c.bf16 %v456, %v455
  %v513 = vunpack.c.l.bf16 %v457
  %v514 = vunpack.c.l.bf16 %v458
  %v515 = vunpack.c.l.bf16 %v459
  %v516 = vunpack.c.l.bf16 %v460
  %v517 = vunpack.c.l.bf16 %v461
  %v518 = vunpack.c.l.bf16 %v462
  %v519 = vunpack.c.l.bf16 %v463
  %v520 = vunpack.c.l.bf16 %v464
  %v521 = vunpack.c.l.bf16 %v465
  %v522 = vunpack.c.l.bf16 %v466
  %v523 = vunpack.c.l.bf16 %v467
  %v524 = vunpack.c.l.bf16 %v468
  %v525 = vunpack.c.l.bf16 %v469
  %v526 = vunpack.c.l.bf16 %v470
  %v527 = vunpack.c.l.bf16 %v471
  %v528 = vunpack.c.l.bf16 %v472
  %v529 = vunpack.c.l.bf16 %v473
  %v530 = vunpack.c.l.bf16 %v474
  %v531 = vunpack.c.l.bf16 %v475
  %v532 = vunpack.c.l.bf16 %v476
  %v533 = vunpack.c.l.bf16 %v477
  %v534 = vunpack.c.l.bf16 %v478
  %v535 = vunpack.c.l.bf16 %v479
  %v536 = vunpack.c.l.bf16 %v480
  %v537 = vunpack.c.l.bf16 %v481
  %v538 = vunpack.c.l.bf16 %v482
  %v539 = vunpack.c.l.bf16 %v483
  %v540 = vunpack.c.l.bf16 %v484
  %v541 = vunpack.c.l.bf16 %v485
  %v542 = vunpack.c.l.bf16 %v486
  %v543 = vunpack.c.l.bf16 %v487
  %v544 = vunpack.c.l.bf16 %v488
  %v545 = vunpack.c.l.bf16 %v489
  %v546 = vunpack.c.l.bf16 %v490
  %v547 = vunpack.c.l.bf16 %v491
  %v548 = vunpack.c.l.bf16 %v492
  %v549 = vunpack.c.l.bf16 %v493
  %v550 = vunpack.c.l.bf16 %v494
  %v551 = vunpack.c.l.bf16 %v495
  %v552 = vunpack.c.l.bf16 %v496
  %v553 = vunpack.c.l.bf16 %v497
  %v554 = vunpack.c.l.bf16 %v498
  %v555 = vunpack.c.l.bf16 %v499
  %v556 = vunpack.c.l.bf16 %v500
  %v557 = vunpack.c.l.bf16 %v501
  %v558 = vunpack.c.l.bf16 %v502
  %v559 = vunpack.c.l.bf16 %v503
  %v560 = vunpack.c.l.bf16 %v504
  %v561 = vunpack.c.l.bf16 %v505
  %v562 = vunpack.c.l.bf16 %v506
  %v563 = vunpack.c.l.bf16 %v507
  %v564 = vunpack.c.l.bf16 %v508
  %v565 = vunpack.c.l.bf16 %v509
  %v566 = vunpack.c.l.bf16 %v510
  %v567 = vunpack.c.l.bf16 %v511
  %v568 = vunpack.c.l.bf16 %v512
  %v625 = vrot.slane %v457, 4
  %v626 = vrot.slane %v458, 4
  %v627 = vrot.slane %v459, 4
  %v628 = vrot.slane %v460, 4
  %v629 = vrot.slane %v461, 4
  %v630 = vrot.slane %v462, 4
  %v631 = vrot.slane %v463, 4
  %v632 = vrot.slane %v464, 4
  %v633 = vrot.slane %v465, 4
  %v634 = vrot.slane %v466, 4
  %v635 = vrot.slane %v467, 4
  %v636 = vrot.slane %v468, 4
  %v637 = vrot.slane %v469, 4
  %v638 = vrot.slane %v470, 4
  %v639 = vrot.slane %v471, 4
  %v640 = vrot.slane %v472, 4
  %v641 = vrot.slane %v473, 4
  %v642 = vrot.slane %v474, 4
  %v643 = vrot.slane %v475, 4
  %v644 = vrot.slane %v476, 4
  %v645 = vrot.slane %v477, 4
  %v646 = vrot.slane %v478, 4
  %v647 = vrot.slane %v479, 4
  %v648 = vrot.slane %v480, 4
  %v649 = vrot.slane %v481, 4
  %v650 = vrot.slane %v482, 4
  %v651 = vrot.slane %v483, 4
  %v652 = vrot.slane %v484, 4
  %v653 = vrot.slane %v485, 4
  %v654 = vrot.slane %v486, 4
  %v655 = vrot.slane %v487, 4
  %v656 = vrot.slane %v488, 4
  %v657 = vrot.slane %v489, 4
  %v658 = vrot.slane %v490, 4
  %v659 = vrot.slane %v491, 4
  %v660 = vrot.slane %v492, 4
  %v661 = vrot.slane %v493, 4
  %v662 = vrot.slane %v494, 4
  %v663 = vrot.slane %v495, 4
  %v664 = vrot.slane %v496, 4
  %v665 = vrot.slane %v497, 4
  %v666 = vrot.slane %v498, 4
  %v667 = vrot.slane %v499, 4
  %v668 = vrot.slane %v500, 4
  %v669 = vrot.slane %v501, 4
  %v670 = vrot.slane %v502, 4
  %v671 = vrot.slane %v503, 4
  %v672 = vrot.slane %v504, 4
  %v673 = vrot.slane %v505, 4
  %v674 = vrot.slane %v506, 4
  %v675 = vrot.slane %v507, 4
  %v676 = vrot.slane %v508, 4
  %v677 = vrot.slane %v509, 4
  %v678 = vrot.slane %v510, 4
  %v679 = vrot.slane %v511, 4
  %v680 = vrot.slane %v512, 4
  %v737 = vunpack.c.l.bf16 %v625
  %v738 = vunpack.c.l.bf16 %v626
  %v739 = vunpack.c.l.bf16 %v627
  %v740 = vunpack.c.l.bf16 %v628
  %v741 = vunpack.c.l.bf16 %v629
  %v742 = vunpack.c.l.bf16 %v630
  %v743 = vunpack.c.l.bf16 %v631
  %v744 = vunpack.c.l.bf16 %v632
  %v745 = vunpack.c.l.bf16 %v633
  %v746 = vunpack.c.l.bf16 %v634
  %v747 = vunpack.c.l.bf16 %v635
  %v748 = vunpack.c.l.bf16 %v636
  %v749 = vunpack.c.l.bf16 %v637
  %v750 = vunpack.c.l.bf16 %v638
  %v751 = vunpack.c.l.bf16 %v639
  %v752 = vunpack.c.l.bf16 %v640
  %v753 = vunpack.c.l.bf16 %v641
  %v754 = vunpack.c.l.bf16 %v642
  %v755 = vunpack.c.l.bf16 %v643
  %v756 = vunpack.c.l.bf16 %v644
  %v757 = vunpack.c.l.bf16 %v645
  %v758 = vunpack.c.l.bf16 %v646
  %v759 = vunpack.c.l.bf16 %v647
  %v760 = vunpack.c.l.bf16 %v648
  %v761 = vunpack.c.l.bf16 %v649
  %v762 = vunpack.c.l.bf16 %v650
  %v763 = vunpack.c.l.bf16 %v651
  %v764 = vunpack.c.l.bf16 %v652
  %v765 = vunpack.c.l.bf16 %v653
  %v766 = vunpack.c.l.bf16 %v654
  %v767 = vunpack.c.l.bf16 %v655
  %v768 = vunpack.c.l.bf16 %v656
  %v769 = vunpack.c.l.bf16 %v657
  %v770 = vunpack.c.l.bf16 %v658
  %v771 = vunpack.c.l.bf16 %v659
  %v772 = vunpack.c.l.bf16 %v660
  %v773 = vunpack.c.l.bf16 %v661
  %v774 = vunpack.c.l.bf16 %v662
  %v775 = vunpack.c.l.bf16 %v663
  %v776 = vunpack.c.l.bf16 %v664
  %v777 = vunpack.c.l.bf16 %v665
  %v778 = vunpack.c.l.bf16 %v666
  %v779 = vunpack.c.l.bf16 %v667
  %v780 = vunpack.c.l.bf16 %v668
  %v781 = vunpack.c.l.bf16 %v669
  %v782 = vunpack.c.l.bf16 %v670
  %v783 = vunpack.c.l.bf16 %v671
  %v784 = vunpack.c.l.bf16 %v672
  %v785 = vunpack.c.l.bf16 %v673
  %v786 = vunpack.c.l.bf16 %v674
  %v787 = vunpack.c.l.bf16 %v675
  %v788 = vunpack.c.l.bf16 %v676
  %v789 = vunpack.c.l.bf16 %v677
  %v790 = vunpack.c.l.bf16 %v678
  %v791 = vunpack.c.l.bf16 %v679
  %v792 = vunpack.c.l.bf16 %v680
  %v793 = vmax.f32 %v513, %v737
  %v794 = vmax.f32 %v514, %v738
  %v795 = vmax.f32 %v515, %v739
  %v796 = vmax.f32 %v516, %v740
  %v797 = vmax.f32 %v517, %v741
  %v798 = vmax.f32 %v518, %v742
  %v799 = vmax.f32 %v519, %v743
  %v800 = vmax.f32 %v520, %v744
  %v801 = vmax.f32 %v521, %v745
  %v802 = vmax.f32 %v522, %v746
  %v803 = vmax.f32 %v523, %v747
  %v804 = vmax.f32 %v524, %v748
  %v805 = vmax.f32 %v525, %v749
  %v806 = vmax.f32 %v526, %v750
  %v807 = vmax.f32 %v527, %v751
  %v808 = vmax.f32 %v528, %v752
  %v809 = vmax.f32 %v529, %v753
  %v810 = vmax.f32 %v530, %v754
  %v811 = vmax.f32 %v531, %v755
  %v812 = vmax.f32 %v532, %v756
  %v813 = vmax.f32 %v533, %v757
  %v814 = vmax.f32 %v534, %v758
  %v815 = vmax.f32 %v535, %v759
  %v816 = vmax.f32 %v536, %v760
  %v817 = vmax.f32 %v537, %v761
  %v818 = vmax.f32 %v538, %v762
  %v819 = vmax.f32 %v539, %v763
  %v820 = vmax.f32 %v540, %v764
  %v821 = vmax.f32 %v541, %v765
  %v822 = vmax.f32 %v542, %v766
  %v823 = vmax.f32 %v543, %v767
  %v824 = vmax.f32 %v544, %v768
  %v825 = vmax.f32 %v545, %v769
  %v826 = vmax.f32 %v546, %v770
  %v827 = vmax.f32 %v547, %v771
  %v828 = vmax.f32 %v548, %v772
  %v829 = vmax.f32 %v549, %v773
  %v830 = vmax.f32 %v550, %v774
  %v831 = vmax.f32 %v551, %v775
  %v832 = vmax.f32 %v552, %v776
  %v833 = vmax.f32 %v553, %v777
  %v834 = vmax.f32 %v554, %v778
  %v835 = vmax.f32 %v555, %v779
  %v836 = vmax.f32 %v556, %v780
  %v837 = vmax.f32 %v557, %v781
  %v838 = vmax.f32 %v558, %v782
  %v839 = vmax.f32 %v559, %v783
  %v840 = vmax.f32 %v560, %v784
  %v841 = vmax.f32 %v561, %v785
  %v842 = vmax.f32 %v562, %v786
  %v843 = vmax.f32 %v563, %v787
  %v844 = vmax.f32 %v564, %v788
  %v845 = vmax.f32 %v565, %v789
  %v846 = vmax.f32 %v566, %v790
  %v847 = vmax.f32 %v567, %v791
  %v848 = vmax.f32 %v568, %v792
  %v849 = vpack.c.bf16 %v793, %v793
  %v850 = vpack.c.bf16 %v794, %v794
  %v851 = vpack.c.bf16 %v795, %v795
  %v852 = vpack.c.bf16 %v796, %v796
  %v853 = vpack.c.bf16 %v797, %v797
  %v854 = vpack.c.bf16 %v798, %v798
  %v855 = vpack.c.bf16 %v799, %v799
  %v856 = vpack.c.bf16 %v800, %v800
  %v857 = vpack.c.bf16 %v801, %v801
  %v858 = vpack.c.bf16 %v802, %v802
  %v859 = vpack.c.bf16 %v803, %v803
  %v860 = vpack.c.bf16 %v804, %v804
  %v861 = vpack.c.bf16 %v805, %v805
  %v862 = vpack.c.bf16 %v806, %v806
  %v863 = vpack.c.bf16 %v807, %v807
  %v864 = vpack.c.bf16 %v808, %v808
  %v865 = vpack.c.bf16 %v809, %v809
  %v866 = vpack.c.bf16 %v810, %v810
  %v867 = vpack.c.bf16 %v811, %v811
  %v868 = vpack.c.bf16 %v812, %v812
  %v869 = vpack.c.bf16 %v813, %v813
  %v870 = vpack.c.bf16 %v814, %v814
  %v871 = vpack.c.bf16 %v815, %v815
  %v872 = vpack.c.bf16 %v816, %v816
  %v873 = vpack.c.bf16 %v817, %v817
  %v874 = vpack.c.bf16 %v818, %v818
  %v875 = vpack.c.bf16 %v819, %v819
  %v876 = vpack.c.bf16 %v820, %v820
  %v877 = vpack.c.bf16 %v821, %v821
  %v878 = vpack.c.bf16 %v822, %v822
  %v879 = vpack.c.bf16 %v823, %v823
  %v880 = vpack.c.bf16 %v824, %v824
  %v881 = vpack.c.bf16 %v825, %v825
  %v882 = vpack.c.bf16 %v826, %v826
  %v883 = vpack.c.bf16 %v827, %v827
  %v884 = vpack.c.bf16 %v828, %v828
  %v885 = vpack.c.bf16 %v829, %v829
  %v886 = vpack.c.bf16 %v830, %v830
  %v887 = vpack.c.bf16 %v831, %v831
  %v888 = vpack.c.bf16 %v832, %v832
  %v889 = vpack.c.bf16 %v833, %v833
  %v890 = vpack.c.bf16 %v834, %v834
  %v891 = vpack.c.bf16 %v835, %v835
  %v892 = vpack.c.bf16 %v836, %v836
  %v893 = vpack.c.bf16 %v837, %v837
  %v894 = vpack.c.bf16 %v838, %v838
  %v895 = vpack.c.bf16 %v839, %v839
  %v896 = vpack.c.bf16 %v840, %v840
  %v897 = vpack.c.bf16 %v841, %v841
  %v898 = vpack.c.bf16 %v842, %v842
  %v899 = vpack.c.bf16 %v843, %v843
  %v900 = vpack.c.bf16 %v844, %v844
  %v901 = vpack.c.bf16 %v845, %v845
  %v902 = vpack.c.bf16 %v846, %v846
  %v903 = vpack.c.bf16 %v847, %v847
  %v904 = vpack.c.bf16 %v848, %v848
  %905 = vst [vmem:[%s1] sm:$0xf] %v849
  %906 = vst [vmem:[%s1 + $0x4] sm:$0x7] %v850
  %907 = vst [vmem:[%s1 + $0x8] sm:$0xf] %v851
  %908 = vst [vmem:[%s1 + $0xc] sm:$0x7] %v852
  %909 = vst [vmem:[%s1 + $0x10] sm:$0xf] %v853
  %910 = vst [vmem:[%s1 + $0x14] sm:$0x7] %v854
  %911 = vst [vmem:[%s1 + $0x18] sm:$0xf] %v855
  %912 = vst [vmem:[%s1 + $0x1c] sm:$0x7] %v856
  %913 = vst [vmem:[%s1 + $0x20] sm:$0xf] %v857
  %914 = vst [vmem:[%s1 + $0x24] sm:$0x7] %v858
  %915 = vst [vmem:[%s1 + $0x28] sm:$0xf] %v859
  %916 = vst [vmem:[%s1 + $0x2c] sm:$0x7] %v860
  %917 = vst [vmem:[%s1 + $0x30] sm:$0xf] %v861
  %918 = vst [vmem:[%s1 + $0x34] sm:$0x7] %v862
  %919 = vst [vmem:[%s1 + $0x38] sm:$0xf] %v863
  %920 = vst [vmem:[%s1 + $0x3c] sm:$0x7] %v864
  %921 = vst [vmem:[%s1 + $0x40] sm:$0xf] %v865
  %922 = vst [vmem:[%s1 + $0x44] sm:$0x7] %v866
  %923 = vst [vmem:[%s1 + $0x48] sm:$0xf] %v867
  %924 = vst [vmem:[%s1 + $0x4c] sm:$0x7] %v868
  %925 = vst [vmem:[%s1 + $0x50] sm:$0xf] %v869
  %926 = vst [vmem:[%s1 + $0x54] sm:$0x7] %v870
  %927 = vst [vmem:[%s1 + $0x58] sm:$0xf] %v871
  %928 = vst [vmem:[%s1 + $0x5c] sm:$0x7] %v872
  %929 = vst [vmem:[%s1 + $0x60] sm:$0xf] %v873
  %930 = vst [vmem:[%s1 + $0x64] sm:$0x7] %v874
  %931 = vst [vmem:[%s1 + $0x68] sm:$0xf] %v875
  %932 = vst [vmem:[%s1 + $0x6c] sm:$0x7] %v876
  %933 = vst [vmem:[%s1 + $0x70] sm:$0xf] %v877
  %934 = vst [vmem:[%s1 + $0x74] sm:$0x7] %v878
  %935 = vst [vmem:[%s1 + $0x78] sm:$0xf] %v879
  %936 = vst [vmem:[%s1 + $0x7c] sm:$0x7] %v880
  %937 = vst [vmem:[%s1 + $0x80] sm:$0xf] %v881
  %938 = vst [vmem:[%s1 + $0x84] sm:$0x7] %v882
  %939 = vst [vmem:[%s1 + $0x88] sm:$0xf] %v883
  %940 = vst [vmem:[%s1 + $0x8c] sm:$0x7] %v884
  %941 = vst [vmem:[%s1 + $0x90] sm:$0xf] %v885
  %942 = vst [vmem:[%s1 + $0x94] sm:$0x7] %v886
  %943 = vst [vmem:[%s1 + $0x98] sm:$0xf] %v887
  %944 = vst [vmem:[%s1 + $0x9c] sm:$0x7] %v888
  %945 = vst [vmem:[%s1 + $0xa0] sm:$0xf] %v889
  %946 = vst [vmem:[%s1 + $0xa4] sm:$0x7] %v890
  %947 = vst [vmem:[%s1 + $0xa8] sm:$0xf] %v891
  %948 = vst [vmem:[%s1 + $0xac] sm:$0x7] %v892
  %949 = vst [vmem:[%s1 + $0xb0] sm:$0xf] %v893
  %950 = vst [vmem:[%s1 + $0xb4] sm:$0x7] %v894
  %951 = vst [vmem:[%s1 + $0xb8] sm:$0xf] %v895
  %952 = vst [vmem:[%s1 + $0xbc] sm:$0x7] %v896
  %953 = vst [vmem:[%s1 + $0xc0] sm:$0xf] %v897
  %954 = vst [vmem:[%s1 + $0xc4] sm:$0x7] %v898
  %955 = vst [vmem:[%s1 + $0xc8] sm:$0xf] %v899
  %956 = vst [vmem:[%s1 + $0xcc] sm:$0x7] %v900
  %957 = vst [vmem:[%s1 + $0xd0] sm:$0xf] %v901
  %958 = vst [vmem:[%s1 + $0xd4] sm:$0x7] %v902
  %959 = vst [vmem:[%s1 + $0xd8] sm:$0xf] %v903
  %960 = vst [vmem:[%s1 + $0xdc] sm:$0x7] %v904
  // Predicated region
  $region6: #{convnet_forward.6} parent=0 // pred_check
    _
  $region7: #{convnet_forward.6} parent=0 // pred_check_branch
    %962 = sbr.rel (0) target = $region9
  $region8: #{convnet_forward.6} parent=0 // pred_region
    _
  $region9: #{convnet_forward.6} parent=0 // pred_fallthru
    _
  // Predicated region
  $region10: #{convnet_forward.6} parent=0 // pred_check
    _
  $region11: #{convnet_forward.6} parent=0 // pred_check_branch
    %964 = sbr.rel (0) target = $region13
  $region12: #{convnet_forward.6} parent=0 // pred_region
    _
  $region13: #{convnet_forward.6} parent=0 // pred_fallthru
    _

// kernel: convnet_forward.8
$region0: #{convnet_forward.8}
  #allocation0 [shape = 'u32[]', space=smem, size = 0x4, offset = 0x4, fixed_abs, tag = 'smem constant byte address 0x4 - core index']
  #allocation1 [shape = 'u32[72,128]{1,0:T(1,128)}', space=vmem, size = 0x9000, scoped, tag = 'internal scratch']
  %s0 = inlined_call_operand.vmem [shape: bf16[10,2,5,256], index: 0, kind: input, shape index: {}]
  %s1 = inlined_call_operand.vmem [shape: bf16[10,5,128], index: 1, kind: output, shape index: {}]
  %s2 = sld [smem:[#allocation0]]
  $region14: #{convnet_forward.8} parent=0
    _
  %s4 = ssub.s32 1, %s2
  %s5 = scalar_select 0, %s4, %s2
  // Predicated region
  $region2: #{convnet_forward.8} parent=0 // pred_check
    _
  $region3: #{convnet_forward.8} parent=0 // pred_check_branch
    %7 = sbr.rel (0) target = $region5
  $region4: #{convnet_forward.8} parent=0 // pred_region
    _
  $region5: #{convnet_forward.8} parent=0 // pred_fallthru
    _
  %v8 = vld [vmem:[%s0] sm:$0x77]
  %v9 = vld [vmem:[%s0 + $0x10] sm:$0x77]
  %v10 = vld [vmem:[%s0 + $0x20] sm:$0x77]
  %v11 = vld [vmem:[%s0 + $0x30] sm:$0x77]
  %v12 = vld [vmem:[%s0 + $0x40] sm:$0x77]
  %v13 = vld [vmem:[%s0 + $0x50] sm:$0x77]
  %v14 = vld [vmem:[%s0 + $0x60] sm:$0x77]
  %v15 = vld [vmem:[%s0 + $0x70] sm:$0x77]
  %v16 = vld [vmem:[%s0 + $0x80] sm:$0x77]
  %v17 = vld [vmem:[%s0 + $0x90] sm:$0x77]
  %s18 = scalar_lea.vmem %s0, 8
  %v19 = vld [vmem:[%s18] sm:$0x77]
  %v20 = vld [vmem:[%s18 + $0x10] sm:$0x77]
  %v21 = vld [vmem:[%s18 + $0x20] sm:$0x77]
  %v22 = vld [vmem:[%s18 + $0x30] sm:$0x77]
  %v23 = vld [vmem:[%s18 + $0x40] sm:$0x77]
  %v24 = vld [vmem:[%s18 + $0x50] sm:$0x77]
  %v25 = vld [vmem:[%s18 + $0x60] sm:$0x77]
  %v26 = vld [vmem:[%s18 + $0x70] sm:$0x77]
  %v27 = vld [vmem:[%s18 + $0x80] sm:$0x77]
  %v28 = vld [vmem:[%s18 + $0x90] sm:$0x77]
  %v29 = vunpack.c.l.bf16 %v8
  %v30 = vunpack.c.h.bf16 %v8
  %v31 = vunpack.c.l.bf16 %v9
  %v32 = vunpack.c.h.bf16 %v9
  %v33 = vunpack.c.l.bf16 %v10
  %v34 = vunpack.c.h.bf16 %v10
  %v35 = vunpack.c.l.bf16 %v11
  %v36 = vunpack.c.h.bf16 %v11
  %v37 = vunpack.c.l.bf16 %v12
  %v38 = vunpack.c.h.bf16 %v12
  %v39 = vunpack.c.l.bf16 %v13
  %v40 = vunpack.c.h.bf16 %v13
  %v41 = vunpack.c.l.bf16 %v14
  %v42 = vunpack.c.h.bf16 %v14
  %v43 = vunpack.c.l.bf16 %v15
  %v44 = vunpack.c.h.bf16 %v15
  %v45 = vunpack.c.l.bf16 %v16
  %v46 = vunpack.c.h.bf16 %v16
  %v47 = vunpack.c.l.bf16 %v17
  %v48 = vunpack.c.h.bf16 %v17
  %v49 = vunpack.c.l.bf16 %v19
  %v50 = vunpack.c.h.bf16 %v19
  %v51 = vunpack.c.l.bf16 %v20
  %v52 = vunpack.c.h.bf16 %v20
  %v53 = vunpack.c.l.bf16 %v21
  %v54 = vunpack.c.h.bf16 %v21
  %v55 = vunpack.c.l.bf16 %v22
  %v56 = vunpack.c.h.bf16 %v22
  %v57 = vunpack.c.l.bf16 %v23
  %v58 = vunpack.c.h.bf16 %v23
  %v59 = vunpack.c.l.bf16 %v24
  %v60 = vunpack.c.h.bf16 %v24
  %v61 = vunpack.c.l.bf16 %v25
  %v62 = vunpack.c.h.bf16 %v25
  %v63 = vunpack.c.l.bf16 %v26
  %v64 = vunpack.c.h.bf16 %v26
  %v65 = vunpack.c.l.bf16 %v27
  %v66 = vunpack.c.h.bf16 %v27
  %v67 = vunpack.c.l.bf16 %v28
  %v68 = vunpack.c.h.bf16 %v28
  %v69 = vmax.f32 %v29, %v49
  %v70 = vmax.f32 %v30, %v50
  %v71 = vmax.f32 %v31, %v51
  %v72 = vmax.f32 %v32, %v52
  %v73 = vmax.f32 %v33, %v53
  %v74 = vmax.f32 %v34, %v54
  %v75 = vmax.f32 %v35, %v55
  %v76 = vmax.f32 %v36, %v56
  %v77 = vmax.f32 %v37, %v57
  %v78 = vmax.f32 %v38, %v58
  %v79 = vmax.f32 %v39, %v59
  %v80 = vmax.f32 %v40, %v60
  %v81 = vmax.f32 %v41, %v61
  %v82 = vmax.f32 %v42, %v62
  %v83 = vmax.f32 %v43, %v63
  %v84 = vmax.f32 %v44, %v64
  %v85 = vmax.f32 %v45, %v65
  %v86 = vmax.f32 %v46, %v66
  %v87 = vmax.f32 %v47, %v67
  %v88 = vmax.f32 %v48, %v68
  %v89 = vpack.c.bf16 %v70, %v69
  %v90 = vpack.c.bf16 %v72, %v71
  %v91 = vpack.c.bf16 %v74, %v73
  %v92 = vpack.c.bf16 %v76, %v75
  %v93 = vpack.c.bf16 %v78, %v77
  %v94 = vpack.c.bf16 %v80, %v79
  %v95 = vpack.c.bf16 %v82, %v81
  %v96 = vpack.c.bf16 %v84, %v83
  %v97 = vpack.c.bf16 %v86, %v85
  %v98 = vpack.c.bf16 %v88, %v87
  %v99 = vunpack.c.l.bf16 %v89
  %v100 = vunpack.c.l.bf16 %v90
  %v101 = vunpack.c.l.bf16 %v91
  %v102 = vunpack.c.l.bf16 %v92
  %v103 = vunpack.c.l.bf16 %v93
  %v104 = vunpack.c.l.bf16 %v94
  %v105 = vunpack.c.l.bf16 %v95
  %v106 = vunpack.c.l.bf16 %v96
  %v107 = vunpack.c.l.bf16 %v97
  %v108 = vunpack.c.l.bf16 %v98
  %v119 = vrot.slane %v89, 4
  %v120 = vrot.slane %v90, 4
  %v121 = vrot.slane %v91, 4
  %v122 = vrot.slane %v92, 4
  %v123 = vrot.slane %v93, 4
  %v124 = vrot.slane %v94, 4
  %v125 = vrot.slane %v95, 4
  %v126 = vrot.slane %v96, 4
  %v127 = vrot.slane %v97, 4
  %v128 = vrot.slane %v98, 4
  %v139 = vunpack.c.l.bf16 %v119
  %v140 = vunpack.c.l.bf16 %v120
  %v141 = vunpack.c.l.bf16 %v121
  %v142 = vunpack.c.l.bf16 %v122
  %v143 = vunpack.c.l.bf16 %v123
  %v144 = vunpack.c.l.bf16 %v124
  %v145 = vunpack.c.l.bf16 %v125
  %v146 = vunpack.c.l.bf16 %v126
  %v147 = vunpack.c.l.bf16 %v127
  %v148 = vunpack.c.l.bf16 %v128
  %v149 = vmax.f32 %v99, %v139
  %v150 = vmax.f32 %v100, %v140
  %v151 = vmax.f32 %v101, %v141
  %v152 = vmax.f32 %v102, %v142
  %v153 = vmax.f32 %v103, %v143
  %v154 = vmax.f32 %v104, %v144
  %v155 = vmax.f32 %v105, %v145
  %v156 = vmax.f32 %v106, %v146
  %v157 = vmax.f32 %v107, %v147
  %v158 = vmax.f32 %v108, %v148
  %v159 = vpack.c.bf16 %v149, %v149
  %v160 = vpack.c.bf16 %v150, %v150
  %v161 = vpack.c.bf16 %v151, %v151
  %v162 = vpack.c.bf16 %v152, %v152
  %v163 = vpack.c.bf16 %v153, %v153
  %v164 = vpack.c.bf16 %v154, %v154
  %v165 = vpack.c.bf16 %v155, %v155
  %v166 = vpack.c.bf16 %v156, %v156
  %v167 = vpack.c.bf16 %v157, %v157
  %v168 = vpack.c.bf16 %v158, %v158
  %vm169 = vcmask 1042432
  %vm170 = vsmask.f32 2304
  %vm171 = vmand %vm169, %vm170
  %v172 = vld [vmem:[%s1] sm:$0x7]
  %v173 = vsel %vm171, %v159, %v172
  %174 = vst [vmem:[%s1] sm:$0x7] %v173
  %v175 = vld [vmem:[%s1 + $0x4] sm:$0x7]
  %v176 = vsel %vm171, %v160, %v175
  %177 = vst [vmem:[%s1 + $0x4] sm:$0x7] %v176
  %v178 = vld [vmem:[%s1 + $0x8] sm:$0x7]
  %v179 = vsel %vm171, %v161, %v178
  %180 = vst [vmem:[%s1 + $0x8] sm:$0x7] %v179
  %v181 = vld [vmem:[%s1 + $0xc] sm:$0x7]
  %v182 = vsel %vm171, %v162, %v181
  %183 = vst [vmem:[%s1 + $0xc] sm:$0x7] %v182
  %v184 = vld [vmem:[%s1 + $0x10] sm:$0x7]
  %v185 = vsel %vm171, %v163, %v184
  %186 = vst [vmem:[%s1 + $0x10] sm:$0x7] %v185
  %v187 = vld [vmem:[%s1 + $0x14] sm:$0x7]
  %v188 = vsel %vm171, %v164, %v187
  %189 = vst [vmem:[%s1 + $0x14] sm:$0x7] %v188
  %v190 = vld [vmem:[%s1 + $0x18] sm:$0x7]
  %v191 = vsel %vm171, %v165, %v190
  %192 = vst [vmem:[%s1 + $0x18] sm:$0x7] %v191
  %v193 = vld [vmem:[%s1 + $0x1c] sm:$0x7]
  %v194 = vsel %vm171, %v166, %v193
  %195 = vst [vmem:[%s1 + $0x1c] sm:$0x7] %v194
  %v196 = vld [vmem:[%s1 + $0x20] sm:$0x7]
  %v197 = vsel %vm171, %v167, %v196
  %198 = vst [vmem:[%s1 + $0x20] sm:$0x7] %v197
  %v199 = vld [vmem:[%s1 + $0x24] sm:$0x7]
  %v200 = vsel %vm171, %v168, %v199
  %201 = vst [vmem:[%s1 + $0x24] sm:$0x7] %v200
  // Predicated region
  $region6: #{convnet_forward.8} parent=0 // pred_check
    _
  $region7: #{convnet_forward.8} parent=0 // pred_check_branch
    %203 = sbr.rel (0) target = $region9
  $region8: #{convnet_forward.8} parent=0 // pred_region
    _
  $region9: #{convnet_forward.8} parent=0 // pred_fallthru
    _
  // Predicated region
  $region10: #{convnet_forward.8} parent=0 // pred_check
    _
  $region11: #{convnet_forward.8} parent=0 // pred_check_branch
    %205 = sbr.rel (0) target = $region13
  $region12: #{convnet_forward.8} parent=0 // pred_region
    _
  $region13: #{convnet_forward.8} parent=0 // pred_fallthru
    _

// kernel: convnet_forward.7
$region0: #{convnet_forward.7}
  #allocation0 [shape = 'u32[]', space=smem, size = 0x4, offset = 0x4, fixed_abs, tag = 'smem constant byte address 0x4 - core index']
  #allocation1 [shape = 'u32[72,128]{1,0:T(1,128)}', space=vmem, size = 0x9000, scoped, tag = 'internal scratch']
  %s0 = inlined_call_operand.vmem [shape: bf16[200,3200], index: 0, kind: input, shape index: {}]
  %s1 = inlined_call_operand.vmem [shape: bf16[3200,128], index: 1, kind: input, shape index: {}]
  %s2 = inlined_call_operand.vmem [shape: f32[1,128], index: 2, kind: input, shape index: {}]
  %s3 = inlined_call_operand.vmem [shape: bf16[200,128], index: 3, kind: output, shape index: {}]
  %s4 = sld [smem:[#allocation0]]
  $region22: #{convnet_forward.7} parent=0
    _
  %s6 = ssub.s32 1, %s4
  %s7 = scalar_select 0, %s6, %s4
  // Predicated region
  $region2: #{convnet_forward.7} parent=0 // pred_check
    _
  $region3: #{convnet_forward.7} parent=0 // pred_check_branch
    %9 = sbr.rel (0) target = $region5
  $region4: #{convnet_forward.7} parent=0 // pred_region
    _
  $region5: #{convnet_forward.7} parent=0 // pred_fallthru
    _
  // Predicated region
  $region6: #{convnet_forward.7} parent=0 // pred_check
    _
  $region7: #{convnet_forward.7} parent=0 // pred_check_branch
    %11 = sbr.rel (0) target = $region9
  $region8: #{convnet_forward.7} parent=0 // pred_region
    _
  $region9: #{convnet_forward.7} parent=0 // pred_fallthru
    _
  // Predicated region
  $region10: #{convnet_forward.7} parent=0 // pred_check
    _
  $region11: #{convnet_forward.7} parent=0 // pred_check_branch
    %13 = sbr.rel (0) target = $region13
  $region12: #{convnet_forward.7} parent=0 // pred_region
    _
  $region13: #{convnet_forward.7} parent=0 // pred_fallthru
    _
  %v14 = vld [vmem:[%s0] sm:$0xff]
  %v15 = vld [vmem:[%s0 + $0x8] sm:$0xff]
  %v16 = vld [vmem:[%s0 + $0x10] sm:$0xff]
  %v17 = vld [vmem:[%s0 + $0x18] sm:$0xff]
  %v18 = vld [vmem:[%s0 + $0x20] sm:$0xff]
  %v19 = vld [vmem:[%s0 + $0x28] sm:$0xff]
  %v20 = vld [vmem:[%s0 + $0x30] sm:$0xff]
  %v21 = vld [vmem:[%s0 + $0x38] sm:$0xff]
  %v22 = vld [vmem:[%s0 + $0x40] sm:$0xff]
  %v23 = vld [vmem:[%s0 + $0x48] sm:$0xff]
  %v24 = vld [vmem:[%s0 + $0x50] sm:$0xff]
  %v25 = vld [vmem:[%s0 + $0x58] sm:$0xff]
  %v26 = vld [vmem:[%s0 + $0x60] sm:$0xf]
  %v27 = vld [vmem:[%s0 + $0x64] sm:$0xff]
  %v28 = vld [vmem:[%s0 + $0x6c] sm:$0xff]
  %v29 = vld [vmem:[%s0 + $0x74] sm:$0xff]
  %v30 = vld [vmem:[%s0 + $0x7c] sm:$0xff]
  %v31 = vld [vmem:[%s0 + $0x84] sm:$0xff]
  %v32 = vld [vmem:[%s0 + $0x8c] sm:$0xff]
  %v33 = vld [vmem:[%s0 + $0x94] sm:$0xff]
  %v34 = vld [vmem:[%s0 + $0x9c] sm:$0xff]
  %v35 = vld [vmem:[%s0 + $0xa4] sm:$0xff]
  %v36 = vld [vmem:[%s0 + $0xac] sm:$0xff]
  %v37 = vld [vmem:[%s0 + $0xb4] sm:$0xff]
  %v38 = vld [vmem:[%s0 + $0xbc] sm:$0xff]
  %v39 = vld [vmem:[%s0 + $0xc4] sm:$0xf]
  %v40 = vld [vmem:[%s0 + $0xc8] sm:$0xff]
  %v41 = vld [vmem:[%s0 + $0xd0] sm:$0xff]
  %v42 = vld [vmem:[%s0 + $0xd8] sm:$0xff]
  %v43 = vld [vmem:[%s0 + $0xe0] sm:$0xff]
  %v44 = vld [vmem:[%s0 + $0xe8] sm:$0xff]
  %v45 = vld [vmem:[%s0 + $0xf0] sm:$0xff]
  %v46 = vld [vmem:[%s0 + $0xf8] sm:$0xff]
  %v47 = vld [vmem:[%s0 + $0x100] sm:$0xff]
  %v48 = vld [vmem:[%s0 + $0x108] sm:$0xff]
  %v49 = vld [vmem:[%s0 + $0x110] sm:$0xff]
  %v50 = vld [vmem:[%s0 + $0x118] sm:$0xff]
  %v51 = vld [vmem:[%s0 + $0x120] sm:$0xff]
  %v52 = vld [vmem:[%s0 + $0x128] sm:$0xf]
  %v53 = vld [vmem:[%s0 + $0x12c] sm:$0xff]
  %v54 = vld [vmem:[%s0 + $0x134] sm:$0xff]
  %v55 = vld [vmem:[%s0 + $0x13c] sm:$0xff]
  %v56 = vld [vmem:[%s0 + $0x144] sm:$0xff]
  %v57 = vld [vmem:[%s0 + $0x14c] sm:$0xff]
  %v58 = vld [vmem:[%s0 + $0x154] sm:$0xff]
  %v59 = vld [vmem:[%s0 + $0x15c] sm:$0xff]
  %v60 = vld [vmem:[%s0 + $0x164] sm:$0xff]
  %v61 = vld [vmem:[%s0 + $0x16c] sm:$0xff]
  %v62 = vld [vmem:[%s0 + $0x174] sm:$0xff]
  %v63 = vld [vmem:[%s0 + $0x17c] sm:$0xff]
  %v64 = vld [vmem:[%s0 + $0x184] sm:$0xff]
  %v65 = vld [vmem:[%s0 + $0x18c] sm:$0xf]
  %v66 = vld [vmem:[%s0 + $0x190] sm:$0xff]
  %v67 = vld [vmem:[%s0 + $0x198] sm:$0xff]
  %v68 = vld [vmem:[%s0 + $0x1a0] sm:$0xff]
  %v69 = vld [vmem:[%s0 + $0x1a8] sm:$0xff]
  %v70 = vld [vmem:[%s0 + $0x1b0] sm:$0xff]
  %v71 = vld [vmem:[%s0 + $0x1b8] sm:$0xff]
  %v72 = vld [vmem:[%s0 + $0x1c0] sm:$0xff]
  %v73 = vld [vmem:[%s0 + $0x1c8] sm:$0xff]
  %v74 = vld [vmem:[%s0 + $0x1d0] sm:$0xff]
  %v75 = vld [vmem:[%s0 + $0x1d8] sm:$0xff]
  %v76 = vld [vmem:[%s0 + $0x1e0] sm:$0xff]
  %v77 = vld [vmem:[%s0 + $0x1e8] sm:$0xff]
  %v78 = vld [vmem:[%s0 + $0x1f0] sm:$0xf]
  %v79 = vld [vmem:[%s0 + $0x1f4] sm:$0xff]
  %v80 = vld [vmem:[%s0 + $0x1fc] sm:$0xff]
  %v81 = vld [vmem:[%s0 + $0x204] sm:$0xff]
  %v82 = vld [vmem:[%s0 + $0x20c] sm:$0xff]
  %v83 = vld [vmem:[%s0 + $0x214] sm:$0xff]
  %v84 = vld [vmem:[%s0 + $0x21c] sm:$0xff]
  %v85 = vld [vmem:[%s0 + $0x224] sm:$0xff]
  %v86 = vld [vmem:[%s0 + $0x22c] sm:$0xff]
  %v87 = vld [vmem:[%s0 + $0x234] sm:$0xff]
  %v88 = vld [vmem:[%s0 + $0x23c] sm:$0xff]
  %v89 = vld [vmem:[%s0 + $0x244] sm:$0xff]
  %v90 = vld [vmem:[%s0 + $0x24c] sm:$0xff]
  %v91 = vld [vmem:[%s0 + $0x254] sm:$0xf]
  %v92 = vld [vmem:[%s0 + $0x258] sm:$0xff]
  %v93 = vld [vmem:[%s0 + $0x260] sm:$0xff]
  %v94 = vld [vmem:[%s0 + $0x268] sm:$0xff]
  %v95 = vld [vmem:[%s0 + $0x270] sm:$0xff]
  %v96 = vld [vmem:[%s0 + $0x278] sm:$0xff]
  %v97 = vld [vmem:[%s0 + $0x280] sm:$0xff]
  %v98 = vld [vmem:[%s0 + $0x288] sm:$0xff]
  %v99 = vld [vmem:[%s0 + $0x290] sm:$0xff]
  %v100 = vld [vmem:[%s0 + $0x298] sm:$0xff]
  %v101 = vld [vmem:[%s0 + $0x2a0] sm:$0xff]
  %v102 = vld [vmem:[%s0 + $0x2a8] sm:$0xff]
  %v103 = vld [vmem:[%s0 + $0x2b0] sm:$0xff]
  %v104 = vld [vmem:[%s0 + $0x2b8] sm:$0xf]
  %v105 = vld [vmem:[%s0 + $0x2bc] sm:$0xff]
  %v106 = vld [vmem:[%s0 + $0x2c4] sm:$0xff]
  %v107 = vld [vmem:[%s0 + $0x2cc] sm:$0xff]
  %v108 = vld [vmem:[%s0 + $0x2d4] sm:$0xff]
  %v109 = vld [vmem:[%s0 + $0x2dc] sm:$0xff]
  %v110 = vld [vmem:[%s0 + $0x2e4] sm:$0xff]
  %v111 = vld [vmem:[%s0 + $0x2ec] sm:$0xff]
  %v112 = vld [vmem:[%s0 + $0x2f4] sm:$0xff]
  %v113 = vld [vmem:[%s0 + $0x2fc] sm:$0xff]
  %v114 = vld [vmem:[%s0 + $0x304] sm:$0xff]
  %v115 = vld [vmem:[%s0 + $0x30c] sm:$0xff]
  %v116 = vld [vmem:[%s0 + $0x314] sm:$0xff]
  %v117 = vld [vmem:[%s0 + $0x31c] sm:$0xf]
  %v118 = vld [vmem:[%s0 + $0x320] sm:$0xff]
  %v119 = vld [vmem:[%s0 + $0x328] sm:$0xff]
  %v120 = vld [vmem:[%s0 + $0x330] sm:$0xff]
  %v121 = vld [vmem:[%s0 + $0x338] sm:$0xff]
  %v122 = vld [vmem:[%s0 + $0x340] sm:$0xff]
  %v123 = vld [vmem:[%s0 + $0x348] sm:$0xff]
  %v124 = vld [vmem:[%s0 + $0x350] sm:$0xff]
  %v125 = vld [vmem:[%s0 + $0x358] sm:$0xff]
  %v126 = vld [vmem:[%s0 + $0x360] sm:$0xff]
  %v127 = vld [vmem:[%s0 + $0x368] sm:$0xff]
  %v128 = vld [vmem:[%s0 + $0x370] sm:$0xff]
  %v129 = vld [vmem:[%s0 + $0x378] sm:$0xff]
  %v130 = vld [vmem:[%s0 + $0x380] sm:$0xf]
  %v131 = vld [vmem:[%s0 + $0x384] sm:$0xff]
  %v132 = vld [vmem:[%s0 + $0x38c] sm:$0xff]
  %v133 = vld [vmem:[%s0 + $0x394] sm:$0xff]
  %v134 = vld [vmem:[%s0 + $0x39c] sm:$0xff]
  %v135 = vld [vmem:[%s0 + $0x3a4] sm:$0xff]
  %v136 = vld [vmem:[%s0 + $0x3ac] sm:$0xff]
  %v137 = vld [vmem:[%s0 + $0x3b4] sm:$0xff]
  %v138 = vld [vmem:[%s0 + $0x3bc] sm:$0xff]
  %v139 = vld [vmem:[%s0 + $0x3c4] sm:$0xff]
  %v140 = vld [vmem:[%s0 + $0x3cc] sm:$0xff]
  %v141 = vld [vmem:[%s0 + $0x3d4] sm:$0xff]
  %v142 = vld [vmem:[%s0 + $0x3dc] sm:$0xff]
  %v143 = vld [vmem:[%s0 + $0x3e4] sm:$0xf]
  %v144 = vld [vmem:[%s0 + $0x3e8] sm:$0xff]
  %v145 = vld [vmem:[%s0 + $0x3f0] sm:$0xff]
  %v146 = vld [vmem:[%s0 + $0x3f8] sm:$0xff]
  %v147 = vld [vmem:[%s0 + $0x400] sm:$0xff]
  %v148 = vld [vmem:[%s0 + $0x408] sm:$0xff]
  %v149 = vld [vmem:[%s0 + $0x410] sm:$0xff]
  %v150 = vld [vmem:[%s0 + $0x418] sm:$0xff]
  %v151 = vld [vmem:[%s0 + $0x420] sm:$0xff]
  %v152 = vld [vmem:[%s0 + $0x428] sm:$0xff]
  %v153 = vld [vmem:[%s0 + $0x430] sm:$0xff]
  %v154 = vld [vmem:[%s0 + $0x438] sm:$0xff]
  %v155 = vld [vmem:[%s0 + $0x440] sm:$0xff]
  %v156 = vld [vmem:[%s0 + $0x448] sm:$0xf]
  %v157 = vld [vmem:[%s0 + $0x44c] sm:$0xff]
  %v158 = vld [vmem:[%s0 + $0x454] sm:$0xff]
  %v159 = vld [vmem:[%s0 + $0x45c] sm:$0xff]
  %v160 = vld [vmem:[%s0 + $0x464] sm:$0xff]
  %v161 = vld [vmem:[%s0 + $0x46c] sm:$0xff]
  %v162 = vld [vmem:[%s0 + $0x474] sm:$0xff]
  %v163 = vld [vmem:[%s0 + $0x47c] sm:$0xff]
  %v164 = vld [vmem:[%s0 + $0x484] sm:$0xff]
  %v165 = vld [vmem:[%s0 + $0x48c] sm:$0xff]
  %v166 = vld [vmem:[%s0 + $0x494] sm:$0xff]
  %v167 = vld [vmem:[%s0 + $0x49c] sm:$0xff]
  %v168 = vld [vmem:[%s0 + $0x4a4] sm:$0xff]
  %v169 = vld [vmem:[%s0 + $0x4ac] sm:$0xf]
  %v170 = vld [vmem:[%s0 + $0x4b0] sm:$0xff]
  %v171 = vld [vmem:[%s0 + $0x4b8] sm:$0xff]
  %v172 = vld [vmem:[%s0 + $0x4c0] sm:$0xff]
  %v173 = vld [vmem:[%s0 + $0x4c8] sm:$0xff]
  %v174 = vld [vmem:[%s0 + $0x4d0] sm:$0xff]
  %v175 = vld [vmem:[%s0 + $0x4d8] sm:$0xff]
  %v176 = vld [vmem:[%s0 + $0x4e0] sm:$0xff]
  %v177 = vld [vmem:[%s0 + $0x4e8] sm:$0xff]
  %v178 = vld [vmem:[%s0 + $0x4f0] sm:$0xff]
  %v179 = vld [vmem:[%s0 + $0x4f8] sm:$0xff]
  %v180 = vld [vmem:[%s0 + $0x500] sm:$0xff]
  %v181 = vld [vmem:[%s0 + $0x508] sm:$0xff]
  %v182 = vld [vmem:[%s0 + $0x510] sm:$0xf]
  %v183 = vld [vmem:[%s0 + $0x514] sm:$0xff]
  %v184 = vld [vmem:[%s0 + $0x51c] sm:$0xff]
  %v185 = vld [vmem:[%s0 + $0x524] sm:$0xff]
  %v186 = vld [vmem:[%s0 + $0x52c] sm:$0xff]
  %v187 = vld [vmem:[%s0 + $0x534] sm:$0xff]
  %v188 = vld [vmem:[%s0 + $0x53c] sm:$0xff]
  %v189 = vld [vmem:[%s0 + $0x544] sm:$0xff]
  %v190 = vld [vmem:[%s0 + $0x54c] sm:$0xff]
  %v191 = vld [vmem:[%s0 + $0x554] sm:$0xff]
  %v192 = vld [vmem:[%s0 + $0x55c] sm:$0xff]
  %v193 = vld [vmem:[%s0 + $0x564] sm:$0xff]
  %v194 = vld [vmem:[%s0 + $0x56c] sm:$0xff]
  %v195 = vld [vmem:[%s0 + $0x574] sm:$0xf]
  %v196 = vld [vmem:[%s0 + $0x578] sm:$0xff]
  %v197 = vld [vmem:[%s0 + $0x580] sm:$0xff]
  %v198 = vld [vmem:[%s0 + $0x588] sm:$0xff]
  %v199 = vld [vmem:[%s0 + $0x590] sm:$0xff]
  %v200 = vld [vmem:[%s0 + $0x598] sm:$0xff]
  %v201 = vld [vmem:[%s0 + $0x5a0] sm:$0xff]
  %v202 = vld [vmem:[%s0 + $0x5a8] sm:$0xff]
  %v203 = vld [vmem:[%s0 + $0x5b0] sm:$0xff]
  %v204 = vld [vmem:[%s0 + $0x5b8] sm:$0xff]
  %v205 = vld [vmem:[%s0 + $0x5c0] sm:$0xff]
  %v206 = vld [vmem:[%s0 + $0x5c8] sm:$0xff]
  %v207 = vld [vmem:[%s0 + $0x5d0] sm:$0xff]
  %v208 = vld [vmem:[%s0 + $0x5d8] sm:$0xf]
  %v209 = vld [vmem:[%s0 + $0x5dc] sm:$0xff]
  %v210 = vld [vmem:[%s0 + $0x5e4] sm:$0xff]
  %v211 = vld [vmem:[%s0 + $0x5ec] sm:$0xff]
  %v212 = vld [vmem:[%s0 + $0x5f4] sm:$0xff]
  %v213 = vld [vmem:[%s0 + $0x5fc] sm:$0xff]
  %v214 = vld [vmem:[%s0 + $0x604] sm:$0xff]
  %v215 = vld [vmem:[%s0 + $0x60c] sm:$0xff]
  %v216 = vld [vmem:[%s0 + $0x614] sm:$0xff]
  %v217 = vld [vmem:[%s0 + $0x61c] sm:$0xff]
  %v218 = vld [vmem:[%s0 + $0x624] sm:$0xff]
  %v219 = vld [vmem:[%s0 + $0x62c] sm:$0xff]
  %v220 = vld [vmem:[%s0 + $0x634] sm:$0xff]
  %v221 = vld [vmem:[%s0 + $0x63c] sm:$0xf]
  %v222 = vld [vmem:[%s0 + $0x640] sm:$0xff]
  %v223 = vld [vmem:[%s0 + $0x648] sm:$0xff]
  %v224 = vld [vmem:[%s0 + $0x650] sm:$0xff]
  %v225 = vld [vmem:[%s0 + $0x658] sm:$0xff]
  %v226 = vld [vmem:[%s0 + $0x660] sm:$0xff]
  %v227 = vld [vmem:[%s0 + $0x668] sm:$0xff]
  %v228 = vld [vmem:[%s0 + $0x670] sm:$0xff]
  %v229 = vld [vmem:[%s0 + $0x678] sm:$0xff]
  %v230 = vld [vmem:[%s0 + $0x680] sm:$0xff]
  %v231 = vld [vmem:[%s0 + $0x688] sm:$0xff]
  %v232 = vld [vmem:[%s0 + $0x690] sm:$0xff]
  %v233 = vld [vmem:[%s0 + $0x698] sm:$0xff]
  %v234 = vld [vmem:[%s0 + $0x6a0] sm:$0xf]
  %v235 = vld [vmem:[%s0 + $0x6a4] sm:$0xff]
  %v236 = vld [vmem:[%s0 + $0x6ac] sm:$0xff]
  %v237 = vld [vmem:[%s0 + $0x6b4] sm:$0xff]
  %v238 = vld [vmem:[%s0 + $0x6bc] sm:$0xff]
  %v239 = vld [vmem:[%s0 + $0x6c4] sm:$0xff]
  %v240 = vld [vmem:[%s0 + $0x6cc] sm:$0xff]
  %v241 = vld [vmem:[%s0 + $0x6d4] sm:$0xff]
  %v242 = vld [vmem:[%s0 + $0x6dc] sm:$0xff]
  %v243 = vld [vmem:[%s0 + $0x6e4] sm:$0xff]
  %v244 = vld [vmem:[%s0 + $0x6ec] sm:$0xff]
  %v245 = vld [vmem:[%s0 + $0x6f4] sm:$0xff]
  %v246 = vld [vmem:[%s0 + $0x6fc] sm:$0xff]
  %v247 = vld [vmem:[%s0 + $0x704] sm:$0xf]
  %v248 = vld [vmem:[%s0 + $0x708] sm:$0xff]
  %v249 = vld [vmem:[%s0 + $0x710] sm:$0xff]
  %v250 = vld [vmem:[%s0 + $0x718] sm:$0xff]
  %v251 = vld [vmem:[%s0 + $0x720] sm:$0xff]
  %v252 = vld [vmem:[%s0 + $0x728] sm:$0xff]
  %v253 = vld [vmem:[%s0 + $0x730] sm:$0xff]
  %v254 = vld [vmem:[%s0 + $0x738] sm:$0xff]
  %v255 = vld [vmem:[%s0 + $0x740] sm:$0xff]
  %v256 = vld [vmem:[%s0 + $0x748] sm:$0xff]
  %v257 = vld [vmem:[%s0 + $0x750] sm:$0xff]
  %v258 = vld [vmem:[%s0 + $0x758] sm:$0xff]
  %v259 = vld [vmem:[%s0 + $0x760] sm:$0xff]
  %v260 = vld [vmem:[%s0 + $0x768] sm:$0xf]
  %v261 = vld [vmem:[%s0 + $0x76c] sm:$0xff]
  %v262 = vld [vmem:[%s0 + $0x774] sm:$0xff]
  %v263 = vld [vmem:[%s0 + $0x77c] sm:$0xff]
  %v264 = vld [vmem:[%s0 + $0x784] sm:$0xff]
  %v265 = vld [vmem:[%s0 + $0x78c] sm:$0xff]
  %v266 = vld [vmem:[%s0 + $0x794] sm:$0xff]
  %v267 = vld [vmem:[%s0 + $0x79c] sm:$0xff]
  %v268 = vld [vmem:[%s0 + $0x7a4] sm:$0xff]
  %v269 = vld [vmem:[%s0 + $0x7ac] sm:$0xff]
  %v270 = vld [vmem:[%s0 + $0x7b4] sm:$0xff]
  %v271 = vld [vmem:[%s0 + $0x7bc] sm:$0xff]
  %v272 = vld [vmem:[%s0 + $0x7c4] sm:$0xff]
  %v273 = vld [vmem:[%s0 + $0x7cc] sm:$0xf]
  %v274 = vld [vmem:[%s0 + $0x7d0] sm:$0xff]
  %v275 = vld [vmem:[%s0 + $0x7d8] sm:$0xff]
  %v276 = vld [vmem:[%s0 + $0x7e0] sm:$0xff]
  %v277 = vld [vmem:[%s0 + $0x7e8] sm:$0xff]
  %v278 = vld [vmem:[%s0 + $0x7f0] sm:$0xff]
  %v279 = vld [vmem:[%s0 + $0x7f8] sm:$0xff]
  %v280 = vld [vmem:[%s0 + $0x800] sm:$0xff]
  %v281 = vld [vmem:[%s0 + $0x808] sm:$0xff]
  %v282 = vld [vmem:[%s0 + $0x810] sm:$0xff]
  %v283 = vld [vmem:[%s0 + $0x818] sm:$0xff]
  %v284 = vld [vmem:[%s0 + $0x820] sm:$0xff]
  %v285 = vld [vmem:[%s0 + $0x828] sm:$0xff]
  %v286 = vld [vmem:[%s0 + $0x830] sm:$0xf]
  %v287 = vld [vmem:[%s0 + $0x834] sm:$0xff]
  %v288 = vld [vmem:[%s0 + $0x83c] sm:$0xff]
  %v289 = vld [vmem:[%s0 + $0x844] sm:$0xff]
  %v290 = vld [vmem:[%s0 + $0x84c] sm:$0xff]
  %v291 = vld [vmem:[%s0 + $0x854] sm:$0xff]
  %v292 = vld [vmem:[%s0 + $0x85c] sm:$0xff]
  %v293 = vld [vmem:[%s0 + $0x864] sm:$0xff]
  %v294 = vld [vmem:[%s0 + $0x86c] sm:$0xff]
  %v295 = vld [vmem:[%s0 + $0x874] sm:$0xff]
  %v296 = vld [vmem:[%s0 + $0x87c] sm:$0xff]
  %v297 = vld [vmem:[%s0 + $0x884] sm:$0xff]
  %v298 = vld [vmem:[%s0 + $0x88c] sm:$0xff]
  %v299 = vld [vmem:[%s0 + $0x894] sm:$0xf]
  %v300 = vld [vmem:[%s0 + $0x898] sm:$0xff]
  %v301 = vld [vmem:[%s0 + $0x8a0] sm:$0xff]
  %v302 = vld [vmem:[%s0 + $0x8a8] sm:$0xff]
  %v303 = vld [vmem:[%s0 + $0x8b0] sm:$0xff]
  %v304 = vld [vmem:[%s0 + $0x8b8] sm:$0xff]
  %v305 = vld [vmem:[%s0 + $0x8c0] sm:$0xff]
  %v306 = vld [vmem:[%s0 + $0x8c8] sm:$0xff]
  %v307 = vld [vmem:[%s0 + $0x8d0] sm:$0xff]
  %v308 = vld [vmem:[%s0 + $0x8d8] sm:$0xff]
  %v309 = vld [vmem:[%s0 + $0x8e0] sm:$0xff]
  %v310 = vld [vmem:[%s0 + $0x8e8] sm:$0xff]
  %v311 = vld [vmem:[%s0 + $0x8f0] sm:$0xff]
  %v312 = vld [vmem:[%s0 + $0x8f8] sm:$0xf]
  %v313 = vld [vmem:[%s0 + $0x8fc] sm:$0xff]
  %v314 = vld [vmem:[%s0 + $0x904] sm:$0xff]
  %v315 = vld [vmem:[%s0 + $0x90c] sm:$0xff]
  %v316 = vld [vmem:[%s0 + $0x914] sm:$0xff]
  %v317 = vld [vmem:[%s0 + $0x91c] sm:$0xff]
  %v318 = vld [vmem:[%s0 + $0x924] sm:$0xff]
  %v319 = vld [vmem:[%s0 + $0x92c] sm:$0xff]
  %v320 = vld [vmem:[%s0 + $0x934] sm:$0xff]
  %v321 = vld [vmem:[%s0 + $0x93c] sm:$0xff]
  %v322 = vld [vmem:[%s0 + $0x944] sm:$0xff]
  %v323 = vld [vmem:[%s0 + $0x94c] sm:$0xff]
  %v324 = vld [vmem:[%s0 + $0x954] sm:$0xff]
  %v325 = vld [vmem:[%s0 + $0x95c] sm:$0xf]
  %v326 = vld [vmem:[%s0 + $0x960] sm:$0xff]
  %v327 = vld [vmem:[%s0 + $0x968] sm:$0xff]
  %v328 = vld [vmem:[%s0 + $0x970] sm:$0xff]
  %v329 = vld [vmem:[%s0 + $0x978] sm:$0xff]
  %v330 = vld [vmem:[%s0 + $0x980] sm:$0xff]
  %v331 = vld [vmem:[%s0 + $0x988] sm:$0xff]
  %v332 = vld [vmem:[%s0 + $0x990] sm:$0xff]
  %v333 = vld [vmem:[%s0 + $0x998] sm:$0xff]
  %v334 = vld [vmem:[%s0 + $0x9a0] sm:$0xff]
  %v335 = vld [vmem:[%s0 + $0x9a8] sm:$0xff]
  %v336 = vld [vmem:[%s0 + $0x9b0] sm:$0xff]
  %v337 = vld [vmem:[%s0 + $0x9b8] sm:$0xff]
  %v338 = vld [vmem:[%s0 + $0x9c0] sm:$0xf]
  %v339 = vld [vmem:[%s1] sm:$0xf]
  %v340 = vld [vmem:[%s1 + $0x4] sm:$0xf]
  %v341 = vld [vmem:[%s1 + $0x8] sm:$0xf]
  %v342 = vld [vmem:[%s1 + $0xc] sm:$0xf]
  %v343 = vld [vmem:[%s1 + $0x10] sm:$0xf]
  %v344 = vld [vmem:[%s1 + $0x14] sm:$0xf]
  %v345 = vld [vmem:[%s1 + $0x18] sm:$0xf]
  %v346 = vld [vmem:[%s1 + $0x1c] sm:$0xf]
  %v347 = vld [vmem:[%s1 + $0x20] sm:$0xf]
  %v348 = vld [vmem:[%s1 + $0x24] sm:$0xf]
  %v349 = vld [vmem:[%s1 + $0x28] sm:$0xf]
  %v350 = vld [vmem:[%s1 + $0x2c] sm:$0xf]
  %v351 = vld [vmem:[%s1 + $0x30] sm:$0xf]
  %v352 = vld [vmem:[%s1 + $0x34] sm:$0xf]
  %v353 = vld [vmem:[%s1 + $0x38] sm:$0xf]
  %v354 = vld [vmem:[%s1 + $0x3c] sm:$0xf]
  %v355 = vld [vmem:[%s1 + $0x40] sm:$0xf]
  %v356 = vld [vmem:[%s1 + $0x44] sm:$0xf]
  %v357 = vld [vmem:[%s1 + $0x48] sm:$0xf]
  %v358 = vld [vmem:[%s1 + $0x4c] sm:$0xf]
  %v359 = vld [vmem:[%s1 + $0x50] sm:$0xf]
  %v360 = vld [vmem:[%s1 + $0x54] sm:$0xf]
  %v361 = vld [vmem:[%s1 + $0x58] sm:$0xf]
  %v362 = vld [vmem:[%s1 + $0x5c] sm:$0xf]
  %v363 = vld [vmem:[%s1 + $0x60] sm:$0xf]
  %v364 = vld [vmem:[%s1 + $0x64] sm:$0xf]
  %v365 = vld [vmem:[%s1 + $0x68] sm:$0xf]
  %v366 = vld [vmem:[%s1 + $0x6c] sm:$0xf]
  %v367 = vld [vmem:[%s1 + $0x70] sm:$0xf]
  %v368 = vld [vmem:[%s1 + $0x74] sm:$0xf]
  %v369 = vld [vmem:[%s1 + $0x78] sm:$0xf]
  %v370 = vld [vmem:[%s1 + $0x7c] sm:$0xf]
  %v371 = vld [vmem:[%s1 + $0x80] sm:$0xf]
  %v372 = vld [vmem:[%s1 + $0x84] sm:$0xf]
  %v373 = vld [vmem:[%s1 + $0x88] sm:$0xf]
  %v374 = vld [vmem:[%s1 + $0x8c] sm:$0xf]
  %v375 = vld [vmem:[%s1 + $0x90] sm:$0xf]
  %v376 = vld [vmem:[%s1 + $0x94] sm:$0xf]
  %v377 = vld [vmem:[%s1 + $0x98] sm:$0xf]
  %v378 = vld [vmem:[%s1 + $0x9c] sm:$0xf]
  %v379 = vld [vmem:[%s1 + $0xa0] sm:$0xf]
  %v380 = vld [vmem:[%s1 + $0xa4] sm:$0xf]
  %v381 = vld [vmem:[%s1 + $0xa8] sm:$0xf]
  %v382 = vld [vmem:[%s1 + $0xac] sm:$0xf]
  %v383 = vld [vmem:[%s1 + $0xb0] sm:$0xf]
  %v384 = vld [vmem:[%s1 + $0xb4] sm:$0xf]
  %v385 = vld [vmem:[%s1 + $0xb8] sm:$0xf]
  %v386 = vld [vmem:[%s1 + $0xbc] sm:$0xf]
  %v387 = vld [vmem:[%s1 + $0xc0] sm:$0xf]
  %v388 = vld [vmem:[%s1 + $0xc4] sm:$0xf]
  %v389 = vld [vmem:[%s1 + $0xc8] sm:$0xf]
  %v390 = vld [vmem:[%s1 + $0xcc] sm:$0xf]
  %v391 = vld [vmem:[%s1 + $0xd0] sm:$0xf]
  %v392 = vld [vmem:[%s1 + $0xd4] sm:$0xf]
  %v393 = vld [vmem:[%s1 + $0xd8] sm:$0xf]
  %v394 = vld [vmem:[%s1 + $0xdc] sm:$0xf]
  %v395 = vld [vmem:[%s1 + $0xe0] sm:$0xf]
  %v396 = vld [vmem:[%s1 + $0xe4] sm:$0xf]
  %v397 = vld [vmem:[%s1 + $0xe8] sm:$0xf]
  %v398 = vld [vmem:[%s1 + $0xec] sm:$0xf]
  %v399 = vld [vmem:[%s1 + $0xf0] sm:$0xf]
  %v400 = vld [vmem:[%s1 + $0xf4] sm:$0xf]
  %v401 = vld [vmem:[%s1 + $0xf8] sm:$0xf]
  %v402 = vld [vmem:[%s1 + $0xfc] sm:$0xf]
  %v403 = vld [vmem:[%s1 + $0x100] sm:$0xf]
  %v404 = vld [vmem:[%s1 + $0x104] sm:$0xf]
  %v405 = vld [vmem:[%s1 + $0x108] sm:$0xf]
  %v406 = vld [vmem:[%s1 + $0x10c] sm:$0xf]
  %v407 = vld [vmem:[%s1 + $0x110] sm:$0xf]
  %v408 = vld [vmem:[%s1 + $0x114] sm:$0xf]
  %v409 = vld [vmem:[%s1 + $0x118] sm:$0xf]
  %v410 = vld [vmem:[%s1 + $0x11c] sm:$0xf]
  %v411 = vld [vmem:[%s1 + $0x120] sm:$0xf]
  %v412 = vld [vmem:[%s1 + $0x124] sm:$0xf]
  %v413 = vld [vmem:[%s1 + $0x128] sm:$0xf]
  %v414 = vld [vmem:[%s1 + $0x12c] sm:$0xf]
  %v415 = vld [vmem:[%s1 + $0x130] sm:$0xf]
  %v416 = vld [vmem:[%s1 + $0x134] sm:$0xf]
  %v417 = vld [vmem:[%s1 + $0x138] sm:$0xf]
  %v418 = vld [vmem:[%s1 + $0x13c] sm:$0xf]
  %v419 = vld [vmem:[%s1 + $0x140] sm:$0xf]
  %v420 = vld [vmem:[%s1 + $0x144] sm:$0xf]
  %v421 = vld [vmem:[%s1 + $0x148] sm:$0xf]
  %v422 = vld [vmem:[%s1 + $0x14c] sm:$0xf]
  %v423 = vld [vmem:[%s1 + $0x150] sm:$0xf]
  %v424 = vld [vmem:[%s1 + $0x154] sm:$0xf]
  %v425 = vld [vmem:[%s1 + $0x158] sm:$0xf]
  %v426 = vld [vmem:[%s1 + $0x15c] sm:$0xf]
  %v427 = vld [vmem:[%s1 + $0x160] sm:$0xf]
  %v428 = vld [vmem:[%s1 + $0x164] sm:$0xf]
  %v429 = vld [vmem:[%s1 + $0x168] sm:$0xf]
  %v430 = vld [vmem:[%s1 + $0x16c] sm:$0xf]
  %v431 = vld [vmem:[%s1 + $0x170] sm:$0xf]
  %v432 = vld [vmem:[%s1 + $0x174] sm:$0xf]
  %v433 = vld [vmem:[%s1 + $0x178] sm:$0xf]
  %v434 = vld [vmem:[%s1 + $0x17c] sm:$0xf]
  %v435 = vld [vmem:[%s1 + $0x180] sm:$0xf]
  %v436 = vld [vmem:[%s1 + $0x184] sm:$0xf]
  %v437 = vld [vmem:[%s1 + $0x188] sm:$0xf]
  %v438 = vld [vmem:[%s1 + $0x18c] sm:$0xf]
  %v439 = vld [vmem:[%s1 + $0x190] sm:$0xf]
  %v440 = vld [vmem:[%s1 + $0x194] sm:$0xf]
  %v441 = vld [vmem:[%s1 + $0x198] sm:$0xf]
  %v442 = vld [vmem:[%s1 + $0x19c] sm:$0xf]
  %v443 = vld [vmem:[%s1 + $0x1a0] sm:$0xf]
  %v444 = vld [vmem:[%s1 + $0x1a4] sm:$0xf]
  %v445 = vld [vmem:[%s1 + $0x1a8] sm:$0xf]
  %v446 = vld [vmem:[%s1 + $0x1ac] sm:$0xf]
  %v447 = vld [vmem:[%s1 + $0x1b0] sm:$0xf]
  %v448 = vld [vmem:[%s1 + $0x1b4] sm:$0xf]
  %v449 = vld [vmem:[%s1 + $0x1b8] sm:$0xf]
  %v450 = vld [vmem:[%s1 + $0x1bc] sm:$0xf]
  %v451 = vld [vmem:[%s1 + $0x1c0] sm:$0xf]
  %v452 = vld [vmem:[%s1 + $0x1c4] sm:$0xf]
  %v453 = vld [vmem:[%s1 + $0x1c8] sm:$0xf]
  %v454 = vld [vmem:[%s1 + $0x1cc] sm:$0xf]
  %v455 = vld [vmem:[%s1 + $0x1d0] sm:$0xf]
  %v456 = vld [vmem:[%s1 + $0x1d4] sm:$0xf]
  %v457 = vld [vmem:[%s1 + $0x1d8] sm:$0xf]
  %v458 = vld [vmem:[%s1 + $0x1dc] sm:$0xf]
  %v459 = vld [vmem:[%s1 + $0x1e0] sm:$0xf]
  %v460 = vld [vmem:[%s1 + $0x1e4] sm:$0xf]
  %v461 = vld [vmem:[%s1 + $0x1e8] sm:$0xf]
  %v462 = vld [vmem:[%s1 + $0x1ec] sm:$0xf]
  %v463 = vld [vmem:[%s1 + $0x1f0] sm:$0xf]
  %v464 = vld [vmem:[%s1 + $0x1f4] sm:$0xf]
  %v465 = vld [vmem:[%s1 + $0x1f8] sm:$0xf]
  %v466 = vld [vmem:[%s1 + $0x1fc] sm:$0xf]
  %v467 = vld [vmem:[%s1 + $0x200] sm:$0xf]
  %v468 = vld [vmem:[%s1 + $0x204] sm:$0xf]
  %v469 = vld [vmem:[%s1 + $0x208] sm:$0xf]
  %v470 = vld [vmem:[%s1 + $0x20c] sm:$0xf]
  %v471 = vld [vmem:[%s1 + $0x210] sm:$0xf]
  %v472 = vld [vmem:[%s1 + $0x214] sm:$0xf]
  %v473 = vld [vmem:[%s1 + $0x218] sm:$0xf]
  %v474 = vld [vmem:[%s1 + $0x21c] sm:$0xf]
  %v475 = vld [vmem:[%s1 + $0x220] sm:$0xf]
  %v476 = vld [vmem:[%s1 + $0x224] sm:$0xf]
  %v477 = vld [vmem:[%s1 + $0x228] sm:$0xf]
  %v478 = vld [vmem:[%s1 + $0x22c] sm:$0xf]
  %v479 = vld [vmem:[%s1 + $0x230] sm:$0xf]
  %v480 = vld [vmem:[%s1 + $0x234] sm:$0xf]
  %v481 = vld [vmem:[%s1 + $0x238] sm:$0xf]
  %v482 = vld [vmem:[%s1 + $0x23c] sm:$0xf]
  %v483 = vld [vmem:[%s1 + $0x240] sm:$0xf]
  %v484 = vld [vmem:[%s1 + $0x244] sm:$0xf]
  %v485 = vld [vmem:[%s1 + $0x248] sm:$0xf]
  %v486 = vld [vmem:[%s1 + $0x24c] sm:$0xf]
  %v487 = vld [vmem:[%s1 + $0x250] sm:$0xf]
  %v488 = vld [vmem:[%s1 + $0x254] sm:$0xf]
  %v489 = vld [vmem:[%s1 + $0x258] sm:$0xf]
  %v490 = vld [vmem:[%s1 + $0x25c] sm:$0xf]
  %v491 = vld [vmem:[%s1 + $0x260] sm:$0xf]
  %v492 = vld [vmem:[%s1 + $0x264] sm:$0xf]
  %v493 = vld [vmem:[%s1 + $0x268] sm:$0xf]
  %v494 = vld [vmem:[%s1 + $0x26c] sm:$0xf]
  %v495 = vld [vmem:[%s1 + $0x270] sm:$0xf]
  %v496 = vld [vmem:[%s1 + $0x274] sm:$0xf]
  %v497 = vld [vmem:[%s1 + $0x278] sm:$0xf]
  %v498 = vld [vmem:[%s1 + $0x27c] sm:$0xf]
  %v499 = vld [vmem:[%s1 + $0x280] sm:$0xf]
  %v500 = vld [vmem:[%s1 + $0x284] sm:$0xf]
  %v501 = vld [vmem:[%s1 + $0x288] sm:$0xf]
  %v502 = vld [vmem:[%s1 + $0x28c] sm:$0xf]
  %v503 = vld [vmem:[%s1 + $0x290] sm:$0xf]
  %v504 = vld [vmem:[%s1 + $0x294] sm:$0xf]
  %v505 = vld [vmem:[%s1 + $0x298] sm:$0xf]
  %v506 = vld [vmem:[%s1 + $0x29c] sm:$0xf]
  %v507 = vld [vmem:[%s1 + $0x2a0] sm:$0xf]
  %v508 = vld [vmem:[%s1 + $0x2a4] sm:$0xf]
  %v509 = vld [vmem:[%s1 + $0x2a8] sm:$0xf]
  %v510 = vld [vmem:[%s1 + $0x2ac] sm:$0xf]
  %v511 = vld [vmem:[%s1 + $0x2b0] sm:$0xf]
  %v512 = vld [vmem:[%s1 + $0x2b4] sm:$0xf]
  %v513 = vld [vmem:[%s1 + $0x2b8] sm:$0xf]
  %v514 = vld [vmem:[%s1 + $0x2bc] sm:$0xf]
  %v515 = vld [vmem:[%s1 + $0x2c0] sm:$0xf]
  %v516 = vld [vmem:[%s1 + $0x2c4] sm:$0xf]
  %v517 = vld [vmem:[%s1 + $0x2c8] sm:$0xf]
  %v518 = vld [vmem:[%s1 + $0x2cc] sm:$0xf]
  %v519 = vld [vmem:[%s1 + $0x2d0] sm:$0xf]
  %v520 = vld [vmem:[%s1 + $0x2d4] sm:$0xf]
  %v521 = vld [vmem:[%s1 + $0x2d8] sm:$0xf]
  %v522 = vld [vmem:[%s1 + $0x2dc] sm:$0xf]
  %v523 = vld [vmem:[%s1 + $0x2e0] sm:$0xf]
  %v524 = vld [vmem:[%s1 + $0x2e4] sm:$0xf]
  %v525 = vld [vmem:[%s1 + $0x2e8] sm:$0xf]
  %v526 = vld [vmem:[%s1 + $0x2ec] sm:$0xf]
  %v527 = vld [vmem:[%s1 + $0x2f0] sm:$0xf]
  %v528 = vld [vmem:[%s1 + $0x2f4] sm:$0xf]
  %v529 = vld [vmem:[%s1 + $0x2f8] sm:$0xf]
  %v530 = vld [vmem:[%s1 + $0x2fc] sm:$0xf]
  %v531 = vld [vmem:[%s1 + $0x300] sm:$0xf]
  %v532 = vld [vmem:[%s1 + $0x304] sm:$0xf]
  %v533 = vld [vmem:[%s1 + $0x308] sm:$0xf]
  %v534 = vld [vmem:[%s1 + $0x30c] sm:$0xf]
  %v535 = vld [vmem:[%s1 + $0x310] sm:$0xf]
  %v536 = vld [vmem:[%s1 + $0x314] sm:$0xf]
  %v537 = vld [vmem:[%s1 + $0x318] sm:$0xf]
  %v538 = vld [vmem:[%s1 + $0x31c] sm:$0xf]
  %v539 = vld [vmem:[%s1 + $0x320] sm:$0xf]
  %v540 = vld [vmem:[%s1 + $0x324] sm:$0xf]
  %v541 = vld [vmem:[%s1 + $0x328] sm:$0xf]
  %v542 = vld [vmem:[%s1 + $0x32c] sm:$0xf]
  %v543 = vld [vmem:[%s1 + $0x330] sm:$0xf]
  %v544 = vld [vmem:[%s1 + $0x334] sm:$0xf]
  %v545 = vld [vmem:[%s1 + $0x338] sm:$0xf]
  %v546 = vld [vmem:[%s1 + $0x33c] sm:$0xf]
  %v547 = vld [vmem:[%s1 + $0x340] sm:$0xf]
  %v548 = vld [vmem:[%s1 + $0x344] sm:$0xf]
  %v549 = vld [vmem:[%s1 + $0x348] sm:$0xf]
  %v550 = vld [vmem:[%s1 + $0x34c] sm:$0xf]
  %v551 = vld [vmem:[%s1 + $0x350] sm:$0xf]
  %v552 = vld [vmem:[%s1 + $0x354] sm:$0xf]
  %v553 = vld [vmem:[%s1 + $0x358] sm:$0xf]
  %v554 = vld [vmem:[%s1 + $0x35c] sm:$0xf]
  %v555 = vld [vmem:[%s1 + $0x360] sm:$0xf]
  %v556 = vld [vmem:[%s1 + $0x364] sm:$0xf]
  %v557 = vld [vmem:[%s1 + $0x368] sm:$0xf]
  %v558 = vld [vmem:[%s1 + $0x36c] sm:$0xf]
  %v559 = vld [vmem:[%s1 + $0x370] sm:$0xf]
  %v560 = vld [vmem:[%s1 + $0x374] sm:$0xf]
  %v561 = vld [vmem:[%s1 + $0x378] sm:$0xf]
  %v562 = vld [vmem:[%s1 + $0x37c] sm:$0xf]
  %v563 = vld [vmem:[%s1 + $0x380] sm:$0xf]
  %v564 = vld [vmem:[%s1 + $0x384] sm:$0xf]
  %v565 = vld [vmem:[%s1 + $0x388] sm:$0xf]
  %v566 = vld [vmem:[%s1 + $0x38c] sm:$0xf]
  %v567 = vld [vmem:[%s1 + $0x390] sm:$0xf]
  %v568 = vld [vmem:[%s1 + $0x394] sm:$0xf]
  %v569 = vld [vmem:[%s1 + $0x398] sm:$0xf]
  %v570 = vld [vmem:[%s1 + $0x39c] sm:$0xf]
  %v571 = vld [vmem:[%s1 + $0x3a0] sm:$0xf]
  %v572 = vld [vmem:[%s1 + $0x3a4] sm:$0xf]
  %v573 = vld [vmem:[%s1 + $0x3a8] sm:$0xf]
  %v574 = vld [vmem:[%s1 + $0x3ac] sm:$0xf]
  %v575 = vld [vmem:[%s1 + $0x3b0] sm:$0xf]
  %v576 = vld [vmem:[%s1 + $0x3b4] sm:$0xf]
  %v577 = vld [vmem:[%s1 + $0x3b8] sm:$0xf]
  %v578 = vld [vmem:[%s1 + $0x3bc] sm:$0xf]
  %v579 = vld [vmem:[%s1 + $0x3c0] sm:$0xf]
  %v580 = vld [vmem:[%s1 + $0x3c4] sm:$0xf]
  %v581 = vld [vmem:[%s1 + $0x3c8] sm:$0xf]
  %v582 = vld [vmem:[%s1 + $0x3cc] sm:$0xf]
  %v583 = vld [vmem:[%s1 + $0x3d0] sm:$0xf]
  %v584 = vld [vmem:[%s1 + $0x3d4] sm:$0xf]
  %v585 = vld [vmem:[%s1 + $0x3d8] sm:$0xf]
  %v586 = vld [vmem:[%s1 + $0x3dc] sm:$0xf]
  %v587 = vld [vmem:[%s1 + $0x3e0] sm:$0xf]
  %v588 = vld [vmem:[%s1 + $0x3e4] sm:$0xf]
  %v589 = vld [vmem:[%s1 + $0x3e8] sm:$0xf]
  %v590 = vld [vmem:[%s1 + $0x3ec] sm:$0xf]
  %v591 = vld [vmem:[%s1 + $0x3f0] sm:$0xf]
  %v592 = vld [vmem:[%s1 + $0x3f4] sm:$0xf]
  %v593 = vld [vmem:[%s1 + $0x3f8] sm:$0xf]
  %v594 = vld [vmem:[%s1 + $0x3fc] sm:$0xf]
  %v595 = vld [vmem:[%s1 + $0x400] sm:$0xf]
  %v596 = vld [vmem:[%s1 + $0x404] sm:$0xf]
  %v597 = vld [vmem:[%s1 + $0x408] sm:$0xf]
  %v598 = vld [vmem:[%s1 + $0x40c] sm:$0xf]
  %v599 = vld [vmem:[%s1 + $0x410] sm:$0xf]
  %v600 = vld [vmem:[%s1 + $0x414] sm:$0xf]
  %v601 = vld [vmem:[%s1 + $0x418] sm:$0xf]
  %v602 = vld [vmem:[%s1 + $0x41c] sm:$0xf]
  %v603 = vld [vmem:[%s1 + $0x420] sm:$0xf]
  %v604 = vld [vmem:[%s1 + $0x424] sm:$0xf]
  %v605 = vld [vmem:[%s1 + $0x428] sm:$0xf]
  %v606 = vld [vmem:[%s1 + $0x42c] sm:$0xf]
  %v607 = vld [vmem:[%s1 + $0x430] sm:$0xf]
  %v608 = vld [vmem:[%s1 + $0x434] sm:$0xf]
  %v609 = vld [vmem:[%s1 + $0x438] sm:$0xf]
  %v610 = vld [vmem:[%s1 + $0x43c] sm:$0xf]
  %v611 = vld [vmem:[%s1 + $0x440] sm:$0xf]
  %v612 = vld [vmem:[%s1 + $0x444] sm:$0xf]
  %v613 = vld [vmem:[%s1 + $0x448] sm:$0xf]
  %v614 = vld [vmem:[%s1 + $0x44c] sm:$0xf]
  %v615 = vld [vmem:[%s1 + $0x450] sm:$0xf]
  %v616 = vld [vmem:[%s1 + $0x454] sm:$0xf]
  %v617 = vld [vmem:[%s1 + $0x458] sm:$0xf]
  %v618 = vld [vmem:[%s1 + $0x45c] sm:$0xf]
  %v619 = vld [vmem:[%s1 + $0x460] sm:$0xf]
  %v620 = vld [vmem:[%s1 + $0x464] sm:$0xf]
  %v621 = vld [vmem:[%s1 + $0x468] sm:$0xf]
  %v622 = vld [vmem:[%s1 + $0x46c] sm:$0xf]
  %v623 = vld [vmem:[%s1 + $0x470] sm:$0xf]
  %v624 = vld [vmem:[%s1 + $0x474] sm:$0xf]
  %v625 = vld [vmem:[%s1 + $0x478] sm:$0xf]
  %v626 = vld [vmem:[%s1 + $0x47c] sm:$0xf]
  %v627 = vld [vmem:[%s1 + $0x480] sm:$0xf]
  %v628 = vld [vmem:[%s1 + $0x484] sm:$0xf]
  %v629 = vld [vmem:[%s1 + $0x488] sm:$0xf]
  %v630 = vld [vmem:[%s1 + $0x48c] sm:$0xf]
  %v631 = vld [vmem:[%s1 + $0x490] sm:$0xf]
  %v632 = vld [vmem:[%s1 + $0x494] sm:$0xf]
  %v633 = vld [vmem:[%s1 + $0x498] sm:$0xf]
  %v634 = vld [vmem:[%s1 + $0x49c] sm:$0xf]
  %v635 = vld [vmem:[%s1 + $0x4a0] sm:$0xf]
  %v636 = vld [vmem:[%s1 + $0x4a4] sm:$0xf]
  %v637 = vld [vmem:[%s1 + $0x4a8] sm:$0xf]
  %v638 = vld [vmem:[%s1 + $0x4ac] sm:$0xf]
  %v639 = vld [vmem:[%s1 + $0x4b0] sm:$0xf]
  %v640 = vld [vmem:[%s1 + $0x4b4] sm:$0xf]
  %v641 = vld [vmem:[%s1 + $0x4b8] sm:$0xf]
  %v642 = vld [vmem:[%s1 + $0x4bc] sm:$0xf]
  %v643 = vld [vmem:[%s1 + $0x4c0] sm:$0xf]
  %v644 = vld [vmem:[%s1 + $0x4c4] sm:$0xf]
  %v645 = vld [vmem:[%s1 + $0x4c8] sm:$0xf]
  %v646 = vld [vmem:[%s1 + $0x4cc] sm:$0xf]
  %v647 = vld [vmem:[%s1 + $0x4d0] sm:$0xf]
  %v648 = vld [vmem:[%s1 + $0x4d4] sm:$0xf]
  %v649 = vld [vmem:[%s1 + $0x4d8] sm:$0xf]
  %v650 = vld [vmem:[%s1 + $0x4dc] sm:$0xf]
  %v651 = vld [vmem:[%s1 + $0x4e0] sm:$0xf]
  %v652 = vld [vmem:[%s1 + $0x4e4] sm:$0xf]
  %v653 = vld [vmem:[%s1 + $0x4e8] sm:$0xf]
  %v654 = vld [vmem:[%s1 + $0x4ec] sm:$0xf]
  %v655 = vld [vmem:[%s1 + $0x4f0] sm:$0xf]
  %v656 = vld [vmem:[%s1 + $0x4f4] sm:$0xf]
  %v657 = vld [vmem:[%s1 + $0x4f8] sm:$0xf]
  %v658 = vld [vmem:[%s1 + $0x4fc] sm:$0xf]
  %v659 = vld [vmem:[%s1 + $0x500] sm:$0xf]
  %v660 = vld [vmem:[%s1 + $0x504] sm:$0xf]
  %v661 = vld [vmem:[%s1 + $0x508] sm:$0xf]
  %v662 = vld [vmem:[%s1 + $0x50c] sm:$0xf]
  %v663 = vld [vmem:[%s1 + $0x510] sm:$0xf]
  %v664 = vld [vmem:[%s1 + $0x514] sm:$0xf]
  %v665 = vld [vmem:[%s1 + $0x518] sm:$0xf]
  %v666 = vld [vmem:[%s1 + $0x51c] sm:$0xf]
  %v667 = vld [vmem:[%s1 + $0x520] sm:$0xf]
  %v668 = vld [vmem:[%s1 + $0x524] sm:$0xf]
  %v669 = vld [vmem:[%s1 + $0x528] sm:$0xf]
  %v670 = vld [vmem:[%s1 + $0x52c] sm:$0xf]
  %v671 = vld [vmem:[%s1 + $0x530] sm:$0xf]
  %v672 = vld [vmem:[%s1 + $0x534] sm:$0xf]
  %v673 = vld [vmem:[%s1 + $0x538] sm:$0xf]
  %v674 = vld [vmem:[%s1 + $0x53c] sm:$0xf]
  %v675 = vld [vmem:[%s1 + $0x540] sm:$0xf]
  %v676 = vld [vmem:[%s1 + $0x544] sm:$0xf]
  %v677 = vld [vmem:[%s1 + $0x548] sm:$0xf]
  %v678 = vld [vmem:[%s1 + $0x54c] sm:$0xf]
  %v679 = vld [vmem:[%s1 + $0x550] sm:$0xf]
  %v680 = vld [vmem:[%s1 + $0x554] sm:$0xf]
  %v681 = vld [vmem:[%s1 + $0x558] sm:$0xf]
  %v682 = vld [vmem:[%s1 + $0x55c] sm:$0xf]
  %v683 = vld [vmem:[%s1 + $0x560] sm:$0xf]
  %v684 = vld [vmem:[%s1 + $0x564] sm:$0xf]
  %v685 = vld [vmem:[%s1 + $0x568] sm:$0xf]
  %v686 = vld [vmem:[%s1 + $0x56c] sm:$0xf]
  %v687 = vld [vmem:[%s1 + $0x570] sm:$0xf]
  %v688 = vld [vmem:[%s1 + $0x574] sm:$0xf]
  %v689 = vld [vmem:[%s1 + $0x578] sm:$0xf]
  %v690 = vld [vmem:[%s1 + $0x57c] sm:$0xf]
  %v691 = vld [vmem:[%s1 + $0x580] sm:$0xf]
  %v692 = vld [vmem:[%s1 + $0x584] sm:$0xf]
  %v693 = vld [vmem:[%s1 + $0x588] sm:$0xf]
  %v694 = vld [vmem:[%s1 + $0x58c] sm:$0xf]
  %v695 = vld [vmem:[%s1 + $0x590] sm:$0xf]
  %v696 = vld [vmem:[%s1 + $0x594] sm:$0xf]
  %v697 = vld [vmem:[%s1 + $0x598] sm:$0xf]
  %v698 = vld [vmem:[%s1 + $0x59c] sm:$0xf]
  %v699 = vld [vmem:[%s1 + $0x5a0] sm:$0xf]
  %v700 = vld [vmem:[%s1 + $0x5a4] sm:$0xf]
  %v701 = vld [vmem:[%s1 + $0x5a8] sm:$0xf]
  %v702 = vld [vmem:[%s1 + $0x5ac] sm:$0xf]
  %v703 = vld [vmem:[%s1 + $0x5b0] sm:$0xf]
  %v704 = vld [vmem:[%s1 + $0x5b4] sm:$0xf]
  %v705 = vld [vmem:[%s1 + $0x5b8] sm:$0xf]
  %v706 = vld [vmem:[%s1 + $0x5bc] sm:$0xf]
  %v707 = vld [vmem:[%s1 + $0x5c0] sm:$0xf]
  %v708 = vld [vmem:[%s1 + $0x5c4] sm:$0xf]
  %v709 = vld [vmem:[%s1 + $0x5c8] sm:$0xf]
  %v710 = vld [vmem:[%s1 + $0x5cc] sm:$0xf]
  %v711 = vld [vmem:[%s1 + $0x5d0] sm:$0xf]
  %v712 = vld [vmem:[%s1 + $0x5d4] sm:$0xf]
  %v713 = vld [vmem:[%s1 + $0x5d8] sm:$0xf]
  %v714 = vld [vmem:[%s1 + $0x5dc] sm:$0xf]
  %v715 = vld [vmem:[%s1 + $0x5e0] sm:$0xf]
  %v716 = vld [vmem:[%s1 + $0x5e4] sm:$0xf]
  %v717 = vld [vmem:[%s1 + $0x5e8] sm:$0xf]
  %v718 = vld [vmem:[%s1 + $0x5ec] sm:$0xf]
  %v719 = vld [vmem:[%s1 + $0x5f0] sm:$0xf]
  %v720 = vld [vmem:[%s1 + $0x5f4] sm:$0xf]
  %v721 = vld [vmem:[%s1 + $0x5f8] sm:$0xf]
  %v722 = vld [vmem:[%s1 + $0x5fc] sm:$0xf]
  %v723 = vld [vmem:[%s1 + $0x600] sm:$0xf]
  %v724 = vld [vmem:[%s1 + $0x604] sm:$0xf]
  %v725 = vld [vmem:[%s1 + $0x608] sm:$0xf]
  %v726 = vld [vmem:[%s1 + $0x60c] sm:$0xf]
  %v727 = vld [vmem:[%s1 + $0x610] sm:$0xf]
  %v728 = vld [vmem:[%s1 + $0x614] sm:$0xf]
  %v729 = vld [vmem:[%s1 + $0x618] sm:$0xf]
  %v730 = vld [vmem:[%s1 + $0x61c] sm:$0xf]
  %v731 = vld [vmem:[%s1 + $0x620] sm:$0xf]
  %v732 = vld [vmem:[%s1 + $0x624] sm:$0xf]
  %v733 = vld [vmem:[%s1 + $0x628] sm:$0xf]
  %v734 = vld [vmem:[%s1 + $0x62c] sm:$0xf]
  %v735 = vld [vmem:[%s1 + $0x630] sm:$0xf]
  %v736 = vld [vmem:[%s1 + $0x634] sm:$0xf]
  %v737 = vld [vmem:[%s1 + $0x638] sm:$0xf]
  %v738 = vld [vmem:[%s1 + $0x63c] sm:$0xf]
  %v739 = vld [vmem:[%s2] sm:$0x1]
  %v741 = vperm.slane %v739, 0
  %v1068 = vunpack.c.l.b16 %v14
  %v1069 = vunpack.c.h.b16 %v14
  %v1070 = vunpack.c.l.b16 %v15
  %v1071 = vunpack.c.h.b16 %v15
  %v1072 = vunpack.c.l.b16 %v16
  %v1073 = vunpack.c.h.b16 %v16
  %v1074 = vunpack.c.l.b16 %v17
  %v1075 = vunpack.c.h.b16 %v17
  %v1076 = vunpack.c.l.b16 %v18
  %v1077 = vunpack.c.h.b16 %v18
  %v1078 = vunpack.c.l.b16 %v19
  %v1079 = vunpack.c.h.b16 %v19
  %v1080 = vunpack.c.l.b16 %v20
  %v1081 = vunpack.c.h.b16 %v20
  %v1082 = vunpack.c.l.b16 %v21
  %v1083 = vunpack.c.h.b16 %v21
  %v1084 = vunpack.c.l.b16 %v22
  %v1085 = vunpack.c.h.b16 %v22
  %v1086 = vunpack.c.l.b16 %v23
  %v1087 = vunpack.c.h.b16 %v23
  %v1088 = vunpack.c.l.b16 %v24
  %v1089 = vunpack.c.h.b16 %v24
  %v1090 = vunpack.c.l.b16 %v25
  %v1091 = vunpack.c.h.b16 %v25
  %v1092 = vunpack.c.l.b16 %v26
  %v1093 = vunpack.c.l.b16 %v27
  %v1094 = vunpack.c.h.b16 %v27
  %v1095 = vunpack.c.l.b16 %v28
  %v1096 = vunpack.c.h.b16 %v28
  %v1097 = vunpack.c.l.b16 %v29
  %v1098 = vunpack.c.h.b16 %v29
  %v1099 = vunpack.c.l.b16 %v30
  %v1100 = vunpack.c.h.b16 %v30
  %v1101 = vunpack.c.l.b16 %v31
  %v1102 = vunpack.c.h.b16 %v31
  %v1103 = vunpack.c.l.b16 %v32
  %v1104 = vunpack.c.h.b16 %v32
  %v1105 = vunpack.c.l.b16 %v33
  %v1106 = vunpack.c.h.b16 %v33
  %v1107 = vunpack.c.l.b16 %v34
  %v1108 = vunpack.c.h.b16 %v34
  %v1109 = vunpack.c.l.b16 %v35
  %v1110 = vunpack.c.h.b16 %v35
  %v1111 = vunpack.c.l.b16 %v36
  %v1112 = vunpack.c.h.b16 %v36
  %v1113 = vunpack.c.l.b16 %v37
  %v1114 = vunpack.c.h.b16 %v37
  %v1115 = vunpack.c.l.b16 %v38
  %v1116 = vunpack.c.h.b16 %v38
  %v1117 = vunpack.c.l.b16 %v39
  %v1118 = vunpack.c.l.b16 %v40
  %v1119 = vunpack.c.h.b16 %v40
  %v1120 = vunpack.c.l.b16 %v41
  %v1121 = vunpack.c.h.b16 %v41
  %v1122 = vunpack.c.l.b16 %v42
  %v1123 = vunpack.c.h.b16 %v42
  %v1124 = vunpack.c.l.b16 %v43
  %v1125 = vunpack.c.h.b16 %v43
  %v1126 = vunpack.c.l.b16 %v44
  %v1127 = vunpack.c.h.b16 %v44
  %v1128 = vunpack.c.l.b16 %v45
  %v1129 = vunpack.c.h.b16 %v45
  %v1130 = vunpack.c.l.b16 %v46
  %v1131 = vunpack.c.h.b16 %v46
  %v1132 = vunpack.c.l.b16 %v47
  %v1133 = vunpack.c.h.b16 %v47
  %v1134 = vunpack.c.l.b16 %v48
  %v1135 = vunpack.c.h.b16 %v48
  %v1136 = vunpack.c.l.b16 %v49
  %v1137 = vunpack.c.h.b16 %v49
  %v1138 = vunpack.c.l.b16 %v50
  %v1139 = vunpack.c.h.b16 %v50
  %v1140 = vunpack.c.l.b16 %v51
  %v1141 = vunpack.c.h.b16 %v51
  %v1142 = vunpack.c.l.b16 %v52
  %v1143 = vunpack.c.l.b16 %v53
  %v1144 = vunpack.c.h.b16 %v53
  %v1145 = vunpack.c.l.b16 %v54
  %v1146 = vunpack.c.h.b16 %v54
  %v1147 = vunpack.c.l.b16 %v55
  %v1148 = vunpack.c.h.b16 %v55
  %v1149 = vunpack.c.l.b16 %v56
  %v1150 = vunpack.c.h.b16 %v56
  %v1151 = vunpack.c.l.b16 %v57
  %v1152 = vunpack.c.h.b16 %v57
  %v1153 = vunpack.c.l.b16 %v58
  %v1154 = vunpack.c.h.b16 %v58
  %v1155 = vunpack.c.l.b16 %v59
  %v1156 = vunpack.c.h.b16 %v59
  %v1157 = vunpack.c.l.b16 %v60
  %v1158 = vunpack.c.h.b16 %v60
  %v1159 = vunpack.c.l.b16 %v61
  %v1160 = vunpack.c.h.b16 %v61
  %v1161 = vunpack.c.l.b16 %v62
  %v1162 = vunpack.c.h.b16 %v62
  %v1163 = vunpack.c.l.b16 %v63
  %v1164 = vunpack.c.h.b16 %v63
  %v1165 = vunpack.c.l.b16 %v64
  %v1166 = vunpack.c.h.b16 %v64
  %v1167 = vunpack.c.l.b16 %v65
  %v1168 = vunpack.c.l.b16 %v66
  %v1169 = vunpack.c.h.b16 %v66
  %v1170 = vunpack.c.l.b16 %v67
  %v1171 = vunpack.c.h.b16 %v67
  %v1172 = vunpack.c.l.b16 %v68
  %v1173 = vunpack.c.h.b16 %v68
  %v1174 = vunpack.c.l.b16 %v69
  %v1175 = vunpack.c.h.b16 %v69
  %v1176 = vunpack.c.l.b16 %v70
  %v1177 = vunpack.c.h.b16 %v70
  %v1178 = vunpack.c.l.b16 %v71
  %v1179 = vunpack.c.h.b16 %v71
  %v1180 = vunpack.c.l.b16 %v72
  %v1181 = vunpack.c.h.b16 %v72
  %v1182 = vunpack.c.l.b16 %v73
  %v1183 = vunpack.c.h.b16 %v73
  %v1184 = vunpack.c.l.b16 %v74
  %v1185 = vunpack.c.h.b16 %v74
  %v1186 = vunpack.c.l.b16 %v75
  %v1187 = vunpack.c.h.b16 %v75
  %v1188 = vunpack.c.l.b16 %v76
  %v1189 = vunpack.c.h.b16 %v76
  %v1190 = vunpack.c.l.b16 %v77
  %v1191 = vunpack.c.h.b16 %v77
  %v1192 = vunpack.c.l.b16 %v78
  %v1193 = vunpack.c.l.b16 %v79
  %v1194 = vunpack.c.h.b16 %v79
  %v1195 = vunpack.c.l.b16 %v80
  %v1196 = vunpack.c.h.b16 %v80
  %v1197 = vunpack.c.l.b16 %v81
  %v1198 = vunpack.c.h.b16 %v81
  %v1199 = vunpack.c.l.b16 %v82
  %v1200 = vunpack.c.h.b16 %v82
  %v1201 = vunpack.c.l.b16 %v83
  %v1202 = vunpack.c.h.b16 %v83
  %v1203 = vunpack.c.l.b16 %v84
  %v1204 = vunpack.c.h.b16 %v84
  %v1205 = vunpack.c.l.b16 %v85
  %v1206 = vunpack.c.h.b16 %v85
  %v1207 = vunpack.c.l.b16 %v86
  %v1208 = vunpack.c.h.b16 %v86
  %v1209 = vunpack.c.l.b16 %v87
  %v1210 = vunpack.c.h.b16 %v87
  %v1211 = vunpack.c.l.b16 %v88
  %v1212 = vunpack.c.h.b16 %v88
  %v1213 = vunpack.c.l.b16 %v89
  %v1214 = vunpack.c.h.b16 %v89
  %v1215 = vunpack.c.l.b16 %v90
  %v1216 = vunpack.c.h.b16 %v90
  %v1217 = vunpack.c.l.b16 %v91
  %v1218 = vunpack.c.l.b16 %v92
  %v1219 = vunpack.c.h.b16 %v92
  %v1220 = vunpack.c.l.b16 %v93
  %v1221 = vunpack.c.h.b16 %v93
  %v1222 = vunpack.c.l.b16 %v94
  %v1223 = vunpack.c.h.b16 %v94
  %v1224 = vunpack.c.l.b16 %v95
  %v1225 = vunpack.c.h.b16 %v95
  %v1226 = vunpack.c.l.b16 %v96
  %v1227 = vunpack.c.h.b16 %v96
  %v1228 = vunpack.c.l.b16 %v97
  %v1229 = vunpack.c.h.b16 %v97
  %v1230 = vunpack.c.l.b16 %v98
  %v1231 = vunpack.c.h.b16 %v98
  %v1232 = vunpack.c.l.b16 %v99
  %v1233 = vunpack.c.h.b16 %v99
  %v1234 = vunpack.c.l.b16 %v100
  %v1235 = vunpack.c.h.b16 %v100
  %v1236 = vunpack.c.l.b16 %v101
  %v1237 = vunpack.c.h.b16 %v101
  %v1238 = vunpack.c.l.b16 %v102
  %v1239 = vunpack.c.h.b16 %v102
  %v1240 = vunpack.c.l.b16 %v103
  %v1241 = vunpack.c.h.b16 %v103
  %v1242 = vunpack.c.l.b16 %v104
  %v1243 = vunpack.c.l.b16 %v105
  %v1244 = vunpack.c.h.b16 %v105
  %v1245 = vunpack.c.l.b16 %v106
  %v1246 = vunpack.c.h.b16 %v106
  %v1247 = vunpack.c.l.b16 %v107
  %v1248 = vunpack.c.h.b16 %v107
  %v1249 = vunpack.c.l.b16 %v108
  %v1250 = vunpack.c.h.b16 %v108
  %v1251 = vunpack.c.l.b16 %v109
  %v1252 = vunpack.c.h.b16 %v109
  %v1253 = vunpack.c.l.b16 %v110
  %v1254 = vunpack.c.h.b16 %v110
  %v1255 = vunpack.c.l.b16 %v111
  %v1256 = vunpack.c.h.b16 %v111
  %v1257 = vunpack.c.l.b16 %v112
  %v1258 = vunpack.c.h.b16 %v112
  %v1259 = vunpack.c.l.b16 %v113
  %v1260 = vunpack.c.h.b16 %v113
  %v1261 = vunpack.c.l.b16 %v114
  %v1262 = vunpack.c.h.b16 %v114
  %v1263 = vunpack.c.l.b16 %v115
  %v1264 = vunpack.c.h.b16 %v115
  %v1265 = vunpack.c.l.b16 %v116
  %v1266 = vunpack.c.h.b16 %v116
  %v1267 = vunpack.c.l.b16 %v117
  %v1268 = vunpack.c.l.b16 %v118
  %v1269 = vunpack.c.h.b16 %v118
  %v1270 = vunpack.c.l.b16 %v119
  %v1271 = vunpack.c.h.b16 %v119
  %v1272 = vunpack.c.l.b16 %v120
  %v1273 = vunpack.c.h.b16 %v120
  %v1274 = vunpack.c.l.b16 %v121
  %v1275 = vunpack.c.h.b16 %v121
  %v1276 = vunpack.c.l.b16 %v122
  %v1277 = vunpack.c.h.b16 %v122
  %v1278 = vunpack.c.l.b16 %v123
  %v1279 = vunpack.c.h.b16 %v123
  %v1280 = vunpack.c.l.b16 %v124
  %v1281 = vunpack.c.h.b16 %v124
  %v1282 = vunpack.c.l.b16 %v125
  %v1283 = vunpack.c.h.b16 %v125
  %v1284 = vunpack.c.l.b16 %v126
  %v1285 = vunpack.c.h.b16 %v126
  %v1286 = vunpack.c.l.b16 %v127
  %v1287 = vunpack.c.h.b16 %v127
  %v1288 = vunpack.c.l.b16 %v128
  %v1289 = vunpack.c.h.b16 %v128
  %v1290 = vunpack.c.l.b16 %v129
  %v1291 = vunpack.c.h.b16 %v129
  %v1292 = vunpack.c.l.b16 %v130
  %v1293 = vunpack.c.l.b16 %v131
  %v1294 = vunpack.c.h.b16 %v131
  %v1295 = vunpack.c.l.b16 %v132
  %v1296 = vunpack.c.h.b16 %v132
  %v1297 = vunpack.c.l.b16 %v133
  %v1298 = vunpack.c.h.b16 %v133
  %v1299 = vunpack.c.l.b16 %v134
  %v1300 = vunpack.c.h.b16 %v134
  %v1301 = vunpack.c.l.b16 %v135
  %v1302 = vunpack.c.h.b16 %v135
  %v1303 = vunpack.c.l.b16 %v136
  %v1304 = vunpack.c.h.b16 %v136
  %v1305 = vunpack.c.l.b16 %v137
  %v1306 = vunpack.c.h.b16 %v137
  %v1307 = vunpack.c.l.b16 %v138
  %v1308 = vunpack.c.h.b16 %v138
  %v1309 = vunpack.c.l.b16 %v139
  %v1310 = vunpack.c.h.b16 %v139
  %v1311 = vunpack.c.l.b16 %v140
  %v1312 = vunpack.c.h.b16 %v140
  %v1313 = vunpack.c.l.b16 %v141
  %v1314 = vunpack.c.h.b16 %v141
  %v1315 = vunpack.c.l.b16 %v142
  %v1316 = vunpack.c.h.b16 %v142
  %v1317 = vunpack.c.l.b16 %v143
  %v1318 = vunpack.c.l.b16 %v144
  %v1319 = vunpack.c.h.b16 %v144
  %v1320 = vunpack.c.l.b16 %v145
  %v1321 = vunpack.c.h.b16 %v145
  %v1322 = vunpack.c.l.b16 %v146
  %v1323 = vunpack.c.h.b16 %v146
  %v1324 = vunpack.c.l.b16 %v147
  %v1325 = vunpack.c.h.b16 %v147
  %v1326 = vunpack.c.l.b16 %v148
  %v1327 = vunpack.c.h.b16 %v148
  %v1328 = vunpack.c.l.b16 %v149
  %v1329 = vunpack.c.h.b16 %v149
  %v1330 = vunpack.c.l.b16 %v150
  %v1331 = vunpack.c.h.b16 %v150
  %v1332 = vunpack.c.l.b16 %v151
  %v1333 = vunpack.c.h.b16 %v151
  %v1334 = vunpack.c.l.b16 %v152
  %v1335 = vunpack.c.h.b16 %v152
  %v1336 = vunpack.c.l.b16 %v153
  %v1337 = vunpack.c.h.b16 %v153
  %v1338 = vunpack.c.l.b16 %v154
  %v1339 = vunpack.c.h.b16 %v154
  %v1340 = vunpack.c.l.b16 %v155
  %v1341 = vunpack.c.h.b16 %v155
  %v1342 = vunpack.c.l.b16 %v156
  %v1343 = vunpack.c.l.b16 %v157
  %v1344 = vunpack.c.h.b16 %v157
  %v1345 = vunpack.c.l.b16 %v158
  %v1346 = vunpack.c.h.b16 %v158
  %v1347 = vunpack.c.l.b16 %v159
  %v1348 = vunpack.c.h.b16 %v159
  %v1349 = vunpack.c.l.b16 %v160
  %v1350 = vunpack.c.h.b16 %v160
  %v1351 = vunpack.c.l.b16 %v161
  %v1352 = vunpack.c.h.b16 %v161
  %v1353 = vunpack.c.l.b16 %v162
  %v1354 = vunpack.c.h.b16 %v162
  %v1355 = vunpack.c.l.b16 %v163
  %v1356 = vunpack.c.h.b16 %v163
  %v1357 = vunpack.c.l.b16 %v164
  %v1358 = vunpack.c.h.b16 %v164
  %v1359 = vunpack.c.l.b16 %v165
  %v1360 = vunpack.c.h.b16 %v165
  %v1361 = vunpack.c.l.b16 %v166
  %v1362 = vunpack.c.h.b16 %v166
  %v1363 = vunpack.c.l.b16 %v167
  %v1364 = vunpack.c.h.b16 %v167
  %v1365 = vunpack.c.l.b16 %v168
  %v1366 = vunpack.c.h.b16 %v168
  %v1367 = vunpack.c.l.b16 %v169
  %v1368 = vunpack.c.l.b16 %v170
  %v1369 = vunpack.c.h.b16 %v170
  %v1370 = vunpack.c.l.b16 %v171
  %v1371 = vunpack.c.h.b16 %v171
  %v1372 = vunpack.c.l.b16 %v172
  %v1373 = vunpack.c.h.b16 %v172
  %v1374 = vunpack.c.l.b16 %v173
  %v1375 = vunpack.c.h.b16 %v173
  %v1376 = vunpack.c.l.b16 %v174
  %v1377 = vunpack.c.h.b16 %v174
  %v1378 = vunpack.c.l.b16 %v175
  %v1379 = vunpack.c.h.b16 %v175
  %v1380 = vunpack.c.l.b16 %v176
  %v1381 = vunpack.c.h.b16 %v176
  %v1382 = vunpack.c.l.b16 %v177
  %v1383 = vunpack.c.h.b16 %v177
  %v1384 = vunpack.c.l.b16 %v178
  %v1385 = vunpack.c.h.b16 %v178
  %v1386 = vunpack.c.l.b16 %v179
  %v1387 = vunpack.c.h.b16 %v179
  %v1388 = vunpack.c.l.b16 %v180
  %v1389 = vunpack.c.h.b16 %v180
  %v1390 = vunpack.c.l.b16 %v181
  %v1391 = vunpack.c.h.b16 %v181
  %v1392 = vunpack.c.l.b16 %v182
  %v1393 = vunpack.c.l.b16 %v183
  %v1394 = vunpack.c.h.b16 %v183
  %v1395 = vunpack.c.l.b16 %v184
  %v1396 = vunpack.c.h.b16 %v184
  %v1397 = vunpack.c.l.b16 %v185
  %v1398 = vunpack.c.h.b16 %v185
  %v1399 = vunpack.c.l.b16 %v186
  %v1400 = vunpack.c.h.b16 %v186
  %v1401 = vunpack.c.l.b16 %v187
  %v1402 = vunpack.c.h.b16 %v187
  %v1403 = vunpack.c.l.b16 %v188
  %v1404 = vunpack.c.h.b16 %v188
  %v1405 = vunpack.c.l.b16 %v189
  %v1406 = vunpack.c.h.b16 %v189
  %v1407 = vunpack.c.l.b16 %v190
  %v1408 = vunpack.c.h.b16 %v190
  %v1409 = vunpack.c.l.b16 %v191
  %v1410 = vunpack.c.h.b16 %v191
  %v1411 = vunpack.c.l.b16 %v192
  %v1412 = vunpack.c.h.b16 %v192
  %v1413 = vunpack.c.l.b16 %v193
  %v1414 = vunpack.c.h.b16 %v193
  %v1415 = vunpack.c.l.b16 %v194
  %v1416 = vunpack.c.h.b16 %v194
  %v1417 = vunpack.c.l.b16 %v195
  %v1418 = vunpack.c.l.b16 %v196
  %v1419 = vunpack.c.h.b16 %v196
  %v1420 = vunpack.c.l.b16 %v197
  %v1421 = vunpack.c.h.b16 %v197
  %v1422 = vunpack.c.l.b16 %v198
  %v1423 = vunpack.c.h.b16 %v198
  %v1424 = vunpack.c.l.b16 %v199
  %v1425 = vunpack.c.h.b16 %v199
  %v1426 = vunpack.c.l.b16 %v200
  %v1427 = vunpack.c.h.b16 %v200
  %v1428 = vunpack.c.l.b16 %v201
  %v1429 = vunpack.c.h.b16 %v201
  %v1430 = vunpack.c.l.b16 %v202
  %v1431 = vunpack.c.h.b16 %v202
  %v1432 = vunpack.c.l.b16 %v203
  %v1433 = vunpack.c.h.b16 %v203
  %v1434 = vunpack.c.l.b16 %v204
  %v1435 = vunpack.c.h.b16 %v204
  %v1436 = vunpack.c.l.b16 %v205
  %v1437 = vunpack.c.h.b16 %v205
  %v1438 = vunpack.c.l.b16 %v206
  %v1439 = vunpack.c.h.b16 %v206
  %v1440 = vunpack.c.l.b16 %v207
  %v1441 = vunpack.c.h.b16 %v207
  %v1442 = vunpack.c.l.b16 %v208
  %v1443 = vunpack.c.l.b16 %v209
  %v1444 = vunpack.c.h.b16 %v209
  %v1445 = vunpack.c.l.b16 %v210
  %v1446 = vunpack.c.h.b16 %v210
  %v1447 = vunpack.c.l.b16 %v211
  %v1448 = vunpack.c.h.b16 %v211
  %v1449 = vunpack.c.l.b16 %v212
  %v1450 = vunpack.c.h.b16 %v212
  %v1451 = vunpack.c.l.b16 %v213
  %v1452 = vunpack.c.h.b16 %v213
  %v1453 = vunpack.c.l.b16 %v214
  %v1454 = vunpack.c.h.b16 %v214
  %v1455 = vunpack.c.l.b16 %v215
  %v1456 = vunpack.c.h.b16 %v215
  %v1457 = vunpack.c.l.b16 %v216
  %v1458 = vunpack.c.h.b16 %v216
  %v1459 = vunpack.c.l.b16 %v217
  %v1460 = vunpack.c.h.b16 %v217
  %v1461 = vunpack.c.l.b16 %v218
  %v1462 = vunpack.c.h.b16 %v218
  %v1463 = vunpack.c.l.b16 %v219
  %v1464 = vunpack.c.h.b16 %v219
  %v1465 = vunpack.c.l.b16 %v220
  %v1466 = vunpack.c.h.b16 %v220
  %v1467 = vunpack.c.l.b16 %v221
  %v1468 = vunpack.c.l.b16 %v222
  %v1469 = vunpack.c.h.b16 %v222
  %v1470 = vunpack.c.l.b16 %v223
  %v1471 = vunpack.c.h.b16 %v223
  %v1472 = vunpack.c.l.b16 %v224
  %v1473 = vunpack.c.h.b16 %v224
  %v1474 = vunpack.c.l.b16 %v225
  %v1475 = vunpack.c.h.b16 %v225
  %v1476 = vunpack.c.l.b16 %v226
  %v1477 = vunpack.c.h.b16 %v226
  %v1478 = vunpack.c.l.b16 %v227
  %v1479 = vunpack.c.h.b16 %v227
  %v1480 = vunpack.c.l.b16 %v228
  %v1481 = vunpack.c.h.b16 %v228
  %v1482 = vunpack.c.l.b16 %v229
  %v1483 = vunpack.c.h.b16 %v229
  %v1484 = vunpack.c.l.b16 %v230
  %v1485 = vunpack.c.h.b16 %v230
  %v1486 = vunpack.c.l.b16 %v231
  %v1487 = vunpack.c.h.b16 %v231
  %v1488 = vunpack.c.l.b16 %v232
  %v1489 = vunpack.c.h.b16 %v232
  %v1490 = vunpack.c.l.b16 %v233
  %v1491 = vunpack.c.h.b16 %v233
  %v1492 = vunpack.c.l.b16 %v234
  %v1493 = vunpack.c.l.b16 %v235
  %v1494 = vunpack.c.h.b16 %v235
  %v1495 = vunpack.c.l.b16 %v236
  %v1496 = vunpack.c.h.b16 %v236
  %v1497 = vunpack.c.l.b16 %v237
  %v1498 = vunpack.c.h.b16 %v237
  %v1499 = vunpack.c.l.b16 %v238
  %v1500 = vunpack.c.h.b16 %v238
  %v1501 = vunpack.c.l.b16 %v239
  %v1502 = vunpack.c.h.b16 %v239
  %v1503 = vunpack.c.l.b16 %v240
  %v1504 = vunpack.c.h.b16 %v240
  %v1505 = vunpack.c.l.b16 %v241
  %v1506 = vunpack.c.h.b16 %v241
  %v1507 = vunpack.c.l.b16 %v242
  %v1508 = vunpack.c.h.b16 %v242
  %v1509 = vunpack.c.l.b16 %v243
  %v1510 = vunpack.c.h.b16 %v243
  %v1511 = vunpack.c.l.b16 %v244
  %v1512 = vunpack.c.h.b16 %v244
  %v1513 = vunpack.c.l.b16 %v245
  %v1514 = vunpack.c.h.b16 %v245
  %v1515 = vunpack.c.l.b16 %v246
  %v1516 = vunpack.c.h.b16 %v246
  %v1517 = vunpack.c.l.b16 %v247
  %v1518 = vunpack.c.l.b16 %v248
  %v1519 = vunpack.c.h.b16 %v248
  %v1520 = vunpack.c.l.b16 %v249
  %v1521 = vunpack.c.h.b16 %v249
  %v1522 = vunpack.c.l.b16 %v250
  %v1523 = vunpack.c.h.b16 %v250
  %v1524 = vunpack.c.l.b16 %v251
  %v1525 = vunpack.c.h.b16 %v251
  %v1526 = vunpack.c.l.b16 %v252
  %v1527 = vunpack.c.h.b16 %v252
  %v1528 = vunpack.c.l.b16 %v253
  %v1529 = vunpack.c.h.b16 %v253
  %v1530 = vunpack.c.l.b16 %v254
  %v1531 = vunpack.c.h.b16 %v254
  %v1532 = vunpack.c.l.b16 %v255
  %v1533 = vunpack.c.h.b16 %v255
  %v1534 = vunpack.c.l.b16 %v256
  %v1535 = vunpack.c.h.b16 %v256
  %v1536 = vunpack.c.l.b16 %v257
  %v1537 = vunpack.c.h.b16 %v257
  %v1538 = vunpack.c.l.b16 %v258
  %v1539 = vunpack.c.h.b16 %v258
  %v1540 = vunpack.c.l.b16 %v259
  %v1541 = vunpack.c.h.b16 %v259
  %v1542 = vunpack.c.l.b16 %v260
  %v1543 = vunpack.c.l.b16 %v261
  %v1544 = vunpack.c.h.b16 %v261
  %v1545 = vunpack.c.l.b16 %v262
  %v1546 = vunpack.c.h.b16 %v262
  %v1547 = vunpack.c.l.b16 %v263
  %v1548 = vunpack.c.h.b16 %v263
  %v1549 = vunpack.c.l.b16 %v264
  %v1550 = vunpack.c.h.b16 %v264
  %v1551 = vunpack.c.l.b16 %v265
  %v1552 = vunpack.c.h.b16 %v265
  %v1553 = vunpack.c.l.b16 %v266
  %v1554 = vunpack.c.h.b16 %v266
  %v1555 = vunpack.c.l.b16 %v267
  %v1556 = vunpack.c.h.b16 %v267
  %v1557 = vunpack.c.l.b16 %v268
  %v1558 = vunpack.c.h.b16 %v268
  %v1559 = vunpack.c.l.b16 %v269
  %v1560 = vunpack.c.h.b16 %v269
  %v1561 = vunpack.c.l.b16 %v270
  %v1562 = vunpack.c.h.b16 %v270
  %v1563 = vunpack.c.l.b16 %v271
  %v1564 = vunpack.c.h.b16 %v271
  %v1565 = vunpack.c.l.b16 %v272
  %v1566 = vunpack.c.h.b16 %v272
  %v1567 = vunpack.c.l.b16 %v273
  %v1568 = vunpack.c.l.b16 %v274
  %v1569 = vunpack.c.h.b16 %v274
  %v1570 = vunpack.c.l.b16 %v275
  %v1571 = vunpack.c.h.b16 %v275
  %v1572 = vunpack.c.l.b16 %v276
  %v1573 = vunpack.c.h.b16 %v276
  %v1574 = vunpack.c.l.b16 %v277
  %v1575 = vunpack.c.h.b16 %v277
  %v1576 = vunpack.c.l.b16 %v278
  %v1577 = vunpack.c.h.b16 %v278
  %v1578 = vunpack.c.l.b16 %v279
  %v1579 = vunpack.c.h.b16 %v279
  %v1580 = vunpack.c.l.b16 %v280
  %v1581 = vunpack.c.h.b16 %v280
  %v1582 = vunpack.c.l.b16 %v281
  %v1583 = vunpack.c.h.b16 %v281
  %v1584 = vunpack.c.l.b16 %v282
  %v1585 = vunpack.c.h.b16 %v282
  %v1586 = vunpack.c.l.b16 %v283
  %v1587 = vunpack.c.h.b16 %v283
  %v1588 = vunpack.c.l.b16 %v284
  %v1589 = vunpack.c.h.b16 %v284
  %v1590 = vunpack.c.l.b16 %v285
  %v1591 = vunpack.c.h.b16 %v285
  %v1592 = vunpack.c.l.b16 %v286
  %v1593 = vunpack.c.l.b16 %v287
  %v1594 = vunpack.c.h.b16 %v287
  %v1595 = vunpack.c.l.b16 %v288
  %v1596 = vunpack.c.h.b16 %v288
  %v1597 = vunpack.c.l.b16 %v289
  %v1598 = vunpack.c.h.b16 %v289
  %v1599 = vunpack.c.l.b16 %v290
  %v1600 = vunpack.c.h.b16 %v290
  %v1601 = vunpack.c.l.b16 %v291
  %v1602 = vunpack.c.h.b16 %v291
  %v1603 = vunpack.c.l.b16 %v292
  %v1604 = vunpack.c.h.b16 %v292
  %v1605 = vunpack.c.l.b16 %v293
  %v1606 = vunpack.c.h.b16 %v293
  %v1607 = vunpack.c.l.b16 %v294
  %v1608 = vunpack.c.h.b16 %v294
  %v1609 = vunpack.c.l.b16 %v295
  %v1610 = vunpack.c.h.b16 %v295
  %v1611 = vunpack.c.l.b16 %v296
  %v1612 = vunpack.c.h.b16 %v296
  %v1613 = vunpack.c.l.b16 %v297
  %v1614 = vunpack.c.h.b16 %v297
  %v1615 = vunpack.c.l.b16 %v298
  %v1616 = vunpack.c.h.b16 %v298
  %v1617 = vunpack.c.l.b16 %v299
  %v1618 = vunpack.c.l.b16 %v300
  %v1619 = vunpack.c.h.b16 %v300
  %v1620 = vunpack.c.l.b16 %v301
  %v1621 = vunpack.c.h.b16 %v301
  %v1622 = vunpack.c.l.b16 %v302
  %v1623 = vunpack.c.h.b16 %v302
  %v1624 = vunpack.c.l.b16 %v303
  %v1625 = vunpack.c.h.b16 %v303
  %v1626 = vunpack.c.l.b16 %v304
  %v1627 = vunpack.c.h.b16 %v304
  %v1628 = vunpack.c.l.b16 %v305
  %v1629 = vunpack.c.h.b16 %v305
  %v1630 = vunpack.c.l.b16 %v306
  %v1631 = vunpack.c.h.b16 %v306
  %v1632 = vunpack.c.l.b16 %v307
  %v1633 = vunpack.c.h.b16 %v307
  %v1634 = vunpack.c.l.b16 %v308
  %v1635 = vunpack.c.h.b16 %v308
  %v1636 = vunpack.c.l.b16 %v309
  %v1637 = vunpack.c.h.b16 %v309
  %v1638 = vunpack.c.l.b16 %v310
  %v1639 = vunpack.c.h.b16 %v310
  %v1640 = vunpack.c.l.b16 %v311
  %v1641 = vunpack.c.h.b16 %v311
  %v1642 = vunpack.c.l.b16 %v312
  %v1643 = vunpack.c.l.b16 %v313
  %v1644 = vunpack.c.h.b16 %v313
  %v1645 = vunpack.c.l.b16 %v314
  %v1646 = vunpack.c.h.b16 %v314
  %v1647 = vunpack.c.l.b16 %v315
  %v1648 = vunpack.c.h.b16 %v315
  %v1649 = vunpack.c.l.b16 %v316
  %v1650 = vunpack.c.h.b16 %v316
  %v1651 = vunpack.c.l.b16 %v317
  %v1652 = vunpack.c.h.b16 %v317
  %v1653 = vunpack.c.l.b16 %v318
  %v1654 = vunpack.c.h.b16 %v318
  %v1655 = vunpack.c.l.b16 %v319
  %v1656 = vunpack.c.h.b16 %v319
  %v1657 = vunpack.c.l.b16 %v320
  %v1658 = vunpack.c.h.b16 %v320
  %v1659 = vunpack.c.l.b16 %v321
  %v1660 = vunpack.c.h.b16 %v321
  %v1661 = vunpack.c.l.b16 %v322
  %v1662 = vunpack.c.h.b16 %v322
  %v1663 = vunpack.c.l.b16 %v323
  %v1664 = vunpack.c.h.b16 %v323
  %v1665 = vunpack.c.l.b16 %v324
  %v1666 = vunpack.c.h.b16 %v324
  %v1667 = vunpack.c.l.b16 %v325
  %v1668 = vunpack.c.l.b16 %v326
  %v1669 = vunpack.c.h.b16 %v326
  %v1670 = vunpack.c.l.b16 %v327
  %v1671 = vunpack.c.h.b16 %v327
  %v1672 = vunpack.c.l.b16 %v328
  %v1673 = vunpack.c.h.b16 %v328
  %v1674 = vunpack.c.l.b16 %v329
  %v1675 = vunpack.c.h.b16 %v329
  %v1676 = vunpack.c.l.b16 %v330
  %v1677 = vunpack.c.h.b16 %v330
  %v1678 = vunpack.c.l.b16 %v331
  %v1679 = vunpack.c.h.b16 %v331
  %v1680 = vunpack.c.l.b16 %v332
  %v1681 = vunpack.c.h.b16 %v332
  %v1682 = vunpack.c.l.b16 %v333
  %v1683 = vunpack.c.h.b16 %v333
  %v1684 = vunpack.c.l.b16 %v334
  %v1685 = vunpack.c.h.b16 %v334
  %v1686 = vunpack.c.l.b16 %v335
  %v1687 = vunpack.c.h.b16 %v335
  %v1688 = vunpack.c.l.b16 %v336
  %v1689 = vunpack.c.h.b16 %v336
  %v1690 = vunpack.c.l.b16 %v337
  %v1691 = vunpack.c.h.b16 %v337
  %v1692 = vunpack.c.l.b16 %v338
  %v1693 = vpack.c.b16 %v1093, %v1068
  %v1694 = vpack.c.b16 %v1094, %v1069
  %v1695 = vpack.c.b16 %v1095, %v1070
  %v1696 = vpack.c.b16 %v1096, %v1071
  %v1697 = vpack.c.b16 %v1097, %v1072
  %v1698 = vpack.c.b16 %v1098, %v1073
  %v1699 = vpack.c.b16 %v1099, %v1074
  %v1700 = vpack.c.b16 %v1100, %v1075
  %v1701 = vpack.c.b16 %v1101, %v1076
  %v1702 = vpack.c.b16 %v1102, %v1077
  %v1703 = vpack.c.b16 %v1103, %v1078
  %v1704 = vpack.c.b16 %v1104, %v1079
  %v1705 = vpack.c.b16 %v1105, %v1080
  %v1706 = vpack.c.b16 %v1106, %v1081
  %v1707 = vpack.c.b16 %v1107, %v1082
  %v1708 = vpack.c.b16 %v1108, %v1083
  %v1709 = vpack.c.b16 %v1109, %v1084
  %v1710 = vpack.c.b16 %v1110, %v1085
  %v1711 = vpack.c.b16 %v1111, %v1086
  %v1712 = vpack.c.b16 %v1112, %v1087
  %v1713 = vpack.c.b16 %v1113, %v1088
  %v1714 = vpack.c.b16 %v1114, %v1089
  %v1715 = vpack.c.b16 %v1115, %v1090
  %v1716 = vpack.c.b16 %v1116, %v1091
  %v1717 = vpack.c.b16 %v1117, %v1092
  %v1718 = vpack.c.b16 %v1143, %v1118
  %v1719 = vpack.c.b16 %v1144, %v1119
  %v1720 = vpack.c.b16 %v1145, %v1120
  %v1721 = vpack.c.b16 %v1146, %v1121
  %v1722 = vpack.c.b16 %v1147, %v1122
  %v1723 = vpack.c.b16 %v1148, %v1123
  %v1724 = vpack.c.b16 %v1149, %v1124
  %v1725 = vpack.c.b16 %v1150, %v1125
  %v1726 = vpack.c.b16 %v1151, %v1126
  %v1727 = vpack.c.b16 %v1152, %v1127
  %v1728 = vpack.c.b16 %v1153, %v1128
  %v1729 = vpack.c.b16 %v1154, %v1129
  %v1730 = vpack.c.b16 %v1155, %v1130
  %v1731 = vpack.c.b16 %v1156, %v1131
  %v1732 = vpack.c.b16 %v1157, %v1132
  %v1733 = vpack.c.b16 %v1158, %v1133
  %v1734 = vpack.c.b16 %v1159, %v1134
  %v1735 = vpack.c.b16 %v1160, %v1135
  %v1736 = vpack.c.b16 %v1161, %v1136
  %v1737 = vpack.c.b16 %v1162, %v1137
  %v1738 = vpack.c.b16 %v1163, %v1138
  %v1739 = vpack.c.b16 %v1164, %v1139
  %v1740 = vpack.c.b16 %v1165, %v1140
  %v1741 = vpack.c.b16 %v1166, %v1141
  %v1742 = vpack.c.b16 %v1167, %v1142
  %v1743 = vpack.c.b16 %v1193, %v1168
  %v1744 = vpack.c.b16 %v1194, %v1169
  %v1745 = vpack.c.b16 %v1195, %v1170
  %v1746 = vpack.c.b16 %v1196, %v1171
  %v1747 = vpack.c.b16 %v1197, %v1172
  %v1748 = vpack.c.b16 %v1198, %v1173
  %v1749 = vpack.c.b16 %v1199, %v1174
  %v1750 = vpack.c.b16 %v1200, %v1175
  %v1751 = vpack.c.b16 %v1201, %v1176
  %v1752 = vpack.c.b16 %v1202, %v1177
  %v1753 = vpack.c.b16 %v1203, %v1178
  %v1754 = vpack.c.b16 %v1204, %v1179
  %v1755 = vpack.c.b16 %v1205, %v1180
  %v1756 = vpack.c.b16 %v1206, %v1181
  %v1757 = vpack.c.b16 %v1207, %v1182
  %v1758 = vpack.c.b16 %v1208, %v1183
  %v1759 = vpack.c.b16 %v1209, %v1184
  %v1760 = vpack.c.b16 %v1210, %v1185
  %v1761 = vpack.c.b16 %v1211, %v1186
  %v1762 = vpack.c.b16 %v1212, %v1187
  %v1763 = vpack.c.b16 %v1213, %v1188
  %v1764 = vpack.c.b16 %v1214, %v1189
  %v1765 = vpack.c.b16 %v1215, %v1190
  %v1766 = vpack.c.b16 %v1216, %v1191
  %v1767 = vpack.c.b16 %v1217, %v1192
  %v1768 = vpack.c.b16 %v1243, %v1218
  %v1769 = vpack.c.b16 %v1244, %v1219
  %v1770 = vpack.c.b16 %v1245, %v1220
  %v1771 = vpack.c.b16 %v1246, %v1221
  %v1772 = vpack.c.b16 %v1247, %v1222
  %v1773 = vpack.c.b16 %v1248, %v1223
  %v1774 = vpack.c.b16 %v1249, %v1224
  %v1775 = vpack.c.b16 %v1250, %v1225
  %v1776 = vpack.c.b16 %v1251, %v1226
  %v1777 = vpack.c.b16 %v1252, %v1227
  %v1778 = vpack.c.b16 %v1253, %v1228
  %v1779 = vpack.c.b16 %v1254, %v1229
  %v1780 = vpack.c.b16 %v1255, %v1230
  %v1781 = vpack.c.b16 %v1256, %v1231
  %v1782 = vpack.c.b16 %v1257, %v1232
  %v1783 = vpack.c.b16 %v1258, %v1233
  %v1784 = vpack.c.b16 %v1259, %v1234
  %v1785 = vpack.c.b16 %v1260, %v1235
  %v1786 = vpack.c.b16 %v1261, %v1236
  %v1787 = vpack.c.b16 %v1262, %v1237
  %v1788 = vpack.c.b16 %v1263, %v1238
  %v1789 = vpack.c.b16 %v1264, %v1239
  %v1790 = vpack.c.b16 %v1265, %v1240
  %v1791 = vpack.c.b16 %v1266, %v1241
  %v1792 = vpack.c.b16 %v1267, %v1242
  %v1793 = vpack.c.b16 %v1293, %v1268
  %v1794 = vpack.c.b16 %v1294, %v1269
  %v1795 = vpack.c.b16 %v1295, %v1270
  %v1796 = vpack.c.b16 %v1296, %v1271
  %v1797 = vpack.c.b16 %v1297, %v1272
  %v1798 = vpack.c.b16 %v1298, %v1273
  %v1799 = vpack.c.b16 %v1299, %v1274
  %v1800 = vpack.c.b16 %v1300, %v1275
  %v1801 = vpack.c.b16 %v1301, %v1276
  %v1802 = vpack.c.b16 %v1302, %v1277
  %v1803 = vpack.c.b16 %v1303, %v1278
  %v1804 = vpack.c.b16 %v1304, %v1279
  %v1805 = vpack.c.b16 %v1305, %v1280
  %v1806 = vpack.c.b16 %v1306, %v1281
  %v1807 = vpack.c.b16 %v1307, %v1282
  %v1808 = vpack.c.b16 %v1308, %v1283
  %v1809 = vpack.c.b16 %v1309, %v1284
  %v1810 = vpack.c.b16 %v1310, %v1285
  %v1811 = vpack.c.b16 %v1311, %v1286
  %v1812 = vpack.c.b16 %v1312, %v1287
  %v1813 = vpack.c.b16 %v1313, %v1288
  %v1814 = vpack.c.b16 %v1314, %v1289
  %v1815 = vpack.c.b16 %v1315, %v1290
  %v1816 = vpack.c.b16 %v1316, %v1291
  %v1817 = vpack.c.b16 %v1317, %v1292
  %v1818 = vpack.c.b16 %v1343, %v1318
  %v1819 = vpack.c.b16 %v1344, %v1319
  %v1820 = vpack.c.b16 %v1345, %v1320
  %v1821 = vpack.c.b16 %v1346, %v1321
  %v1822 = vpack.c.b16 %v1347, %v1322
  %v1823 = vpack.c.b16 %v1348, %v1323
  %v1824 = vpack.c.b16 %v1349, %v1324
  %v1825 = vpack.c.b16 %v1350, %v1325
  %v1826 = vpack.c.b16 %v1351, %v1326
  %v1827 = vpack.c.b16 %v1352, %v1327
  %v1828 = vpack.c.b16 %v1353, %v1328
  %v1829 = vpack.c.b16 %v1354, %v1329
  %v1830 = vpack.c.b16 %v1355, %v1330
  %v1831 = vpack.c.b16 %v1356, %v1331
  %v1832 = vpack.c.b16 %v1357, %v1332
  %v1833 = vpack.c.b16 %v1358, %v1333
  %v1834 = vpack.c.b16 %v1359, %v1334
  %v1835 = vpack.c.b16 %v1360, %v1335
  %v1836 = vpack.c.b16 %v1361, %v1336
  %v1837 = vpack.c.b16 %v1362, %v1337
  %v1838 = vpack.c.b16 %v1363, %v1338
  %v1839 = vpack.c.b16 %v1364, %v1339
  %v1840 = vpack.c.b16 %v1365, %v1340
  %v1841 = vpack.c.b16 %v1366, %v1341
  %v1842 = vpack.c.b16 %v1367, %v1342
  %v1843 = vpack.c.b16 %v1393, %v1368
  %v1844 = vpack.c.b16 %v1394, %v1369
  %v1845 = vpack.c.b16 %v1395, %v1370
  %v1846 = vpack.c.b16 %v1396, %v1371
  %v1847 = vpack.c.b16 %v1397, %v1372
  %v1848 = vpack.c.b16 %v1398, %v1373
  %v1849 = vpack.c.b16 %v1399, %v1374
  %v1850 = vpack.c.b16 %v1400, %v1375
  %v1851 = vpack.c.b16 %v1401, %v1376
  %v1852 = vpack.c.b16 %v1402, %v1377
  %v1853 = vpack.c.b16 %v1403, %v1378
  %v1854 = vpack.c.b16 %v1404, %v1379
  %v1855 = vpack.c.b16 %v1405, %v1380
  %v1856 = vpack.c.b16 %v1406, %v1381
  %v1857 = vpack.c.b16 %v1407, %v1382
  %v1858 = vpack.c.b16 %v1408, %v1383
  %v1859 = vpack.c.b16 %v1409, %v1384
  %v1860 = vpack.c.b16 %v1410, %v1385
  %v1861 = vpack.c.b16 %v1411, %v1386
  %v1862 = vpack.c.b16 %v1412, %v1387
  %v1863 = vpack.c.b16 %v1413, %v1388
  %v1864 = vpack.c.b16 %v1414, %v1389
  %v1865 = vpack.c.b16 %v1415, %v1390
  %v1866 = vpack.c.b16 %v1416, %v1391
  %v1867 = vpack.c.b16 %v1417, %v1392
  %v1868 = vpack.c.b16 %v1443, %v1418
  %v1869 = vpack.c.b16 %v1444, %v1419
  %v1870 = vpack.c.b16 %v1445, %v1420
  %v1871 = vpack.c.b16 %v1446, %v1421
  %v1872 = vpack.c.b16 %v1447, %v1422
  %v1873 = vpack.c.b16 %v1448, %v1423
  %v1874 = vpack.c.b16 %v1449, %v1424
  %v1875 = vpack.c.b16 %v1450, %v1425
  %v1876 = vpack.c.b16 %v1451, %v1426
  %v1877 = vpack.c.b16 %v1452, %v1427
  %v1878 = vpack.c.b16 %v1453, %v1428
  %v1879 = vpack.c.b16 %v1454, %v1429
  %v1880 = vpack.c.b16 %v1455, %v1430
  %v1881 = vpack.c.b16 %v1456, %v1431
  %v1882 = vpack.c.b16 %v1457, %v1432
  %v1883 = vpack.c.b16 %v1458, %v1433
  %v1884 = vpack.c.b16 %v1459, %v1434
  %v1885 = vpack.c.b16 %v1460, %v1435
  %v1886 = vpack.c.b16 %v1461, %v1436
  %v1887 = vpack.c.b16 %v1462, %v1437
  %v1888 = vpack.c.b16 %v1463, %v1438
  %v1889 = vpack.c.b16 %v1464, %v1439
  %v1890 = vpack.c.b16 %v1465, %v1440
  %v1891 = vpack.c.b16 %v1466, %v1441
  %v1892 = vpack.c.b16 %v1467, %v1442
  %v1893 = vpack.c.b16 %v1493, %v1468
  %v1894 = vpack.c.b16 %v1494, %v1469
  %v1895 = vpack.c.b16 %v1495, %v1470
  %v1896 = vpack.c.b16 %v1496, %v1471
  %v1897 = vpack.c.b16 %v1497, %v1472
  %v1898 = vpack.c.b16 %v1498, %v1473
  %v1899 = vpack.c.b16 %v1499, %v1474
  %v1900 = vpack.c.b16 %v1500, %v1475
  %v1901 = vpack.c.b16 %v1501, %v1476
  %v1902 = vpack.c.b16 %v1502, %v1477
  %v1903 = vpack.c.b16 %v1503, %v1478
  %v1904 = vpack.c.b16 %v1504, %v1479
  %v1905 = vpack.c.b16 %v1505, %v1480
  %v1906 = vpack.c.b16 %v1506, %v1481
  %v1907 = vpack.c.b16 %v1507, %v1482
  %v1908 = vpack.c.b16 %v1508, %v1483
  %v1909 = vpack.c.b16 %v1509, %v1484
  %v1910 = vpack.c.b16 %v1510, %v1485
  %v1911 = vpack.c.b16 %v1511, %v1486
  %v1912 = vpack.c.b16 %v1512, %v1487
  %v1913 = vpack.c.b16 %v1513, %v1488
  %v1914 = vpack.c.b16 %v1514, %v1489
  %v1915 = vpack.c.b16 %v1515, %v1490
  %v1916 = vpack.c.b16 %v1516, %v1491
  %v1917 = vpack.c.b16 %v1517, %v1492
  %v1918 = vpack.c.b16 %v1543, %v1518
  %v1919 = vpack.c.b16 %v1544, %v1519
  %v1920 = vpack.c.b16 %v1545, %v1520
  %v1921 = vpack.c.b16 %v1546, %v1521
  %v1922 = vpack.c.b16 %v1547, %v1522
  %v1923 = vpack.c.b16 %v1548, %v1523
  %v1924 = vpack.c.b16 %v1549, %v1524
  %v1925 = vpack.c.b16 %v1550, %v1525
  %v1926 = vpack.c.b16 %v1551, %v1526
  %v1927 = vpack.c.b16 %v1552, %v1527
  %v1928 = vpack.c.b16 %v1553, %v1528
  %v1929 = vpack.c.b16 %v1554, %v1529
  %v1930 = vpack.c.b16 %v1555, %v1530
  %v1931 = vpack.c.b16 %v1556, %v1531
  %v1932 = vpack.c.b16 %v1557, %v1532
  %v1933 = vpack.c.b16 %v1558, %v1533
  %v1934 = vpack.c.b16 %v1559, %v1534
  %v1935 = vpack.c.b16 %v1560, %v1535
  %v1936 = vpack.c.b16 %v1561, %v1536
  %v1937 = vpack.c.b16 %v1562, %v1537
  %v1938 = vpack.c.b16 %v1563, %v1538
  %v1939 = vpack.c.b16 %v1564, %v1539
  %v1940 = vpack.c.b16 %v1565, %v1540
  %v1941 = vpack.c.b16 %v1566, %v1541
  %v1942 = vpack.c.b16 %v1567, %v1542
  %v1943 = vpack.c.b16 %v1593, %v1568
  %v1944 = vpack.c.b16 %v1594, %v1569
  %v1945 = vpack.c.b16 %v1595, %v1570
  %v1946 = vpack.c.b16 %v1596, %v1571
  %v1947 = vpack.c.b16 %v1597, %v1572
  %v1948 = vpack.c.b16 %v1598, %v1573
  %v1949 = vpack.c.b16 %v1599, %v1574
  %v1950 = vpack.c.b16 %v1600, %v1575
  %v1951 = vpack.c.b16 %v1601, %v1576
  %v1952 = vpack.c.b16 %v1602, %v1577
  %v1953 = vpack.c.b16 %v1603, %v1578
  %v1954 = vpack.c.b16 %v1604, %v1579
  %v1955 = vpack.c.b16 %v1605, %v1580
  %v1956 = vpack.c.b16 %v1606, %v1581
  %v1957 = vpack.c.b16 %v1607, %v1582
  %v1958 = vpack.c.b16 %v1608, %v1583
  %v1959 = vpack.c.b16 %v1609, %v1584
  %v1960 = vpack.c.b16 %v1610, %v1585
  %v1961 = vpack.c.b16 %v1611, %v1586
  %v1962 = vpack.c.b16 %v1612, %v1587
  %v1963 = vpack.c.b16 %v1613, %v1588
  %v1964 = vpack.c.b16 %v1614, %v1589
  %v1965 = vpack.c.b16 %v1615, %v1590
  %v1966 = vpack.c.b16 %v1616, %v1591
  %v1967 = vpack.c.b16 %v1617, %v1592
  %v1968 = vpack.c.b16 %v1643, %v1618
  %v1969 = vpack.c.b16 %v1644, %v1619
  %v1970 = vpack.c.b16 %v1645, %v1620
  %v1971 = vpack.c.b16 %v1646, %v1621
  %v1972 = vpack.c.b16 %v1647, %v1622
  %v1973 = vpack.c.b16 %v1648, %v1623
  %v1974 = vpack.c.b16 %v1649, %v1624
  %v1975 = vpack.c.b16 %v1650, %v1625
  %v1976 = vpack.c.b16 %v1651, %v1626
  %v1977 = vpack.c.b16 %v1652, %v1627
  %v1978 = vpack.c.b16 %v1653, %v1628
  %v1979 = vpack.c.b16 %v1654, %v1629
  %v1980 = vpack.c.b16 %v1655, %v1630
  %v1981 = vpack.c.b16 %v1656, %v1631
  %v1982 = vpack.c.b16 %v1657, %v1632
  %v1983 = vpack.c.b16 %v1658, %v1633
  %v1984 = vpack.c.b16 %v1659, %v1634
  %v1985 = vpack.c.b16 %v1660, %v1635
  %v1986 = vpack.c.b16 %v1661, %v1636
  %v1987 = vpack.c.b16 %v1662, %v1637
  %v1988 = vpack.c.b16 %v1663, %v1638
  %v1989 = vpack.c.b16 %v1664, %v1639
  %v1990 = vpack.c.b16 %v1665, %v1640
  %v1991 = vpack.c.b16 %v1666, %v1641
  %v1992 = vpack.c.b16 %v1667, %v1642
  %v1993 = vpack.c.b16 %v1668, %v1668
  %v1994 = vpack.c.b16 %v1669, %v1669
  %v1995 = vpack.c.b16 %v1670, %v1670
  %v1996 = vpack.c.b16 %v1671, %v1671
  %v1997 = vpack.c.b16 %v1672, %v1672
  %v1998 = vpack.c.b16 %v1673, %v1673
  %v1999 = vpack.c.b16 %v1674, %v1674
  %v2000 = vpack.c.b16 %v1675, %v1675
  %v2001 = vpack.c.b16 %v1676, %v1676
  %v2002 = vpack.c.b16 %v1677, %v1677
  %v2003 = vpack.c.b16 %v1678, %v1678
  %v2004 = vpack.c.b16 %v1679, %v1679
  %v2005 = vpack.c.b16 %v1680, %v1680
  %v2006 = vpack.c.b16 %v1681, %v1681
  %v2007 = vpack.c.b16 %v1682, %v1682
  %v2008 = vpack.c.b16 %v1683, %v1683
  %v2009 = vpack.c.b16 %v1684, %v1684
  %v2010 = vpack.c.b16 %v1685, %v1685
  %v2011 = vpack.c.b16 %v1686, %v1686
  %v2012 = vpack.c.b16 %v1687, %v1687
  %v2013 = vpack.c.b16 %v1688, %v1688
  %v2014 = vpack.c.b16 %v1689, %v1689
  %v2015 = vpack.c.b16 %v1690, %v1690
  %v2016 = vpack.c.b16 %v1691, %v1691
  %v2017 = vpack.c.b16 %v1692, %v1692
  %v2743 = vunpack.c.l.b16 %v339
  %v2744 = vunpack.c.l.b16 %v340
  %v2745 = vunpack.c.l.b16 %v341
  %v2746 = vunpack.c.l.b16 %v342
  %v2747 = vunpack.c.l.b16 %v343
  %v2748 = vunpack.c.l.b16 %v344
  %v2749 = vunpack.c.l.b16 %v345
  %v2750 = vunpack.c.l.b16 %v346
  %v2751 = vunpack.c.l.b16 %v347
  %v2752 = vunpack.c.l.b16 %v348
  %v2753 = vunpack.c.l.b16 %v349
  %v2754 = vunpack.c.l.b16 %v350
  %v2755 = vunpack.c.l.b16 %v351
  %v2756 = vunpack.c.l.b16 %v352
  %v2757 = vunpack.c.l.b16 %v353
  %v2758 = vunpack.c.l.b16 %v354
  %v2759 = vunpack.c.l.b16 %v355
  %v2760 = vunpack.c.l.b16 %v356
  %v2761 = vunpack.c.l.b16 %v357
  %v2762 = vunpack.c.l.b16 %v358
  %v2763 = vunpack.c.l.b16 %v359
  %v2764 = vunpack.c.l.b16 %v360
  %v2765 = vunpack.c.l.b16 %v361
  %v2766 = vunpack.c.l.b16 %v362
  %v2767 = vunpack.c.l.b16 %v363
  %v2768 = vunpack.c.l.b16 %v364
  %v2769 = vunpack.c.l.b16 %v365
  %v2770 = vunpack.c.l.b16 %v366
  %v2771 = vunpack.c.l.b16 %v367
  %v2772 = vunpack.c.l.b16 %v368
  %v2773 = vunpack.c.l.b16 %v369
  %v2774 = vunpack.c.l.b16 %v370
  %v2775 = vunpack.c.l.b16 %v371
  %v2776 = vunpack.c.l.b16 %v372
  %v2777 = vunpack.c.l.b16 %v373
  %v2778 = vunpack.c.l.b16 %v374
  %v2779 = vunpack.c.l.b16 %v375
  %v2780 = vunpack.c.l.b16 %v376
  %v2781 = vunpack.c.l.b16 %v377
  %v2782 = vunpack.c.l.b16 %v378
  %v2783 = vunpack.c.l.b16 %v379
  %v2784 = vunpack.c.l.b16 %v380
  %v2785 = vunpack.c.l.b16 %v381
  %v2786 = vunpack.c.l.b16 %v382
  %v2787 = vunpack.c.l.b16 %v383
  %v2788 = vunpack.c.l.b16 %v384
  %v2789 = vunpack.c.l.b16 %v385
  %v2790 = vunpack.c.l.b16 %v386
  %v2791 = vunpack.c.l.b16 %v387
  %v2792 = vunpack.c.l.b16 %v388
  %v2793 = vunpack.c.l.b16 %v389
  %v2794 = vunpack.c.l.b16 %v390
  %v2795 = vunpack.c.l.b16 %v391
  %v2796 = vunpack.c.l.b16 %v392
  %v2797 = vunpack.c.l.b16 %v393
  %v2798 = vunpack.c.l.b16 %v394
  %v2799 = vunpack.c.l.b16 %v395
  %v2800 = vunpack.c.l.b16 %v396
  %v2801 = vunpack.c.l.b16 %v397
  %v2802 = vunpack.c.l.b16 %v398
  %v2803 = vunpack.c.l.b16 %v399
  %v2804 = vunpack.c.l.b16 %v400
  %v2805 = vunpack.c.l.b16 %v401
  %v2806 = vunpack.c.l.b16 %v402
  %v2807 = vunpack.c.l.b16 %v403
  %v2808 = vunpack.c.l.b16 %v404
  %v2809 = vunpack.c.l.b16 %v405
  %v2810 = vunpack.c.l.b16 %v406
  %v2811 = vunpack.c.l.b16 %v407
  %v2812 = vunpack.c.l.b16 %v408
  %v2813 = vunpack.c.l.b16 %v409
  %v2814 = vunpack.c.l.b16 %v410
  %v2815 = vunpack.c.l.b16 %v411
  %v2816 = vunpack.c.l.b16 %v412
  %v2817 = vunpack.c.l.b16 %v413
  %v2818 = vunpack.c.l.b16 %v414
  %v2819 = vunpack.c.l.b16 %v415
  %v2820 = vunpack.c.l.b16 %v416
  %v2821 = vunpack.c.l.b16 %v417
  %v2822 = vunpack.c.l.b16 %v418
  %v2823 = vunpack.c.l.b16 %v419
  %v2824 = vunpack.c.l.b16 %v420
  %v2825 = vunpack.c.l.b16 %v421
  %v2826 = vunpack.c.l.b16 %v422
  %v2827 = vunpack.c.l.b16 %v423
  %v2828 = vunpack.c.l.b16 %v424
  %v2829 = vunpack.c.l.b16 %v425
  %v2830 = vunpack.c.l.b16 %v426
  %v2831 = vunpack.c.l.b16 %v427
  %v2832 = vunpack.c.l.b16 %v428
  %v2833 = vunpack.c.l.b16 %v429
  %v2834 = vunpack.c.l.b16 %v430
  %v2835 = vunpack.c.l.b16 %v431
  %v2836 = vunpack.c.l.b16 %v432
  %v2837 = vunpack.c.l.b16 %v433
  %v2838 = vunpack.c.l.b16 %v434
  %v2839 = vunpack.c.l.b16 %v435
  %v2840 = vunpack.c.l.b16 %v436
  %v2841 = vunpack.c.l.b16 %v437
  %v2842 = vunpack.c.l.b16 %v438
  %v2843 = vunpack.c.l.b16 %v439
  %v2844 = vunpack.c.l.b16 %v440
  %v2845 = vunpack.c.l.b16 %v441
  %v2846 = vunpack.c.l.b16 %v442
  %v2847 = vunpack.c.l.b16 %v443
  %v2848 = vunpack.c.l.b16 %v444
  %v2849 = vunpack.c.l.b16 %v445
  %v2850 = vunpack.c.l.b16 %v446
  %v2851 = vunpack.c.l.b16 %v447
  %v2852 = vunpack.c.l.b16 %v448
  %v2853 = vunpack.c.l.b16 %v449
  %v2854 = vunpack.c.l.b16 %v450
  %v2855 = vunpack.c.l.b16 %v451
  %v2856 = vunpack.c.l.b16 %v452
  %v2857 = vunpack.c.l.b16 %v453
  %v2858 = vunpack.c.l.b16 %v454
  %v2859 = vunpack.c.l.b16 %v455
  %v2860 = vunpack.c.l.b16 %v456
  %v2861 = vunpack.c.l.b16 %v457
  %v2862 = vunpack.c.l.b16 %v458
  %v2863 = vunpack.c.l.b16 %v459
  %v2864 = vunpack.c.l.b16 %v460
  %v2865 = vunpack.c.l.b16 %v461
  %v2866 = vunpack.c.l.b16 %v462
  %v2867 = vunpack.c.l.b16 %v463
  %v2868 = vunpack.c.l.b16 %v464
  %v2869 = vunpack.c.l.b16 %v465
  %v2870 = vunpack.c.l.b16 %v466
  %v2871 = vunpack.c.l.b16 %v467
  %v2872 = vunpack.c.l.b16 %v468
  %v2873 = vunpack.c.l.b16 %v469
  %v2874 = vunpack.c.l.b16 %v470
  %v2875 = vunpack.c.l.b16 %v471
  %v2876 = vunpack.c.l.b16 %v472
  %v2877 = vunpack.c.l.b16 %v473
  %v2878 = vunpack.c.l.b16 %v474
  %v2879 = vunpack.c.l.b16 %v475
  %v2880 = vunpack.c.l.b16 %v476
  %v2881 = vunpack.c.l.b16 %v477
  %v2882 = vunpack.c.l.b16 %v478
  %v2883 = vunpack.c.l.b16 %v479
  %v2884 = vunpack.c.l.b16 %v480
  %v2885 = vunpack.c.l.b16 %v481
  %v2886 = vunpack.c.l.b16 %v482
  %v2887 = vunpack.c.l.b16 %v483
  %v2888 = vunpack.c.l.b16 %v484
  %v2889 = vunpack.c.l.b16 %v485
  %v2890 = vunpack.c.l.b16 %v486
  %v2891 = vunpack.c.l.b16 %v487
  %v2892 = vunpack.c.l.b16 %v488
  %v2893 = vunpack.c.l.b16 %v489
  %v2894 = vunpack.c.l.b16 %v490
  %v2895 = vunpack.c.l.b16 %v491
  %v2896 = vunpack.c.l.b16 %v492
  %v2897 = vunpack.c.l.b16 %v493
  %v2898 = vunpack.c.l.b16 %v494
  %v2899 = vunpack.c.l.b16 %v495
  %v2900 = vunpack.c.l.b16 %v496
  %v2901 = vunpack.c.l.b16 %v497
  %v2902 = vunpack.c.l.b16 %v498
  %v2903 = vunpack.c.l.b16 %v499
  %v2904 = vunpack.c.l.b16 %v500
  %v2905 = vunpack.c.l.b16 %v501
  %v2906 = vunpack.c.l.b16 %v502
  %v2907 = vunpack.c.l.b16 %v503
  %v2908 = vunpack.c.l.b16 %v504
  %v2909 = vunpack.c.l.b16 %v505
  %v2910 = vunpack.c.l.b16 %v506
  %v2911 = vunpack.c.l.b16 %v507
  %v2912 = vunpack.c.l.b16 %v508
  %v2913 = vunpack.c.l.b16 %v509
  %v2914 = vunpack.c.l.b16 %v510
  %v2915 = vunpack.c.l.b16 %v511
  %v2916 = vunpack.c.l.b16 %v512
  %v2917 = vunpack.c.l.b16 %v513
  %v2918 = vunpack.c.l.b16 %v514
  %v2919 = vunpack.c.l.b16 %v515
  %v2920 = vunpack.c.l.b16 %v516
  %v2921 = vunpack.c.l.b16 %v517
  %v2922 = vunpack.c.l.b16 %v518
  %v2923 = vunpack.c.l.b16 %v519
  %v2924 = vunpack.c.l.b16 %v520
  %v2925 = vunpack.c.l.b16 %v521
  %v2926 = vunpack.c.l.b16 %v522
  %v2927 = vunpack.c.l.b16 %v523
  %v2928 = vunpack.c.l.b16 %v524
  %v2929 = vunpack.c.l.b16 %v525
  %v2930 = vunpack.c.l.b16 %v526
  %v2931 = vunpack.c.l.b16 %v527
  %v2932 = vunpack.c.l.b16 %v528
  %v2933 = vunpack.c.l.b16 %v529
  %v2934 = vunpack.c.l.b16 %v530
  %v2935 = vunpack.c.l.b16 %v531
  %v2936 = vunpack.c.l.b16 %v532
  %v2937 = vunpack.c.l.b16 %v533
  %v2938 = vunpack.c.l.b16 %v534
  %v2939 = vunpack.c.l.b16 %v535
  %v2940 = vunpack.c.l.b16 %v536
  %v2941 = vunpack.c.l.b16 %v537
  %v2942 = vunpack.c.l.b16 %v538
  %v2943 = vunpack.c.l.b16 %v539
  %v2944 = vunpack.c.l.b16 %v540
  %v2945 = vunpack.c.l.b16 %v541
  %v2946 = vunpack.c.l.b16 %v542
  %v2947 = vunpack.c.l.b16 %v543
  %v2948 = vunpack.c.l.b16 %v544
  %v2949 = vunpack.c.l.b16 %v545
  %v2950 = vunpack.c.l.b16 %v546
  %v2951 = vunpack.c.l.b16 %v547
  %v2952 = vunpack.c.l.b16 %v548
  %v2953 = vunpack.c.l.b16 %v549
  %v2954 = vunpack.c.l.b16 %v550
  %v2955 = vunpack.c.l.b16 %v551
  %v2956 = vunpack.c.l.b16 %v552
  %v2957 = vunpack.c.l.b16 %v553
  %v2958 = vunpack.c.l.b16 %v554
  %v2959 = vunpack.c.l.b16 %v555
  %v2960 = vunpack.c.l.b16 %v556
  %v2961 = vunpack.c.l.b16 %v557
  %v2962 = vunpack.c.l.b16 %v558
  %v2963 = vunpack.c.l.b16 %v559
  %v2964 = vunpack.c.l.b16 %v560
  %v2965 = vunpack.c.l.b16 %v561
  %v2966 = vunpack.c.l.b16 %v562
  %v2967 = vunpack.c.l.b16 %v563
  %v2968 = vunpack.c.l.b16 %v564
  %v2969 = vunpack.c.l.b16 %v565
  %v2970 = vunpack.c.l.b16 %v566
  %v2971 = vunpack.c.l.b16 %v567
  %v2972 = vunpack.c.l.b16 %v568
  %v2973 = vunpack.c.l.b16 %v569
  %v2974 = vunpack.c.l.b16 %v570
  %v2975 = vunpack.c.l.b16 %v571
  %v2976 = vunpack.c.l.b16 %v572
  %v2977 = vunpack.c.l.b16 %v573
  %v2978 = vunpack.c.l.b16 %v574
  %v2979 = vunpack.c.l.b16 %v575
  %v2980 = vunpack.c.l.b16 %v576
  %v2981 = vunpack.c.l.b16 %v577
  %v2982 = vunpack.c.l.b16 %v578
  %v2983 = vunpack.c.l.b16 %v579
  %v2984 = vunpack.c.l.b16 %v580
  %v2985 = vunpack.c.l.b16 %v581
  %v2986 = vunpack.c.l.b16 %v582
  %v2987 = vunpack.c.l.b16 %v583
  %v2988 = vunpack.c.l.b16 %v584
  %v2989 = vunpack.c.l.b16 %v585
  %v2990 = vunpack.c.l.b16 %v586
  %v2991 = vunpack.c.l.b16 %v587
  %v2992 = vunpack.c.l.b16 %v588
  %v2993 = vunpack.c.l.b16 %v589
  %v2994 = vunpack.c.l.b16 %v590
  %v2995 = vunpack.c.l.b16 %v591
  %v2996 = vunpack.c.l.b16 %v592
  %v2997 = vunpack.c.l.b16 %v593
  %v2998 = vunpack.c.l.b16 %v594
  %v2999 = vunpack.c.l.b16 %v595
  %v3000 = vunpack.c.l.b16 %v596
  %v3001 = vunpack.c.l.b16 %v597
  %v3002 = vunpack.c.l.b16 %v598
  %v3003 = vunpack.c.l.b16 %v599
  %v3004 = vunpack.c.l.b16 %v600
  %v3005 = vunpack.c.l.b16 %v601
  %v3006 = vunpack.c.l.b16 %v602
  %v3007 = vunpack.c.l.b16 %v603
  %v3008 = vunpack.c.l.b16 %v604
  %v3009 = vunpack.c.l.b16 %v605
  %v3010 = vunpack.c.l.b16 %v606
  %v3011 = vunpack.c.l.b16 %v607
  %v3012 = vunpack.c.l.b16 %v608
  %v3013 = vunpack.c.l.b16 %v609
  %v3014 = vunpack.c.l.b16 %v610
  %v3015 = vunpack.c.l.b16 %v611
  %v3016 = vunpack.c.l.b16 %v612
  %v3017 = vunpack.c.l.b16 %v613
  %v3018 = vunpack.c.l.b16 %v614
  %v3019 = vunpack.c.l.b16 %v615
  %v3020 = vunpack.c.l.b16 %v616
  %v3021 = vunpack.c.l.b16 %v617
  %v3022 = vunpack.c.l.b16 %v618
  %v3023 = vunpack.c.l.b16 %v619
  %v3024 = vunpack.c.l.b16 %v620
  %v3025 = vunpack.c.l.b16 %v621
  %v3026 = vunpack.c.l.b16 %v622
  %v3027 = vunpack.c.l.b16 %v623
  %v3028 = vunpack.c.l.b16 %v624
  %v3029 = vunpack.c.l.b16 %v625
  %v3030 = vunpack.c.l.b16 %v626
  %v3031 = vunpack.c.l.b16 %v627
  %v3032 = vunpack.c.l.b16 %v628
  %v3033 = vunpack.c.l.b16 %v629
  %v3034 = vunpack.c.l.b16 %v630
  %v3035 = vunpack.c.l.b16 %v631
  %v3036 = vunpack.c.l.b16 %v632
  %v3037 = vunpack.c.l.b16 %v633
  %v3038 = vunpack.c.l.b16 %v634
  %v3039 = vunpack.c.l.b16 %v635
  %v3040 = vunpack.c.l.b16 %v636
  %v3041 = vunpack.c.l.b16 %v637
  %v3042 = vunpack.c.l.b16 %v638
  %v3043 = vunpack.c.l.b16 %v639
  %v3044 = vunpack.c.l.b16 %v640
  %v3045 = vunpack.c.l.b16 %v641
  %v3046 = vunpack.c.l.b16 %v642
  %v3047 = vunpack.c.l.b16 %v643
  %v3048 = vunpack.c.l.b16 %v644
  %v3049 = vunpack.c.l.b16 %v645
  %v3050 = vunpack.c.l.b16 %v646
  %v3051 = vunpack.c.l.b16 %v647
  %v3052 = vunpack.c.l.b16 %v648
  %v3053 = vunpack.c.l.b16 %v649
  %v3054 = vunpack.c.l.b16 %v650
  %v3055 = vunpack.c.l.b16 %v651
  %v3056 = vunpack.c.l.b16 %v652
  %v3057 = vunpack.c.l.b16 %v653
  %v3058 = vunpack.c.l.b16 %v654
  %v3059 = vunpack.c.l.b16 %v655
  %v3060 = vunpack.c.l.b16 %v656
  %v3061 = vunpack.c.l.b16 %v657
  %v3062 = vunpack.c.l.b16 %v658
  %v3063 = vunpack.c.l.b16 %v659
  %v3064 = vunpack.c.l.b16 %v660
  %v3065 = vunpack.c.l.b16 %v661
  %v3066 = vunpack.c.l.b16 %v662
  %v3067 = vunpack.c.l.b16 %v663
  %v3068 = vunpack.c.l.b16 %v664
  %v3069 = vunpack.c.l.b16 %v665
  %v3070 = vunpack.c.l.b16 %v666
  %v3071 = vunpack.c.l.b16 %v667
  %v3072 = vunpack.c.l.b16 %v668
  %v3073 = vunpack.c.l.b16 %v669
  %v3074 = vunpack.c.l.b16 %v670
  %v3075 = vunpack.c.l.b16 %v671
  %v3076 = vunpack.c.l.b16 %v672
  %v3077 = vunpack.c.l.b16 %v673
  %v3078 = vunpack.c.l.b16 %v674
  %v3079 = vunpack.c.l.b16 %v675
  %v3080 = vunpack.c.l.b16 %v676
  %v3081 = vunpack.c.l.b16 %v677
  %v3082 = vunpack.c.l.b16 %v678
  %v3083 = vunpack.c.l.b16 %v679
  %v3084 = vunpack.c.l.b16 %v680
  %v3085 = vunpack.c.l.b16 %v681
  %v3086 = vunpack.c.l.b16 %v682
  %v3087 = vunpack.c.l.b16 %v683
  %v3088 = vunpack.c.l.b16 %v684
  %v3089 = vunpack.c.l.b16 %v685
  %v3090 = vunpack.c.l.b16 %v686
  %v3091 = vunpack.c.l.b16 %v687
  %v3092 = vunpack.c.l.b16 %v688
  %v3093 = vunpack.c.l.b16 %v689
  %v3094 = vunpack.c.l.b16 %v690
  %v3095 = vunpack.c.l.b16 %v691
  %v3096 = vunpack.c.l.b16 %v692
  %v3097 = vunpack.c.l.b16 %v693
  %v3098 = vunpack.c.l.b16 %v694
  %v3099 = vunpack.c.l.b16 %v695
  %v3100 = vunpack.c.l.b16 %v696
  %v3101 = vunpack.c.l.b16 %v697
  %v3102 = vunpack.c.l.b16 %v698
  %v3103 = vunpack.c.l.b16 %v699
  %v3104 = vunpack.c.l.b16 %v700
  %v3105 = vunpack.c.l.b16 %v701
  %v3106 = vunpack.c.l.b16 %v702
  %v3107 = vunpack.c.l.b16 %v703
  %v3108 = vunpack.c.l.b16 %v704
  %v3109 = vunpack.c.l.b16 %v705
  %v3110 = vunpack.c.l.b16 %v706
  %v3111 = vunpack.c.l.b16 %v707
  %v3112 = vunpack.c.l.b16 %v708
  %v3113 = vunpack.c.l.b16 %v709
  %v3114 = vunpack.c.l.b16 %v710
  %v3115 = vunpack.c.l.b16 %v711
  %v3116 = vunpack.c.l.b16 %v712
  %v3117 = vunpack.c.l.b16 %v713
  %v3118 = vunpack.c.l.b16 %v714
  %v3119 = vunpack.c.l.b16 %v715
  %v3120 = vunpack.c.l.b16 %v716
  %v3121 = vunpack.c.l.b16 %v717
  %v3122 = vunpack.c.l.b16 %v718
  %v3123 = vunpack.c.l.b16 %v719
  %v3124 = vunpack.c.l.b16 %v720
  %v3125 = vunpack.c.l.b16 %v721
  %v3126 = vunpack.c.l.b16 %v722
  %v3127 = vunpack.c.l.b16 %v723
  %v3128 = vunpack.c.l.b16 %v724
  %v3129 = vunpack.c.l.b16 %v725
  %v3130 = vunpack.c.l.b16 %v726
  %v3131 = vunpack.c.l.b16 %v727
  %v3132 = vunpack.c.l.b16 %v728
  %v3133 = vunpack.c.l.b16 %v729
  %v3134 = vunpack.c.l.b16 %v730
  %v3135 = vunpack.c.l.b16 %v731
  %v3136 = vunpack.c.l.b16 %v732
  %v3137 = vunpack.c.l.b16 %v733
  %v3138 = vunpack.c.l.b16 %v734
  %v3139 = vunpack.c.l.b16 %v735
  %v3140 = vunpack.c.l.b16 %v736
  %v3141 = vunpack.c.l.b16 %v737
  %v3142 = vunpack.c.l.b16 %v738
  %v3143 = vpack.c.b16 %v2744, %v2743
  %v3144 = vpack.c.b16 %v2746, %v2745
  %v3145 = vpack.c.b16 %v2748, %v2747
  %v3146 = vpack.c.b16 %v2750, %v2749
  %v3147 = vpack.c.b16 %v2752, %v2751
  %v3148 = vpack.c.b16 %v2754, %v2753
  %v3149 = vpack.c.b16 %v2756, %v2755
  %v3150 = vpack.c.b16 %v2758, %v2757
  %v3151 = vpack.c.b16 %v2760, %v2759
  %v3152 = vpack.c.b16 %v2762, %v2761
  %v3153 = vpack.c.b16 %v2764, %v2763
  %v3154 = vpack.c.b16 %v2766, %v2765
  %v3155 = vpack.c.b16 %v2768, %v2767
  %v3156 = vpack.c.b16 %v2770, %v2769
  %v3157 = vpack.c.b16 %v2772, %v2771
  %v3158 = vpack.c.b16 %v2774, %v2773
  %v3159 = vpack.c.b16 %v2776, %v2775
  %v3160 = vpack.c.b16 %v2778, %v2777
  %v3161 = vpack.c.b16 %v2780, %v2779
  %v3162 = vpack.c.b16 %v2782, %v2781
  %v3163 = vpack.c.b16 %v2784, %v2783
  %v3164 = vpack.c.b16 %v2786, %v2785
  %v3165 = vpack.c.b16 %v2788, %v2787
  %v3166 = vpack.c.b16 %v2790, %v2789
  %v3167 = vpack.c.b16 %v2792, %v2791
  %v3168 = vpack.c.b16 %v2794, %v2793
  %v3169 = vpack.c.b16 %v2796, %v2795
  %v3170 = vpack.c.b16 %v2798, %v2797
  %v3171 = vpack.c.b16 %v2800, %v2799
  %v3172 = vpack.c.b16 %v2802, %v2801
  %v3173 = vpack.c.b16 %v2804, %v2803
  %v3174 = vpack.c.b16 %v2806, %v2805
  %v3175 = vpack.c.b16 %v2808, %v2807
  %v3176 = vpack.c.b16 %v2810, %v2809
  %v3177 = vpack.c.b16 %v2812, %v2811
  %v3178 = vpack.c.b16 %v2814, %v2813
  %v3179 = vpack.c.b16 %v2816, %v2815
  %v3180 = vpack.c.b16 %v2818, %v2817
  %v3181 = vpack.c.b16 %v2820, %v2819
  %v3182 = vpack.c.b16 %v2822, %v2821
  %v3183 = vpack.c.b16 %v2824, %v2823
  %v3184 = vpack.c.b16 %v2826, %v2825
  %v3185 = vpack.c.b16 %v2828, %v2827
  %v3186 = vpack.c.b16 %v2830, %v2829
  %v3187 = vpack.c.b16 %v2832, %v2831
  %v3188 = vpack.c.b16 %v2834, %v2833
  %v3189 = vpack.c.b16 %v2836, %v2835
  %v3190 = vpack.c.b16 %v2838, %v2837
  %v3191 = vpack.c.b16 %v2840, %v2839
  %v3192 = vpack.c.b16 %v2842, %v2841
  %v3193 = vpack.c.b16 %v2844, %v2843
  %v3194 = vpack.c.b16 %v2846, %v2845
  %v3195 = vpack.c.b16 %v2848, %v2847
  %v3196 = vpack.c.b16 %v2850, %v2849
  %v3197 = vpack.c.b16 %v2852, %v2851
  %v3198 = vpack.c.b16 %v2854, %v2853
  %v3199 = vpack.c.b16 %v2856, %v2855
  %v3200 = vpack.c.b16 %v2858, %v2857
  %v3201 = vpack.c.b16 %v2860, %v2859
  %v3202 = vpack.c.b16 %v2862, %v2861
  %v3203 = vpack.c.b16 %v2864, %v2863
  %v3204 = vpack.c.b16 %v2866, %v2865
  %v3205 = vpack.c.b16 %v2868, %v2867
  %v3206 = vpack.c.b16 %v2870, %v2869
  %v3207 = vpack.c.b16 %v2872, %v2871
  %v3208 = vpack.c.b16 %v2874, %v2873
  %v3209 = vpack.c.b16 %v2876, %v2875
  %v3210 = vpack.c.b16 %v2878, %v2877
  %v3211 = vpack.c.b16 %v2880, %v2879
  %v3212 = vpack.c.b16 %v2882, %v2881
  %v3213 = vpack.c.b16 %v2884, %v2883
  %v3214 = vpack.c.b16 %v2886, %v2885
  %v3215 = vpack.c.b16 %v2888, %v2887
  %v3216 = vpack.c.b16 %v2890, %v2889
  %v3217 = vpack.c.b16 %v2892, %v2891
  %v3218 = vpack.c.b16 %v2894, %v2893
  %v3219 = vpack.c.b16 %v2896, %v2895
  %v3220 = vpack.c.b16 %v2898, %v2897
  %v3221 = vpack.c.b16 %v2900, %v2899
  %v3222 = vpack.c.b16 %v2902, %v2901
  %v3223 = vpack.c.b16 %v2904, %v2903
  %v3224 = vpack.c.b16 %v2906, %v2905
  %v3225 = vpack.c.b16 %v2908, %v2907
  %v3226 = vpack.c.b16 %v2910, %v2909
  %v3227 = vpack.c.b16 %v2912, %v2911
  %v3228 = vpack.c.b16 %v2914, %v2913
  %v3229 = vpack.c.b16 %v2916, %v2915
  %v3230 = vpack.c.b16 %v2918, %v2917
  %v3231 = vpack.c.b16 %v2920, %v2919
  %v3232 = vpack.c.b16 %v2922, %v2921
  %v3233 = vpack.c.b16 %v2924, %v2923
  %v3234 = vpack.c.b16 %v2926, %v2925
  %v3235 = vpack.c.b16 %v2928, %v2927
  %v3236 = vpack.c.b16 %v2930, %v2929
  %v3237 = vpack.c.b16 %v2932, %v2931
  %v3238 = vpack.c.b16 %v2934, %v2933
  %v3239 = vpack.c.b16 %v2936, %v2935
  %v3240 = vpack.c.b16 %v2938, %v2937
  %v3241 = vpack.c.b16 %v2940, %v2939
  %v3242 = vpack.c.b16 %v2942, %v2941
  %v3243 = vpack.c.b16 %v2944, %v2943
  %v3244 = vpack.c.b16 %v2946, %v2945
  %v3245 = vpack.c.b16 %v2948, %v2947
  %v3246 = vpack.c.b16 %v2950, %v2949
  %v3247 = vpack.c.b16 %v2952, %v2951
  %v3248 = vpack.c.b16 %v2954, %v2953
  %v3249 = vpack.c.b16 %v2956, %v2955
  %v3250 = vpack.c.b16 %v2958, %v2957
  %v3251 = vpack.c.b16 %v2960, %v2959
  %v3252 = vpack.c.b16 %v2962, %v2961
  %v3253 = vpack.c.b16 %v2964, %v2963
  %v3254 = vpack.c.b16 %v2966, %v2965
  %v3255 = vpack.c.b16 %v2968, %v2967
  %v3256 = vpack.c.b16 %v2970, %v2969
  %v3257 = vpack.c.b16 %v2972, %v2971
  %v3258 = vpack.c.b16 %v2974, %v2973
  %v3259 = vpack.c.b16 %v2976, %v2975
  %v3260 = vpack.c.b16 %v2978, %v2977
  %v3261 = vpack.c.b16 %v2980, %v2979
  %v3262 = vpack.c.b16 %v2982, %v2981
  %v3263 = vpack.c.b16 %v2984, %v2983
  %v3264 = vpack.c.b16 %v2986, %v2985
  %v3265 = vpack.c.b16 %v2988, %v2987
  %v3266 = vpack.c.b16 %v2990, %v2989
  %v3267 = vpack.c.b16 %v2992, %v2991
  %v3268 = vpack.c.b16 %v2994, %v2993
  %v3269 = vpack.c.b16 %v2996, %v2995
  %v3270 = vpack.c.b16 %v2998, %v2997
  %v3271 = vpack.c.b16 %v3000, %v2999
  %v3272 = vpack.c.b16 %v3002, %v3001
  %v3273 = vpack.c.b16 %v3004, %v3003
  %v3274 = vpack.c.b16 %v3006, %v3005
  %v3275 = vpack.c.b16 %v3008, %v3007
  %v3276 = vpack.c.b16 %v3010, %v3009
  %v3277 = vpack.c.b16 %v3012, %v3011
  %v3278 = vpack.c.b16 %v3014, %v3013
  %v3279 = vpack.c.b16 %v3016, %v3015
  %v3280 = vpack.c.b16 %v3018, %v3017
  %v3281 = vpack.c.b16 %v3020, %v3019
  %v3282 = vpack.c.b16 %v3022, %v3021
  %v3283 = vpack.c.b16 %v3024, %v3023
  %v3284 = vpack.c.b16 %v3026, %v3025
  %v3285 = vpack.c.b16 %v3028, %v3027
  %v3286 = vpack.c.b16 %v3030, %v3029
  %v3287 = vpack.c.b16 %v3032, %v3031
  %v3288 = vpack.c.b16 %v3034, %v3033
  %v3289 = vpack.c.b16 %v3036, %v3035
  %v3290 = vpack.c.b16 %v3038, %v3037
  %v3291 = vpack.c.b16 %v3040, %v3039
  %v3292 = vpack.c.b16 %v3042, %v3041
  %v3293 = vpack.c.b16 %v3044, %v3043
  %v3294 = vpack.c.b16 %v3046, %v3045
  %v3295 = vpack.c.b16 %v3048, %v3047
  %v3296 = vpack.c.b16 %v3050, %v3049
  %v3297 = vpack.c.b16 %v3052, %v3051
  %v3298 = vpack.c.b16 %v3054, %v3053
  %v3299 = vpack.c.b16 %v3056, %v3055
  %v3300 = vpack.c.b16 %v3058, %v3057
  %v3301 = vpack.c.b16 %v3060, %v3059
  %v3302 = vpack.c.b16 %v3062, %v3061
  %v3303 = vpack.c.b16 %v3064, %v3063
  %v3304 = vpack.c.b16 %v3066, %v3065
  %v3305 = vpack.c.b16 %v3068, %v3067
  %v3306 = vpack.c.b16 %v3070, %v3069
  %v3307 = vpack.c.b16 %v3072, %v3071
  %v3308 = vpack.c.b16 %v3074, %v3073
  %v3309 = vpack.c.b16 %v3076, %v3075
  %v3310 = vpack.c.b16 %v3078, %v3077
  %v3311 = vpack.c.b16 %v3080, %v3079
  %v3312 = vpack.c.b16 %v3082, %v3081
  %v3313 = vpack.c.b16 %v3084, %v3083
  %v3314 = vpack.c.b16 %v3086, %v3085
  %v3315 = vpack.c.b16 %v3088, %v3087
  %v3316 = vpack.c.b16 %v3090, %v3089
  %v3317 = vpack.c.b16 %v3092, %v3091
  %v3318 = vpack.c.b16 %v3094, %v3093
  %v3319 = vpack.c.b16 %v3096, %v3095
  %v3320 = vpack.c.b16 %v3098, %v3097
  %v3321 = vpack.c.b16 %v3100, %v3099
  %v3322 = vpack.c.b16 %v3102, %v3101
  %v3323 = vpack.c.b16 %v3104, %v3103
  %v3324 = vpack.c.b16 %v3106, %v3105
  %v3325 = vpack.c.b16 %v3108, %v3107
  %v3326 = vpack.c.b16 %v3110, %v3109
  %v3327 = vpack.c.b16 %v3112, %v3111
  %v3328 = vpack.c.b16 %v3114, %v3113
  %v3329 = vpack.c.b16 %v3116, %v3115
  %v3330 = vpack.c.b16 %v3118, %v3117
  %v3331 = vpack.c.b16 %v3120, %v3119
  %v3332 = vpack.c.b16 %v3122, %v3121
  %v3333 = vpack.c.b16 %v3124, %v3123
  %v3334 = vpack.c.b16 %v3126, %v3125
  %v3335 = vpack.c.b16 %v3128, %v3127
  %v3336 = vpack.c.b16 %v3130, %v3129
  %v3337 = vpack.c.b16 %v3132, %v3131
  %v3338 = vpack.c.b16 %v3134, %v3133
  %v3339 = vpack.c.b16 %v3136, %v3135
  %v3340 = vpack.c.b16 %v3138, %v3137
  %v3341 = vpack.c.b16 %v3140, %v3139
  %v3342 = vpack.c.b16 %v3142, %v3141
  %3543 = vmatpush.bf16.msra.mxu0 %v3150
  %3544 = vmatpush.bf16.msra.mxu0 %v3149
  %3545 = vmatpush.bf16.msra.mxu0 %v3148
  %3546 = vmatpush.bf16.msra.mxu0 %v3147
  %3547 = vmatpush.bf16.msra.mxu0 %v3146
  %3548 = vmatpush.bf16.msra.mxu0 %v3145
  %3549 = vmatpush.bf16.msra.mxu0 %v3144
  %3550 = vmatpush.bf16.msra.mxu0 %v3143
  %3551 = vmatmul.bf16.gmra.mxu0 %v1693
  %v3552 = vpop.f32.mrf.mxu0
  %v3553 = vadd.f32 %v741, %v3552
  %v3554 = vpop.f32.mrf.mxu0
  %v3555 = vadd.f32 %v741, %v3554
  %3556 = vmatmul.bf16.gmra.mxu0 %v1718
  %v3557 = vpop.f32.mrf.mxu0
  %v3558 = vadd.f32 %v741, %v3557
  %v3559 = vpop.f32.mrf.mxu0
  %v3560 = vadd.f32 %v741, %v3559
  %3561 = vmatmul.bf16.gmra.mxu0 %v1743
  %v3562 = vpop.f32.mrf.mxu0
  %v3563 = vadd.f32 %v741, %v3562
  %v3564 = vpop.f32.mrf.mxu0
  %v3565 = vadd.f32 %v741, %v3564
  %3566 = vmatmul.bf16.gmra.mxu0 %v1768
  %v3567 = vpop.f32.mrf.mxu0
  %v3568 = vadd.f32 %v741, %v3567
  %v3569 = vpop.f32.mrf.mxu0
  %v3570 = vadd.f32 %v741, %v3569
  %3571 = vmatmul.bf16.gmra.mxu0 %v1793
  %v3572 = vpop.f32.mrf.mxu0
  %v3573 = vadd.f32 %v741, %v3572
  %v3574 = vpop.f32.mrf.mxu0
  %v3575 = vadd.f32 %v741, %v3574
  %3576 = vmatmul.bf16.gmra.mxu0 %v1818
  %v3577 = vpop.f32.mrf.mxu0
  %v3578 = vadd.f32 %v741, %v3577
  %v3579 = vpop.f32.mrf.mxu0
  %v3580 = vadd.f32 %v741, %v3579
  %3581 = vmatmul.bf16.gmra.mxu0 %v1843
  %v3582 = vpop.f32.mrf.mxu0
  %v3583 = vadd.f32 %v741, %v3582
  %v3584 = vpop.f32.mrf.mxu0
  %v3585 = vadd.f32 %v741, %v3584
  %3586 = vmatmul.bf16.gmra.mxu0 %v1868
  %v3587 = vpop.f32.mrf.mxu0
  %v3588 = vadd.f32 %v741, %v3587
  %v3589 = vpop.f32.mrf.mxu0
  %v3590 = vadd.f32 %v741, %v3589
  %3591 = vmatmul.bf16.gmra.mxu0 %v1893
  %v3592 = vpop.f32.mrf.mxu0
  %v3593 = vadd.f32 %v741, %v3592
  %v3594 = vpop.f32.mrf.mxu0
  %v3595 = vadd.f32 %v741, %v3594
  %3596 = vmatmul.bf16.gmra.mxu0 %v1918
  %v3597 = vpop.f32.mrf.mxu0
  %v3598 = vadd.f32 %v741, %v3597
  %v3599 = vpop.f32.mrf.mxu0
  %v3600 = vadd.f32 %v741, %v3599
  %3601 = vmatmul.bf16.gmra.mxu0 %v1943
  %v3602 = vpop.f32.mrf.mxu0
  %v3603 = vadd.f32 %v741, %v3602
  %v3604 = vpop.f32.mrf.mxu0
  %v3605 = vadd.f32 %v741, %v3604
  %3606 = vmatmul.bf16.gmra.mxu0 %v1968
  %v3607 = vpop.f32.mrf.mxu0
  %v3608 = vadd.f32 %v741, %v3607
  %v3609 = vpop.f32.mrf.mxu0
  %v3610 = vadd.f32 %v741, %v3609
  %3611 = vmatmul.bf16.gmra.mxu0 %v1993
  %v3612 = vpop.f32.mrf.mxu0
  %v3613 = vadd.f32 %v741, %v3612
  %v3614 = vpop.f32.mrf.mxu0
  %3615 = vdwg.mxu0
  %3616 = vmatpush.bf16.msra.mxu0 %v3158
  %3617 = vmatpush.bf16.msra.mxu0 %v3157
  %3618 = vmatpush.bf16.msra.mxu0 %v3156
  %3619 = vmatpush.bf16.msra.mxu0 %v3155
  %3620 = vmatpush.bf16.msra.mxu0 %v3154
  %3621 = vmatpush.bf16.msra.mxu0 %v3153
  %3622 = vmatpush.bf16.msra.mxu0 %v3152
  %3623 = vmatpush.bf16.msra.mxu0 %v3151
  %3624 = vmatmul.bf16.gmra.mxu0 %v1694
  %v3625 = vpop.f32.mrf.mxu0
  %v3626 = vadd.f32 %v3553, %v3625
  %v3627 = vpop.f32.mrf.mxu0
  %v3628 = vadd.f32 %v3555, %v3627
  %3629 = vmatmul.bf16.gmra.mxu0 %v1719
  %v3630 = vpop.f32.mrf.mxu0
  %v3631 = vadd.f32 %v3558, %v3630
  %v3632 = vpop.f32.mrf.mxu0
  %v3633 = vadd.f32 %v3560, %v3632
  %3634 = vmatmul.bf16.gmra.mxu0 %v1744
  %v3635 = vpop.f32.mrf.mxu0
  %v3636 = vadd.f32 %v3563, %v3635
  %v3637 = vpop.f32.mrf.mxu0
  %v3638 = vadd.f32 %v3565, %v3637
  %3639 = vmatmul.bf16.gmra.mxu0 %v1769
  %v3640 = vpop.f32.mrf.mxu0
  %v3641 = vadd.f32 %v3568, %v3640
  %v3642 = vpop.f32.mrf.mxu0
  %v3643 = vadd.f32 %v3570, %v3642
  %3644 = vmatmul.bf16.gmra.mxu0 %v1794
  %v3645 = vpop.f32.mrf.mxu0
  %v3646 = vadd.f32 %v3573, %v3645
  %v3647 = vpop.f32.mrf.mxu0
  %v3648 = vadd.f32 %v3575, %v3647
  %3649 = vmatmul.bf16.gmra.mxu0 %v1819
  %v3650 = vpop.f32.mrf.mxu0
  %v3651 = vadd.f32 %v3578, %v3650
  %v3652 = vpop.f32.mrf.mxu0
  %v3653 = vadd.f32 %v3580, %v3652
  %3654 = vmatmul.bf16.gmra.mxu0 %v1844
  %v3655 = vpop.f32.mrf.mxu0
  %v3656 = vadd.f32 %v3583, %v3655
  %v3657 = vpop.f32.mrf.mxu0
  %v3658 = vadd.f32 %v3585, %v3657
  %3659 = vmatmul.bf16.gmra.mxu0 %v1869
  %v3660 = vpop.f32.mrf.mxu0
  %v3661 = vadd.f32 %v3588, %v3660
  %v3662 = vpop.f32.mrf.mxu0
  %v3663 = vadd.f32 %v3590, %v3662
  %3664 = vmatmul.bf16.gmra.mxu0 %v1894
  %v3665 = vpop.f32.mrf.mxu0
  %v3666 = vadd.f32 %v3593, %v3665
  %v3667 = vpop.f32.mrf.mxu0
  %v3668 = vadd.f32 %v3595, %v3667
  %3669 = vmatmul.bf16.gmra.mxu0 %v1919
  %v3670 = vpop.f32.mrf.mxu0
  %v3671 = vadd.f32 %v3598, %v3670
  %v3672 = vpop.f32.mrf.mxu0
  %v3673 = vadd.f32 %v3600, %v3672
  %3674 = vmatmul.bf16.gmra.mxu0 %v1944
  %v3675 = vpop.f32.mrf.mxu0
  %v3676 = vadd.f32 %v3603, %v3675
  %v3677 = vpop.f32.mrf.mxu0
  %v3678 = vadd.f32 %v3605, %v3677
  %3679 = vmatmul.bf16.gmra.mxu0 %v1969
  %v3680 = vpop.f32.mrf.mxu0
  %v3681 = vadd.f32 %v3608, %v3680
  %v3682 = vpop.f32.mrf.mxu0
  %v3683 = vadd.f32 %v3610, %v3682
  %3684 = vmatmul.bf16.gmra.mxu0 %v1994
  %v3685 = vpop.f32.mrf.mxu0
  %v3686 = vadd.f32 %v3613, %v3685
  %v3687 = vpop.f32.mrf.mxu0
  %3688 = vdwg.mxu0
  %3689 = vmatpush.bf16.msra.mxu0 %v3166
  %3690 = vmatpush.bf16.msra.mxu0 %v3165
  %3691 = vmatpush.bf16.msra.mxu0 %v3164
  %3692 = vmatpush.bf16.msra.mxu0 %v3163
  %3693 = vmatpush.bf16.msra.mxu0 %v3162
  %3694 = vmatpush.bf16.msra.mxu0 %v3161
  %3695 = vmatpush.bf16.msra.mxu0 %v3160
  %3696 = vmatpush.bf16.msra.mxu0 %v3159
  %3697 = vmatmul.bf16.gmra.mxu0 %v1695
  %v3698 = vpop.f32.mrf.mxu0
  %v3699 = vadd.f32 %v3626, %v3698
  %v3700 = vpop.f32.mrf.mxu0
  %v3701 = vadd.f32 %v3628, %v3700
  %3702 = vmatmul.bf16.gmra.mxu0 %v1720
  %v3703 = vpop.f32.mrf.mxu0
  %v3704 = vadd.f32 %v3631, %v3703
  %v3705 = vpop.f32.mrf.mxu0
  %v3706 = vadd.f32 %v3633, %v3705
  %3707 = vmatmul.bf16.gmra.mxu0 %v1745
  %v3708 = vpop.f32.mrf.mxu0
  %v3709 = vadd.f32 %v3636, %v3708
  %v3710 = vpop.f32.mrf.mxu0
  %v3711 = vadd.f32 %v3638, %v3710
  %3712 = vmatmul.bf16.gmra.mxu0 %v1770
  %v3713 = vpop.f32.mrf.mxu0
  %v3714 = vadd.f32 %v3641, %v3713
  %v3715 = vpop.f32.mrf.mxu0
  %v3716 = vadd.f32 %v3643, %v3715
  %3717 = vmatmul.bf16.gmra.mxu0 %v1795
  %v3718 = vpop.f32.mrf.mxu0
  %v3719 = vadd.f32 %v3646, %v3718
  %v3720 = vpop.f32.mrf.mxu0
  %v3721 = vadd.f32 %v3648, %v3720
  %3722 = vmatmul.bf16.gmra.mxu0 %v1820
  %v3723 = vpop.f32.mrf.mxu0
  %v3724 = vadd.f32 %v3651, %v3723
  %v3725 = vpop.f32.mrf.mxu0
  %v3726 = vadd.f32 %v3653, %v3725
  %3727 = vmatmul.bf16.gmra.mxu0 %v1845
  %v3728 = vpop.f32.mrf.mxu0
  %v3729 = vadd.f32 %v3656, %v3728
  %v3730 = vpop.f32.mrf.mxu0
  %v3731 = vadd.f32 %v3658, %v3730
  %3732 = vmatmul.bf16.gmra.mxu0 %v1870
  %v3733 = vpop.f32.mrf.mxu0
  %v3734 = vadd.f32 %v3661, %v3733
  %v3735 = vpop.f32.mrf.mxu0
  %v3736 = vadd.f32 %v3663, %v3735
  %3737 = vmatmul.bf16.gmra.mxu0 %v1895
  %v3738 = vpop.f32.mrf.mxu0
  %v3739 = vadd.f32 %v3666, %v3738
  %v3740 = vpop.f32.mrf.mxu0
  %v3741 = vadd.f32 %v3668, %v3740
  %3742 = vmatmul.bf16.gmra.mxu0 %v1920
  %v3743 = vpop.f32.mrf.mxu0
  %v3744 = vadd.f32 %v3671, %v3743
  %v3745 = vpop.f32.mrf.mxu0
  %v3746 = vadd.f32 %v3673, %v3745
  %3747 = vmatmul.bf16.gmra.mxu0 %v1945
  %v3748 = vpop.f32.mrf.mxu0
  %v3749 = vadd.f32 %v3676, %v3748
  %v3750 = vpop.f32.mrf.mxu0
  %v3751 = vadd.f32 %v3678, %v3750
  %3752 = vmatmul.bf16.gmra.mxu0 %v1970
  %v3753 = vpop.f32.mrf.mxu0
  %v3754 = vadd.f32 %v3681, %v3753
  %v3755 = vpop.f32.mrf.mxu0
  %v3756 = vadd.f32 %v3683, %v3755
  %3757 = vmatmul.bf16.gmra.mxu0 %v1995
  %v3758 = vpop.f32.mrf.mxu0
  %v3759 = vadd.f32 %v3686, %v3758
  %v3760 = vpop.f32.mrf.mxu0
  %3761 = vdwg.mxu0
  %3762 = vmatpush.bf16.msra.mxu0 %v3174
  %3763 = vmatpush.bf16.msra.mxu0 %v3173
  %3764 = vmatpush.bf16.msra.mxu0 %v3172
  %3765 = vmatpush.bf16.msra.mxu0 %v3171
  %3766 = vmatpush.bf16.msra.mxu0 %v3170
  %3767 = vmatpush.bf16.msra.mxu0 %v3169
  %3768 = vmatpush.bf16.msra.mxu0 %v3168
  %3769 = vmatpush.bf16.msra.mxu0 %v3167
  %3770 = vmatmul.bf16.gmra.mxu0 %v1696
  %v3771 = vpop.f32.mrf.mxu0
  %v3772 = vadd.f32 %v3699, %v3771
  %v3773 = vpop.f32.mrf.mxu0
  %v3774 = vadd.f32 %v3701, %v3773
  %3775 = vmatmul.bf16.gmra.mxu0 %v1721
  %v3776 = vpop.f32.mrf.mxu0
  %v3777 = vadd.f32 %v3704, %v3776
  %v3778 = vpop.f32.mrf.mxu0
  %v3779 = vadd.f32 %v3706, %v3778
  %3780 = vmatmul.bf16.gmra.mxu0 %v1746
  %v3781 = vpop.f32.mrf.mxu0
  %v3782 = vadd.f32 %v3709, %v3781
  %v3783 = vpop.f32.mrf.mxu0
  %v3784 = vadd.f32 %v3711, %v3783
  %3785 = vmatmul.bf16.gmra.mxu0 %v1771
  %v3786 = vpop.f32.mrf.mxu0
  %v3787 = vadd.f32 %v3714, %v3786
  %v3788 = vpop.f32.mrf.mxu0
  %v3789 = vadd.f32 %v3716, %v3788
  %3790 = vmatmul.bf16.gmra.mxu0 %v1796
  %v3791 = vpop.f32.mrf.mxu0
  %v3792 = vadd.f32 %v3719, %v3791
  %v3793 = vpop.f32.mrf.mxu0
  %v3794 = vadd.f32 %v3721, %v3793
  %3795 = vmatmul.bf16.gmra.mxu0 %v1821
  %v3796 = vpop.f32.mrf.mxu0
  %v3797 = vadd.f32 %v3724, %v3796
  %v3798 = vpop.f32.mrf.mxu0
  %v3799 = vadd.f32 %v3726, %v3798
  %3800 = vmatmul.bf16.gmra.mxu0 %v1846
  %v3801 = vpop.f32.mrf.mxu0
  %v3802 = vadd.f32 %v3729, %v3801
  %v3803 = vpop.f32.mrf.mxu0
  %v3804 = vadd.f32 %v3731, %v3803
  %3805 = vmatmul.bf16.gmra.mxu0 %v1871
  %v3806 = vpop.f32.mrf.mxu0
  %v3807 = vadd.f32 %v3734, %v3806
  %v3808 = vpop.f32.mrf.mxu0
  %v3809 = vadd.f32 %v3736, %v3808
  %3810 = vmatmul.bf16.gmra.mxu0 %v1896
  %v3811 = vpop.f32.mrf.mxu0
  %v3812 = vadd.f32 %v3739, %v3811
  %v3813 = vpop.f32.mrf.mxu0
  %v3814 = vadd.f32 %v3741, %v3813
  %3815 = vmatmul.bf16.gmra.mxu0 %v1921
  %v3816 = vpop.f32.mrf.mxu0
  %v3817 = vadd.f32 %v3744, %v3816
  %v3818 = vpop.f32.mrf.mxu0
  %v3819 = vadd.f32 %v3746, %v3818
  %3820 = vmatmul.bf16.gmra.mxu0 %v1946
  %v3821 = vpop.f32.mrf.mxu0
  %v3822 = vadd.f32 %v3749, %v3821
  %v3823 = vpop.f32.mrf.mxu0
  %v3824 = vadd.f32 %v3751, %v3823
  %3825 = vmatmul.bf16.gmra.mxu0 %v1971
  %v3826 = vpop.f32.mrf.mxu0
  %v3827 = vadd.f32 %v3754, %v3826
  %v3828 = vpop.f32.mrf.mxu0
  %v3829 = vadd.f32 %v3756, %v3828
  %3830 = vmatmul.bf16.gmra.mxu0 %v1996
  %v3831 = vpop.f32.mrf.mxu0
  %v3832 = vadd.f32 %v3759, %v3831
  %v3833 = vpop.f32.mrf.mxu0
  %3834 = vdwg.mxu0
  %3835 = vmatpush.bf16.msra.mxu0 %v3182
  %3836 = vmatpush.bf16.msra.mxu0 %v3181
  %3837 = vmatpush.bf16.msra.mxu0 %v3180
  %3838 = vmatpush.bf16.msra.mxu0 %v3179
  %3839 = vmatpush.bf16.msra.mxu0 %v3178
  %3840 = vmatpush.bf16.msra.mxu0 %v3177
  %3841 = vmatpush.bf16.msra.mxu0 %v3176
  %3842 = vmatpush.bf16.msra.mxu0 %v3175
  %3843 = vmatmul.bf16.gmra.mxu0 %v1697
  %v3844 = vpop.f32.mrf.mxu0
  %v3845 = vadd.f32 %v3772, %v3844
  %v3846 = vpop.f32.mrf.mxu0
  %v3847 = vadd.f32 %v3774, %v3846
  %3848 = vmatmul.bf16.gmra.mxu0 %v1722
  %v3849 = vpop.f32.mrf.mxu0
  %v3850 = vadd.f32 %v3777, %v3849
  %v3851 = vpop.f32.mrf.mxu0
  %v3852 = vadd.f32 %v3779, %v3851
  %3853 = vmatmul.bf16.gmra.mxu0 %v1747
  %v3854 = vpop.f32.mrf.mxu0
  %v3855 = vadd.f32 %v3782, %v3854
  %v3856 = vpop.f32.mrf.mxu0
  %v3857 = vadd.f32 %v3784, %v3856
  %3858 = vmatmul.bf16.gmra.mxu0 %v1772
  %v3859 = vpop.f32.mrf.mxu0
  %v3860 = vadd.f32 %v3787, %v3859
  %v3861 = vpop.f32.mrf.mxu0
  %v3862 = vadd.f32 %v3789, %v3861
  %3863 = vmatmul.bf16.gmra.mxu0 %v1797
  %v3864 = vpop.f32.mrf.mxu0
  %v3865 = vadd.f32 %v3792, %v3864
  %v3866 = vpop.f32.mrf.mxu0
  %v3867 = vadd.f32 %v3794, %v3866
  %3868 = vmatmul.bf16.gmra.mxu0 %v1822
  %v3869 = vpop.f32.mrf.mxu0
  %v3870 = vadd.f32 %v3797, %v3869
  %v3871 = vpop.f32.mrf.mxu0
  %v3872 = vadd.f32 %v3799, %v3871
  %3873 = vmatmul.bf16.gmra.mxu0 %v1847
  %v3874 = vpop.f32.mrf.mxu0
  %v3875 = vadd.f32 %v3802, %v3874
  %v3876 = vpop.f32.mrf.mxu0
  %v3877 = vadd.f32 %v3804, %v3876
  %3878 = vmatmul.bf16.gmra.mxu0 %v1872
  %v3879 = vpop.f32.mrf.mxu0
  %v3880 = vadd.f32 %v3807, %v3879
  %v3881 = vpop.f32.mrf.mxu0
  %v3882 = vadd.f32 %v3809, %v3881
  %3883 = vmatmul.bf16.gmra.mxu0 %v1897
  %v3884 = vpop.f32.mrf.mxu0
  %v3885 = vadd.f32 %v3812, %v3884
  %v3886 = vpop.f32.mrf.mxu0
  %v3887 = vadd.f32 %v3814, %v3886
  %3888 = vmatmul.bf16.gmra.mxu0 %v1922
  %v3889 = vpop.f32.mrf.mxu0
  %v3890 = vadd.f32 %v3817, %v3889
  %v3891 = vpop.f32.mrf.mxu0
  %v3892 = vadd.f32 %v3819, %v3891
  %3893 = vmatmul.bf16.gmra.mxu0 %v1947
  %v3894 = vpop.f32.mrf.mxu0
  %v3895 = vadd.f32 %v3822, %v3894
  %v3896 = vpop.f32.mrf.mxu0
  %v3897 = vadd.f32 %v3824, %v3896
  %3898 = vmatmul.bf16.gmra.mxu0 %v1972
  %v3899 = vpop.f32.mrf.mxu0
  %v3900 = vadd.f32 %v3827, %v3899
  %v3901 = vpop.f32.mrf.mxu0
  %v3902 = vadd.f32 %v3829, %v3901
  %3903 = vmatmul.bf16.gmra.mxu0 %v1997
  %v3904 = vpop.f32.mrf.mxu0
  %v3905 = vadd.f32 %v3832, %v3904
  %v3906 = vpop.f32.mrf.mxu0
  %3907 = vdwg.mxu0
  %3908 = vmatpush.bf16.msra.mxu0 %v3190
  %3909 = vmatpush.bf16.msra.mxu0 %v3189
  %3910 = vmatpush.bf16.msra.mxu0 %v3188
  %3911 = vmatpush.bf16.msra.mxu0 %v3187
  %3912 = vmatpush.bf16.msra.mxu0 %v3186
  %3913 = vmatpush.bf16.msra.mxu0 %v3185
  %3914 = vmatpush.bf16.msra.mxu0 %v3184
  %3915 = vmatpush.bf16.msra.mxu0 %v3183
  %3916 = vmatmul.bf16.gmra.mxu0 %v1698
  %v3917 = vpop.f32.mrf.mxu0
  %v3918 = vadd.f32 %v3845, %v3917
  %v3919 = vpop.f32.mrf.mxu0
  %v3920 = vadd.f32 %v3847, %v3919
  %3921 = vmatmul.bf16.gmra.mxu0 %v1723
  %v3922 = vpop.f32.mrf.mxu0
  %v3923 = vadd.f32 %v3850, %v3922
  %v3924 = vpop.f32.mrf.mxu0
  %v3925 = vadd.f32 %v3852, %v3924
  %3926 = vmatmul.bf16.gmra.mxu0 %v1748
  %v3927 = vpop.f32.mrf.mxu0
  %v3928 = vadd.f32 %v3855, %v3927
  %v3929 = vpop.f32.mrf.mxu0
  %v3930 = vadd.f32 %v3857, %v3929
  %3931 = vmatmul.bf16.gmra.mxu0 %v1773
  %v3932 = vpop.f32.mrf.mxu0
  %v3933 = vadd.f32 %v3860, %v3932
  %v3934 = vpop.f32.mrf.mxu0
  %v3935 = vadd.f32 %v3862, %v3934
  %3936 = vmatmul.bf16.gmra.mxu0 %v1798
  %v3937 = vpop.f32.mrf.mxu0
  %v3938 = vadd.f32 %v3865, %v3937
  %v3939 = vpop.f32.mrf.mxu0
  %v3940 = vadd.f32 %v3867, %v3939
  %3941 = vmatmul.bf16.gmra.mxu0 %v1823
  %v3942 = vpop.f32.mrf.mxu0
  %v3943 = vadd.f32 %v3870, %v3942
  %v3944 = vpop.f32.mrf.mxu0
  %v3945 = vadd.f32 %v3872, %v3944
  %3946 = vmatmul.bf16.gmra.mxu0 %v1848
  %v3947 = vpop.f32.mrf.mxu0
  %v3948 = vadd.f32 %v3875, %v3947
  %v3949 = vpop.f32.mrf.mxu0
  %v3950 = vadd.f32 %v3877, %v3949
  %3951 = vmatmul.bf16.gmra.mxu0 %v1873
  %v3952 = vpop.f32.mrf.mxu0
  %v3953 = vadd.f32 %v3880, %v3952
  %v3954 = vpop.f32.mrf.mxu0
  %v3955 = vadd.f32 %v3882, %v3954
  %3956 = vmatmul.bf16.gmra.mxu0 %v1898
  %v3957 = vpop.f32.mrf.mxu0
  %v3958 = vadd.f32 %v3885, %v3957
  %v3959 = vpop.f32.mrf.mxu0
  %v3960 = vadd.f32 %v3887, %v3959
  %3961 = vmatmul.bf16.gmra.mxu0 %v1923
  %v3962 = vpop.f32.mrf.mxu0
  %v3963 = vadd.f32 %v3890, %v3962
  %v3964 = vpop.f32.mrf.mxu0
  %v3965 = vadd.f32 %v3892, %v3964
  %3966 = vmatmul.bf16.gmra.mxu0 %v1948
  %v3967 = vpop.f32.mrf.mxu0
  %v3968 = vadd.f32 %v3895, %v3967
  %v3969 = vpop.f32.mrf.mxu0
  %v3970 = vadd.f32 %v3897, %v3969
  %3971 = vmatmul.bf16.gmra.mxu0 %v1973
  %v3972 = vpop.f32.mrf.mxu0
  %v3973 = vadd.f32 %v3900, %v3972
  %v3974 = vpop.f32.mrf.mxu0
  %v3975 = vadd.f32 %v3902, %v3974
  %3976 = vmatmul.bf16.gmra.mxu0 %v1998
  %v3977 = vpop.f32.mrf.mxu0
  %v3978 = vadd.f32 %v3905, %v3977
  %v3979 = vpop.f32.mrf.mxu0
  %3980 = vdwg.mxu0
  %3981 = vmatpush.bf16.msra.mxu0 %v3198
  %3982 = vmatpush.bf16.msra.mxu0 %v3197
  %3983 = vmatpush.bf16.msra.mxu0 %v3196
  %3984 = vmatpush.bf16.msra.mxu0 %v3195
  %3985 = vmatpush.bf16.msra.mxu0 %v3194
  %3986 = vmatpush.bf16.msra.mxu0 %v3193
  %3987 = vmatpush.bf16.msra.mxu0 %v3192
  %3988 = vmatpush.bf16.msra.mxu0 %v3191
  %3989 = vmatmul.bf16.gmra.mxu0 %v1699
  %v3990 = vpop.f32.mrf.mxu0
  %v3991 = vadd.f32 %v3918, %v3990
  %v3992 = vpop.f32.mrf.mxu0
  %v3993 = vadd.f32 %v3920, %v3992
  %3994 = vmatmul.bf16.gmra.mxu0 %v1724
  %v3995 = vpop.f32.mrf.mxu0
  %v3996 = vadd.f32 %v3923, %v3995
  %v3997 = vpop.f32.mrf.mxu0
  %v3998 = vadd.f32 %v3925, %v3997
  %3999 = vmatmul.bf16.gmra.mxu0 %v1749
  %v4000 = vpop.f32.mrf.mxu0
  %v4001 = vadd.f32 %v3928, %v4000
  %v4002 = vpop.f32.mrf.mxu0
  %v4003 = vadd.f32 %v3930, %v4002
  %4004 = vmatmul.bf16.gmra.mxu0 %v1774
  %v4005 = vpop.f32.mrf.mxu0
  %v4006 = vadd.f32 %v3933, %v4005
  %v4007 = vpop.f32.mrf.mxu0
  %v4008 = vadd.f32 %v3935, %v4007
  %4009 = vmatmul.bf16.gmra.mxu0 %v1799
  %v4010 = vpop.f32.mrf.mxu0
  %v4011 = vadd.f32 %v3938, %v4010
  %v4012 = vpop.f32.mrf.mxu0
  %v4013 = vadd.f32 %v3940, %v4012
  %4014 = vmatmul.bf16.gmra.mxu0 %v1824
  %v4015 = vpop.f32.mrf.mxu0
  %v4016 = vadd.f32 %v3943, %v4015
  %v4017 = vpop.f32.mrf.mxu0
  %v4018 = vadd.f32 %v3945, %v4017
  %4019 = vmatmul.bf16.gmra.mxu0 %v1849
  %v4020 = vpop.f32.mrf.mxu0
  %v4021 = vadd.f32 %v3948, %v4020
  %v4022 = vpop.f32.mrf.mxu0
  %v4023 = vadd.f32 %v3950, %v4022
  %4024 = vmatmul.bf16.gmra.mxu0 %v1874
  %v4025 = vpop.f32.mrf.mxu0
  %v4026 = vadd.f32 %v3953, %v4025
  %v4027 = vpop.f32.mrf.mxu0
  %v4028 = vadd.f32 %v3955, %v4027
  %4029 = vmatmul.bf16.gmra.mxu0 %v1899
  %v4030 = vpop.f32.mrf.mxu0
  %v4031 = vadd.f32 %v3958, %v4030
  %v4032 = vpop.f32.mrf.mxu0
  %v4033 = vadd.f32 %v3960, %v4032
  %4034 = vmatmul.bf16.gmra.mxu0 %v1924
  %v4035 = vpop.f32.mrf.mxu0
  %v4036 = vadd.f32 %v3963, %v4035
  %v4037 = vpop.f32.mrf.mxu0
  %v4038 = vadd.f32 %v3965, %v4037
  %4039 = vmatmul.bf16.gmra.mxu0 %v1949
  %v4040 = vpop.f32.mrf.mxu0
  %v4041 = vadd.f32 %v3968, %v4040
  %v4042 = vpop.f32.mrf.mxu0
  %v4043 = vadd.f32 %v3970, %v4042
  %4044 = vmatmul.bf16.gmra.mxu0 %v1974
  %v4045 = vpop.f32.mrf.mxu0
  %v4046 = vadd.f32 %v3973, %v4045
  %v4047 = vpop.f32.mrf.mxu0
  %v4048 = vadd.f32 %v3975, %v4047
  %4049 = vmatmul.bf16.gmra.mxu0 %v1999
  %v4050 = vpop.f32.mrf.mxu0
  %v4051 = vadd.f32 %v3978, %v4050
  %v4052 = vpop.f32.mrf.mxu0
  %4053 = vdwg.mxu0
  %4054 = vmatpush.bf16.msra.mxu0 %v3206
  %4055 = vmatpush.bf16.msra.mxu0 %v3205
  %4056 = vmatpush.bf16.msra.mxu0 %v3204
  %4057 = vmatpush.bf16.msra.mxu0 %v3203
  %4058 = vmatpush.bf16.msra.mxu0 %v3202
  %4059 = vmatpush.bf16.msra.mxu0 %v3201
  %4060 = vmatpush.bf16.msra.mxu0 %v3200
  %4061 = vmatpush.bf16.msra.mxu0 %v3199
  %4062 = vmatmul.bf16.gmra.mxu0 %v1700
  %v4063 = vpop.f32.mrf.mxu0
  %v4064 = vadd.f32 %v3991, %v4063
  %v4065 = vpop.f32.mrf.mxu0
  %v4066 = vadd.f32 %v3993, %v4065
  %4067 = vmatmul.bf16.gmra.mxu0 %v1725
  %v4068 = vpop.f32.mrf.mxu0
  %v4069 = vadd.f32 %v3996, %v4068
  %v4070 = vpop.f32.mrf.mxu0
  %v4071 = vadd.f32 %v3998, %v4070
  %4072 = vmatmul.bf16.gmra.mxu0 %v1750
  %v4073 = vpop.f32.mrf.mxu0
  %v4074 = vadd.f32 %v4001, %v4073
  %v4075 = vpop.f32.mrf.mxu0
  %v4076 = vadd.f32 %v4003, %v4075
  %4077 = vmatmul.bf16.gmra.mxu0 %v1775
  %v4078 = vpop.f32.mrf.mxu0
  %v4079 = vadd.f32 %v4006, %v4078
  %v4080 = vpop.f32.mrf.mxu0
  %v4081 = vadd.f32 %v4008, %v4080
  %4082 = vmatmul.bf16.gmra.mxu0 %v1800
  %v4083 = vpop.f32.mrf.mxu0
  %v4084 = vadd.f32 %v4011, %v4083
  %v4085 = vpop.f32.mrf.mxu0
  %v4086 = vadd.f32 %v4013, %v4085
  %4087 = vmatmul.bf16.gmra.mxu0 %v1825
  %v4088 = vpop.f32.mrf.mxu0
  %v4089 = vadd.f32 %v4016, %v4088
  %v4090 = vpop.f32.mrf.mxu0
  %v4091 = vadd.f32 %v4018, %v4090
  %4092 = vmatmul.bf16.gmra.mxu0 %v1850
  %v4093 = vpop.f32.mrf.mxu0
  %v4094 = vadd.f32 %v4021, %v4093
  %v4095 = vpop.f32.mrf.mxu0
  %v4096 = vadd.f32 %v4023, %v4095
  %4097 = vmatmul.bf16.gmra.mxu0 %v1875
  %v4098 = vpop.f32.mrf.mxu0
  %v4099 = vadd.f32 %v4026, %v4098
  %v4100 = vpop.f32.mrf.mxu0
  %v4101 = vadd.f32 %v4028, %v4100
  %4102 = vmatmul.bf16.gmra.mxu0 %v1900
  %v4103 = vpop.f32.mrf.mxu0
  %v4104 = vadd.f32 %v4031, %v4103
  %v4105 = vpop.f32.mrf.mxu0
  %v4106 = vadd.f32 %v4033, %v4105
  %4107 = vmatmul.bf16.gmra.mxu0 %v1925
  %v4108 = vpop.f32.mrf.mxu0
  %v4109 = vadd.f32 %v4036, %v4108
  %v4110 = vpop.f32.mrf.mxu0
  %v4111 = vadd.f32 %v4038, %v4110
  %4112 = vmatmul.bf16.gmra.mxu0 %v1950
  %v4113 = vpop.f32.mrf.mxu0
  %v4114 = vadd.f32 %v4041, %v4113
  %v4115 = vpop.f32.mrf.mxu0
  %v4116 = vadd.f32 %v4043, %v4115
  %4117 = vmatmul.bf16.gmra.mxu0 %v1975
  %v4118 = vpop.f32.mrf.mxu0
  %v4119 = vadd.f32 %v4046, %v4118
  %v4120 = vpop.f32.mrf.mxu0
  %v4121 = vadd.f32 %v4048, %v4120
  %4122 = vmatmul.bf16.gmra.mxu0 %v2000
  %v4123 = vpop.f32.mrf.mxu0
  %v4124 = vadd.f32 %v4051, %v4123
  %v4125 = vpop.f32.mrf.mxu0
  %4126 = vdwg.mxu0
  %4127 = vmatpush.bf16.msra.mxu0 %v3214
  %4128 = vmatpush.bf16.msra.mxu0 %v3213
  %4129 = vmatpush.bf16.msra.mxu0 %v3212
  %4130 = vmatpush.bf16.msra.mxu0 %v3211
  %4131 = vmatpush.bf16.msra.mxu0 %v3210
  %4132 = vmatpush.bf16.msra.mxu0 %v3209
  %4133 = vmatpush.bf16.msra.mxu0 %v3208
  %4134 = vmatpush.bf16.msra.mxu0 %v3207
  %4135 = vmatmul.bf16.gmra.mxu0 %v1701
  %v4136 = vpop.f32.mrf.mxu0
  %v4137 = vadd.f32 %v4064, %v4136
  %v4138 = vpop.f32.mrf.mxu0
  %v4139 = vadd.f32 %v4066, %v4138
  %4140 = vmatmul.bf16.gmra.mxu0 %v1726
  %v4141 = vpop.f32.mrf.mxu0
  %v4142 = vadd.f32 %v4069, %v4141
  %v4143 = vpop.f32.mrf.mxu0
  %v4144 = vadd.f32 %v4071, %v4143
  %4145 = vmatmul.bf16.gmra.mxu0 %v1751
  %v4146 = vpop.f32.mrf.mxu0
  %v4147 = vadd.f32 %v4074, %v4146
  %v4148 = vpop.f32.mrf.mxu0
  %v4149 = vadd.f32 %v4076, %v4148
  %4150 = vmatmul.bf16.gmra.mxu0 %v1776
  %v4151 = vpop.f32.mrf.mxu0
  %v4152 = vadd.f32 %v4079, %v4151
  %v4153 = vpop.f32.mrf.mxu0
  %v4154 = vadd.f32 %v4081, %v4153
  %4155 = vmatmul.bf16.gmra.mxu0 %v1801
  %v4156 = vpop.f32.mrf.mxu0
  %v4157 = vadd.f32 %v4084, %v4156
  %v4158 = vpop.f32.mrf.mxu0
  %v4159 = vadd.f32 %v4086, %v4158
  %4160 = vmatmul.bf16.gmra.mxu0 %v1826
  %v4161 = vpop.f32.mrf.mxu0
  %v4162 = vadd.f32 %v4089, %v4161
  %v4163 = vpop.f32.mrf.mxu0
  %v4164 = vadd.f32 %v4091, %v4163
  %4165 = vmatmul.bf16.gmra.mxu0 %v1851
  %v4166 = vpop.f32.mrf.mxu0
  %v4167 = vadd.f32 %v4094, %v4166
  %v4168 = vpop.f32.mrf.mxu0
  %v4169 = vadd.f32 %v4096, %v4168
  %4170 = vmatmul.bf16.gmra.mxu0 %v1876
  %v4171 = vpop.f32.mrf.mxu0
  %v4172 = vadd.f32 %v4099, %v4171
  %v4173 = vpop.f32.mrf.mxu0
  %v4174 = vadd.f32 %v4101, %v4173
  %4175 = vmatmul.bf16.gmra.mxu0 %v1901
  %v4176 = vpop.f32.mrf.mxu0
  %v4177 = vadd.f32 %v4104, %v4176
  %v4178 = vpop.f32.mrf.mxu0
  %v4179 = vadd.f32 %v4106, %v4178
  %4180 = vmatmul.bf16.gmra.mxu0 %v1926
  %v4181 = vpop.f32.mrf.mxu0
  %v4182 = vadd.f32 %v4109, %v4181
  %v4183 = vpop.f32.mrf.mxu0
  %v4184 = vadd.f32 %v4111, %v4183
  %4185 = vmatmul.bf16.gmra.mxu0 %v1951
  %v4186 = vpop.f32.mrf.mxu0
  %v4187 = vadd.f32 %v4114, %v4186
  %v4188 = vpop.f32.mrf.mxu0
  %v4189 = vadd.f32 %v4116, %v4188
  %4190 = vmatmul.bf16.gmra.mxu0 %v1976
  %v4191 = vpop.f32.mrf.mxu0
  %v4192 = vadd.f32 %v4119, %v4191
  %v4193 = vpop.f32.mrf.mxu0
  %v4194 = vadd.f32 %v4121, %v4193
  %4195 = vmatmul.bf16.gmra.mxu0 %v2001
  %v4196 = vpop.f32.mrf.mxu0
  %v4197 = vadd.f32 %v4124, %v4196
  %v4198 = vpop.f32.mrf.mxu0
  %4199 = vdwg.mxu0
  %4200 = vmatpush.bf16.msra.mxu0 %v3222
  %4201 = vmatpush.bf16.msra.mxu0 %v3221
  %4202 = vmatpush.bf16.msra.mxu0 %v3220
  %4203 = vmatpush.bf16.msra.mxu0 %v3219
  %4204 = vmatpush.bf16.msra.mxu0 %v3218
  %4205 = vmatpush.bf16.msra.mxu0 %v3217
  %4206 = vmatpush.bf16.msra.mxu0 %v3216
  %4207 = vmatpush.bf16.msra.mxu0 %v3215
  %4208 = vmatmul.bf16.gmra.mxu0 %v1702
  %v4209 = vpop.f32.mrf.mxu0
  %v4210 = vadd.f32 %v4137, %v4209
  %v4211 = vpop.f32.mrf.mxu0
  %v4212 = vadd.f32 %v4139, %v4211
  %4213 = vmatmul.bf16.gmra.mxu0 %v1727
  %v4214 = vpop.f32.mrf.mxu0
  %v4215 = vadd.f32 %v4142, %v4214
  %v4216 = vpop.f32.mrf.mxu0
  %v4217 = vadd.f32 %v4144, %v4216
  %4218 = vmatmul.bf16.gmra.mxu0 %v1752
  %v4219 = vpop.f32.mrf.mxu0
  %v4220 = vadd.f32 %v4147, %v4219
  %v4221 = vpop.f32.mrf.mxu0
  %v4222 = vadd.f32 %v4149, %v4221
  %4223 = vmatmul.bf16.gmra.mxu0 %v1777
  %v4224 = vpop.f32.mrf.mxu0
  %v4225 = vadd.f32 %v4152, %v4224
  %v4226 = vpop.f32.mrf.mxu0
  %v4227 = vadd.f32 %v4154, %v4226
  %4228 = vmatmul.bf16.gmra.mxu0 %v1802
  %v4229 = vpop.f32.mrf.mxu0
  %v4230 = vadd.f32 %v4157, %v4229
  %v4231 = vpop.f32.mrf.mxu0
  %v4232 = vadd.f32 %v4159, %v4231
  %4233 = vmatmul.bf16.gmra.mxu0 %v1827
  %v4234 = vpop.f32.mrf.mxu0
  %v4235 = vadd.f32 %v4162, %v4234
  %v4236 = vpop.f32.mrf.mxu0
  %v4237 = vadd.f32 %v4164, %v4236
  %4238 = vmatmul.bf16.gmra.mxu0 %v1852
  %v4239 = vpop.f32.mrf.mxu0
  %v4240 = vadd.f32 %v4167, %v4239
  %v4241 = vpop.f32.mrf.mxu0
  %v4242 = vadd.f32 %v4169, %v4241
  %4243 = vmatmul.bf16.gmra.mxu0 %v1877
  %v4244 = vpop.f32.mrf.mxu0
  %v4245 = vadd.f32 %v4172, %v4244
  %v4246 = vpop.f32.mrf.mxu0
  %v4247 = vadd.f32 %v4174, %v4246
  %4248 = vmatmul.bf16.gmra.mxu0 %v1902
  %v4249 = vpop.f32.mrf.mxu0
  %v4250 = vadd.f32 %v4177, %v4249
  %v4251 = vpop.f32.mrf.mxu0
  %v4252 = vadd.f32 %v4179, %v4251
  %4253 = vmatmul.bf16.gmra.mxu0 %v1927
  %v4254 = vpop.f32.mrf.mxu0
  %v4255 = vadd.f32 %v4182, %v4254
  %v4256 = vpop.f32.mrf.mxu0
  %v4257 = vadd.f32 %v4184, %v4256
  %4258 = vmatmul.bf16.gmra.mxu0 %v1952
  %v4259 = vpop.f32.mrf.mxu0
  %v4260 = vadd.f32 %v4187, %v4259
  %v4261 = vpop.f32.mrf.mxu0
  %v4262 = vadd.f32 %v4189, %v4261
  %4263 = vmatmul.bf16.gmra.mxu0 %v1977
  %v4264 = vpop.f32.mrf.mxu0
  %v4265 = vadd.f32 %v4192, %v4264
  %v4266 = vpop.f32.mrf.mxu0
  %v4267 = vadd.f32 %v4194, %v4266
  %4268 = vmatmul.bf16.gmra.mxu0 %v2002
  %v4269 = vpop.f32.mrf.mxu0
  %v4270 = vadd.f32 %v4197, %v4269
  %v4271 = vpop.f32.mrf.mxu0
  %4272 = vdwg.mxu0
  %4273 = vmatpush.bf16.msra.mxu0 %v3230
  %4274 = vmatpush.bf16.msra.mxu0 %v3229
  %4275 = vmatpush.bf16.msra.mxu0 %v3228
  %4276 = vmatpush.bf16.msra.mxu0 %v3227
  %4277 = vmatpush.bf16.msra.mxu0 %v3226
  %4278 = vmatpush.bf16.msra.mxu0 %v3225
  %4279 = vmatpush.bf16.msra.mxu0 %v3224
  %4280 = vmatpush.bf16.msra.mxu0 %v3223
  %4281 = vmatmul.bf16.gmra.mxu0 %v1703
  %v4282 = vpop.f32.mrf.mxu0
  %v4283 = vadd.f32 %v4210, %v4282
  %v4284 = vpop.f32.mrf.mxu0
  %v4285 = vadd.f32 %v4212, %v4284
  %4286 = vmatmul.bf16.gmra.mxu0 %v1728
  %v4287 = vpop.f32.mrf.mxu0
  %v4288 = vadd.f32 %v4215, %v4287
  %v4289 = vpop.f32.mrf.mxu0
  %v4290 = vadd.f32 %v4217, %v4289
  %4291 = vmatmul.bf16.gmra.mxu0 %v1753
  %v4292 = vpop.f32.mrf.mxu0
  %v4293 = vadd.f32 %v4220, %v4292
  %v4294 = vpop.f32.mrf.mxu0
  %v4295 = vadd.f32 %v4222, %v4294
  %4296 = vmatmul.bf16.gmra.mxu0 %v1778
  %v4297 = vpop.f32.mrf.mxu0
  %v4298 = vadd.f32 %v4225, %v4297
  %v4299 = vpop.f32.mrf.mxu0
  %v4300 = vadd.f32 %v4227, %v4299
  %4301 = vmatmul.bf16.gmra.mxu0 %v1803
  %v4302 = vpop.f32.mrf.mxu0
  %v4303 = vadd.f32 %v4230, %v4302
  %v4304 = vpop.f32.mrf.mxu0
  %v4305 = vadd.f32 %v4232, %v4304
  %4306 = vmatmul.bf16.gmra.mxu0 %v1828
  %v4307 = vpop.f32.mrf.mxu0
  %v4308 = vadd.f32 %v4235, %v4307
  %v4309 = vpop.f32.mrf.mxu0
  %v4310 = vadd.f32 %v4237, %v4309
  %4311 = vmatmul.bf16.gmra.mxu0 %v1853
  %v4312 = vpop.f32.mrf.mxu0
  %v4313 = vadd.f32 %v4240, %v4312
  %v4314 = vpop.f32.mrf.mxu0
  %v4315 = vadd.f32 %v4242, %v4314
  %4316 = vmatmul.bf16.gmra.mxu0 %v1878
  %v4317 = vpop.f32.mrf.mxu0
  %v4318 = vadd.f32 %v4245, %v4317
  %v4319 = vpop.f32.mrf.mxu0
  %v4320 = vadd.f32 %v4247, %v4319
  %4321 = vmatmul.bf16.gmra.mxu0 %v1903
  %v4322 = vpop.f32.mrf.mxu0
  %v4323 = vadd.f32 %v4250, %v4322
  %v4324 = vpop.f32.mrf.mxu0
  %v4325 = vadd.f32 %v4252, %v4324
  %4326 = vmatmul.bf16.gmra.mxu0 %v1928
  %v4327 = vpop.f32.mrf.mxu0
  %v4328 = vadd.f32 %v4255, %v4327
  %v4329 = vpop.f32.mrf.mxu0
  %v4330 = vadd.f32 %v4257, %v4329
  %4331 = vmatmul.bf16.gmra.mxu0 %v1953
  %v4332 = vpop.f32.mrf.mxu0
  %v4333 = vadd.f32 %v4260, %v4332
  %v4334 = vpop.f32.mrf.mxu0
  %v4335 = vadd.f32 %v4262, %v4334
  %4336 = vmatmul.bf16.gmra.mxu0 %v1978
  %v4337 = vpop.f32.mrf.mxu0
  %v4338 = vadd.f32 %v4265, %v4337
  %v4339 = vpop.f32.mrf.mxu0
  %v4340 = vadd.f32 %v4267, %v4339
  %4341 = vmatmul.bf16.gmra.mxu0 %v2003
  %v4342 = vpop.f32.mrf.mxu0
  %v4343 = vadd.f32 %v4270, %v4342
  %v4344 = vpop.f32.mrf.mxu0
  %4345 = vdwg.mxu0
  %4346 = vmatpush.bf16.msra.mxu0 %v3238
  %4347 = vmatpush.bf16.msra.mxu0 %v3237
  %4348 = vmatpush.bf16.msra.mxu0 %v3236
  %4349 = vmatpush.bf16.msra.mxu0 %v3235
  %4350 = vmatpush.bf16.msra.mxu0 %v3234
  %4351 = vmatpush.bf16.msra.mxu0 %v3233
  %4352 = vmatpush.bf16.msra.mxu0 %v3232
  %4353 = vmatpush.bf16.msra.mxu0 %v3231
  %4354 = vmatmul.bf16.gmra.mxu0 %v1704
  %v4355 = vpop.f32.mrf.mxu0
  %v4356 = vadd.f32 %v4283, %v4355
  %v4357 = vpop.f32.mrf.mxu0
  %v4358 = vadd.f32 %v4285, %v4357
  %4359 = vmatmul.bf16.gmra.mxu0 %v1729
  %v4360 = vpop.f32.mrf.mxu0
  %v4361 = vadd.f32 %v4288, %v4360
  %v4362 = vpop.f32.mrf.mxu0
  %v4363 = vadd.f32 %v4290, %v4362
  %4364 = vmatmul.bf16.gmra.mxu0 %v1754
  %v4365 = vpop.f32.mrf.mxu0
  %v4366 = vadd.f32 %v4293, %v4365
  %v4367 = vpop.f32.mrf.mxu0
  %v4368 = vadd.f32 %v4295, %v4367
  %4369 = vmatmul.bf16.gmra.mxu0 %v1779
  %v4370 = vpop.f32.mrf.mxu0
  %v4371 = vadd.f32 %v4298, %v4370
  %v4372 = vpop.f32.mrf.mxu0
  %v4373 = vadd.f32 %v4300, %v4372
  %4374 = vmatmul.bf16.gmra.mxu0 %v1804
  %v4375 = vpop.f32.mrf.mxu0
  %v4376 = vadd.f32 %v4303, %v4375
  %v4377 = vpop.f32.mrf.mxu0
  %v4378 = vadd.f32 %v4305, %v4377
  %4379 = vmatmul.bf16.gmra.mxu0 %v1829
  %v4380 = vpop.f32.mrf.mxu0
  %v4381 = vadd.f32 %v4308, %v4380
  %v4382 = vpop.f32.mrf.mxu0
  %v4383 = vadd.f32 %v4310, %v4382
  %4384 = vmatmul.bf16.gmra.mxu0 %v1854
  %v4385 = vpop.f32.mrf.mxu0
  %v4386 = vadd.f32 %v4313, %v4385
  %v4387 = vpop.f32.mrf.mxu0
  %v4388 = vadd.f32 %v4315, %v4387
  %4389 = vmatmul.bf16.gmra.mxu0 %v1879
  %v4390 = vpop.f32.mrf.mxu0
  %v4391 = vadd.f32 %v4318, %v4390
  %v4392 = vpop.f32.mrf.mxu0
  %v4393 = vadd.f32 %v4320, %v4392
  %4394 = vmatmul.bf16.gmra.mxu0 %v1904
  %v4395 = vpop.f32.mrf.mxu0
  %v4396 = vadd.f32 %v4323, %v4395
  %v4397 = vpop.f32.mrf.mxu0
  %v4398 = vadd.f32 %v4325, %v4397
  %4399 = vmatmul.bf16.gmra.mxu0 %v1929
  %v4400 = vpop.f32.mrf.mxu0
  %v4401 = vadd.f32 %v4328, %v4400
  %v4402 = vpop.f32.mrf.mxu0
  %v4403 = vadd.f32 %v4330, %v4402
  %4404 = vmatmul.bf16.gmra.mxu0 %v1954
  %v4405 = vpop.f32.mrf.mxu0
  %v4406 = vadd.f32 %v4333, %v4405
  %v4407 = vpop.f32.mrf.mxu0
  %v4408 = vadd.f32 %v4335, %v4407
  %4409 = vmatmul.bf16.gmra.mxu0 %v1979
  %v4410 = vpop.f32.mrf.mxu0
  %v4411 = vadd.f32 %v4338, %v4410
  %v4412 = vpop.f32.mrf.mxu0
  %v4413 = vadd.f32 %v4340, %v4412
  %4414 = vmatmul.bf16.gmra.mxu0 %v2004
  %v4415 = vpop.f32.mrf.mxu0
  %v4416 = vadd.f32 %v4343, %v4415
  %v4417 = vpop.f32.mrf.mxu0
  %4418 = vdwg.mxu0
  %4419 = vmatpush.bf16.msra.mxu0 %v3246
  %4420 = vmatpush.bf16.msra.mxu0 %v3245
  %4421 = vmatpush.bf16.msra.mxu0 %v3244
  %4422 = vmatpush.bf16.msra.mxu0 %v3243
  %4423 = vmatpush.bf16.msra.mxu0 %v3242
  %4424 = vmatpush.bf16.msra.mxu0 %v3241
  %4425 = vmatpush.bf16.msra.mxu0 %v3240
  %4426 = vmatpush.bf16.msra.mxu0 %v3239
  %4427 = vmatmul.bf16.gmra.mxu0 %v1705
  %v4428 = vpop.f32.mrf.mxu0
  %v4429 = vadd.f32 %v4356, %v4428
  %v4430 = vpop.f32.mrf.mxu0
  %v4431 = vadd.f32 %v4358, %v4430
  %4432 = vmatmul.bf16.gmra.mxu0 %v1730
  %v4433 = vpop.f32.mrf.mxu0
  %v4434 = vadd.f32 %v4361, %v4433
  %v4435 = vpop.f32.mrf.mxu0
  %v4436 = vadd.f32 %v4363, %v4435
  %4437 = vmatmul.bf16.gmra.mxu0 %v1755
  %v4438 = vpop.f32.mrf.mxu0
  %v4439 = vadd.f32 %v4366, %v4438
  %v4440 = vpop.f32.mrf.mxu0
  %v4441 = vadd.f32 %v4368, %v4440
  %4442 = vmatmul.bf16.gmra.mxu0 %v1780
  %v4443 = vpop.f32.mrf.mxu0
  %v4444 = vadd.f32 %v4371, %v4443
  %v4445 = vpop.f32.mrf.mxu0
  %v4446 = vadd.f32 %v4373, %v4445
  %4447 = vmatmul.bf16.gmra.mxu0 %v1805
  %v4448 = vpop.f32.mrf.mxu0
  %v4449 = vadd.f32 %v4376, %v4448
  %v4450 = vpop.f32.mrf.mxu0
  %v4451 = vadd.f32 %v4378, %v4450
  %4452 = vmatmul.bf16.gmra.mxu0 %v1830
  %v4453 = vpop.f32.mrf.mxu0
  %v4454 = vadd.f32 %v4381, %v4453
  %v4455 = vpop.f32.mrf.mxu0
  %v4456 = vadd.f32 %v4383, %v4455
  %4457 = vmatmul.bf16.gmra.mxu0 %v1855
  %v4458 = vpop.f32.mrf.mxu0
  %v4459 = vadd.f32 %v4386, %v4458
  %v4460 = vpop.f32.mrf.mxu0
  %v4461 = vadd.f32 %v4388, %v4460
  %4462 = vmatmul.bf16.gmra.mxu0 %v1880
  %v4463 = vpop.f32.mrf.mxu0
  %v4464 = vadd.f32 %v4391, %v4463
  %v4465 = vpop.f32.mrf.mxu0
  %v4466 = vadd.f32 %v4393, %v4465
  %4467 = vmatmul.bf16.gmra.mxu0 %v1905
  %v4468 = vpop.f32.mrf.mxu0
  %v4469 = vadd.f32 %v4396, %v4468
  %v4470 = vpop.f32.mrf.mxu0
  %v4471 = vadd.f32 %v4398, %v4470
  %4472 = vmatmul.bf16.gmra.mxu0 %v1930
  %v4473 = vpop.f32.mrf.mxu0
  %v4474 = vadd.f32 %v4401, %v4473
  %v4475 = vpop.f32.mrf.mxu0
  %v4476 = vadd.f32 %v4403, %v4475
  %4477 = vmatmul.bf16.gmra.mxu0 %v1955
  %v4478 = vpop.f32.mrf.mxu0
  %v4479 = vadd.f32 %v4406, %v4478
  %v4480 = vpop.f32.mrf.mxu0
  %v4481 = vadd.f32 %v4408, %v4480
  %4482 = vmatmul.bf16.gmra.mxu0 %v1980
  %v4483 = vpop.f32.mrf.mxu0
  %v4484 = vadd.f32 %v4411, %v4483
  %v4485 = vpop.f32.mrf.mxu0
  %v4486 = vadd.f32 %v4413, %v4485
  %4487 = vmatmul.bf16.gmra.mxu0 %v2005
  %v4488 = vpop.f32.mrf.mxu0
  %v4489 = vadd.f32 %v4416, %v4488
  %v4490 = vpop.f32.mrf.mxu0
  %4491 = vdwg.mxu0
  %4492 = vmatpush.bf16.msra.mxu0 %v3254
  %4493 = vmatpush.bf16.msra.mxu0 %v3253
  %4494 = vmatpush.bf16.msra.mxu0 %v3252
  %4495 = vmatpush.bf16.msra.mxu0 %v3251
  %4496 = vmatpush.bf16.msra.mxu0 %v3250
  %4497 = vmatpush.bf16.msra.mxu0 %v3249
  %4498 = vmatpush.bf16.msra.mxu0 %v3248
  %4499 = vmatpush.bf16.msra.mxu0 %v3247
  %4500 = vmatmul.bf16.gmra.mxu0 %v1706
  %v4501 = vpop.f32.mrf.mxu0
  %v4502 = vadd.f32 %v4429, %v4501
  %v4503 = vpop.f32.mrf.mxu0
  %v4504 = vadd.f32 %v4431, %v4503
  %4505 = vmatmul.bf16.gmra.mxu0 %v1731
  %v4506 = vpop.f32.mrf.mxu0
  %v4507 = vadd.f32 %v4434, %v4506
  %v4508 = vpop.f32.mrf.mxu0
  %v4509 = vadd.f32 %v4436, %v4508
  %4510 = vmatmul.bf16.gmra.mxu0 %v1756
  %v4511 = vpop.f32.mrf.mxu0
  %v4512 = vadd.f32 %v4439, %v4511
  %v4513 = vpop.f32.mrf.mxu0
  %v4514 = vadd.f32 %v4441, %v4513
  %4515 = vmatmul.bf16.gmra.mxu0 %v1781
  %v4516 = vpop.f32.mrf.mxu0
  %v4517 = vadd.f32 %v4444, %v4516
  %v4518 = vpop.f32.mrf.mxu0
  %v4519 = vadd.f32 %v4446, %v4518
  %4520 = vmatmul.bf16.gmra.mxu0 %v1806
  %v4521 = vpop.f32.mrf.mxu0
  %v4522 = vadd.f32 %v4449, %v4521
  %v4523 = vpop.f32.mrf.mxu0
  %v4524 = vadd.f32 %v4451, %v4523
  %4525 = vmatmul.bf16.gmra.mxu0 %v1831
  %v4526 = vpop.f32.mrf.mxu0
  %v4527 = vadd.f32 %v4454, %v4526
  %v4528 = vpop.f32.mrf.mxu0
  %v4529 = vadd.f32 %v4456, %v4528
  %4530 = vmatmul.bf16.gmra.mxu0 %v1856
  %v4531 = vpop.f32.mrf.mxu0
  %v4532 = vadd.f32 %v4459, %v4531
  %v4533 = vpop.f32.mrf.mxu0
  %v4534 = vadd.f32 %v4461, %v4533
  %4535 = vmatmul.bf16.gmra.mxu0 %v1881
  %v4536 = vpop.f32.mrf.mxu0
  %v4537 = vadd.f32 %v4464, %v4536
  %v4538 = vpop.f32.mrf.mxu0
  %v4539 = vadd.f32 %v4466, %v4538
  %4540 = vmatmul.bf16.gmra.mxu0 %v1906
  %v4541 = vpop.f32.mrf.mxu0
  %v4542 = vadd.f32 %v4469, %v4541
  %v4543 = vpop.f32.mrf.mxu0
  %v4544 = vadd.f32 %v4471, %v4543
  %4545 = vmatmul.bf16.gmra.mxu0 %v1931
  %v4546 = vpop.f32.mrf.mxu0
  %v4547 = vadd.f32 %v4474, %v4546
  %v4548 = vpop.f32.mrf.mxu0
  %v4549 = vadd.f32 %v4476, %v4548
  %4550 = vmatmul.bf16.gmra.mxu0 %v1956
  %v4551 = vpop.f32.mrf.mxu0
  %v4552 = vadd.f32 %v4479, %v4551
  %v4553 = vpop.f32.mrf.mxu0
  %v4554 = vadd.f32 %v4481, %v4553
  %4555 = vmatmul.bf16.gmra.mxu0 %v1981
  %v4556 = vpop.f32.mrf.mxu0
  %v4557 = vadd.f32 %v4484, %v4556
  %v4558 = vpop.f32.mrf.mxu0
  %v4559 = vadd.f32 %v4486, %v4558
  %4560 = vmatmul.bf16.gmra.mxu0 %v2006
  %v4561 = vpop.f32.mrf.mxu0
  %v4562 = vadd.f32 %v4489, %v4561
  %v4563 = vpop.f32.mrf.mxu0
  %4564 = vdwg.mxu0
  %4565 = vmatpush.bf16.msra.mxu0 %v3262
  %4566 = vmatpush.bf16.msra.mxu0 %v3261
  %4567 = vmatpush.bf16.msra.mxu0 %v3260
  %4568 = vmatpush.bf16.msra.mxu0 %v3259
  %4569 = vmatpush.bf16.msra.mxu0 %v3258
  %4570 = vmatpush.bf16.msra.mxu0 %v3257
  %4571 = vmatpush.bf16.msra.mxu0 %v3256
  %4572 = vmatpush.bf16.msra.mxu0 %v3255
  %4573 = vmatmul.bf16.gmra.mxu0 %v1707
  %v4574 = vpop.f32.mrf.mxu0
  %v4575 = vadd.f32 %v4502, %v4574
  %v4576 = vpop.f32.mrf.mxu0
  %v4577 = vadd.f32 %v4504, %v4576
  %4578 = vmatmul.bf16.gmra.mxu0 %v1732
  %v4579 = vpop.f32.mrf.mxu0
  %v4580 = vadd.f32 %v4507, %v4579
  %v4581 = vpop.f32.mrf.mxu0
  %v4582 = vadd.f32 %v4509, %v4581
  %4583 = vmatmul.bf16.gmra.mxu0 %v1757
  %v4584 = vpop.f32.mrf.mxu0
  %v4585 = vadd.f32 %v4512, %v4584
  %v4586 = vpop.f32.mrf.mxu0
  %v4587 = vadd.f32 %v4514, %v4586
  %4588 = vmatmul.bf16.gmra.mxu0 %v1782
  %v4589 = vpop.f32.mrf.mxu0
  %v4590 = vadd.f32 %v4517, %v4589
  %v4591 = vpop.f32.mrf.mxu0
  %v4592 = vadd.f32 %v4519, %v4591
  %4593 = vmatmul.bf16.gmra.mxu0 %v1807
  %v4594 = vpop.f32.mrf.mxu0
  %v4595 = vadd.f32 %v4522, %v4594
  %v4596 = vpop.f32.mrf.mxu0
  %v4597 = vadd.f32 %v4524, %v4596
  %4598 = vmatmul.bf16.gmra.mxu0 %v1832
  %v4599 = vpop.f32.mrf.mxu0
  %v4600 = vadd.f32 %v4527, %v4599
  %v4601 = vpop.f32.mrf.mxu0
  %v4602 = vadd.f32 %v4529, %v4601
  %4603 = vmatmul.bf16.gmra.mxu0 %v1857
  %v4604 = vpop.f32.mrf.mxu0
  %v4605 = vadd.f32 %v4532, %v4604
  %v4606 = vpop.f32.mrf.mxu0
  %v4607 = vadd.f32 %v4534, %v4606
  %4608 = vmatmul.bf16.gmra.mxu0 %v1882
  %v4609 = vpop.f32.mrf.mxu0
  %v4610 = vadd.f32 %v4537, %v4609
  %v4611 = vpop.f32.mrf.mxu0
  %v4612 = vadd.f32 %v4539, %v4611
  %4613 = vmatmul.bf16.gmra.mxu0 %v1907
  %v4614 = vpop.f32.mrf.mxu0
  %v4615 = vadd.f32 %v4542, %v4614
  %v4616 = vpop.f32.mrf.mxu0
  %v4617 = vadd.f32 %v4544, %v4616
  %4618 = vmatmul.bf16.gmra.mxu0 %v1932
  %v4619 = vpop.f32.mrf.mxu0
  %v4620 = vadd.f32 %v4547, %v4619
  %v4621 = vpop.f32.mrf.mxu0
  %v4622 = vadd.f32 %v4549, %v4621
  %4623 = vmatmul.bf16.gmra.mxu0 %v1957
  %v4624 = vpop.f32.mrf.mxu0
  %v4625 = vadd.f32 %v4552, %v4624
  %v4626 = vpop.f32.mrf.mxu0
  %v4627 = vadd.f32 %v4554, %v4626
  %4628 = vmatmul.bf16.gmra.mxu0 %v1982
  %v4629 = vpop.f32.mrf.mxu0
  %v4630 = vadd.f32 %v4557, %v4629
  %v4631 = vpop.f32.mrf.mxu0
  %v4632 = vadd.f32 %v4559, %v4631
  %4633 = vmatmul.bf16.gmra.mxu0 %v2007
  %v4634 = vpop.f32.mrf.mxu0
  %v4635 = vadd.f32 %v4562, %v4634
  %v4636 = vpop.f32.mrf.mxu0
  %4637 = vdwg.mxu0
  %4638 = vmatpush.bf16.msra.mxu0 %v3270
  %4639 = vmatpush.bf16.msra.mxu0 %v3269
  %4640 = vmatpush.bf16.msra.mxu0 %v3268
  %4641 = vmatpush.bf16.msra.mxu0 %v3267
  %4642 = vmatpush.bf16.msra.mxu0 %v3266
  %4643 = vmatpush.bf16.msra.mxu0 %v3265
  %4644 = vmatpush.bf16.msra.mxu0 %v3264
  %4645 = vmatpush.bf16.msra.mxu0 %v3263
  %4646 = vmatmul.bf16.gmra.mxu0 %v1708
  %v4647 = vpop.f32.mrf.mxu0
  %v4648 = vadd.f32 %v4575, %v4647
  %v4649 = vpop.f32.mrf.mxu0
  %v4650 = vadd.f32 %v4577, %v4649
  %4651 = vmatmul.bf16.gmra.mxu0 %v1733
  %v4652 = vpop.f32.mrf.mxu0
  %v4653 = vadd.f32 %v4580, %v4652
  %v4654 = vpop.f32.mrf.mxu0
  %v4655 = vadd.f32 %v4582, %v4654
  %4656 = vmatmul.bf16.gmra.mxu0 %v1758
  %v4657 = vpop.f32.mrf.mxu0
  %v4658 = vadd.f32 %v4585, %v4657
  %v4659 = vpop.f32.mrf.mxu0
  %v4660 = vadd.f32 %v4587, %v4659
  %4661 = vmatmul.bf16.gmra.mxu0 %v1783
  %v4662 = vpop.f32.mrf.mxu0
  %v4663 = vadd.f32 %v4590, %v4662
  %v4664 = vpop.f32.mrf.mxu0
  %v4665 = vadd.f32 %v4592, %v4664
  %4666 = vmatmul.bf16.gmra.mxu0 %v1808
  %v4667 = vpop.f32.mrf.mxu0
  %v4668 = vadd.f32 %v4595, %v4667
  %v4669 = vpop.f32.mrf.mxu0
  %v4670 = vadd.f32 %v4597, %v4669
  %4671 = vmatmul.bf16.gmra.mxu0 %v1833
  %v4672 = vpop.f32.mrf.mxu0
  %v4673 = vadd.f32 %v4600, %v4672
  %v4674 = vpop.f32.mrf.mxu0
  %v4675 = vadd.f32 %v4602, %v4674
  %4676 = vmatmul.bf16.gmra.mxu0 %v1858
  %v4677 = vpop.f32.mrf.mxu0
  %v4678 = vadd.f32 %v4605, %v4677
  %v4679 = vpop.f32.mrf.mxu0
  %v4680 = vadd.f32 %v4607, %v4679
  %4681 = vmatmul.bf16.gmra.mxu0 %v1883
  %v4682 = vpop.f32.mrf.mxu0
  %v4683 = vadd.f32 %v4610, %v4682
  %v4684 = vpop.f32.mrf.mxu0
  %v4685 = vadd.f32 %v4612, %v4684
  %4686 = vmatmul.bf16.gmra.mxu0 %v1908
  %v4687 = vpop.f32.mrf.mxu0
  %v4688 = vadd.f32 %v4615, %v4687
  %v4689 = vpop.f32.mrf.mxu0
  %v4690 = vadd.f32 %v4617, %v4689
  %4691 = vmatmul.bf16.gmra.mxu0 %v1933
  %v4692 = vpop.f32.mrf.mxu0
  %v4693 = vadd.f32 %v4620, %v4692
  %v4694 = vpop.f32.mrf.mxu0
  %v4695 = vadd.f32 %v4622, %v4694
  %4696 = vmatmul.bf16.gmra.mxu0 %v1958
  %v4697 = vpop.f32.mrf.mxu0
  %v4698 = vadd.f32 %v4625, %v4697
  %v4699 = vpop.f32.mrf.mxu0
  %v4700 = vadd.f32 %v4627, %v4699
  %4701 = vmatmul.bf16.gmra.mxu0 %v1983
  %v4702 = vpop.f32.mrf.mxu0
  %v4703 = vadd.f32 %v4630, %v4702
  %v4704 = vpop.f32.mrf.mxu0
  %v4705 = vadd.f32 %v4632, %v4704
  %4706 = vmatmul.bf16.gmra.mxu0 %v2008
  %v4707 = vpop.f32.mrf.mxu0
  %v4708 = vadd.f32 %v4635, %v4707
  %v4709 = vpop.f32.mrf.mxu0
  %4710 = vdwg.mxu0
  %4711 = vmatpush.bf16.msra.mxu0 %v3278
  %4712 = vmatpush.bf16.msra.mxu0 %v3277
  %4713 = vmatpush.bf16.msra.mxu0 %v3276
  %4714 = vmatpush.bf16.msra.mxu0 %v3275
  %4715 = vmatpush.bf16.msra.mxu0 %v3274
  %4716 = vmatpush.bf16.msra.mxu0 %v3273
  %4717 = vmatpush.bf16.msra.mxu0 %v3272
  %4718 = vmatpush.bf16.msra.mxu0 %v3271
  %4719 = vmatmul.bf16.gmra.mxu0 %v1709
  %v4720 = vpop.f32.mrf.mxu0
  %v4721 = vadd.f32 %v4648, %v4720
  %v4722 = vpop.f32.mrf.mxu0
  %v4723 = vadd.f32 %v4650, %v4722
  %4724 = vmatmul.bf16.gmra.mxu0 %v1734
  %v4725 = vpop.f32.mrf.mxu0
  %v4726 = vadd.f32 %v4653, %v4725
  %v4727 = vpop.f32.mrf.mxu0
  %v4728 = vadd.f32 %v4655, %v4727
  %4729 = vmatmul.bf16.gmra.mxu0 %v1759
  %v4730 = vpop.f32.mrf.mxu0
  %v4731 = vadd.f32 %v4658, %v4730
  %v4732 = vpop.f32.mrf.mxu0
  %v4733 = vadd.f32 %v4660, %v4732
  %4734 = vmatmul.bf16.gmra.mxu0 %v1784
  %v4735 = vpop.f32.mrf.mxu0
  %v4736 = vadd.f32 %v4663, %v4735
  %v4737 = vpop.f32.mrf.mxu0
  %v4738 = vadd.f32 %v4665, %v4737
  %4739 = vmatmul.bf16.gmra.mxu0 %v1809
  %v4740 = vpop.f32.mrf.mxu0
  %v4741 = vadd.f32 %v4668, %v4740
  %v4742 = vpop.f32.mrf.mxu0
  %v4743 = vadd.f32 %v4670, %v4742
  %4744 = vmatmul.bf16.gmra.mxu0 %v1834
  %v4745 = vpop.f32.mrf.mxu0
  %v4746 = vadd.f32 %v4673, %v4745
  %v4747 = vpop.f32.mrf.mxu0
  %v4748 = vadd.f32 %v4675, %v4747
  %4749 = vmatmul.bf16.gmra.mxu0 %v1859
  %v4750 = vpop.f32.mrf.mxu0
  %v4751 = vadd.f32 %v4678, %v4750
  %v4752 = vpop.f32.mrf.mxu0
  %v4753 = vadd.f32 %v4680, %v4752
  %4754 = vmatmul.bf16.gmra.mxu0 %v1884
  %v4755 = vpop.f32.mrf.mxu0
  %v4756 = vadd.f32 %v4683, %v4755
  %v4757 = vpop.f32.mrf.mxu0
  %v4758 = vadd.f32 %v4685, %v4757
  %4759 = vmatmul.bf16.gmra.mxu0 %v1909
  %v4760 = vpop.f32.mrf.mxu0
  %v4761 = vadd.f32 %v4688, %v4760
  %v4762 = vpop.f32.mrf.mxu0
  %v4763 = vadd.f32 %v4690, %v4762
  %4764 = vmatmul.bf16.gmra.mxu0 %v1934
  %v4765 = vpop.f32.mrf.mxu0
  %v4766 = vadd.f32 %v4693, %v4765
  %v4767 = vpop.f32.mrf.mxu0
  %v4768 = vadd.f32 %v4695, %v4767
  %4769 = vmatmul.bf16.gmra.mxu0 %v1959
  %v4770 = vpop.f32.mrf.mxu0
  %v4771 = vadd.f32 %v4698, %v4770
  %v4772 = vpop.f32.mrf.mxu0
  %v4773 = vadd.f32 %v4700, %v4772
  %4774 = vmatmul.bf16.gmra.mxu0 %v1984
  %v4775 = vpop.f32.mrf.mxu0
  %v4776 = vadd.f32 %v4703, %v4775
  %v4777 = vpop.f32.mrf.mxu0
  %v4778 = vadd.f32 %v4705, %v4777
  %4779 = vmatmul.bf16.gmra.mxu0 %v2009
  %v4780 = vpop.f32.mrf.mxu0
  %v4781 = vadd.f32 %v4708, %v4780
  %v4782 = vpop.f32.mrf.mxu0
  %4783 = vdwg.mxu0
  %4784 = vmatpush.bf16.msra.mxu0 %v3286
  %4785 = vmatpush.bf16.msra.mxu0 %v3285
  %4786 = vmatpush.bf16.msra.mxu0 %v3284
  %4787 = vmatpush.bf16.msra.mxu0 %v3283
  %4788 = vmatpush.bf16.msra.mxu0 %v3282
  %4789 = vmatpush.bf16.msra.mxu0 %v3281
  %4790 = vmatpush.bf16.msra.mxu0 %v3280
  %4791 = vmatpush.bf16.msra.mxu0 %v3279
  %4792 = vmatmul.bf16.gmra.mxu0 %v1710
  %v4793 = vpop.f32.mrf.mxu0
  %v4794 = vadd.f32 %v4721, %v4793
  %v4795 = vpop.f32.mrf.mxu0
  %v4796 = vadd.f32 %v4723, %v4795
  %4797 = vmatmul.bf16.gmra.mxu0 %v1735
  %v4798 = vpop.f32.mrf.mxu0
  %v4799 = vadd.f32 %v4726, %v4798
  %v4800 = vpop.f32.mrf.mxu0
  %v4801 = vadd.f32 %v4728, %v4800
  %4802 = vmatmul.bf16.gmra.mxu0 %v1760
  %v4803 = vpop.f32.mrf.mxu0
  %v4804 = vadd.f32 %v4731, %v4803
  %v4805 = vpop.f32.mrf.mxu0
  %v4806 = vadd.f32 %v4733, %v4805
  %4807 = vmatmul.bf16.gmra.mxu0 %v1785
  %v4808 = vpop.f32.mrf.mxu0
  %v4809 = vadd.f32 %v4736, %v4808
  %v4810 = vpop.f32.mrf.mxu0
  %v4811 = vadd.f32 %v4738, %v4810
  %4812 = vmatmul.bf16.gmra.mxu0 %v1810
  %v4813 = vpop.f32.mrf.mxu0
  %v4814 = vadd.f32 %v4741, %v4813
  %v4815 = vpop.f32.mrf.mxu0
  %v4816 = vadd.f32 %v4743, %v4815
  %4817 = vmatmul.bf16.gmra.mxu0 %v1835
  %v4818 = vpop.f32.mrf.mxu0
  %v4819 = vadd.f32 %v4746, %v4818
  %v4820 = vpop.f32.mrf.mxu0
  %v4821 = vadd.f32 %v4748, %v4820
  %4822 = vmatmul.bf16.gmra.mxu0 %v1860
  %v4823 = vpop.f32.mrf.mxu0
  %v4824 = vadd.f32 %v4751, %v4823
  %v4825 = vpop.f32.mrf.mxu0
  %v4826 = vadd.f32 %v4753, %v4825
  %4827 = vmatmul.bf16.gmra.mxu0 %v1885
  %v4828 = vpop.f32.mrf.mxu0
  %v4829 = vadd.f32 %v4756, %v4828
  %v4830 = vpop.f32.mrf.mxu0
  %v4831 = vadd.f32 %v4758, %v4830
  %4832 = vmatmul.bf16.gmra.mxu0 %v1910
  %v4833 = vpop.f32.mrf.mxu0
  %v4834 = vadd.f32 %v4761, %v4833
  %v4835 = vpop.f32.mrf.mxu0
  %v4836 = vadd.f32 %v4763, %v4835
  %4837 = vmatmul.bf16.gmra.mxu0 %v1935
  %v4838 = vpop.f32.mrf.mxu0
  %v4839 = vadd.f32 %v4766, %v4838
  %v4840 = vpop.f32.mrf.mxu0
  %v4841 = vadd.f32 %v4768, %v4840
  %4842 = vmatmul.bf16.gmra.mxu0 %v1960
  %v4843 = vpop.f32.mrf.mxu0
  %v4844 = vadd.f32 %v4771, %v4843
  %v4845 = vpop.f32.mrf.mxu0
  %v4846 = vadd.f32 %v4773, %v4845
  %4847 = vmatmul.bf16.gmra.mxu0 %v1985
  %v4848 = vpop.f32.mrf.mxu0
  %v4849 = vadd.f32 %v4776, %v4848
  %v4850 = vpop.f32.mrf.mxu0
  %v4851 = vadd.f32 %v4778, %v4850
  %4852 = vmatmul.bf16.gmra.mxu0 %v2010
  %v4853 = vpop.f32.mrf.mxu0
  %v4854 = vadd.f32 %v4781, %v4853
  %v4855 = vpop.f32.mrf.mxu0
  %4856 = vdwg.mxu0
  %4857 = vmatpush.bf16.msra.mxu0 %v3294
  %4858 = vmatpush.bf16.msra.mxu0 %v3293
  %4859 = vmatpush.bf16.msra.mxu0 %v3292
  %4860 = vmatpush.bf16.msra.mxu0 %v3291
  %4861 = vmatpush.bf16.msra.mxu0 %v3290
  %4862 = vmatpush.bf16.msra.mxu0 %v3289
  %4863 = vmatpush.bf16.msra.mxu0 %v3288
  %4864 = vmatpush.bf16.msra.mxu0 %v3287
  %4865 = vmatmul.bf16.gmra.mxu0 %v1711
  %v4866 = vpop.f32.mrf.mxu0
  %v4867 = vadd.f32 %v4794, %v4866
  %v4868 = vpop.f32.mrf.mxu0
  %v4869 = vadd.f32 %v4796, %v4868
  %4870 = vmatmul.bf16.gmra.mxu0 %v1736
  %v4871 = vpop.f32.mrf.mxu0
  %v4872 = vadd.f32 %v4799, %v4871
  %v4873 = vpop.f32.mrf.mxu0
  %v4874 = vadd.f32 %v4801, %v4873
  %4875 = vmatmul.bf16.gmra.mxu0 %v1761
  %v4876 = vpop.f32.mrf.mxu0
  %v4877 = vadd.f32 %v4804, %v4876
  %v4878 = vpop.f32.mrf.mxu0
  %v4879 = vadd.f32 %v4806, %v4878
  %4880 = vmatmul.bf16.gmra.mxu0 %v1786
  %v4881 = vpop.f32.mrf.mxu0
  %v4882 = vadd.f32 %v4809, %v4881
  %v4883 = vpop.f32.mrf.mxu0
  %v4884 = vadd.f32 %v4811, %v4883
  %4885 = vmatmul.bf16.gmra.mxu0 %v1811
  %v4886 = vpop.f32.mrf.mxu0
  %v4887 = vadd.f32 %v4814, %v4886
  %v4888 = vpop.f32.mrf.mxu0
  %v4889 = vadd.f32 %v4816, %v4888
  %4890 = vmatmul.bf16.gmra.mxu0 %v1836
  %v4891 = vpop.f32.mrf.mxu0
  %v4892 = vadd.f32 %v4819, %v4891
  %v4893 = vpop.f32.mrf.mxu0
  %v4894 = vadd.f32 %v4821, %v4893
  %4895 = vmatmul.bf16.gmra.mxu0 %v1861
  %v4896 = vpop.f32.mrf.mxu0
  %v4897 = vadd.f32 %v4824, %v4896
  %v4898 = vpop.f32.mrf.mxu0
  %v4899 = vadd.f32 %v4826, %v4898
  %4900 = vmatmul.bf16.gmra.mxu0 %v1886
  %v4901 = vpop.f32.mrf.mxu0
  %v4902 = vadd.f32 %v4829, %v4901
  %v4903 = vpop.f32.mrf.mxu0
  %v4904 = vadd.f32 %v4831, %v4903
  %4905 = vmatmul.bf16.gmra.mxu0 %v1911
  %v4906 = vpop.f32.mrf.mxu0
  %v4907 = vadd.f32 %v4834, %v4906
  %v4908 = vpop.f32.mrf.mxu0
  %v4909 = vadd.f32 %v4836, %v4908
  %4910 = vmatmul.bf16.gmra.mxu0 %v1936
  %v4911 = vpop.f32.mrf.mxu0
  %v4912 = vadd.f32 %v4839, %v4911
  %v4913 = vpop.f32.mrf.mxu0
  %v4914 = vadd.f32 %v4841, %v4913
  %4915 = vmatmul.bf16.gmra.mxu0 %v1961
  %v4916 = vpop.f32.mrf.mxu0
  %v4917 = vadd.f32 %v4844, %v4916
  %v4918 = vpop.f32.mrf.mxu0
  %v4919 = vadd.f32 %v4846, %v4918
  %4920 = vmatmul.bf16.gmra.mxu0 %v1986
  %v4921 = vpop.f32.mrf.mxu0
  %v4922 = vadd.f32 %v4849, %v4921
  %v4923 = vpop.f32.mrf.mxu0
  %v4924 = vadd.f32 %v4851, %v4923
  %4925 = vmatmul.bf16.gmra.mxu0 %v2011
  %v4926 = vpop.f32.mrf.mxu0
  %v4927 = vadd.f32 %v4854, %v4926
  %v4928 = vpop.f32.mrf.mxu0
  %4929 = vdwg.mxu0
  %4930 = vmatpush.bf16.msra.mxu0 %v3302
  %4931 = vmatpush.bf16.msra.mxu0 %v3301
  %4932 = vmatpush.bf16.msra.mxu0 %v3300
  %4933 = vmatpush.bf16.msra.mxu0 %v3299
  %4934 = vmatpush.bf16.msra.mxu0 %v3298
  %4935 = vmatpush.bf16.msra.mxu0 %v3297
  %4936 = vmatpush.bf16.msra.mxu0 %v3296
  %4937 = vmatpush.bf16.msra.mxu0 %v3295
  %4938 = vmatmul.bf16.gmra.mxu0 %v1712
  %v4939 = vpop.f32.mrf.mxu0
  %v4940 = vadd.f32 %v4867, %v4939
  %v4941 = vpop.f32.mrf.mxu0
  %v4942 = vadd.f32 %v4869, %v4941
  %4943 = vmatmul.bf16.gmra.mxu0 %v1737
  %v4944 = vpop.f32.mrf.mxu0
  %v4945 = vadd.f32 %v4872, %v4944
  %v4946 = vpop.f32.mrf.mxu0
  %v4947 = vadd.f32 %v4874, %v4946
  %4948 = vmatmul.bf16.gmra.mxu0 %v1762
  %v4949 = vpop.f32.mrf.mxu0
  %v4950 = vadd.f32 %v4877, %v4949
  %v4951 = vpop.f32.mrf.mxu0
  %v4952 = vadd.f32 %v4879, %v4951
  %4953 = vmatmul.bf16.gmra.mxu0 %v1787
  %v4954 = vpop.f32.mrf.mxu0
  %v4955 = vadd.f32 %v4882, %v4954
  %v4956 = vpop.f32.mrf.mxu0
  %v4957 = vadd.f32 %v4884, %v4956
  %4958 = vmatmul.bf16.gmra.mxu0 %v1812
  %v4959 = vpop.f32.mrf.mxu0
  %v4960 = vadd.f32 %v4887, %v4959
  %v4961 = vpop.f32.mrf.mxu0
  %v4962 = vadd.f32 %v4889, %v4961
  %4963 = vmatmul.bf16.gmra.mxu0 %v1837
  %v4964 = vpop.f32.mrf.mxu0
  %v4965 = vadd.f32 %v4892, %v4964
  %v4966 = vpop.f32.mrf.mxu0
  %v4967 = vadd.f32 %v4894, %v4966
  %4968 = vmatmul.bf16.gmra.mxu0 %v1862
  %v4969 = vpop.f32.mrf.mxu0
  %v4970 = vadd.f32 %v4897, %v4969
  %v4971 = vpop.f32.mrf.mxu0
  %v4972 = vadd.f32 %v4899, %v4971
  %4973 = vmatmul.bf16.gmra.mxu0 %v1887
  %v4974 = vpop.f32.mrf.mxu0
  %v4975 = vadd.f32 %v4902, %v4974
  %v4976 = vpop.f32.mrf.mxu0
  %v4977 = vadd.f32 %v4904, %v4976
  %4978 = vmatmul.bf16.gmra.mxu0 %v1912
  %v4979 = vpop.f32.mrf.mxu0
  %v4980 = vadd.f32 %v4907, %v4979
  %v4981 = vpop.f32.mrf.mxu0
  %v4982 = vadd.f32 %v4909, %v4981
  %4983 = vmatmul.bf16.gmra.mxu0 %v1937
  %v4984 = vpop.f32.mrf.mxu0
  %v4985 = vadd.f32 %v4912, %v4984
  %v4986 = vpop.f32.mrf.mxu0
  %v4987 = vadd.f32 %v4914, %v4986
  %4988 = vmatmul.bf16.gmra.mxu0 %v1962
  %v4989 = vpop.f32.mrf.mxu0
  %v4990 = vadd.f32 %v4917, %v4989
  %v4991 = vpop.f32.mrf.mxu0
  %v4992 = vadd.f32 %v4919, %v4991
  %4993 = vmatmul.bf16.gmra.mxu0 %v1987
  %v4994 = vpop.f32.mrf.mxu0
  %v4995 = vadd.f32 %v4922, %v4994
  %v4996 = vpop.f32.mrf.mxu0
  %v4997 = vadd.f32 %v4924, %v4996
  %4998 = vmatmul.bf16.gmra.mxu0 %v2012
  %v4999 = vpop.f32.mrf.mxu0
  %v5000 = vadd.f32 %v4927, %v4999
  %v5001 = vpop.f32.mrf.mxu0
  %5002 = vdwg.mxu0
  %5003 = vmatpush.bf16.msra.mxu0 %v3310
  %5004 = vmatpush.bf16.msra.mxu0 %v3309
  %5005 = vmatpush.bf16.msra.mxu0 %v3308
  %5006 = vmatpush.bf16.msra.mxu0 %v3307
  %5007 = vmatpush.bf16.msra.mxu0 %v3306
  %5008 = vmatpush.bf16.msra.mxu0 %v3305
  %5009 = vmatpush.bf16.msra.mxu0 %v3304
  %5010 = vmatpush.bf16.msra.mxu0 %v3303
  %5011 = vmatmul.bf16.gmra.mxu0 %v1713
  %v5012 = vpop.f32.mrf.mxu0
  %v5013 = vadd.f32 %v4940, %v5012
  %v5014 = vpop.f32.mrf.mxu0
  %v5015 = vadd.f32 %v4942, %v5014
  %5016 = vmatmul.bf16.gmra.mxu0 %v1738
  %v5017 = vpop.f32.mrf.mxu0
  %v5018 = vadd.f32 %v4945, %v5017
  %v5019 = vpop.f32.mrf.mxu0
  %v5020 = vadd.f32 %v4947, %v5019
  %5021 = vmatmul.bf16.gmra.mxu0 %v1763
  %v5022 = vpop.f32.mrf.mxu0
  %v5023 = vadd.f32 %v4950, %v5022
  %v5024 = vpop.f32.mrf.mxu0
  %v5025 = vadd.f32 %v4952, %v5024
  %5026 = vmatmul.bf16.gmra.mxu0 %v1788
  %v5027 = vpop.f32.mrf.mxu0
  %v5028 = vadd.f32 %v4955, %v5027
  %v5029 = vpop.f32.mrf.mxu0
  %v5030 = vadd.f32 %v4957, %v5029
  %5031 = vmatmul.bf16.gmra.mxu0 %v1813
  %v5032 = vpop.f32.mrf.mxu0
  %v5033 = vadd.f32 %v4960, %v5032
  %v5034 = vpop.f32.mrf.mxu0
  %v5035 = vadd.f32 %v4962, %v5034
  %5036 = vmatmul.bf16.gmra.mxu0 %v1838
  %v5037 = vpop.f32.mrf.mxu0
  %v5038 = vadd.f32 %v4965, %v5037
  %v5039 = vpop.f32.mrf.mxu0
  %v5040 = vadd.f32 %v4967, %v5039
  %5041 = vmatmul.bf16.gmra.mxu0 %v1863
  %v5042 = vpop.f32.mrf.mxu0
  %v5043 = vadd.f32 %v4970, %v5042
  %v5044 = vpop.f32.mrf.mxu0
  %v5045 = vadd.f32 %v4972, %v5044
  %5046 = vmatmul.bf16.gmra.mxu0 %v1888
  %v5047 = vpop.f32.mrf.mxu0
  %v5048 = vadd.f32 %v4975, %v5047
  %v5049 = vpop.f32.mrf.mxu0
  %v5050 = vadd.f32 %v4977, %v5049
  %5051 = vmatmul.bf16.gmra.mxu0 %v1913
  %v5052 = vpop.f32.mrf.mxu0
  %v5053 = vadd.f32 %v4980, %v5052
  %v5054 = vpop.f32.mrf.mxu0
  %v5055 = vadd.f32 %v4982, %v5054
  %5056 = vmatmul.bf16.gmra.mxu0 %v1938
  %v5057 = vpop.f32.mrf.mxu0
  %v5058 = vadd.f32 %v4985, %v5057
  %v5059 = vpop.f32.mrf.mxu0
  %v5060 = vadd.f32 %v4987, %v5059
  %5061 = vmatmul.bf16.gmra.mxu0 %v1963
  %v5062 = vpop.f32.mrf.mxu0
  %v5063 = vadd.f32 %v4990, %v5062
  %v5064 = vpop.f32.mrf.mxu0
  %v5065 = vadd.f32 %v4992, %v5064
  %5066 = vmatmul.bf16.gmra.mxu0 %v1988
  %v5067 = vpop.f32.mrf.mxu0
  %v5068 = vadd.f32 %v4995, %v5067
  %v5069 = vpop.f32.mrf.mxu0
  %v5070 = vadd.f32 %v4997, %v5069
  %5071 = vmatmul.bf16.gmra.mxu0 %v2013
  %v5072 = vpop.f32.mrf.mxu0
  %v5073 = vadd.f32 %v5000, %v5072
  %v5074 = vpop.f32.mrf.mxu0
  %5075 = vdwg.mxu0
  %5076 = vmatpush.bf16.msra.mxu0 %v3318
  %5077 = vmatpush.bf16.msra.mxu0 %v3317
  %5078 = vmatpush.bf16.msra.mxu0 %v3316
  %5079 = vmatpush.bf16.msra.mxu0 %v3315
  %5080 = vmatpush.bf16.msra.mxu0 %v3314
  %5081 = vmatpush.bf16.msra.mxu0 %v3313
  %5082 = vmatpush.bf16.msra.mxu0 %v3312
  %5083 = vmatpush.bf16.msra.mxu0 %v3311
  %5084 = vmatmul.bf16.gmra.mxu0 %v1714
  %v5085 = vpop.f32.mrf.mxu0
  %v5086 = vadd.f32 %v5013, %v5085
  %v5087 = vpop.f32.mrf.mxu0
  %v5088 = vadd.f32 %v5015, %v5087
  %5089 = vmatmul.bf16.gmra.mxu0 %v1739
  %v5090 = vpop.f32.mrf.mxu0
  %v5091 = vadd.f32 %v5018, %v5090
  %v5092 = vpop.f32.mrf.mxu0
  %v5093 = vadd.f32 %v5020, %v5092
  %5094 = vmatmul.bf16.gmra.mxu0 %v1764
  %v5095 = vpop.f32.mrf.mxu0
  %v5096 = vadd.f32 %v5023, %v5095
  %v5097 = vpop.f32.mrf.mxu0
  %v5098 = vadd.f32 %v5025, %v5097
  %5099 = vmatmul.bf16.gmra.mxu0 %v1789
  %v5100 = vpop.f32.mrf.mxu0
  %v5101 = vadd.f32 %v5028, %v5100
  %v5102 = vpop.f32.mrf.mxu0
  %v5103 = vadd.f32 %v5030, %v5102
  %5104 = vmatmul.bf16.gmra.mxu0 %v1814
  %v5105 = vpop.f32.mrf.mxu0
  %v5106 = vadd.f32 %v5033, %v5105
  %v5107 = vpop.f32.mrf.mxu0
  %v5108 = vadd.f32 %v5035, %v5107
  %5109 = vmatmul.bf16.gmra.mxu0 %v1839
  %v5110 = vpop.f32.mrf.mxu0
  %v5111 = vadd.f32 %v5038, %v5110
  %v5112 = vpop.f32.mrf.mxu0
  %v5113 = vadd.f32 %v5040, %v5112
  %5114 = vmatmul.bf16.gmra.mxu0 %v1864
  %v5115 = vpop.f32.mrf.mxu0
  %v5116 = vadd.f32 %v5043, %v5115
  %v5117 = vpop.f32.mrf.mxu0
  %v5118 = vadd.f32 %v5045, %v5117
  %5119 = vmatmul.bf16.gmra.mxu0 %v1889
  %v5120 = vpop.f32.mrf.mxu0
  %v5121 = vadd.f32 %v5048, %v5120
  %v5122 = vpop.f32.mrf.mxu0
  %v5123 = vadd.f32 %v5050, %v5122
  %5124 = vmatmul.bf16.gmra.mxu0 %v1914
  %v5125 = vpop.f32.mrf.mxu0
  %v5126 = vadd.f32 %v5053, %v5125
  %v5127 = vpop.f32.mrf.mxu0
  %v5128 = vadd.f32 %v5055, %v5127
  %5129 = vmatmul.bf16.gmra.mxu0 %v1939
  %v5130 = vpop.f32.mrf.mxu0
  %v5131 = vadd.f32 %v5058, %v5130
  %v5132 = vpop.f32.mrf.mxu0
  %v5133 = vadd.f32 %v5060, %v5132
  %5134 = vmatmul.bf16.gmra.mxu0 %v1964
  %v5135 = vpop.f32.mrf.mxu0
  %v5136 = vadd.f32 %v5063, %v5135
  %v5137 = vpop.f32.mrf.mxu0
  %v5138 = vadd.f32 %v5065, %v5137
  %5139 = vmatmul.bf16.gmra.mxu0 %v1989
  %v5140 = vpop.f32.mrf.mxu0
  %v5141 = vadd.f32 %v5068, %v5140
  %v5142 = vpop.f32.mrf.mxu0
  %v5143 = vadd.f32 %v5070, %v5142
  %5144 = vmatmul.bf16.gmra.mxu0 %v2014
  %v5145 = vpop.f32.mrf.mxu0
  %v5146 = vadd.f32 %v5073, %v5145
  %v5147 = vpop.f32.mrf.mxu0
  %5148 = vdwg.mxu0
  %5149 = vmatpush.bf16.msra.mxu0 %v3326
  %5150 = vmatpush.bf16.msra.mxu0 %v3325
  %5151 = vmatpush.bf16.msra.mxu0 %v3324
  %5152 = vmatpush.bf16.msra.mxu0 %v3323
  %5153 = vmatpush.bf16.msra.mxu0 %v3322
  %5154 = vmatpush.bf16.msra.mxu0 %v3321
  %5155 = vmatpush.bf16.msra.mxu0 %v3320
  %5156 = vmatpush.bf16.msra.mxu0 %v3319
  %5157 = vmatmul.bf16.gmra.mxu0 %v1715
  %v5158 = vpop.f32.mrf.mxu0
  %v5159 = vadd.f32 %v5086, %v5158
  %v5160 = vpop.f32.mrf.mxu0
  %v5161 = vadd.f32 %v5088, %v5160
  %5162 = vmatmul.bf16.gmra.mxu0 %v1740
  %v5163 = vpop.f32.mrf.mxu0
  %v5164 = vadd.f32 %v5091, %v5163
  %v5165 = vpop.f32.mrf.mxu0
  %v5166 = vadd.f32 %v5093, %v5165
  %5167 = vmatmul.bf16.gmra.mxu0 %v1765
  %v5168 = vpop.f32.mrf.mxu0
  %v5169 = vadd.f32 %v5096, %v5168
  %v5170 = vpop.f32.mrf.mxu0
  %v5171 = vadd.f32 %v5098, %v5170
  %5172 = vmatmul.bf16.gmra.mxu0 %v1790
  %v5173 = vpop.f32.mrf.mxu0
  %v5174 = vadd.f32 %v5101, %v5173
  %v5175 = vpop.f32.mrf.mxu0
  %v5176 = vadd.f32 %v5103, %v5175
  %5177 = vmatmul.bf16.gmra.mxu0 %v1815
  %v5178 = vpop.f32.mrf.mxu0
  %v5179 = vadd.f32 %v5106, %v5178
  %v5180 = vpop.f32.mrf.mxu0
  %v5181 = vadd.f32 %v5108, %v5180
  %5182 = vmatmul.bf16.gmra.mxu0 %v1840
  %v5183 = vpop.f32.mrf.mxu0
  %v5184 = vadd.f32 %v5111, %v5183
  %v5185 = vpop.f32.mrf.mxu0
  %v5186 = vadd.f32 %v5113, %v5185
  %5187 = vmatmul.bf16.gmra.mxu0 %v1865
  %v5188 = vpop.f32.mrf.mxu0
  %v5189 = vadd.f32 %v5116, %v5188
  %v5190 = vpop.f32.mrf.mxu0
  %v5191 = vadd.f32 %v5118, %v5190
  %5192 = vmatmul.bf16.gmra.mxu0 %v1890
  %v5193 = vpop.f32.mrf.mxu0
  %v5194 = vadd.f32 %v5121, %v5193
  %v5195 = vpop.f32.mrf.mxu0
  %v5196 = vadd.f32 %v5123, %v5195
  %5197 = vmatmul.bf16.gmra.mxu0 %v1915
  %v5198 = vpop.f32.mrf.mxu0
  %v5199 = vadd.f32 %v5126, %v5198
  %v5200 = vpop.f32.mrf.mxu0
  %v5201 = vadd.f32 %v5128, %v5200
  %5202 = vmatmul.bf16.gmra.mxu0 %v1940
  %v5203 = vpop.f32.mrf.mxu0
  %v5204 = vadd.f32 %v5131, %v5203
  %v5205 = vpop.f32.mrf.mxu0
  %v5206 = vadd.f32 %v5133, %v5205
  %5207 = vmatmul.bf16.gmra.mxu0 %v1965
  %v5208 = vpop.f32.mrf.mxu0
  %v5209 = vadd.f32 %v5136, %v5208
  %v5210 = vpop.f32.mrf.mxu0
  %v5211 = vadd.f32 %v5138, %v5210
  %5212 = vmatmul.bf16.gmra.mxu0 %v1990
  %v5213 = vpop.f32.mrf.mxu0
  %v5214 = vadd.f32 %v5141, %v5213
  %v5215 = vpop.f32.mrf.mxu0
  %v5216 = vadd.f32 %v5143, %v5215
  %5217 = vmatmul.bf16.gmra.mxu0 %v2015
  %v5218 = vpop.f32.mrf.mxu0
  %v5219 = vadd.f32 %v5146, %v5218
  %v5220 = vpop.f32.mrf.mxu0
  %5221 = vdwg.mxu0
  %5222 = vmatpush.bf16.msra.mxu0 %v3334
  %5223 = vmatpush.bf16.msra.mxu0 %v3333
  %5224 = vmatpush.bf16.msra.mxu0 %v3332
  %5225 = vmatpush.bf16.msra.mxu0 %v3331
  %5226 = vmatpush.bf16.msra.mxu0 %v3330
  %5227 = vmatpush.bf16.msra.mxu0 %v3329
  %5228 = vmatpush.bf16.msra.mxu0 %v3328
  %5229 = vmatpush.bf16.msra.mxu0 %v3327
  %5230 = vmatmul.bf16.gmra.mxu0 %v1716
  %v5231 = vpop.f32.mrf.mxu0
  %v5232 = vadd.f32 %v5159, %v5231
  %v5233 = vpop.f32.mrf.mxu0
  %v5234 = vadd.f32 %v5161, %v5233
  %5235 = vmatmul.bf16.gmra.mxu0 %v1741
  %v5236 = vpop.f32.mrf.mxu0
  %v5237 = vadd.f32 %v5164, %v5236
  %v5238 = vpop.f32.mrf.mxu0
  %v5239 = vadd.f32 %v5166, %v5238
  %5240 = vmatmul.bf16.gmra.mxu0 %v1766
  %v5241 = vpop.f32.mrf.mxu0
  %v5242 = vadd.f32 %v5169, %v5241
  %v5243 = vpop.f32.mrf.mxu0
  %v5244 = vadd.f32 %v5171, %v5243
  %5245 = vmatmul.bf16.gmra.mxu0 %v1791
  %v5246 = vpop.f32.mrf.mxu0
  %v5247 = vadd.f32 %v5174, %v5246
  %v5248 = vpop.f32.mrf.mxu0
  %v5249 = vadd.f32 %v5176, %v5248
  %5250 = vmatmul.bf16.gmra.mxu0 %v1816
  %v5251 = vpop.f32.mrf.mxu0
  %v5252 = vadd.f32 %v5179, %v5251
  %v5253 = vpop.f32.mrf.mxu0
  %v5254 = vadd.f32 %v5181, %v5253
  %5255 = vmatmul.bf16.gmra.mxu0 %v1841
  %v5256 = vpop.f32.mrf.mxu0
  %v5257 = vadd.f32 %v5184, %v5256
  %v5258 = vpop.f32.mrf.mxu0
  %v5259 = vadd.f32 %v5186, %v5258
  %5260 = vmatmul.bf16.gmra.mxu0 %v1866
  %v5261 = vpop.f32.mrf.mxu0
  %v5262 = vadd.f32 %v5189, %v5261
  %v5263 = vpop.f32.mrf.mxu0
  %v5264 = vadd.f32 %v5191, %v5263
  %5265 = vmatmul.bf16.gmra.mxu0 %v1891
  %v5266 = vpop.f32.mrf.mxu0
  %v5267 = vadd.f32 %v5194, %v5266
  %v5268 = vpop.f32.mrf.mxu0
  %v5269 = vadd.f32 %v5196, %v5268
  %5270 = vmatmul.bf16.gmra.mxu0 %v1916
  %v5271 = vpop.f32.mrf.mxu0
  %v5272 = vadd.f32 %v5199, %v5271
  %v5273 = vpop.f32.mrf.mxu0
  %v5274 = vadd.f32 %v5201, %v5273
  %5275 = vmatmul.bf16.gmra.mxu0 %v1941
  %v5276 = vpop.f32.mrf.mxu0
  %v5277 = vadd.f32 %v5204, %v5276
  %v5278 = vpop.f32.mrf.mxu0
  %v5279 = vadd.f32 %v5206, %v5278
  %5280 = vmatmul.bf16.gmra.mxu0 %v1966
  %v5281 = vpop.f32.mrf.mxu0
  %v5282 = vadd.f32 %v5209, %v5281
  %v5283 = vpop.f32.mrf.mxu0
  %v5284 = vadd.f32 %v5211, %v5283
  %5285 = vmatmul.bf16.gmra.mxu0 %v1991
  %v5286 = vpop.f32.mrf.mxu0
  %v5287 = vadd.f32 %v5214, %v5286
  %v5288 = vpop.f32.mrf.mxu0
  %v5289 = vadd.f32 %v5216, %v5288
  %5290 = vmatmul.bf16.gmra.mxu0 %v2016
  %v5291 = vpop.f32.mrf.mxu0
  %v5292 = vadd.f32 %v5219, %v5291
  %v5293 = vpop.f32.mrf.mxu0
  %5294 = vdwg.mxu0
  %5295 = vmatpush.bf16.msra.mxu0 %v3342
  %5296 = vmatpush.bf16.msra.mxu0 %v3341
  %5297 = vmatpush.bf16.msra.mxu0 %v3340
  %5298 = vmatpush.bf16.msra.mxu0 %v3339
  %5299 = vmatpush.bf16.msra.mxu0 %v3338
  %5300 = vmatpush.bf16.msra.mxu0 %v3337
  %5301 = vmatpush.bf16.msra.mxu0 %v3336
  %5302 = vmatpush.bf16.msra.mxu0 %v3335
  %5303 = vmatmul.bf16.gmra.mxu0 %v1717
  %v5304 = vpop.f32.mrf.mxu0
  %v5305 = vadd.f32 %v5232, %v5304
  %v5306 = vpop.f32.mrf.mxu0
  %v5307 = vadd.f32 %v5234, %v5306
  %5308 = vmatmul.bf16.gmra.mxu0 %v1742
  %v5309 = vpop.f32.mrf.mxu0
  %v5310 = vadd.f32 %v5237, %v5309
  %v5311 = vpop.f32.mrf.mxu0
  %v5312 = vadd.f32 %v5239, %v5311
  %5313 = vmatmul.bf16.gmra.mxu0 %v1767
  %v5314 = vpop.f32.mrf.mxu0
  %v5315 = vadd.f32 %v5242, %v5314
  %v5316 = vpop.f32.mrf.mxu0
  %v5317 = vadd.f32 %v5244, %v5316
  %5318 = vmatmul.bf16.gmra.mxu0 %v1792
  %v5319 = vpop.f32.mrf.mxu0
  %v5320 = vadd.f32 %v5247, %v5319
  %v5321 = vpop.f32.mrf.mxu0
  %v5322 = vadd.f32 %v5249, %v5321
  %5323 = vmatmul.bf16.gmra.mxu0 %v1817
  %v5324 = vpop.f32.mrf.mxu0
  %v5325 = vadd.f32 %v5252, %v5324
  %v5326 = vpop.f32.mrf.mxu0
  %v5327 = vadd.f32 %v5254, %v5326
  %5328 = vmatmul.bf16.gmra.mxu0 %v1842
  %v5329 = vpop.f32.mrf.mxu0
  %v5330 = vadd.f32 %v5257, %v5329
  %v5331 = vpop.f32.mrf.mxu0
  %v5332 = vadd.f32 %v5259, %v5331
  %5333 = vmatmul.bf16.gmra.mxu0 %v1867
  %v5334 = vpop.f32.mrf.mxu0
  %v5335 = vadd.f32 %v5262, %v5334
  %v5336 = vpop.f32.mrf.mxu0
  %v5337 = vadd.f32 %v5264, %v5336
  %5338 = vmatmul.bf16.gmra.mxu0 %v1892
  %v5339 = vpop.f32.mrf.mxu0
  %v5340 = vadd.f32 %v5267, %v5339
  %v5341 = vpop.f32.mrf.mxu0
  %v5342 = vadd.f32 %v5269, %v5341
  %5343 = vmatmul.bf16.gmra.mxu0 %v1917
  %v5344 = vpop.f32.mrf.mxu0
  %v5345 = vadd.f32 %v5272, %v5344
  %v5346 = vpop.f32.mrf.mxu0
  %v5347 = vadd.f32 %v5274, %v5346
  %5348 = vmatmul.bf16.gmra.mxu0 %v1942
  %v5349 = vpop.f32.mrf.mxu0
  %v5350 = vadd.f32 %v5277, %v5349
  %v5351 = vpop.f32.mrf.mxu0
  %v5352 = vadd.f32 %v5279, %v5351
  %5353 = vmatmul.bf16.gmra.mxu0 %v1967
  %v5354 = vpop.f32.mrf.mxu0
  %v5355 = vadd.f32 %v5282, %v5354
  %v5356 = vpop.f32.mrf.mxu0
  %v5357 = vadd.f32 %v5284, %v5356
  %5358 = vmatmul.bf16.gmra.mxu0 %v1992
  %v5359 = vpop.f32.mrf.mxu0
  %v5360 = vadd.f32 %v5287, %v5359
  %v5361 = vpop.f32.mrf.mxu0
  %v5362 = vadd.f32 %v5289, %v5361
  %5363 = vmatmul.bf16.gmra.mxu0 %v2017
  %v5364 = vpop.f32.mrf.mxu0
  %v5365 = vadd.f32 %v5292, %v5364
  %v5366 = vpop.f32.mrf.mxu0
  %5367 = vdwg.mxu0
  %v5368 = vmax.f32 %v5305, 0.0
  %v5369 = vmax.f32 %v5307, 0.0
  %v5370 = vmax.f32 %v5310, 0.0
  %v5371 = vmax.f32 %v5312, 0.0
  %v5372 = vmax.f32 %v5315, 0.0
  %v5373 = vmax.f32 %v5317, 0.0
  %v5374 = vmax.f32 %v5320, 0.0
  %v5375 = vmax.f32 %v5322, 0.0
  %v5376 = vmax.f32 %v5325, 0.0
  %v5377 = vmax.f32 %v5327, 0.0
  %v5378 = vmax.f32 %v5330, 0.0
  %v5379 = vmax.f32 %v5332, 0.0
  %v5380 = vmax.f32 %v5335, 0.0
  %v5381 = vmax.f32 %v5337, 0.0
  %v5382 = vmax.f32 %v5340, 0.0
  %v5383 = vmax.f32 %v5342, 0.0
  %v5384 = vmax.f32 %v5345, 0.0
  %v5385 = vmax.f32 %v5347, 0.0
  %v5386 = vmax.f32 %v5350, 0.0
  %v5387 = vmax.f32 %v5352, 0.0
  %v5388 = vmax.f32 %v5355, 0.0
  %v5389 = vmax.f32 %v5357, 0.0
  %v5390 = vmax.f32 %v5360, 0.0
  %v5391 = vmax.f32 %v5362, 0.0
  %v5392 = vmax.f32 %v5365, 0.0
  %v5393 = vpack.c.bf16 %v5368, %v5368
  %v5394 = vpack.c.bf16 %v5369, %v5369
  %v5395 = vpack.c.bf16 %v5370, %v5370
  %v5396 = vpack.c.bf16 %v5371, %v5371
  %v5397 = vpack.c.bf16 %v5372, %v5372
  %v5398 = vpack.c.bf16 %v5373, %v5373
  %v5399 = vpack.c.bf16 %v5374, %v5374
  %v5400 = vpack.c.bf16 %v5375, %v5375
  %v5401 = vpack.c.bf16 %v5376, %v5376
  %v5402 = vpack.c.bf16 %v5377, %v5377
  %v5403 = vpack.c.bf16 %v5378, %v5378
  %v5404 = vpack.c.bf16 %v5379, %v5379
  %v5405 = vpack.c.bf16 %v5380, %v5380
  %v5406 = vpack.c.bf16 %v5381, %v5381
  %v5407 = vpack.c.bf16 %v5382, %v5382
  %v5408 = vpack.c.bf16 %v5383, %v5383
  %v5409 = vpack.c.bf16 %v5384, %v5384
  %v5410 = vpack.c.bf16 %v5385, %v5385
  %v5411 = vpack.c.bf16 %v5386, %v5386
  %v5412 = vpack.c.bf16 %v5387, %v5387
  %v5413 = vpack.c.bf16 %v5388, %v5388
  %v5414 = vpack.c.bf16 %v5389, %v5389
  %v5415 = vpack.c.bf16 %v5390, %v5390
  %v5416 = vpack.c.bf16 %v5391, %v5391
  %v5417 = vpack.c.bf16 %v5392, %v5392
  %5418 = vst [vmem:[%s3] sm:$0xf] %v5393
  %5419 = vst [vmem:[%s3 + $0x4] sm:$0xf] %v5394
  %5420 = vst [vmem:[%s3 + $0x8] sm:$0xf] %v5395
  %5421 = vst [vmem:[%s3 + $0xc] sm:$0xf] %v5396
  %5422 = vst [vmem:[%s3 + $0x10] sm:$0xf] %v5397
  %5423 = vst [vmem:[%s3 + $0x14] sm:$0xf] %v5398
  %5424 = vst [vmem:[%s3 + $0x18] sm:$0xf] %v5399
  %5425 = vst [vmem:[%s3 + $0x1c] sm:$0xf] %v5400
  %5426 = vst [vmem:[%s3 + $0x20] sm:$0xf] %v5401
  %5427 = vst [vmem:[%s3 + $0x24] sm:$0xf] %v5402
  %5428 = vst [vmem:[%s3 + $0x28] sm:$0xf] %v5403
  %5429 = vst [vmem:[%s3 + $0x2c] sm:$0xf] %v5404
  %5430 = vst [vmem:[%s3 + $0x30] sm:$0xf] %v5405
  %5431 = vst [vmem:[%s3 + $0x34] sm:$0xf] %v5406
  %5432 = vst [vmem:[%s3 + $0x38] sm:$0xf] %v5407
  %5433 = vst [vmem:[%s3 + $0x3c] sm:$0xf] %v5408
  %5434 = vst [vmem:[%s3 + $0x40] sm:$0xf] %v5409
  %5435 = vst [vmem:[%s3 + $0x44] sm:$0xf] %v5410
  %5436 = vst [vmem:[%s3 + $0x48] sm:$0xf] %v5411
  %5437 = vst [vmem:[%s3 + $0x4c] sm:$0xf] %v5412
  %5438 = vst [vmem:[%s3 + $0x50] sm:$0xf] %v5413
  %5439 = vst [vmem:[%s3 + $0x54] sm:$0xf] %v5414
  %5440 = vst [vmem:[%s3 + $0x58] sm:$0xf] %v5415
  %5441 = vst [vmem:[%s3 + $0x5c] sm:$0xf] %v5416
  %5442 = vst [vmem:[%s3 + $0x60] sm:$0xf] %v5417
  // Predicated region
  $region14: #{convnet_forward.7} parent=0 // pred_check
    _
  $region15: #{convnet_forward.7} parent=0 // pred_check_branch
    %5444 = sbr.rel (0) target = $region17
  $region16: #{convnet_forward.7} parent=0 // pred_region
    _
  $region17: #{convnet_forward.7} parent=0 // pred_fallthru
    _
  // Predicated region
  $region18: #{convnet_forward.7} parent=0 // pred_check
    _
  $region19: #{convnet_forward.7} parent=0 // pred_check_branch
    %5446 = sbr.rel (0) target = $region21
  $region20: #{convnet_forward.7} parent=0 // pred_region
    _
  $region21: #{convnet_forward.7} parent=0 // pred_fallthru
    _

// kernel: convnet_forward.9
$region0: #{convnet_forward.9}
  #allocation0 [shape = 'u32[]', space=smem, size = 0x4, offset = 0x4, fixed_abs, tag = 'smem constant byte address 0x4 - core index']
  #allocation1 [shape = 'u32[72,128]{1,0:T(1,128)}', space=vmem, size = 0x9000, scoped, tag = 'internal scratch']
  %s0 = inlined_call_operand.vmem [shape: bf16[2,3200], index: 0, kind: input, shape index: {}]
  %s1 = inlined_call_operand.vmem [shape: bf16[3200,120], index: 1, kind: input, shape index: {}]
  %s2 = inlined_call_operand.vmem [shape: f32[1,120], index: 2, kind: input, shape index: {}]
  %s3 = inlined_call_operand.vmem [shape: bf16[120,84], index: 3, kind: input, shape index: {}]
  %s4 = inlined_call_operand.vmem [shape: f32[1,84], index: 4, kind: input, shape index: {}]
  %s5 = inlined_call_operand.vmem [shape: bf16[84,10], index: 5, kind: input, shape index: {}]
  %s6 = inlined_call_operand.vmem [shape: f32[1,10], index: 6, kind: input, shape index: {}]
  %s7 = inlined_call_operand.hbm [shape: f32[2,10], index: 7, kind: output, shape index: {}]
  %s8 = sld [smem:[#allocation0]]
  $region38: #{convnet_forward.9} parent=0
    _
  %s10 = ssub.s32 1, %s8
  %s11 = scalar_select 0, %s10, %s8
  $region1: #{convnet_forward.9} parent=0
    #allocation2 [shape = 'u8[1024]{0}', space=vmem, size = 0x400, scoped, tag = 'output window, operand 0, single buffered']
    #allocation3 [shape = 's32[1]{0}', space=sflag, size = 0x4, scoped, tag = 'scoped memory for convnet_forward.9']
    %12 = vsyncpa [#allocation3], 0
    // Predicated region
    $region2: #{convnet_forward.9} parent=1 // pred_check
      _
    $region3: #{convnet_forward.9} parent=1 // pred_check_branch
      %14 = sbr.rel (0) target = $region5
    $region4: #{convnet_forward.9} parent=1 // pred_region
      _
    $region5: #{convnet_forward.9} parent=1 // pred_fallthru
      _
    // Predicated region
    $region6: #{convnet_forward.9} parent=1 // pred_check
      _
    $region7: #{convnet_forward.9} parent=1 // pred_check_branch
      %16 = sbr.rel (0) target = $region9
    $region8: #{convnet_forward.9} parent=1 // pred_region
      _
    $region9: #{convnet_forward.9} parent=1 // pred_fallthru
      _
    // Predicated region
    $region10: #{convnet_forward.9} parent=1 // pred_check
      _
    $region11: #{convnet_forward.9} parent=1 // pred_check_branch
      %18 = sbr.rel (0) target = $region13
    $region12: #{convnet_forward.9} parent=1 // pred_region
      _
    $region13: #{convnet_forward.9} parent=1 // pred_fallthru
      _
    // Predicated region
    $region14: #{convnet_forward.9} parent=1 // pred_check
      _
    $region15: #{convnet_forward.9} parent=1 // pred_check_branch
      %20 = sbr.rel (0) target = $region17
    $region16: #{convnet_forward.9} parent=1 // pred_region
      _
    $region17: #{convnet_forward.9} parent=1 // pred_fallthru
      _
    // Predicated region
    $region18: #{convnet_forward.9} parent=1 // pred_check
      _
    $region19: #{convnet_forward.9} parent=1 // pred_check_branch
      %22 = sbr.rel (0) target = $region21
    $region20: #{convnet_forward.9} parent=1 // pred_region
      _
    $region21: #{convnet_forward.9} parent=1 // pred_fallthru
      _
    // Predicated region
    $region22: #{convnet_forward.9} parent=1 // pred_check
      _
    $region23: #{convnet_forward.9} parent=1 // pred_check_branch
      %24 = sbr.rel (0) target = $region25
    $region24: #{convnet_forward.9} parent=1 // pred_region
      _
    $region25: #{convnet_forward.9} parent=1 // pred_fallthru
      _
    // Predicated region
    $region26: #{convnet_forward.9} parent=1 // pred_check
      _
    $region27: #{convnet_forward.9} parent=1 // pred_check_branch
      %26 = sbr.rel (0) target = $region29
    $region28: #{convnet_forward.9} parent=1 // pred_region
      _
    $region29: #{convnet_forward.9} parent=1 // pred_fallthru
      _
    %v28 = vld [vmem:[%s0] sm:$0xff]
    %v29 = vld [vmem:[%s0 + $0x8] sm:$0xff]
    %v30 = vld [vmem:[%s0 + $0x10] sm:$0xff]
    %v31 = vld [vmem:[%s0 + $0x18] sm:$0x1]
    %v32 = vld [vmem:[%s1] sm:$0xf]
    %v33 = vld [vmem:[%s1 + $0x4] sm:$0xf]
    %v34 = vld [vmem:[%s1 + $0x8] sm:$0xf]
    %v35 = vld [vmem:[%s1 + $0xc] sm:$0xf]
    %v36 = vld [vmem:[%s1 + $0x10] sm:$0xf]
    %v37 = vld [vmem:[%s1 + $0x14] sm:$0xf]
    %v38 = vld [vmem:[%s1 + $0x18] sm:$0xf]
    %v39 = vld [vmem:[%s1 + $0x1c] sm:$0xf]
    %v40 = vld [vmem:[%s1 + $0x20] sm:$0xf]
    %v41 = vld [vmem:[%s1 + $0x24] sm:$0xf]
    %v42 = vld [vmem:[%s1 + $0x28] sm:$0xf]
    %v43 = vld [vmem:[%s1 + $0x2c] sm:$0xf]
    %v44 = vld [vmem:[%s1 + $0x30] sm:$0xf]
    %v45 = vld [vmem:[%s1 + $0x34] sm:$0xf]
    %v46 = vld [vmem:[%s1 + $0x38] sm:$0xf]
    %v47 = vld [vmem:[%s1 + $0x3c] sm:$0xf]
    %v48 = vld [vmem:[%s1 + $0x40] sm:$0xf]
    %v49 = vld [vmem:[%s1 + $0x44] sm:$0xf]
    %v50 = vld [vmem:[%s1 + $0x48] sm:$0xf]
    %v51 = vld [vmem:[%s1 + $0x4c] sm:$0xf]
    %v52 = vld [vmem:[%s1 + $0x50] sm:$0xf]
    %v53 = vld [vmem:[%s1 + $0x54] sm:$0xf]
    %v54 = vld [vmem:[%s1 + $0x58] sm:$0xf]
    %v55 = vld [vmem:[%s1 + $0x5c] sm:$0xf]
    %v56 = vld [vmem:[%s1 + $0x60] sm:$0xf]
    %v57 = vld [vmem:[%s1 + $0x64] sm:$0xf]
    %v58 = vld [vmem:[%s1 + $0x68] sm:$0xf]
    %v59 = vld [vmem:[%s1 + $0x6c] sm:$0xf]
    %v60 = vld [vmem:[%s1 + $0x70] sm:$0xf]
    %v61 = vld [vmem:[%s1 + $0x74] sm:$0xf]
    %v62 = vld [vmem:[%s1 + $0x78] sm:$0xf]
    %v63 = vld [vmem:[%s1 + $0x7c] sm:$0xf]
    %v64 = vld [vmem:[%s1 + $0x80] sm:$0xf]
    %v65 = vld [vmem:[%s1 + $0x84] sm:$0xf]
    %v66 = vld [vmem:[%s1 + $0x88] sm:$0xf]
    %v67 = vld [vmem:[%s1 + $0x8c] sm:$0xf]
    %v68 = vld [vmem:[%s1 + $0x90] sm:$0xf]
    %v69 = vld [vmem:[%s1 + $0x94] sm:$0xf]
    %v70 = vld [vmem:[%s1 + $0x98] sm:$0xf]
    %v71 = vld [vmem:[%s1 + $0x9c] sm:$0xf]
    %v72 = vld [vmem:[%s1 + $0xa0] sm:$0xf]
    %v73 = vld [vmem:[%s1 + $0xa4] sm:$0xf]
    %v74 = vld [vmem:[%s1 + $0xa8] sm:$0xf]
    %v75 = vld [vmem:[%s1 + $0xac] sm:$0xf]
    %v76 = vld [vmem:[%s1 + $0xb0] sm:$0xf]
    %v77 = vld [vmem:[%s1 + $0xb4] sm:$0xf]
    %v78 = vld [vmem:[%s1 + $0xb8] sm:$0xf]
    %v79 = vld [vmem:[%s1 + $0xbc] sm:$0xf]
    %v80 = vld [vmem:[%s1 + $0xc0] sm:$0xf]
    %v81 = vld [vmem:[%s1 + $0xc4] sm:$0xf]
    %v82 = vld [vmem:[%s1 + $0xc8] sm:$0xf]
    %v83 = vld [vmem:[%s1 + $0xcc] sm:$0xf]
    %v84 = vld [vmem:[%s1 + $0xd0] sm:$0xf]
    %v85 = vld [vmem:[%s1 + $0xd4] sm:$0xf]
    %v86 = vld [vmem:[%s1 + $0xd8] sm:$0xf]
    %v87 = vld [vmem:[%s1 + $0xdc] sm:$0xf]
    %v88 = vld [vmem:[%s1 + $0xe0] sm:$0xf]
    %v89 = vld [vmem:[%s1 + $0xe4] sm:$0xf]
    %v90 = vld [vmem:[%s1 + $0xe8] sm:$0xf]
    %v91 = vld [vmem:[%s1 + $0xec] sm:$0xf]
    %v92 = vld [vmem:[%s1 + $0xf0] sm:$0xf]
    %v93 = vld [vmem:[%s1 + $0xf4] sm:$0xf]
    %v94 = vld [vmem:[%s1 + $0xf8] sm:$0xf]
    %v95 = vld [vmem:[%s1 + $0xfc] sm:$0xf]
    %v96 = vld [vmem:[%s1 + $0x100] sm:$0xf]
    %v97 = vld [vmem:[%s1 + $0x104] sm:$0xf]
    %v98 = vld [vmem:[%s1 + $0x108] sm:$0xf]
    %v99 = vld [vmem:[%s1 + $0x10c] sm:$0xf]
    %v100 = vld [vmem:[%s1 + $0x110] sm:$0xf]
    %v101 = vld [vmem:[%s1 + $0x114] sm:$0xf]
    %v102 = vld [vmem:[%s1 + $0x118] sm:$0xf]
    %v103 = vld [vmem:[%s1 + $0x11c] sm:$0xf]
    %v104 = vld [vmem:[%s1 + $0x120] sm:$0xf]
    %v105 = vld [vmem:[%s1 + $0x124] sm:$0xf]
    %v106 = vld [vmem:[%s1 + $0x128] sm:$0xf]
    %v107 = vld [vmem:[%s1 + $0x12c] sm:$0xf]
    %v108 = vld [vmem:[%s1 + $0x130] sm:$0xf]
    %v109 = vld [vmem:[%s1 + $0x134] sm:$0xf]
    %v110 = vld [vmem:[%s1 + $0x138] sm:$0xf]
    %v111 = vld [vmem:[%s1 + $0x13c] sm:$0xf]
    %v112 = vld [vmem:[%s1 + $0x140] sm:$0xf]
    %v113 = vld [vmem:[%s1 + $0x144] sm:$0xf]
    %v114 = vld [vmem:[%s1 + $0x148] sm:$0xf]
    %v115 = vld [vmem:[%s1 + $0x14c] sm:$0xf]
    %v116 = vld [vmem:[%s1 + $0x150] sm:$0xf]
    %v117 = vld [vmem:[%s1 + $0x154] sm:$0xf]
    %v118 = vld [vmem:[%s1 + $0x158] sm:$0xf]
    %v119 = vld [vmem:[%s1 + $0x15c] sm:$0xf]
    %v120 = vld [vmem:[%s1 + $0x160] sm:$0xf]
    %v121 = vld [vmem:[%s1 + $0x164] sm:$0xf]
    %v122 = vld [vmem:[%s1 + $0x168] sm:$0xf]
    %v123 = vld [vmem:[%s1 + $0x16c] sm:$0xf]
    %v124 = vld [vmem:[%s1 + $0x170] sm:$0xf]
    %v125 = vld [vmem:[%s1 + $0x174] sm:$0xf]
    %v126 = vld [vmem:[%s1 + $0x178] sm:$0xf]
    %v127 = vld [vmem:[%s1 + $0x17c] sm:$0xf]
    %v128 = vld [vmem:[%s1 + $0x180] sm:$0xf]
    %v129 = vld [vmem:[%s1 + $0x184] sm:$0xf]
    %v130 = vld [vmem:[%s1 + $0x188] sm:$0xf]
    %v131 = vld [vmem:[%s1 + $0x18c] sm:$0xf]
    %v132 = vld [vmem:[%s1 + $0x190] sm:$0xf]
    %v133 = vld [vmem:[%s1 + $0x194] sm:$0xf]
    %v134 = vld [vmem:[%s1 + $0x198] sm:$0xf]
    %v135 = vld [vmem:[%s1 + $0x19c] sm:$0xf]
    %v136 = vld [vmem:[%s1 + $0x1a0] sm:$0xf]
    %v137 = vld [vmem:[%s1 + $0x1a4] sm:$0xf]
    %v138 = vld [vmem:[%s1 + $0x1a8] sm:$0xf]
    %v139 = vld [vmem:[%s1 + $0x1ac] sm:$0xf]
    %v140 = vld [vmem:[%s1 + $0x1b0] sm:$0xf]
    %v141 = vld [vmem:[%s1 + $0x1b4] sm:$0xf]
    %v142 = vld [vmem:[%s1 + $0x1b8] sm:$0xf]
    %v143 = vld [vmem:[%s1 + $0x1bc] sm:$0xf]
    %v144 = vld [vmem:[%s1 + $0x1c0] sm:$0xf]
    %v145 = vld [vmem:[%s1 + $0x1c4] sm:$0xf]
    %v146 = vld [vmem:[%s1 + $0x1c8] sm:$0xf]
    %v147 = vld [vmem:[%s1 + $0x1cc] sm:$0xf]
    %v148 = vld [vmem:[%s1 + $0x1d0] sm:$0xf]
    %v149 = vld [vmem:[%s1 + $0x1d4] sm:$0xf]
    %v150 = vld [vmem:[%s1 + $0x1d8] sm:$0xf]
    %v151 = vld [vmem:[%s1 + $0x1dc] sm:$0xf]
    %v152 = vld [vmem:[%s1 + $0x1e0] sm:$0xf]
    %v153 = vld [vmem:[%s1 + $0x1e4] sm:$0xf]
    %v154 = vld [vmem:[%s1 + $0x1e8] sm:$0xf]
    %v155 = vld [vmem:[%s1 + $0x1ec] sm:$0xf]
    %v156 = vld [vmem:[%s1 + $0x1f0] sm:$0xf]
    %v157 = vld [vmem:[%s1 + $0x1f4] sm:$0xf]
    %v158 = vld [vmem:[%s1 + $0x1f8] sm:$0xf]
    %v159 = vld [vmem:[%s1 + $0x1fc] sm:$0xf]
    %v160 = vld [vmem:[%s1 + $0x200] sm:$0xf]
    %v161 = vld [vmem:[%s1 + $0x204] sm:$0xf]
    %v162 = vld [vmem:[%s1 + $0x208] sm:$0xf]
    %v163 = vld [vmem:[%s1 + $0x20c] sm:$0xf]
    %v164 = vld [vmem:[%s1 + $0x210] sm:$0xf]
    %v165 = vld [vmem:[%s1 + $0x214] sm:$0xf]
    %v166 = vld [vmem:[%s1 + $0x218] sm:$0xf]
    %v167 = vld [vmem:[%s1 + $0x21c] sm:$0xf]
    %v168 = vld [vmem:[%s1 + $0x220] sm:$0xf]
    %v169 = vld [vmem:[%s1 + $0x224] sm:$0xf]
    %v170 = vld [vmem:[%s1 + $0x228] sm:$0xf]
    %v171 = vld [vmem:[%s1 + $0x22c] sm:$0xf]
    %v172 = vld [vmem:[%s1 + $0x230] sm:$0xf]
    %v173 = vld [vmem:[%s1 + $0x234] sm:$0xf]
    %v174 = vld [vmem:[%s1 + $0x238] sm:$0xf]
    %v175 = vld [vmem:[%s1 + $0x23c] sm:$0xf]
    %v176 = vld [vmem:[%s1 + $0x240] sm:$0xf]
    %v177 = vld [vmem:[%s1 + $0x244] sm:$0xf]
    %v178 = vld [vmem:[%s1 + $0x248] sm:$0xf]
    %v179 = vld [vmem:[%s1 + $0x24c] sm:$0xf]
    %v180 = vld [vmem:[%s1 + $0x250] sm:$0xf]
    %v181 = vld [vmem:[%s1 + $0x254] sm:$0xf]
    %v182 = vld [vmem:[%s1 + $0x258] sm:$0xf]
    %v183 = vld [vmem:[%s1 + $0x25c] sm:$0xf]
    %v184 = vld [vmem:[%s1 + $0x260] sm:$0xf]
    %v185 = vld [vmem:[%s1 + $0x264] sm:$0xf]
    %v186 = vld [vmem:[%s1 + $0x268] sm:$0xf]
    %v187 = vld [vmem:[%s1 + $0x26c] sm:$0xf]
    %v188 = vld [vmem:[%s1 + $0x270] sm:$0xf]
    %v189 = vld [vmem:[%s1 + $0x274] sm:$0xf]
    %v190 = vld [vmem:[%s1 + $0x278] sm:$0xf]
    %v191 = vld [vmem:[%s1 + $0x27c] sm:$0xf]
    %v192 = vld [vmem:[%s1 + $0x280] sm:$0xf]
    %v193 = vld [vmem:[%s1 + $0x284] sm:$0xf]
    %v194 = vld [vmem:[%s1 + $0x288] sm:$0xf]
    %v195 = vld [vmem:[%s1 + $0x28c] sm:$0xf]
    %v196 = vld [vmem:[%s1 + $0x290] sm:$0xf]
    %v197 = vld [vmem:[%s1 + $0x294] sm:$0xf]
    %v198 = vld [vmem:[%s1 + $0x298] sm:$0xf]
    %v199 = vld [vmem:[%s1 + $0x29c] sm:$0xf]
    %v200 = vld [vmem:[%s1 + $0x2a0] sm:$0xf]
    %v201 = vld [vmem:[%s1 + $0x2a4] sm:$0xf]
    %v202 = vld [vmem:[%s1 + $0x2a8] sm:$0xf]
    %v203 = vld [vmem:[%s1 + $0x2ac] sm:$0xf]
    %v204 = vld [vmem:[%s1 + $0x2b0] sm:$0xf]
    %v205 = vld [vmem:[%s1 + $0x2b4] sm:$0xf]
    %v206 = vld [vmem:[%s1 + $0x2b8] sm:$0xf]
    %v207 = vld [vmem:[%s1 + $0x2bc] sm:$0xf]
    %v208 = vld [vmem:[%s1 + $0x2c0] sm:$0xf]
    %v209 = vld [vmem:[%s1 + $0x2c4] sm:$0xf]
    %v210 = vld [vmem:[%s1 + $0x2c8] sm:$0xf]
    %v211 = vld [vmem:[%s1 + $0x2cc] sm:$0xf]
    %v212 = vld [vmem:[%s1 + $0x2d0] sm:$0xf]
    %v213 = vld [vmem:[%s1 + $0x2d4] sm:$0xf]
    %v214 = vld [vmem:[%s1 + $0x2d8] sm:$0xf]
    %v215 = vld [vmem:[%s1 + $0x2dc] sm:$0xf]
    %v216 = vld [vmem:[%s1 + $0x2e0] sm:$0xf]
    %v217 = vld [vmem:[%s1 + $0x2e4] sm:$0xf]
    %v218 = vld [vmem:[%s1 + $0x2e8] sm:$0xf]
    %v219 = vld [vmem:[%s1 + $0x2ec] sm:$0xf]
    %v220 = vld [vmem:[%s1 + $0x2f0] sm:$0xf]
    %v221 = vld [vmem:[%s1 + $0x2f4] sm:$0xf]
    %v222 = vld [vmem:[%s1 + $0x2f8] sm:$0xf]
    %v223 = vld [vmem:[%s1 + $0x2fc] sm:$0xf]
    %v224 = vld [vmem:[%s1 + $0x300] sm:$0xf]
    %v225 = vld [vmem:[%s1 + $0x304] sm:$0xf]
    %v226 = vld [vmem:[%s1 + $0x308] sm:$0xf]
    %v227 = vld [vmem:[%s1 + $0x30c] sm:$0xf]
    %v228 = vld [vmem:[%s1 + $0x310] sm:$0xf]
    %v229 = vld [vmem:[%s1 + $0x314] sm:$0xf]
    %v230 = vld [vmem:[%s1 + $0x318] sm:$0xf]
    %v231 = vld [vmem:[%s1 + $0x31c] sm:$0xf]
    %v232 = vld [vmem:[%s1 + $0x320] sm:$0xf]
    %v233 = vld [vmem:[%s1 + $0x324] sm:$0xf]
    %v234 = vld [vmem:[%s1 + $0x328] sm:$0xf]
    %v235 = vld [vmem:[%s1 + $0x32c] sm:$0xf]
    %v236 = vld [vmem:[%s1 + $0x330] sm:$0xf]
    %v237 = vld [vmem:[%s1 + $0x334] sm:$0xf]
    %v238 = vld [vmem:[%s1 + $0x338] sm:$0xf]
    %v239 = vld [vmem:[%s1 + $0x33c] sm:$0xf]
    %v240 = vld [vmem:[%s1 + $0x340] sm:$0xf]
    %v241 = vld [vmem:[%s1 + $0x344] sm:$0xf]
    %v242 = vld [vmem:[%s1 + $0x348] sm:$0xf]
    %v243 = vld [vmem:[%s1 + $0x34c] sm:$0xf]
    %v244 = vld [vmem:[%s1 + $0x350] sm:$0xf]
    %v245 = vld [vmem:[%s1 + $0x354] sm:$0xf]
    %v246 = vld [vmem:[%s1 + $0x358] sm:$0xf]
    %v247 = vld [vmem:[%s1 + $0x35c] sm:$0xf]
    %v248 = vld [vmem:[%s1 + $0x360] sm:$0xf]
    %v249 = vld [vmem:[%s1 + $0x364] sm:$0xf]
    %v250 = vld [vmem:[%s1 + $0x368] sm:$0xf]
    %v251 = vld [vmem:[%s1 + $0x36c] sm:$0xf]
    %v252 = vld [vmem:[%s1 + $0x370] sm:$0xf]
    %v253 = vld [vmem:[%s1 + $0x374] sm:$0xf]
    %v254 = vld [vmem:[%s1 + $0x378] sm:$0xf]
    %v255 = vld [vmem:[%s1 + $0x37c] sm:$0xf]
    %v256 = vld [vmem:[%s1 + $0x380] sm:$0xf]
    %v257 = vld [vmem:[%s1 + $0x384] sm:$0xf]
    %v258 = vld [vmem:[%s1 + $0x388] sm:$0xf]
    %v259 = vld [vmem:[%s1 + $0x38c] sm:$0xf]
    %v260 = vld [vmem:[%s1 + $0x390] sm:$0xf]
    %v261 = vld [vmem:[%s1 + $0x394] sm:$0xf]
    %v262 = vld [vmem:[%s1 + $0x398] sm:$0xf]
    %v263 = vld [vmem:[%s1 + $0x39c] sm:$0xf]
    %v264 = vld [vmem:[%s1 + $0x3a0] sm:$0xf]
    %v265 = vld [vmem:[%s1 + $0x3a4] sm:$0xf]
    %v266 = vld [vmem:[%s1 + $0x3a8] sm:$0xf]
    %v267 = vld [vmem:[%s1 + $0x3ac] sm:$0xf]
    %v268 = vld [vmem:[%s1 + $0x3b0] sm:$0xf]
    %v269 = vld [vmem:[%s1 + $0x3b4] sm:$0xf]
    %v270 = vld [vmem:[%s1 + $0x3b8] sm:$0xf]
    %v271 = vld [vmem:[%s1 + $0x3bc] sm:$0xf]
    %v272 = vld [vmem:[%s1 + $0x3c0] sm:$0xf]
    %v273 = vld [vmem:[%s1 + $0x3c4] sm:$0xf]
    %v274 = vld [vmem:[%s1 + $0x3c8] sm:$0xf]
    %v275 = vld [vmem:[%s1 + $0x3cc] sm:$0xf]
    %v276 = vld [vmem:[%s1 + $0x3d0] sm:$0xf]
    %v277 = vld [vmem:[%s1 + $0x3d4] sm:$0xf]
    %v278 = vld [vmem:[%s1 + $0x3d8] sm:$0xf]
    %v279 = vld [vmem:[%s1 + $0x3dc] sm:$0xf]
    %v280 = vld [vmem:[%s1 + $0x3e0] sm:$0xf]
    %v281 = vld [vmem:[%s1 + $0x3e4] sm:$0xf]
    %v282 = vld [vmem:[%s1 + $0x3e8] sm:$0xf]
    %v283 = vld [vmem:[%s1 + $0x3ec] sm:$0xf]
    %v284 = vld [vmem:[%s1 + $0x3f0] sm:$0xf]
    %v285 = vld [vmem:[%s1 + $0x3f4] sm:$0xf]
    %v286 = vld [vmem:[%s1 + $0x3f8] sm:$0xf]
    %v287 = vld [vmem:[%s1 + $0x3fc] sm:$0xf]
    %v288 = vld [vmem:[%s1 + $0x400] sm:$0xf]
    %v289 = vld [vmem:[%s1 + $0x404] sm:$0xf]
    %v290 = vld [vmem:[%s1 + $0x408] sm:$0xf]
    %v291 = vld [vmem:[%s1 + $0x40c] sm:$0xf]
    %v292 = vld [vmem:[%s1 + $0x410] sm:$0xf]
    %v293 = vld [vmem:[%s1 + $0x414] sm:$0xf]
    %v294 = vld [vmem:[%s1 + $0x418] sm:$0xf]
    %v295 = vld [vmem:[%s1 + $0x41c] sm:$0xf]
    %v296 = vld [vmem:[%s1 + $0x420] sm:$0xf]
    %v297 = vld [vmem:[%s1 + $0x424] sm:$0xf]
    %v298 = vld [vmem:[%s1 + $0x428] sm:$0xf]
    %v299 = vld [vmem:[%s1 + $0x42c] sm:$0xf]
    %v300 = vld [vmem:[%s1 + $0x430] sm:$0xf]
    %v301 = vld [vmem:[%s1 + $0x434] sm:$0xf]
    %v302 = vld [vmem:[%s1 + $0x438] sm:$0xf]
    %v303 = vld [vmem:[%s1 + $0x43c] sm:$0xf]
    %v304 = vld [vmem:[%s1 + $0x440] sm:$0xf]
    %v305 = vld [vmem:[%s1 + $0x444] sm:$0xf]
    %v306 = vld [vmem:[%s1 + $0x448] sm:$0xf]
    %v307 = vld [vmem:[%s1 + $0x44c] sm:$0xf]
    %v308 = vld [vmem:[%s1 + $0x450] sm:$0xf]
    %v309 = vld [vmem:[%s1 + $0x454] sm:$0xf]
    %v310 = vld [vmem:[%s1 + $0x458] sm:$0xf]
    %v311 = vld [vmem:[%s1 + $0x45c] sm:$0xf]
    %v312 = vld [vmem:[%s1 + $0x460] sm:$0xf]
    %v313 = vld [vmem:[%s1 + $0x464] sm:$0xf]
    %v314 = vld [vmem:[%s1 + $0x468] sm:$0xf]
    %v315 = vld [vmem:[%s1 + $0x46c] sm:$0xf]
    %v316 = vld [vmem:[%s1 + $0x470] sm:$0xf]
    %v317 = vld [vmem:[%s1 + $0x474] sm:$0xf]
    %v318 = vld [vmem:[%s1 + $0x478] sm:$0xf]
    %v319 = vld [vmem:[%s1 + $0x47c] sm:$0xf]
    %v320 = vld [vmem:[%s1 + $0x480] sm:$0xf]
    %v321 = vld [vmem:[%s1 + $0x484] sm:$0xf]
    %v322 = vld [vmem:[%s1 + $0x488] sm:$0xf]
    %v323 = vld [vmem:[%s1 + $0x48c] sm:$0xf]
    %v324 = vld [vmem:[%s1 + $0x490] sm:$0xf]
    %v325 = vld [vmem:[%s1 + $0x494] sm:$0xf]
    %v326 = vld [vmem:[%s1 + $0x498] sm:$0xf]
    %v327 = vld [vmem:[%s1 + $0x49c] sm:$0xf]
    %v328 = vld [vmem:[%s1 + $0x4a0] sm:$0xf]
    %v329 = vld [vmem:[%s1 + $0x4a4] sm:$0xf]
    %v330 = vld [vmem:[%s1 + $0x4a8] sm:$0xf]
    %v331 = vld [vmem:[%s1 + $0x4ac] sm:$0xf]
    %v332 = vld [vmem:[%s1 + $0x4b0] sm:$0xf]
    %v333 = vld [vmem:[%s1 + $0x4b4] sm:$0xf]
    %v334 = vld [vmem:[%s1 + $0x4b8] sm:$0xf]
    %v335 = vld [vmem:[%s1 + $0x4bc] sm:$0xf]
    %v336 = vld [vmem:[%s1 + $0x4c0] sm:$0xf]
    %v337 = vld [vmem:[%s1 + $0x4c4] sm:$0xf]
    %v338 = vld [vmem:[%s1 + $0x4c8] sm:$0xf]
    %v339 = vld [vmem:[%s1 + $0x4cc] sm:$0xf]
    %v340 = vld [vmem:[%s1 + $0x4d0] sm:$0xf]
    %v341 = vld [vmem:[%s1 + $0x4d4] sm:$0xf]
    %v342 = vld [vmem:[%s1 + $0x4d8] sm:$0xf]
    %v343 = vld [vmem:[%s1 + $0x4dc] sm:$0xf]
    %v344 = vld [vmem:[%s1 + $0x4e0] sm:$0xf]
    %v345 = vld [vmem:[%s1 + $0x4e4] sm:$0xf]
    %v346 = vld [vmem:[%s1 + $0x4e8] sm:$0xf]
    %v347 = vld [vmem:[%s1 + $0x4ec] sm:$0xf]
    %v348 = vld [vmem:[%s1 + $0x4f0] sm:$0xf]
    %v349 = vld [vmem:[%s1 + $0x4f4] sm:$0xf]
    %v350 = vld [vmem:[%s1 + $0x4f8] sm:$0xf]
    %v351 = vld [vmem:[%s1 + $0x4fc] sm:$0xf]
    %v352 = vld [vmem:[%s1 + $0x500] sm:$0xf]
    %v353 = vld [vmem:[%s1 + $0x504] sm:$0xf]
    %v354 = vld [vmem:[%s1 + $0x508] sm:$0xf]
    %v355 = vld [vmem:[%s1 + $0x50c] sm:$0xf]
    %v356 = vld [vmem:[%s1 + $0x510] sm:$0xf]
    %v357 = vld [vmem:[%s1 + $0x514] sm:$0xf]
    %v358 = vld [vmem:[%s1 + $0x518] sm:$0xf]
    %v359 = vld [vmem:[%s1 + $0x51c] sm:$0xf]
    %v360 = vld [vmem:[%s1 + $0x520] sm:$0xf]
    %v361 = vld [vmem:[%s1 + $0x524] sm:$0xf]
    %v362 = vld [vmem:[%s1 + $0x528] sm:$0xf]
    %v363 = vld [vmem:[%s1 + $0x52c] sm:$0xf]
    %v364 = vld [vmem:[%s1 + $0x530] sm:$0xf]
    %v365 = vld [vmem:[%s1 + $0x534] sm:$0xf]
    %v366 = vld [vmem:[%s1 + $0x538] sm:$0xf]
    %v367 = vld [vmem:[%s1 + $0x53c] sm:$0xf]
    %v368 = vld [vmem:[%s1 + $0x540] sm:$0xf]
    %v369 = vld [vmem:[%s1 + $0x544] sm:$0xf]
    %v370 = vld [vmem:[%s1 + $0x548] sm:$0xf]
    %v371 = vld [vmem:[%s1 + $0x54c] sm:$0xf]
    %v372 = vld [vmem:[%s1 + $0x550] sm:$0xf]
    %v373 = vld [vmem:[%s1 + $0x554] sm:$0xf]
    %v374 = vld [vmem:[%s1 + $0x558] sm:$0xf]
    %v375 = vld [vmem:[%s1 + $0x55c] sm:$0xf]
    %v376 = vld [vmem:[%s1 + $0x560] sm:$0xf]
    %v377 = vld [vmem:[%s1 + $0x564] sm:$0xf]
    %v378 = vld [vmem:[%s1 + $0x568] sm:$0xf]
    %v379 = vld [vmem:[%s1 + $0x56c] sm:$0xf]
    %v380 = vld [vmem:[%s1 + $0x570] sm:$0xf]
    %v381 = vld [vmem:[%s1 + $0x574] sm:$0xf]
    %v382 = vld [vmem:[%s1 + $0x578] sm:$0xf]
    %v383 = vld [vmem:[%s1 + $0x57c] sm:$0xf]
    %v384 = vld [vmem:[%s1 + $0x580] sm:$0xf]
    %v385 = vld [vmem:[%s1 + $0x584] sm:$0xf]
    %v386 = vld [vmem:[%s1 + $0x588] sm:$0xf]
    %v387 = vld [vmem:[%s1 + $0x58c] sm:$0xf]
    %v388 = vld [vmem:[%s1 + $0x590] sm:$0xf]
    %v389 = vld [vmem:[%s1 + $0x594] sm:$0xf]
    %v390 = vld [vmem:[%s1 + $0x598] sm:$0xf]
    %v391 = vld [vmem:[%s1 + $0x59c] sm:$0xf]
    %v392 = vld [vmem:[%s1 + $0x5a0] sm:$0xf]
    %v393 = vld [vmem:[%s1 + $0x5a4] sm:$0xf]
    %v394 = vld [vmem:[%s1 + $0x5a8] sm:$0xf]
    %v395 = vld [vmem:[%s1 + $0x5ac] sm:$0xf]
    %v396 = vld [vmem:[%s1 + $0x5b0] sm:$0xf]
    %v397 = vld [vmem:[%s1 + $0x5b4] sm:$0xf]
    %v398 = vld [vmem:[%s1 + $0x5b8] sm:$0xf]
    %v399 = vld [vmem:[%s1 + $0x5bc] sm:$0xf]
    %v400 = vld [vmem:[%s1 + $0x5c0] sm:$0xf]
    %v401 = vld [vmem:[%s1 + $0x5c4] sm:$0xf]
    %v402 = vld [vmem:[%s1 + $0x5c8] sm:$0xf]
    %v403 = vld [vmem:[%s1 + $0x5cc] sm:$0xf]
    %v404 = vld [vmem:[%s1 + $0x5d0] sm:$0xf]
    %v405 = vld [vmem:[%s1 + $0x5d4] sm:$0xf]
    %v406 = vld [vmem:[%s1 + $0x5d8] sm:$0xf]
    %v407 = vld [vmem:[%s1 + $0x5dc] sm:$0xf]
    %v408 = vld [vmem:[%s1 + $0x5e0] sm:$0xf]
    %v409 = vld [vmem:[%s1 + $0x5e4] sm:$0xf]
    %v410 = vld [vmem:[%s1 + $0x5e8] sm:$0xf]
    %v411 = vld [vmem:[%s1 + $0x5ec] sm:$0xf]
    %v412 = vld [vmem:[%s1 + $0x5f0] sm:$0xf]
    %v413 = vld [vmem:[%s1 + $0x5f4] sm:$0xf]
    %v414 = vld [vmem:[%s1 + $0x5f8] sm:$0xf]
    %v415 = vld [vmem:[%s1 + $0x5fc] sm:$0xf]
    %v416 = vld [vmem:[%s1 + $0x600] sm:$0xf]
    %v417 = vld [vmem:[%s1 + $0x604] sm:$0xf]
    %v418 = vld [vmem:[%s1 + $0x608] sm:$0xf]
    %v419 = vld [vmem:[%s1 + $0x60c] sm:$0xf]
    %v420 = vld [vmem:[%s1 + $0x610] sm:$0xf]
    %v421 = vld [vmem:[%s1 + $0x614] sm:$0xf]
    %v422 = vld [vmem:[%s1 + $0x618] sm:$0xf]
    %v423 = vld [vmem:[%s1 + $0x61c] sm:$0xf]
    %v424 = vld [vmem:[%s1 + $0x620] sm:$0xf]
    %v425 = vld [vmem:[%s1 + $0x624] sm:$0xf]
    %v426 = vld [vmem:[%s1 + $0x628] sm:$0xf]
    %v427 = vld [vmem:[%s1 + $0x62c] sm:$0xf]
    %v428 = vld [vmem:[%s1 + $0x630] sm:$0xf]
    %v429 = vld [vmem:[%s1 + $0x634] sm:$0xf]
    %v430 = vld [vmem:[%s1 + $0x638] sm:$0xf]
    %v431 = vld [vmem:[%s1 + $0x63c] sm:$0xf]
    %v432 = vld [vmem:[%s2] sm:$0x1]
    %v434 = vperm.slane %v432, 0
    %437 = vst [vmem:[#allocation1] ss:$9 sm:$0xff] %v28
    %v438 = vld [vmem:[#allocation1] sm:$0xff]
    %v439 = vld [vmem:[#allocation1 + $0x9] sm:$0xff]
    %v440 = vld [vmem:[#allocation1 + $0x12] sm:$0xff]
    %v441 = vld [vmem:[#allocation1 + $0x1b] sm:$0xff]
    %v442 = vld [vmem:[#allocation1 + $0x24] sm:$0xff]
    %v443 = vld [vmem:[#allocation1 + $0x2d] sm:$0xff]
    %v444 = vld [vmem:[#allocation1 + $0x36] sm:$0xff]
    %v445 = vld [vmem:[#allocation1 + $0x3f] sm:$0xff]
    %447 = vst [vmem:[#allocation1] ss:$9 sm:$0xff] %v29
    %v448 = vld [vmem:[#allocation1] sm:$0xff]
    %v449 = vld [vmem:[#allocation1 + $0x9] sm:$0xff]
    %v450 = vld [vmem:[#allocation1 + $0x12] sm:$0xff]
    %v451 = vld [vmem:[#allocation1 + $0x1b] sm:$0xff]
    %v452 = vld [vmem:[#allocation1 + $0x24] sm:$0xff]
    %v453 = vld [vmem:[#allocation1 + $0x2d] sm:$0xff]
    %v454 = vld [vmem:[#allocation1 + $0x36] sm:$0xff]
    %v455 = vld [vmem:[#allocation1 + $0x3f] sm:$0xff]
    %457 = vst [vmem:[#allocation1] ss:$9 sm:$0xff] %v30
    %v458 = vld [vmem:[#allocation1] sm:$0xff]
    %v459 = vld [vmem:[#allocation1 + $0x9] sm:$0xff]
    %v460 = vld [vmem:[#allocation1 + $0x12] sm:$0xff]
    %v461 = vld [vmem:[#allocation1 + $0x1b] sm:$0xff]
    %v462 = vld [vmem:[#allocation1 + $0x24] sm:$0xff]
    %v463 = vld [vmem:[#allocation1 + $0x2d] sm:$0xff]
    %v464 = vld [vmem:[#allocation1 + $0x36] sm:$0xff]
    %v465 = vld [vmem:[#allocation1 + $0x3f] sm:$0xff]
    %467 = vst [vmem:[#allocation1] ss:$9 sm:$0xff] %v31
    %v468 = vld [vmem:[#allocation1] sm:$0xff]
    %v894 = vunpack.c.l.b16 %v32
    %v895 = vunpack.c.l.b16 %v33
    %v896 = vunpack.c.l.b16 %v34
    %v897 = vunpack.c.l.b16 %v35
    %v898 = vunpack.c.l.b16 %v36
    %v899 = vunpack.c.l.b16 %v37
    %v900 = vunpack.c.l.b16 %v38
    %v901 = vunpack.c.l.b16 %v39
    %v902 = vunpack.c.l.b16 %v40
    %v903 = vunpack.c.l.b16 %v41
    %v904 = vunpack.c.l.b16 %v42
    %v905 = vunpack.c.l.b16 %v43
    %v906 = vunpack.c.l.b16 %v44
    %v907 = vunpack.c.l.b16 %v45
    %v908 = vunpack.c.l.b16 %v46
    %v909 = vunpack.c.l.b16 %v47
    %v910 = vunpack.c.l.b16 %v48
    %v911 = vunpack.c.l.b16 %v49
    %v912 = vunpack.c.l.b16 %v50
    %v913 = vunpack.c.l.b16 %v51
    %v914 = vunpack.c.l.b16 %v52
    %v915 = vunpack.c.l.b16 %v53
    %v916 = vunpack.c.l.b16 %v54
    %v917 = vunpack.c.l.b16 %v55
    %v918 = vunpack.c.l.b16 %v56
    %v919 = vunpack.c.l.b16 %v57
    %v920 = vunpack.c.l.b16 %v58
    %v921 = vunpack.c.l.b16 %v59
    %v922 = vunpack.c.l.b16 %v60
    %v923 = vunpack.c.l.b16 %v61
    %v924 = vunpack.c.l.b16 %v62
    %v925 = vunpack.c.l.b16 %v63
    %v926 = vunpack.c.l.b16 %v64
    %v927 = vunpack.c.l.b16 %v65
    %v928 = vunpack.c.l.b16 %v66
    %v929 = vunpack.c.l.b16 %v67
    %v930 = vunpack.c.l.b16 %v68
    %v931 = vunpack.c.l.b16 %v69
    %v932 = vunpack.c.l.b16 %v70
    %v933 = vunpack.c.l.b16 %v71
    %v934 = vunpack.c.l.b16 %v72
    %v935 = vunpack.c.l.b16 %v73
    %v936 = vunpack.c.l.b16 %v74
    %v937 = vunpack.c.l.b16 %v75
    %v938 = vunpack.c.l.b16 %v76
    %v939 = vunpack.c.l.b16 %v77
    %v940 = vunpack.c.l.b16 %v78
    %v941 = vunpack.c.l.b16 %v79
    %v942 = vunpack.c.l.b16 %v80
    %v943 = vunpack.c.l.b16 %v81
    %v944 = vunpack.c.l.b16 %v82
    %v945 = vunpack.c.l.b16 %v83
    %v946 = vunpack.c.l.b16 %v84
    %v947 = vunpack.c.l.b16 %v85
    %v948 = vunpack.c.l.b16 %v86
    %v949 = vunpack.c.l.b16 %v87
    %v950 = vunpack.c.l.b16 %v88
    %v951 = vunpack.c.l.b16 %v89
    %v952 = vunpack.c.l.b16 %v90
    %v953 = vunpack.c.l.b16 %v91
    %v954 = vunpack.c.l.b16 %v92
    %v955 = vunpack.c.l.b16 %v93
    %v956 = vunpack.c.l.b16 %v94
    %v957 = vunpack.c.l.b16 %v95
    %v958 = vunpack.c.l.b16 %v96
    %v959 = vunpack.c.l.b16 %v97
    %v960 = vunpack.c.l.b16 %v98
    %v961 = vunpack.c.l.b16 %v99
    %v962 = vunpack.c.l.b16 %v100
    %v963 = vunpack.c.l.b16 %v101
    %v964 = vunpack.c.l.b16 %v102
    %v965 = vunpack.c.l.b16 %v103
    %v966 = vunpack.c.l.b16 %v104
    %v967 = vunpack.c.l.b16 %v105
    %v968 = vunpack.c.l.b16 %v106
    %v969 = vunpack.c.l.b16 %v107
    %v970 = vunpack.c.l.b16 %v108
    %v971 = vunpack.c.l.b16 %v109
    %v972 = vunpack.c.l.b16 %v110
    %v973 = vunpack.c.l.b16 %v111
    %v974 = vunpack.c.l.b16 %v112
    %v975 = vunpack.c.l.b16 %v113
    %v976 = vunpack.c.l.b16 %v114
    %v977 = vunpack.c.l.b16 %v115
    %v978 = vunpack.c.l.b16 %v116
    %v979 = vunpack.c.l.b16 %v117
    %v980 = vunpack.c.l.b16 %v118
    %v981 = vunpack.c.l.b16 %v119
    %v982 = vunpack.c.l.b16 %v120
    %v983 = vunpack.c.l.b16 %v121
    %v984 = vunpack.c.l.b16 %v122
    %v985 = vunpack.c.l.b16 %v123
    %v986 = vunpack.c.l.b16 %v124
    %v987 = vunpack.c.l.b16 %v125
    %v988 = vunpack.c.l.b16 %v126
    %v989 = vunpack.c.l.b16 %v127
    %v990 = vunpack.c.l.b16 %v128
    %v991 = vunpack.c.l.b16 %v129
    %v992 = vunpack.c.l.b16 %v130
    %v993 = vunpack.c.l.b16 %v131
    %v994 = vunpack.c.l.b16 %v132
    %v995 = vunpack.c.l.b16 %v133
    %v996 = vunpack.c.l.b16 %v134
    %v997 = vunpack.c.l.b16 %v135
    %v998 = vunpack.c.l.b16 %v136
    %v999 = vunpack.c.l.b16 %v137
    %v1000 = vunpack.c.l.b16 %v138
    %v1001 = vunpack.c.l.b16 %v139
    %v1002 = vunpack.c.l.b16 %v140
    %v1003 = vunpack.c.l.b16 %v141
    %v1004 = vunpack.c.l.b16 %v142
    %v1005 = vunpack.c.l.b16 %v143
    %v1006 = vunpack.c.l.b16 %v144
    %v1007 = vunpack.c.l.b16 %v145
    %v1008 = vunpack.c.l.b16 %v146
    %v1009 = vunpack.c.l.b16 %v147
    %v1010 = vunpack.c.l.b16 %v148
    %v1011 = vunpack.c.l.b16 %v149
    %v1012 = vunpack.c.l.b16 %v150
    %v1013 = vunpack.c.l.b16 %v151
    %v1014 = vunpack.c.l.b16 %v152
    %v1015 = vunpack.c.l.b16 %v153
    %v1016 = vunpack.c.l.b16 %v154
    %v1017 = vunpack.c.l.b16 %v155
    %v1018 = vunpack.c.l.b16 %v156
    %v1019 = vunpack.c.l.b16 %v157
    %v1020 = vunpack.c.l.b16 %v158
    %v1021 = vunpack.c.l.b16 %v159
    %v1022 = vunpack.c.l.b16 %v160
    %v1023 = vunpack.c.l.b16 %v161
    %v1024 = vunpack.c.l.b16 %v162
    %v1025 = vunpack.c.l.b16 %v163
    %v1026 = vunpack.c.l.b16 %v164
    %v1027 = vunpack.c.l.b16 %v165
    %v1028 = vunpack.c.l.b16 %v166
    %v1029 = vunpack.c.l.b16 %v167
    %v1030 = vunpack.c.l.b16 %v168
    %v1031 = vunpack.c.l.b16 %v169
    %v1032 = vunpack.c.l.b16 %v170
    %v1033 = vunpack.c.l.b16 %v171
    %v1034 = vunpack.c.l.b16 %v172
    %v1035 = vunpack.c.l.b16 %v173
    %v1036 = vunpack.c.l.b16 %v174
    %v1037 = vunpack.c.l.b16 %v175
    %v1038 = vunpack.c.l.b16 %v176
    %v1039 = vunpack.c.l.b16 %v177
    %v1040 = vunpack.c.l.b16 %v178
    %v1041 = vunpack.c.l.b16 %v179
    %v1042 = vunpack.c.l.b16 %v180
    %v1043 = vunpack.c.l.b16 %v181
    %v1044 = vunpack.c.l.b16 %v182
    %v1045 = vunpack.c.l.b16 %v183
    %v1046 = vunpack.c.l.b16 %v184
    %v1047 = vunpack.c.l.b16 %v185
    %v1048 = vunpack.c.l.b16 %v186
    %v1049 = vunpack.c.l.b16 %v187
    %v1050 = vunpack.c.l.b16 %v188
    %v1051 = vunpack.c.l.b16 %v189
    %v1052 = vunpack.c.l.b16 %v190
    %v1053 = vunpack.c.l.b16 %v191
    %v1054 = vunpack.c.l.b16 %v192
    %v1055 = vunpack.c.l.b16 %v193
    %v1056 = vunpack.c.l.b16 %v194
    %v1057 = vunpack.c.l.b16 %v195
    %v1058 = vunpack.c.l.b16 %v196
    %v1059 = vunpack.c.l.b16 %v197
    %v1060 = vunpack.c.l.b16 %v198
    %v1061 = vunpack.c.l.b16 %v199
    %v1062 = vunpack.c.l.b16 %v200
    %v1063 = vunpack.c.l.b16 %v201
    %v1064 = vunpack.c.l.b16 %v202
    %v1065 = vunpack.c.l.b16 %v203
    %v1066 = vunpack.c.l.b16 %v204
    %v1067 = vunpack.c.l.b16 %v205
    %v1068 = vunpack.c.l.b16 %v206
    %v1069 = vunpack.c.l.b16 %v207
    %v1070 = vunpack.c.l.b16 %v208
    %v1071 = vunpack.c.l.b16 %v209
    %v1072 = vunpack.c.l.b16 %v210
    %v1073 = vunpack.c.l.b16 %v211
    %v1074 = vunpack.c.l.b16 %v212
    %v1075 = vunpack.c.l.b16 %v213
    %v1076 = vunpack.c.l.b16 %v214
    %v1077 = vunpack.c.l.b16 %v215
    %v1078 = vunpack.c.l.b16 %v216
    %v1079 = vunpack.c.l.b16 %v217
    %v1080 = vunpack.c.l.b16 %v218
    %v1081 = vunpack.c.l.b16 %v219
    %v1082 = vunpack.c.l.b16 %v220
    %v1083 = vunpack.c.l.b16 %v221
    %v1084 = vunpack.c.l.b16 %v222
    %v1085 = vunpack.c.l.b16 %v223
    %v1086 = vunpack.c.l.b16 %v224
    %v1087 = vunpack.c.l.b16 %v225
    %v1088 = vunpack.c.l.b16 %v226
    %v1089 = vunpack.c.l.b16 %v227
    %v1090 = vunpack.c.l.b16 %v228
    %v1091 = vunpack.c.l.b16 %v229
    %v1092 = vunpack.c.l.b16 %v230
    %v1093 = vunpack.c.l.b16 %v231
    %v1094 = vunpack.c.l.b16 %v232
    %v1095 = vunpack.c.l.b16 %v233
    %v1096 = vunpack.c.l.b16 %v234
    %v1097 = vunpack.c.l.b16 %v235
    %v1098 = vunpack.c.l.b16 %v236
    %v1099 = vunpack.c.l.b16 %v237
    %v1100 = vunpack.c.l.b16 %v238
    %v1101 = vunpack.c.l.b16 %v239
    %v1102 = vunpack.c.l.b16 %v240
    %v1103 = vunpack.c.l.b16 %v241
    %v1104 = vunpack.c.l.b16 %v242
    %v1105 = vunpack.c.l.b16 %v243
    %v1106 = vunpack.c.l.b16 %v244
    %v1107 = vunpack.c.l.b16 %v245
    %v1108 = vunpack.c.l.b16 %v246
    %v1109 = vunpack.c.l.b16 %v247
    %v1110 = vunpack.c.l.b16 %v248
    %v1111 = vunpack.c.l.b16 %v249
    %v1112 = vunpack.c.l.b16 %v250
    %v1113 = vunpack.c.l.b16 %v251
    %v1114 = vunpack.c.l.b16 %v252
    %v1115 = vunpack.c.l.b16 %v253
    %v1116 = vunpack.c.l.b16 %v254
    %v1117 = vunpack.c.l.b16 %v255
    %v1118 = vunpack.c.l.b16 %v256
    %v1119 = vunpack.c.l.b16 %v257
    %v1120 = vunpack.c.l.b16 %v258
    %v1121 = vunpack.c.l.b16 %v259
    %v1122 = vunpack.c.l.b16 %v260
    %v1123 = vunpack.c.l.b16 %v261
    %v1124 = vunpack.c.l.b16 %v262
    %v1125 = vunpack.c.l.b16 %v263
    %v1126 = vunpack.c.l.b16 %v264
    %v1127 = vunpack.c.l.b16 %v265
    %v1128 = vunpack.c.l.b16 %v266
    %v1129 = vunpack.c.l.b16 %v267
    %v1130 = vunpack.c.l.b16 %v268
    %v1131 = vunpack.c.l.b16 %v269
    %v1132 = vunpack.c.l.b16 %v270
    %v1133 = vunpack.c.l.b16 %v271
    %v1134 = vunpack.c.l.b16 %v272
    %v1135 = vunpack.c.l.b16 %v273
    %v1136 = vunpack.c.l.b16 %v274
    %v1137 = vunpack.c.l.b16 %v275
    %v1138 = vunpack.c.l.b16 %v276
    %v1139 = vunpack.c.l.b16 %v277
    %v1140 = vunpack.c.l.b16 %v278
    %v1141 = vunpack.c.l.b16 %v279
    %v1142 = vunpack.c.l.b16 %v280
    %v1143 = vunpack.c.l.b16 %v281
    %v1144 = vunpack.c.l.b16 %v282
    %v1145 = vunpack.c.l.b16 %v283
    %v1146 = vunpack.c.l.b16 %v284
    %v1147 = vunpack.c.l.b16 %v285
    %v1148 = vunpack.c.l.b16 %v286
    %v1149 = vunpack.c.l.b16 %v287
    %v1150 = vunpack.c.l.b16 %v288
    %v1151 = vunpack.c.l.b16 %v289
    %v1152 = vunpack.c.l.b16 %v290
    %v1153 = vunpack.c.l.b16 %v291
    %v1154 = vunpack.c.l.b16 %v292
    %v1155 = vunpack.c.l.b16 %v293
    %v1156 = vunpack.c.l.b16 %v294
    %v1157 = vunpack.c.l.b16 %v295
    %v1158 = vunpack.c.l.b16 %v296
    %v1159 = vunpack.c.l.b16 %v297
    %v1160 = vunpack.c.l.b16 %v298
    %v1161 = vunpack.c.l.b16 %v299
    %v1162 = vunpack.c.l.b16 %v300
    %v1163 = vunpack.c.l.b16 %v301
    %v1164 = vunpack.c.l.b16 %v302
    %v1165 = vunpack.c.l.b16 %v303
    %v1166 = vunpack.c.l.b16 %v304
    %v1167 = vunpack.c.l.b16 %v305
    %v1168 = vunpack.c.l.b16 %v306
    %v1169 = vunpack.c.l.b16 %v307
    %v1170 = vunpack.c.l.b16 %v308
    %v1171 = vunpack.c.l.b16 %v309
    %v1172 = vunpack.c.l.b16 %v310
    %v1173 = vunpack.c.l.b16 %v311
    %v1174 = vunpack.c.l.b16 %v312
    %v1175 = vunpack.c.l.b16 %v313
    %v1176 = vunpack.c.l.b16 %v314
    %v1177 = vunpack.c.l.b16 %v315
    %v1178 = vunpack.c.l.b16 %v316
    %v1179 = vunpack.c.l.b16 %v317
    %v1180 = vunpack.c.l.b16 %v318
    %v1181 = vunpack.c.l.b16 %v319
    %v1182 = vunpack.c.l.b16 %v320
    %v1183 = vunpack.c.l.b16 %v321
    %v1184 = vunpack.c.l.b16 %v322
    %v1185 = vunpack.c.l.b16 %v323
    %v1186 = vunpack.c.l.b16 %v324
    %v1187 = vunpack.c.l.b16 %v325
    %v1188 = vunpack.c.l.b16 %v326
    %v1189 = vunpack.c.l.b16 %v327
    %v1190 = vunpack.c.l.b16 %v328
    %v1191 = vunpack.c.l.b16 %v329
    %v1192 = vunpack.c.l.b16 %v330
    %v1193 = vunpack.c.l.b16 %v331
    %v1194 = vunpack.c.l.b16 %v332
    %v1195 = vunpack.c.l.b16 %v333
    %v1196 = vunpack.c.l.b16 %v334
    %v1197 = vunpack.c.l.b16 %v335
    %v1198 = vunpack.c.l.b16 %v336
    %v1199 = vunpack.c.l.b16 %v337
    %v1200 = vunpack.c.l.b16 %v338
    %v1201 = vunpack.c.l.b16 %v339
    %v1202 = vunpack.c.l.b16 %v340
    %v1203 = vunpack.c.l.b16 %v341
    %v1204 = vunpack.c.l.b16 %v342
    %v1205 = vunpack.c.l.b16 %v343
    %v1206 = vunpack.c.l.b16 %v344
    %v1207 = vunpack.c.l.b16 %v345
    %v1208 = vunpack.c.l.b16 %v346
    %v1209 = vunpack.c.l.b16 %v347
    %v1210 = vunpack.c.l.b16 %v348
    %v1211 = vunpack.c.l.b16 %v349
    %v1212 = vunpack.c.l.b16 %v350
    %v1213 = vunpack.c.l.b16 %v351
    %v1214 = vunpack.c.l.b16 %v352
    %v1215 = vunpack.c.l.b16 %v353
    %v1216 = vunpack.c.l.b16 %v354
    %v1217 = vunpack.c.l.b16 %v355
    %v1218 = vunpack.c.l.b16 %v356
    %v1219 = vunpack.c.l.b16 %v357
    %v1220 = vunpack.c.l.b16 %v358
    %v1221 = vunpack.c.l.b16 %v359
    %v1222 = vunpack.c.l.b16 %v360
    %v1223 = vunpack.c.l.b16 %v361
    %v1224 = vunpack.c.l.b16 %v362
    %v1225 = vunpack.c.l.b16 %v363
    %v1226 = vunpack.c.l.b16 %v364
    %v1227 = vunpack.c.l.b16 %v365
    %v1228 = vunpack.c.l.b16 %v366
    %v1229 = vunpack.c.l.b16 %v367
    %v1230 = vunpack.c.l.b16 %v368
    %v1231 = vunpack.c.l.b16 %v369
    %v1232 = vunpack.c.l.b16 %v370
    %v1233 = vunpack.c.l.b16 %v371
    %v1234 = vunpack.c.l.b16 %v372
    %v1235 = vunpack.c.l.b16 %v373
    %v1236 = vunpack.c.l.b16 %v374
    %v1237 = vunpack.c.l.b16 %v375
    %v1238 = vunpack.c.l.b16 %v376
    %v1239 = vunpack.c.l.b16 %v377
    %v1240 = vunpack.c.l.b16 %v378
    %v1241 = vunpack.c.l.b16 %v379
    %v1242 = vunpack.c.l.b16 %v380
    %v1243 = vunpack.c.l.b16 %v381
    %v1244 = vunpack.c.l.b16 %v382
    %v1245 = vunpack.c.l.b16 %v383
    %v1246 = vunpack.c.l.b16 %v384
    %v1247 = vunpack.c.l.b16 %v385
    %v1248 = vunpack.c.l.b16 %v386
    %v1249 = vunpack.c.l.b16 %v387
    %v1250 = vunpack.c.l.b16 %v388
    %v1251 = vunpack.c.l.b16 %v389
    %v1252 = vunpack.c.l.b16 %v390
    %v1253 = vunpack.c.l.b16 %v391
    %v1254 = vunpack.c.l.b16 %v392
    %v1255 = vunpack.c.l.b16 %v393
    %v1256 = vunpack.c.l.b16 %v394
    %v1257 = vunpack.c.l.b16 %v395
    %v1258 = vunpack.c.l.b16 %v396
    %v1259 = vunpack.c.l.b16 %v397
    %v1260 = vunpack.c.l.b16 %v398
    %v1261 = vunpack.c.l.b16 %v399
    %v1262 = vunpack.c.l.b16 %v400
    %v1263 = vunpack.c.l.b16 %v401
    %v1264 = vunpack.c.l.b16 %v402
    %v1265 = vunpack.c.l.b16 %v403
    %v1266 = vunpack.c.l.b16 %v404
    %v1267 = vunpack.c.l.b16 %v405
    %v1268 = vunpack.c.l.b16 %v406
    %v1269 = vunpack.c.l.b16 %v407
    %v1270 = vunpack.c.l.b16 %v408
    %v1271 = vunpack.c.l.b16 %v409
    %v1272 = vunpack.c.l.b16 %v410
    %v1273 = vunpack.c.l.b16 %v411
    %v1274 = vunpack.c.l.b16 %v412
    %v1275 = vunpack.c.l.b16 %v413
    %v1276 = vunpack.c.l.b16 %v414
    %v1277 = vunpack.c.l.b16 %v415
    %v1278 = vunpack.c.l.b16 %v416
    %v1279 = vunpack.c.l.b16 %v417
    %v1280 = vunpack.c.l.b16 %v418
    %v1281 = vunpack.c.l.b16 %v419
    %v1282 = vunpack.c.l.b16 %v420
    %v1283 = vunpack.c.l.b16 %v421
    %v1284 = vunpack.c.l.b16 %v422
    %v1285 = vunpack.c.l.b16 %v423
    %v1286 = vunpack.c.l.b16 %v424
    %v1287 = vunpack.c.l.b16 %v425
    %v1288 = vunpack.c.l.b16 %v426
    %v1289 = vunpack.c.l.b16 %v427
    %v1290 = vunpack.c.l.b16 %v428
    %v1291 = vunpack.c.l.b16 %v429
    %v1292 = vunpack.c.l.b16 %v430
    %v1293 = vunpack.c.l.b16 %v431
    %v1294 = vpack.c.b16 %v895, %v894
    %v1295 = vpack.c.b16 %v897, %v896
    %v1296 = vpack.c.b16 %v899, %v898
    %v1297 = vpack.c.b16 %v901, %v900
    %v1298 = vpack.c.b16 %v903, %v902
    %v1299 = vpack.c.b16 %v905, %v904
    %v1300 = vpack.c.b16 %v907, %v906
    %v1301 = vpack.c.b16 %v909, %v908
    %v1302 = vpack.c.b16 %v911, %v910
    %v1303 = vpack.c.b16 %v913, %v912
    %v1304 = vpack.c.b16 %v915, %v914
    %v1305 = vpack.c.b16 %v917, %v916
    %v1306 = vpack.c.b16 %v919, %v918
    %v1307 = vpack.c.b16 %v921, %v920
    %v1308 = vpack.c.b16 %v923, %v922
    %v1309 = vpack.c.b16 %v925, %v924
    %v1310 = vpack.c.b16 %v927, %v926
    %v1311 = vpack.c.b16 %v929, %v928
    %v1312 = vpack.c.b16 %v931, %v930
    %v1313 = vpack.c.b16 %v933, %v932
    %v1314 = vpack.c.b16 %v935, %v934
    %v1315 = vpack.c.b16 %v937, %v936
    %v1316 = vpack.c.b16 %v939, %v938
    %v1317 = vpack.c.b16 %v941, %v940
    %v1318 = vpack.c.b16 %v943, %v942
    %v1319 = vpack.c.b16 %v945, %v944
    %v1320 = vpack.c.b16 %v947, %v946
    %v1321 = vpack.c.b16 %v949, %v948
    %v1322 = vpack.c.b16 %v951, %v950
    %v1323 = vpack.c.b16 %v953, %v952
    %v1324 = vpack.c.b16 %v955, %v954
    %v1325 = vpack.c.b16 %v957, %v956
    %v1326 = vpack.c.b16 %v959, %v958
    %v1327 = vpack.c.b16 %v961, %v960
    %v1328 = vpack.c.b16 %v963, %v962
    %v1329 = vpack.c.b16 %v965, %v964
    %v1330 = vpack.c.b16 %v967, %v966
    %v1331 = vpack.c.b16 %v969, %v968
    %v1332 = vpack.c.b16 %v971, %v970
    %v1333 = vpack.c.b16 %v973, %v972
    %v1334 = vpack.c.b16 %v975, %v974
    %v1335 = vpack.c.b16 %v977, %v976
    %v1336 = vpack.c.b16 %v979, %v978
    %v1337 = vpack.c.b16 %v981, %v980
    %v1338 = vpack.c.b16 %v983, %v982
    %v1339 = vpack.c.b16 %v985, %v984
    %v1340 = vpack.c.b16 %v987, %v986
    %v1341 = vpack.c.b16 %v989, %v988
    %v1342 = vpack.c.b16 %v991, %v990
    %v1343 = vpack.c.b16 %v993, %v992
    %v1344 = vpack.c.b16 %v995, %v994
    %v1345 = vpack.c.b16 %v997, %v996
    %v1346 = vpack.c.b16 %v999, %v998
    %v1347 = vpack.c.b16 %v1001, %v1000
    %v1348 = vpack.c.b16 %v1003, %v1002
    %v1349 = vpack.c.b16 %v1005, %v1004
    %v1350 = vpack.c.b16 %v1007, %v1006
    %v1351 = vpack.c.b16 %v1009, %v1008
    %v1352 = vpack.c.b16 %v1011, %v1010
    %v1353 = vpack.c.b16 %v1013, %v1012
    %v1354 = vpack.c.b16 %v1015, %v1014
    %v1355 = vpack.c.b16 %v1017, %v1016
    %v1356 = vpack.c.b16 %v1019, %v1018
    %v1357 = vpack.c.b16 %v1021, %v1020
    %v1358 = vpack.c.b16 %v1023, %v1022
    %v1359 = vpack.c.b16 %v1025, %v1024
    %v1360 = vpack.c.b16 %v1027, %v1026
    %v1361 = vpack.c.b16 %v1029, %v1028
    %v1362 = vpack.c.b16 %v1031, %v1030
    %v1363 = vpack.c.b16 %v1033, %v1032
    %v1364 = vpack.c.b16 %v1035, %v1034
    %v1365 = vpack.c.b16 %v1037, %v1036
    %v1366 = vpack.c.b16 %v1039, %v1038
    %v1367 = vpack.c.b16 %v1041, %v1040
    %v1368 = vpack.c.b16 %v1043, %v1042
    %v1369 = vpack.c.b16 %v1045, %v1044
    %v1370 = vpack.c.b16 %v1047, %v1046
    %v1371 = vpack.c.b16 %v1049, %v1048
    %v1372 = vpack.c.b16 %v1051, %v1050
    %v1373 = vpack.c.b16 %v1053, %v1052
    %v1374 = vpack.c.b16 %v1055, %v1054
    %v1375 = vpack.c.b16 %v1057, %v1056
    %v1376 = vpack.c.b16 %v1059, %v1058
    %v1377 = vpack.c.b16 %v1061, %v1060
    %v1378 = vpack.c.b16 %v1063, %v1062
    %v1379 = vpack.c.b16 %v1065, %v1064
    %v1380 = vpack.c.b16 %v1067, %v1066
    %v1381 = vpack.c.b16 %v1069, %v1068
    %v1382 = vpack.c.b16 %v1071, %v1070
    %v1383 = vpack.c.b16 %v1073, %v1072
    %v1384 = vpack.c.b16 %v1075, %v1074
    %v1385 = vpack.c.b16 %v1077, %v1076
    %v1386 = vpack.c.b16 %v1079, %v1078
    %v1387 = vpack.c.b16 %v1081, %v1080
    %v1388 = vpack.c.b16 %v1083, %v1082
    %v1389 = vpack.c.b16 %v1085, %v1084
    %v1390 = vpack.c.b16 %v1087, %v1086
    %v1391 = vpack.c.b16 %v1089, %v1088
    %v1392 = vpack.c.b16 %v1091, %v1090
    %v1393 = vpack.c.b16 %v1093, %v1092
    %v1394 = vpack.c.b16 %v1095, %v1094
    %v1395 = vpack.c.b16 %v1097, %v1096
    %v1396 = vpack.c.b16 %v1099, %v1098
    %v1397 = vpack.c.b16 %v1101, %v1100
    %v1398 = vpack.c.b16 %v1103, %v1102
    %v1399 = vpack.c.b16 %v1105, %v1104
    %v1400 = vpack.c.b16 %v1107, %v1106
    %v1401 = vpack.c.b16 %v1109, %v1108
    %v1402 = vpack.c.b16 %v1111, %v1110
    %v1403 = vpack.c.b16 %v1113, %v1112
    %v1404 = vpack.c.b16 %v1115, %v1114
    %v1405 = vpack.c.b16 %v1117, %v1116
    %v1406 = vpack.c.b16 %v1119, %v1118
    %v1407 = vpack.c.b16 %v1121, %v1120
    %v1408 = vpack.c.b16 %v1123, %v1122
    %v1409 = vpack.c.b16 %v1125, %v1124
    %v1410 = vpack.c.b16 %v1127, %v1126
    %v1411 = vpack.c.b16 %v1129, %v1128
    %v1412 = vpack.c.b16 %v1131, %v1130
    %v1413 = vpack.c.b16 %v1133, %v1132
    %v1414 = vpack.c.b16 %v1135, %v1134
    %v1415 = vpack.c.b16 %v1137, %v1136
    %v1416 = vpack.c.b16 %v1139, %v1138
    %v1417 = vpack.c.b16 %v1141, %v1140
    %v1418 = vpack.c.b16 %v1143, %v1142
    %v1419 = vpack.c.b16 %v1145, %v1144
    %v1420 = vpack.c.b16 %v1147, %v1146
    %v1421 = vpack.c.b16 %v1149, %v1148
    %v1422 = vpack.c.b16 %v1151, %v1150
    %v1423 = vpack.c.b16 %v1153, %v1152
    %v1424 = vpack.c.b16 %v1155, %v1154
    %v1425 = vpack.c.b16 %v1157, %v1156
    %v1426 = vpack.c.b16 %v1159, %v1158
    %v1427 = vpack.c.b16 %v1161, %v1160
    %v1428 = vpack.c.b16 %v1163, %v1162
    %v1429 = vpack.c.b16 %v1165, %v1164
    %v1430 = vpack.c.b16 %v1167, %v1166
    %v1431 = vpack.c.b16 %v1169, %v1168
    %v1432 = vpack.c.b16 %v1171, %v1170
    %v1433 = vpack.c.b16 %v1173, %v1172
    %v1434 = vpack.c.b16 %v1175, %v1174
    %v1435 = vpack.c.b16 %v1177, %v1176
    %v1436 = vpack.c.b16 %v1179, %v1178
    %v1437 = vpack.c.b16 %v1181, %v1180
    %v1438 = vpack.c.b16 %v1183, %v1182
    %v1439 = vpack.c.b16 %v1185, %v1184
    %v1440 = vpack.c.b16 %v1187, %v1186
    %v1441 = vpack.c.b16 %v1189, %v1188
    %v1442 = vpack.c.b16 %v1191, %v1190
    %v1443 = vpack.c.b16 %v1193, %v1192
    %v1444 = vpack.c.b16 %v1195, %v1194
    %v1445 = vpack.c.b16 %v1197, %v1196
    %v1446 = vpack.c.b16 %v1199, %v1198
    %v1447 = vpack.c.b16 %v1201, %v1200
    %v1448 = vpack.c.b16 %v1203, %v1202
    %v1449 = vpack.c.b16 %v1205, %v1204
    %v1450 = vpack.c.b16 %v1207, %v1206
    %v1451 = vpack.c.b16 %v1209, %v1208
    %v1452 = vpack.c.b16 %v1211, %v1210
    %v1453 = vpack.c.b16 %v1213, %v1212
    %v1454 = vpack.c.b16 %v1215, %v1214
    %v1455 = vpack.c.b16 %v1217, %v1216
    %v1456 = vpack.c.b16 %v1219, %v1218
    %v1457 = vpack.c.b16 %v1221, %v1220
    %v1458 = vpack.c.b16 %v1223, %v1222
    %v1459 = vpack.c.b16 %v1225, %v1224
    %v1460 = vpack.c.b16 %v1227, %v1226
    %v1461 = vpack.c.b16 %v1229, %v1228
    %v1462 = vpack.c.b16 %v1231, %v1230
    %v1463 = vpack.c.b16 %v1233, %v1232
    %v1464 = vpack.c.b16 %v1235, %v1234
    %v1465 = vpack.c.b16 %v1237, %v1236
    %v1466 = vpack.c.b16 %v1239, %v1238
    %v1467 = vpack.c.b16 %v1241, %v1240
    %v1468 = vpack.c.b16 %v1243, %v1242
    %v1469 = vpack.c.b16 %v1245, %v1244
    %v1470 = vpack.c.b16 %v1247, %v1246
    %v1471 = vpack.c.b16 %v1249, %v1248
    %v1472 = vpack.c.b16 %v1251, %v1250
    %v1473 = vpack.c.b16 %v1253, %v1252
    %v1474 = vpack.c.b16 %v1255, %v1254
    %v1475 = vpack.c.b16 %v1257, %v1256
    %v1476 = vpack.c.b16 %v1259, %v1258
    %v1477 = vpack.c.b16 %v1261, %v1260
    %v1478 = vpack.c.b16 %v1263, %v1262
    %v1479 = vpack.c.b16 %v1265, %v1264
    %v1480 = vpack.c.b16 %v1267, %v1266
    %v1481 = vpack.c.b16 %v1269, %v1268
    %v1482 = vpack.c.b16 %v1271, %v1270
    %v1483 = vpack.c.b16 %v1273, %v1272
    %v1484 = vpack.c.b16 %v1275, %v1274
    %v1485 = vpack.c.b16 %v1277, %v1276
    %v1486 = vpack.c.b16 %v1279, %v1278
    %v1487 = vpack.c.b16 %v1281, %v1280
    %v1488 = vpack.c.b16 %v1283, %v1282
    %v1489 = vpack.c.b16 %v1285, %v1284
    %v1490 = vpack.c.b16 %v1287, %v1286
    %v1491 = vpack.c.b16 %v1289, %v1288
    %v1492 = vpack.c.b16 %v1291, %v1290
    %v1493 = vpack.c.b16 %v1293, %v1292
    %1694 = vmatpush.bf16.msra.mxu0 %v1301
    %1695 = vmatpush.bf16.msra.mxu0 %v1300
    %1696 = vmatpush.bf16.msra.mxu0 %v1299
    %1697 = vmatpush.bf16.msra.mxu0 %v1298
    %1698 = vmatpush.bf16.msra.mxu0 %v1297
    %1699 = vmatpush.bf16.msra.mxu0 %v1296
    %1700 = vmatpush.bf16.msra.mxu0 %v1295
    %1701 = vmatpush.bf16.msra.mxu0 %v1294
    %1702 = vmatmul.bf16.gmra.mxu0 %v438
    %v1703 = vpop.f32.mrf.mxu0
    %v1704 = vadd.f32 %v434, %v1703
    %v1705 = vpop.f32.mrf.mxu0
    %1706 = vdwg.mxu0
    %1707 = vmatpush.bf16.msra.mxu0 %v1309
    %1708 = vmatpush.bf16.msra.mxu0 %v1308
    %1709 = vmatpush.bf16.msra.mxu0 %v1307
    %1710 = vmatpush.bf16.msra.mxu0 %v1306
    %1711 = vmatpush.bf16.msra.mxu0 %v1305
    %1712 = vmatpush.bf16.msra.mxu0 %v1304
    %1713 = vmatpush.bf16.msra.mxu0 %v1303
    %1714 = vmatpush.bf16.msra.mxu0 %v1302
    %1715 = vmatmul.bf16.gmra.mxu0 %v439
    %v1716 = vpop.f32.mrf.mxu0
    %v1717 = vadd.f32 %v1704, %v1716
    %v1718 = vpop.f32.mrf.mxu0
    %1719 = vdwg.mxu0
    %1720 = vmatpush.bf16.msra.mxu0 %v1317
    %1721 = vmatpush.bf16.msra.mxu0 %v1316
    %1722 = vmatpush.bf16.msra.mxu0 %v1315
    %1723 = vmatpush.bf16.msra.mxu0 %v1314
    %1724 = vmatpush.bf16.msra.mxu0 %v1313
    %1725 = vmatpush.bf16.msra.mxu0 %v1312
    %1726 = vmatpush.bf16.msra.mxu0 %v1311
    %1727 = vmatpush.bf16.msra.mxu0 %v1310
    %1728 = vmatmul.bf16.gmra.mxu0 %v440
    %v1729 = vpop.f32.mrf.mxu0
    %v1730 = vadd.f32 %v1717, %v1729
    %v1731 = vpop.f32.mrf.mxu0
    %1732 = vdwg.mxu0
    %1733 = vmatpush.bf16.msra.mxu0 %v1325
    %1734 = vmatpush.bf16.msra.mxu0 %v1324
    %1735 = vmatpush.bf16.msra.mxu0 %v1323
    %1736 = vmatpush.bf16.msra.mxu0 %v1322
    %1737 = vmatpush.bf16.msra.mxu0 %v1321
    %1738 = vmatpush.bf16.msra.mxu0 %v1320
    %1739 = vmatpush.bf16.msra.mxu0 %v1319
    %1740 = vmatpush.bf16.msra.mxu0 %v1318
    %1741 = vmatmul.bf16.gmra.mxu0 %v441
    %v1742 = vpop.f32.mrf.mxu0
    %v1743 = vadd.f32 %v1730, %v1742
    %v1744 = vpop.f32.mrf.mxu0
    %1745 = vdwg.mxu0
    %1746 = vmatpush.bf16.msra.mxu0 %v1333
    %1747 = vmatpush.bf16.msra.mxu0 %v1332
    %1748 = vmatpush.bf16.msra.mxu0 %v1331
    %1749 = vmatpush.bf16.msra.mxu0 %v1330
    %1750 = vmatpush.bf16.msra.mxu0 %v1329
    %1751 = vmatpush.bf16.msra.mxu0 %v1328
    %1752 = vmatpush.bf16.msra.mxu0 %v1327
    %1753 = vmatpush.bf16.msra.mxu0 %v1326
    %1754 = vmatmul.bf16.gmra.mxu0 %v442
    %v1755 = vpop.f32.mrf.mxu0
    %v1756 = vadd.f32 %v1743, %v1755
    %v1757 = vpop.f32.mrf.mxu0
    %1758 = vdwg.mxu0
    %1759 = vmatpush.bf16.msra.mxu0 %v1341
    %1760 = vmatpush.bf16.msra.mxu0 %v1340
    %1761 = vmatpush.bf16.msra.mxu0 %v1339
    %1762 = vmatpush.bf16.msra.mxu0 %v1338
    %1763 = vmatpush.bf16.msra.mxu0 %v1337
    %1764 = vmatpush.bf16.msra.mxu0 %v1336
    %1765 = vmatpush.bf16.msra.mxu0 %v1335
    %1766 = vmatpush.bf16.msra.mxu0 %v1334
    %1767 = vmatmul.bf16.gmra.mxu0 %v443
    %v1768 = vpop.f32.mrf.mxu0
    %v1769 = vadd.f32 %v1756, %v1768
    %v1770 = vpop.f32.mrf.mxu0
    %1771 = vdwg.mxu0
    %1772 = vmatpush.bf16.msra.mxu0 %v1349
    %1773 = vmatpush.bf16.msra.mxu0 %v1348
    %1774 = vmatpush.bf16.msra.mxu0 %v1347
    %1775 = vmatpush.bf16.msra.mxu0 %v1346
    %1776 = vmatpush.bf16.msra.mxu0 %v1345
    %1777 = vmatpush.bf16.msra.mxu0 %v1344
    %1778 = vmatpush.bf16.msra.mxu0 %v1343
    %1779 = vmatpush.bf16.msra.mxu0 %v1342
    %1780 = vmatmul.bf16.gmra.mxu0 %v444
    %v1781 = vpop.f32.mrf.mxu0
    %v1782 = vadd.f32 %v1769, %v1781
    %v1783 = vpop.f32.mrf.mxu0
    %1784 = vdwg.mxu0
    %1785 = vmatpush.bf16.msra.mxu0 %v1357
    %1786 = vmatpush.bf16.msra.mxu0 %v1356
    %1787 = vmatpush.bf16.msra.mxu0 %v1355
    %1788 = vmatpush.bf16.msra.mxu0 %v1354
    %1789 = vmatpush.bf16.msra.mxu0 %v1353
    %1790 = vmatpush.bf16.msra.mxu0 %v1352
    %1791 = vmatpush.bf16.msra.mxu0 %v1351
    %1792 = vmatpush.bf16.msra.mxu0 %v1350
    %1793 = vmatmul.bf16.gmra.mxu0 %v445
    %v1794 = vpop.f32.mrf.mxu0
    %v1795 = vadd.f32 %v1782, %v1794
    %v1796 = vpop.f32.mrf.mxu0
    %1797 = vdwg.mxu0
    %1798 = vmatpush.bf16.msra.mxu0 %v1365
    %1799 = vmatpush.bf16.msra.mxu0 %v1364
    %1800 = vmatpush.bf16.msra.mxu0 %v1363
    %1801 = vmatpush.bf16.msra.mxu0 %v1362
    %1802 = vmatpush.bf16.msra.mxu0 %v1361
    %1803 = vmatpush.bf16.msra.mxu0 %v1360
    %1804 = vmatpush.bf16.msra.mxu0 %v1359
    %1805 = vmatpush.bf16.msra.mxu0 %v1358
    %1806 = vmatmul.bf16.gmra.mxu0 %v448
    %v1807 = vpop.f32.mrf.mxu0
    %v1808 = vadd.f32 %v1795, %v1807
    %v1809 = vpop.f32.mrf.mxu0
    %1810 = vdwg.mxu0
    %1811 = vmatpush.bf16.msra.mxu0 %v1373
    %1812 = vmatpush.bf16.msra.mxu0 %v1372
    %1813 = vmatpush.bf16.msra.mxu0 %v1371
    %1814 = vmatpush.bf16.msra.mxu0 %v1370
    %1815 = vmatpush.bf16.msra.mxu0 %v1369
    %1816 = vmatpush.bf16.msra.mxu0 %v1368
    %1817 = vmatpush.bf16.msra.mxu0 %v1367
    %1818 = vmatpush.bf16.msra.mxu0 %v1366
    %1819 = vmatmul.bf16.gmra.mxu0 %v449
    %v1820 = vpop.f32.mrf.mxu0
    %v1821 = vadd.f32 %v1808, %v1820
    %v1822 = vpop.f32.mrf.mxu0
    %1823 = vdwg.mxu0
    %1824 = vmatpush.bf16.msra.mxu0 %v1381
    %1825 = vmatpush.bf16.msra.mxu0 %v1380
    %1826 = vmatpush.bf16.msra.mxu0 %v1379
    %1827 = vmatpush.bf16.msra.mxu0 %v1378
    %1828 = vmatpush.bf16.msra.mxu0 %v1377
    %1829 = vmatpush.bf16.msra.mxu0 %v1376
    %1830 = vmatpush.bf16.msra.mxu0 %v1375
    %1831 = vmatpush.bf16.msra.mxu0 %v1374
    %1832 = vmatmul.bf16.gmra.mxu0 %v450
    %v1833 = vpop.f32.mrf.mxu0
    %v1834 = vadd.f32 %v1821, %v1833
    %v1835 = vpop.f32.mrf.mxu0
    %1836 = vdwg.mxu0
    %1837 = vmatpush.bf16.msra.mxu0 %v1389
    %1838 = vmatpush.bf16.msra.mxu0 %v1388
    %1839 = vmatpush.bf16.msra.mxu0 %v1387
    %1840 = vmatpush.bf16.msra.mxu0 %v1386
    %1841 = vmatpush.bf16.msra.mxu0 %v1385
    %1842 = vmatpush.bf16.msra.mxu0 %v1384
    %1843 = vmatpush.bf16.msra.mxu0 %v1383
    %1844 = vmatpush.bf16.msra.mxu0 %v1382
    %1845 = vmatmul.bf16.gmra.mxu0 %v451
    %v1846 = vpop.f32.mrf.mxu0
    %v1847 = vadd.f32 %v1834, %v1846
    %v1848 = vpop.f32.mrf.mxu0
    %1849 = vdwg.mxu0
    %1850 = vmatpush.bf16.msra.mxu0 %v1397
    %1851 = vmatpush.bf16.msra.mxu0 %v1396
    %1852 = vmatpush.bf16.msra.mxu0 %v1395
    %1853 = vmatpush.bf16.msra.mxu0 %v1394
    %1854 = vmatpush.bf16.msra.mxu0 %v1393
    %1855 = vmatpush.bf16.msra.mxu0 %v1392
    %1856 = vmatpush.bf16.msra.mxu0 %v1391
    %1857 = vmatpush.bf16.msra.mxu0 %v1390
    %1858 = vmatmul.bf16.gmra.mxu0 %v452
    %v1859 = vpop.f32.mrf.mxu0
    %v1860 = vadd.f32 %v1847, %v1859
    %v1861 = vpop.f32.mrf.mxu0
    %1862 = vdwg.mxu0
    %1863 = vmatpush.bf16.msra.mxu0 %v1405
    %1864 = vmatpush.bf16.msra.mxu0 %v1404
    %1865 = vmatpush.bf16.msra.mxu0 %v1403
    %1866 = vmatpush.bf16.msra.mxu0 %v1402
    %1867 = vmatpush.bf16.msra.mxu0 %v1401
    %1868 = vmatpush.bf16.msra.mxu0 %v1400
    %1869 = vmatpush.bf16.msra.mxu0 %v1399
    %1870 = vmatpush.bf16.msra.mxu0 %v1398
    %1871 = vmatmul.bf16.gmra.mxu0 %v453
    %v1872 = vpop.f32.mrf.mxu0
    %v1873 = vadd.f32 %v1860, %v1872
    %v1874 = vpop.f32.mrf.mxu0
    %1875 = vdwg.mxu0
    %1876 = vmatpush.bf16.msra.mxu0 %v1413
    %1877 = vmatpush.bf16.msra.mxu0 %v1412
    %1878 = vmatpush.bf16.msra.mxu0 %v1411
    %1879 = vmatpush.bf16.msra.mxu0 %v1410
    %1880 = vmatpush.bf16.msra.mxu0 %v1409
    %1881 = vmatpush.bf16.msra.mxu0 %v1408
    %1882 = vmatpush.bf16.msra.mxu0 %v1407
    %1883 = vmatpush.bf16.msra.mxu0 %v1406
    %1884 = vmatmul.bf16.gmra.mxu0 %v454
    %v1885 = vpop.f32.mrf.mxu0
    %v1886 = vadd.f32 %v1873, %v1885
    %v1887 = vpop.f32.mrf.mxu0
    %1888 = vdwg.mxu0
    %1889 = vmatpush.bf16.msra.mxu0 %v1421
    %1890 = vmatpush.bf16.msra.mxu0 %v1420
    %1891 = vmatpush.bf16.msra.mxu0 %v1419
    %1892 = vmatpush.bf16.msra.mxu0 %v1418
    %1893 = vmatpush.bf16.msra.mxu0 %v1417
    %1894 = vmatpush.bf16.msra.mxu0 %v1416
    %1895 = vmatpush.bf16.msra.mxu0 %v1415
    %1896 = vmatpush.bf16.msra.mxu0 %v1414
    %1897 = vmatmul.bf16.gmra.mxu0 %v455
    %v1898 = vpop.f32.mrf.mxu0
    %v1899 = vadd.f32 %v1886, %v1898
    %v1900 = vpop.f32.mrf.mxu0
    %1901 = vdwg.mxu0
    %1902 = vmatpush.bf16.msra.mxu0 %v1429
    %1903 = vmatpush.bf16.msra.mxu0 %v1428
    %1904 = vmatpush.bf16.msra.mxu0 %v1427
    %1905 = vmatpush.bf16.msra.mxu0 %v1426
    %1906 = vmatpush.bf16.msra.mxu0 %v1425
    %1907 = vmatpush.bf16.msra.mxu0 %v1424
    %1908 = vmatpush.bf16.msra.mxu0 %v1423
    %1909 = vmatpush.bf16.msra.mxu0 %v1422
    %1910 = vmatmul.bf16.gmra.mxu0 %v458
    %v1911 = vpop.f32.mrf.mxu0
    %v1912 = vadd.f32 %v1899, %v1911
    %v1913 = vpop.f32.mrf.mxu0
    %1914 = vdwg.mxu0
    %1915 = vmatpush.bf16.msra.mxu0 %v1437
    %1916 = vmatpush.bf16.msra.mxu0 %v1436
    %1917 = vmatpush.bf16.msra.mxu0 %v1435
    %1918 = vmatpush.bf16.msra.mxu0 %v1434
    %1919 = vmatpush.bf16.msra.mxu0 %v1433
    %1920 = vmatpush.bf16.msra.mxu0 %v1432
    %1921 = vmatpush.bf16.msra.mxu0 %v1431
    %1922 = vmatpush.bf16.msra.mxu0 %v1430
    %1923 = vmatmul.bf16.gmra.mxu0 %v459
    %v1924 = vpop.f32.mrf.mxu0
    %v1925 = vadd.f32 %v1912, %v1924
    %v1926 = vpop.f32.mrf.mxu0
    %1927 = vdwg.mxu0
    %1928 = vmatpush.bf16.msra.mxu0 %v1445
    %1929 = vmatpush.bf16.msra.mxu0 %v1444
    %1930 = vmatpush.bf16.msra.mxu0 %v1443
    %1931 = vmatpush.bf16.msra.mxu0 %v1442
    %1932 = vmatpush.bf16.msra.mxu0 %v1441
    %1933 = vmatpush.bf16.msra.mxu0 %v1440
    %1934 = vmatpush.bf16.msra.mxu0 %v1439
    %1935 = vmatpush.bf16.msra.mxu0 %v1438
    %1936 = vmatmul.bf16.gmra.mxu0 %v460
    %v1937 = vpop.f32.mrf.mxu0
    %v1938 = vadd.f32 %v1925, %v1937
    %v1939 = vpop.f32.mrf.mxu0
    %1940 = vdwg.mxu0
    %1941 = vmatpush.bf16.msra.mxu0 %v1453
    %1942 = vmatpush.bf16.msra.mxu0 %v1452
    %1943 = vmatpush.bf16.msra.mxu0 %v1451
    %1944 = vmatpush.bf16.msra.mxu0 %v1450
    %1945 = vmatpush.bf16.msra.mxu0 %v1449
    %1946 = vmatpush.bf16.msra.mxu0 %v1448
    %1947 = vmatpush.bf16.msra.mxu0 %v1447
    %1948 = vmatpush.bf16.msra.mxu0 %v1446
    %1949 = vmatmul.bf16.gmra.mxu0 %v461
    %v1950 = vpop.f32.mrf.mxu0
    %v1951 = vadd.f32 %v1938, %v1950
    %v1952 = vpop.f32.mrf.mxu0
    %1953 = vdwg.mxu0
    %1954 = vmatpush.bf16.msra.mxu0 %v1461
    %1955 = vmatpush.bf16.msra.mxu0 %v1460
    %1956 = vmatpush.bf16.msra.mxu0 %v1459
    %1957 = vmatpush.bf16.msra.mxu0 %v1458
    %1958 = vmatpush.bf16.msra.mxu0 %v1457
    %1959 = vmatpush.bf16.msra.mxu0 %v1456
    %1960 = vmatpush.bf16.msra.mxu0 %v1455
    %1961 = vmatpush.bf16.msra.mxu0 %v1454
    %1962 = vmatmul.bf16.gmra.mxu0 %v462
    %v1963 = vpop.f32.mrf.mxu0
    %v1964 = vadd.f32 %v1951, %v1963
    %v1965 = vpop.f32.mrf.mxu0
    %1966 = vdwg.mxu0
    %1967 = vmatpush.bf16.msra.mxu0 %v1469
    %1968 = vmatpush.bf16.msra.mxu0 %v1468
    %1969 = vmatpush.bf16.msra.mxu0 %v1467
    %1970 = vmatpush.bf16.msra.mxu0 %v1466
    %1971 = vmatpush.bf16.msra.mxu0 %v1465
    %1972 = vmatpush.bf16.msra.mxu0 %v1464
    %1973 = vmatpush.bf16.msra.mxu0 %v1463
    %1974 = vmatpush.bf16.msra.mxu0 %v1462
    %1975 = vmatmul.bf16.gmra.mxu0 %v463
    %v1976 = vpop.f32.mrf.mxu0
    %v1977 = vadd.f32 %v1964, %v1976
    %v1978 = vpop.f32.mrf.mxu0
    %1979 = vdwg.mxu0
    %1980 = vmatpush.bf16.msra.mxu0 %v1477
    %1981 = vmatpush.bf16.msra.mxu0 %v1476
    %1982 = vmatpush.bf16.msra.mxu0 %v1475
    %1983 = vmatpush.bf16.msra.mxu0 %v1474
    %1984 = vmatpush.bf16.msra.mxu0 %v1473
    %1985 = vmatpush.bf16.msra.mxu0 %v1472
    %1986 = vmatpush.bf16.msra.mxu0 %v1471
    %1987 = vmatpush.bf16.msra.mxu0 %v1470
    %1988 = vmatmul.bf16.gmra.mxu0 %v464
    %v1989 = vpop.f32.mrf.mxu0
    %v1990 = vadd.f32 %v1977, %v1989
    %v1991 = vpop.f32.mrf.mxu0
    %1992 = vdwg.mxu0
    %1993 = vmatpush.bf16.msra.mxu0 %v1485
    %1994 = vmatpush.bf16.msra.mxu0 %v1484
    %1995 = vmatpush.bf16.msra.mxu0 %v1483
    %1996 = vmatpush.bf16.msra.mxu0 %v1482
    %1997 = vmatpush.bf16.msra.mxu0 %v1481
    %1998 = vmatpush.bf16.msra.mxu0 %v1480
    %1999 = vmatpush.bf16.msra.mxu0 %v1479
    %2000 = vmatpush.bf16.msra.mxu0 %v1478
    %2001 = vmatmul.bf16.gmra.mxu0 %v465
    %v2002 = vpop.f32.mrf.mxu0
    %v2003 = vadd.f32 %v1990, %v2002
    %v2004 = vpop.f32.mrf.mxu0
    %2005 = vdwg.mxu0
    %2006 = vmatpush.bf16.msra.mxu0 %v1493
    %2007 = vmatpush.bf16.msra.mxu0 %v1492
    %2008 = vmatpush.bf16.msra.mxu0 %v1491
    %2009 = vmatpush.bf16.msra.mxu0 %v1490
    %2010 = vmatpush.bf16.msra.mxu0 %v1489
    %2011 = vmatpush.bf16.msra.mxu0 %v1488
    %2012 = vmatpush.bf16.msra.mxu0 %v1487
    %2013 = vmatpush.bf16.msra.mxu0 %v1486
    %2014 = vmatmul.bf16.gmra.mxu0 %v468
    %v2015 = vpop.f32.mrf.mxu0
    %v2016 = vadd.f32 %v2003, %v2015
    %v2017 = vpop.f32.mrf.mxu0
    %2018 = vdwg.mxu0
    %v2019 = vmax.f32 %v2016, 0.0
    %v2020 = vpack.c.bf16 %v2019, %v2019
    %v2021 = vld [vmem:[%s3] sm:$0xf]
    %v2022 = vld [vmem:[%s3 + $0x4] sm:$0xf]
    %v2023 = vld [vmem:[%s3 + $0x8] sm:$0xf]
    %v2024 = vld [vmem:[%s3 + $0xc] sm:$0xf]
    %v2025 = vld [vmem:[%s3 + $0x10] sm:$0xf]
    %v2026 = vld [vmem:[%s3 + $0x14] sm:$0xf]
    %v2027 = vld [vmem:[%s3 + $0x18] sm:$0xf]
    %v2028 = vld [vmem:[%s3 + $0x1c] sm:$0xf]
    %v2029 = vld [vmem:[%s3 + $0x20] sm:$0xf]
    %v2030 = vld [vmem:[%s3 + $0x24] sm:$0xf]
    %v2031 = vld [vmem:[%s3 + $0x28] sm:$0xf]
    %v2032 = vld [vmem:[%s3 + $0x2c] sm:$0xf]
    %v2033 = vld [vmem:[%s3 + $0x30] sm:$0xf]
    %v2034 = vld [vmem:[%s3 + $0x34] sm:$0xf]
    %v2035 = vld [vmem:[%s3 + $0x38] sm:$0xf]
    %v2036 = vld [vmem:[%s4] sm:$0x1]
    %v2038 = vperm.slane %v2036, 0
    %v2055 = vunpack.c.l.b16 %v2021
    %v2056 = vunpack.c.l.b16 %v2022
    %v2057 = vunpack.c.l.b16 %v2023
    %v2058 = vunpack.c.l.b16 %v2024
    %v2059 = vunpack.c.l.b16 %v2025
    %v2060 = vunpack.c.l.b16 %v2026
    %v2061 = vunpack.c.l.b16 %v2027
    %v2062 = vunpack.c.l.b16 %v2028
    %v2063 = vunpack.c.l.b16 %v2029
    %v2064 = vunpack.c.l.b16 %v2030
    %v2065 = vunpack.c.l.b16 %v2031
    %v2066 = vunpack.c.l.b16 %v2032
    %v2067 = vunpack.c.l.b16 %v2033
    %v2068 = vunpack.c.l.b16 %v2034
    %v2069 = vunpack.c.l.b16 %v2035
    %v2070 = vpack.c.b16 %v2056, %v2055
    %v2071 = vpack.c.b16 %v2058, %v2057
    %v2072 = vpack.c.b16 %v2060, %v2059
    %v2073 = vpack.c.b16 %v2062, %v2061
    %v2074 = vpack.c.b16 %v2064, %v2063
    %v2075 = vpack.c.b16 %v2066, %v2065
    %v2076 = vpack.c.b16 %v2068, %v2067
    %v2077 = vpack.c.b16 %v2069, %v2069
    %vm2085 = vcmask 982016
    %v2087 = vsel %vm2085, %v2020, 0
    %vm2089 = vcmask 1043456
    %v2091 = vsel %vm2089, %v2077, 0
    %2093 = vmatpush.bf16.msra.mxu0 %v2091
    %2094 = vmatpush.bf16.msra.mxu0 %v2076
    %2095 = vmatpush.bf16.msra.mxu0 %v2075
    %2096 = vmatpush.bf16.msra.mxu0 %v2074
    %2097 = vmatpush.bf16.msra.mxu0 %v2073
    %2098 = vmatpush.bf16.msra.mxu0 %v2072
    %2099 = vmatpush.bf16.msra.mxu0 %v2071
    %2100 = vmatpush.bf16.msra.mxu0 %v2070
    %2101 = vmatmul.bf16.gmra.mxu0 %v2087
    %v2102 = vpop.f32.mrf.mxu0
    %v2103 = vadd.f32 %v2038, %v2102
    %v2104 = vpop.f32.mrf.mxu0
    %2105 = vdwg.mxu0
    %v2106 = vmax.f32 %v2103, 0.0
    %v2107 = vpack.c.bf16 %v2106, %v2106
    %v2108 = vld [vmem:[%s5] sm:$0xf]
    %v2109 = vld [vmem:[%s5 + $0x4] sm:$0xf]
    %v2110 = vld [vmem:[%s5 + $0x8] sm:$0xf]
    %v2111 = vld [vmem:[%s5 + $0xc] sm:$0xf]
    %v2112 = vld [vmem:[%s5 + $0x10] sm:$0xf]
    %v2113 = vld [vmem:[%s5 + $0x14] sm:$0xf]
    %v2114 = vld [vmem:[%s5 + $0x18] sm:$0xf]
    %v2115 = vld [vmem:[%s5 + $0x1c] sm:$0xf]
    %v2116 = vld [vmem:[%s5 + $0x20] sm:$0xf]
    %v2117 = vld [vmem:[%s5 + $0x24] sm:$0xf]
    %v2118 = vld [vmem:[%s5 + $0x28] sm:$0x3]
    %v2119 = vld [vmem:[%s6] sm:$0x1]
    %v2121 = vperm.slane %v2119, 0
    %v2134 = vunpack.c.l.b16 %v2108
    %v2135 = vunpack.c.l.b16 %v2109
    %v2136 = vunpack.c.l.b16 %v2110
    %v2137 = vunpack.c.l.b16 %v2111
    %v2138 = vunpack.c.l.b16 %v2112
    %v2139 = vunpack.c.l.b16 %v2113
    %v2140 = vunpack.c.l.b16 %v2114
    %v2141 = vunpack.c.l.b16 %v2115
    %v2142 = vunpack.c.l.b16 %v2116
    %v2143 = vunpack.c.l.b16 %v2117
    %v2144 = vunpack.c.l.b16 %v2118
    %v2145 = vpack.c.b16 %v2135, %v2134
    %v2146 = vpack.c.b16 %v2137, %v2136
    %v2147 = vpack.c.b16 %v2139, %v2138
    %v2148 = vpack.c.b16 %v2141, %v2140
    %v2149 = vpack.c.b16 %v2143, %v2142
    %v2150 = vpack.c.b16 %v2144, %v2144
    %vm2156 = vcmask 687104
    %v2158 = vsel %vm2156, %v2107, 0
    %vm2160 = vcmask 1041408
    %v2162 = vsel %vm2160, %v2150, 0
    %2164 = vmatpush.bf16.msra.mxu0 0
    %2165 = vmatpush.bf16.msra.mxu0 0
    %2166 = vmatpush.bf16.msra.mxu0 %v2162
    %2167 = vmatpush.bf16.msra.mxu0 %v2149
    %2168 = vmatpush.bf16.msra.mxu0 %v2148
    %2169 = vmatpush.bf16.msra.mxu0 %v2147
    %2170 = vmatpush.bf16.msra.mxu0 %v2146
    %2171 = vmatpush.bf16.msra.mxu0 %v2145
    %2172 = vmatmul.bf16.gmra.mxu0 %v2158
    %v2173 = vpop.f32.mrf.mxu0
    %v2174 = vadd.f32 %v2121, %v2173
    %v2175 = vpop.f32.mrf.mxu0
    %2176 = vdwg.mxu0
    %vm2177 = vcmask 74752
    %2178 = vst.msk [vmem:[#allocation2] sm:$0x3] %vm2177, %v2174
    // Predicated region
    $region30: #{convnet_forward.9} parent=1 // pred_check
      _
    $region31: #{convnet_forward.9} parent=1 // pred_check_branch
      %2180 = sbr.rel (0) target = $region33
    $region32: #{convnet_forward.9} parent=1 // pred_region
      %2182 = vsyncadd [#allocation3], 0
      %s2184 = sshll.u32 [#allocation2], 4
      %s2185 = int_to_ptr.vmem [resolvable:$true] %s2184
      %s2186 = sshll.u32 %s7, 4
      %s2187 = int_to_ptr.hbm [resolvable:$true] %s2186
      %2189 = dma.vmem_to_hbm [thread:$0]  %s2185, 32, %s2187, [#allocation3]
    $region33: #{convnet_forward.9} parent=1 // pred_fallthru
      _
    // Predicated region
    $region34: #{convnet_forward.9} parent=1 // pred_check
      _
    $region35: #{convnet_forward.9} parent=1 // pred_check_branch
      %2191 = sbr.rel (0) target = $region37
    $region36: #{convnet_forward.9} parent=1 // pred_region
      %2193 = dma.done [#allocation3], 32
    $region37: #{convnet_forward.9} parent=1 // pred_fallthru
      _
    %2194 = vsyncpa [#allocation3], 1

</llo_original>
